<compile_context>
chip_gen: v6e
topology: v6e:2x2x1
jax: 0.10.0
libtpu: 0.0.40
codegen_flags: <defaults>
</compile_context>

<pallas_src>
import functools
import math

import jax
import jax.numpy as jnp
from jax import lax
from jax.experimental import pallas as pl
from jax.experimental.pallas import tpu as pltpu


# ----------------------------------------------------------------------------
# Fused transformer decoder layer kernel (one pallas_call per layer)
# ----------------------------------------------------------------------------
def _tdec_layer_kernel(x_ref, mem_ref,
                       wqkv_ref, bqkv_ref, wos_ref, bos_ref,
                       wqc_ref, bqc_ref, wkvc_ref, bkvc_ref, woc_ref, boc_ref,
                       w1_ref, b1_ref, w2_ref, b2_ref,
                       g1_ref, be1_ref, g2_ref, be2_ref, g3_ref, be3_ref,
                       o_ref, *, n_heads, eps):
    D = x_ref.shape[-1]
    Dh = D // n_heads
    x = x_ref[0]            # (S, D)  f32
    mem = mem_ref[0]        # (Sm, D) f32

    def mm(a, b):           # bf16 MXU inputs, f32 accumulation
        return jnp.dot(a.astype(jnp.bfloat16), b.astype(jnp.bfloat16),
                       preferred_element_type=jnp.float32)

    def mm_nt(a, b):        # a @ b.T without materializing the transpose
        return lax.dot_general(a.astype(jnp.bfloat16), b.astype(jnp.bfloat16),
                               (((1,), (1,)), ((), ())),
                               preferred_element_type=jnp.float32)

    def layernorm(h, g, b):  # f32 statistics
        mu = jnp.mean(h, axis=-1, keepdims=True)
        var = jnp.mean(jnp.square(h - mu), axis=-1, keepdims=True)
        return (h - mu) * lax.rsqrt(var + eps) * g + b

    def attend(q, k, v):
        # heads packed along D; 1/sqrt(Dh) already folded into the Q projection
        outs = []
        for hh in range(n_heads):
            sl = slice(hh * Dh, (hh + 1) * Dh)
            s = mm_nt(q[:, sl], k[:, sl])                  # (Sq, Sk) f32
            s = s - jnp.max(s, axis=-1, keepdims=True)
            p = jnp.exp(s)
            p = p * pl.reciprocal(jnp.sum(p, axis=-1, keepdims=True), approx=True)
            outs.append(mm(p, v[:, sl]))                   # (Sq, Dh)
        return jnp.concatenate(outs, axis=-1)              # (Sq, D)

    # --- self attention + post-LN ---------------------------------------
    qkv = mm(x, wqkv_ref[...]) + bqkv_ref[...]             # (S, 3D)
    sa = mm(attend(qkv[:, :D], qkv[:, D:2 * D], qkv[:, 2 * D:]),
            wos_ref[...]) + bos_ref[...]
    x = layernorm(x + sa, g1_ref[...], be1_ref[...])

    # --- cross attention + post-LN --------------------------------------
    qc = mm(x, wqc_ref[...]) + bqc_ref[...]                # (S, D)
    kv = mm(mem, wkvc_ref[...]) + bkvc_ref[...]            # (Sm, 2D)
    ca = mm(attend(qc, kv[:, :D], kv[:, D:]), woc_ref[...]) + boc_ref[...]
    x = layernorm(x + ca, g2_ref[...], be2_ref[...])

    # --- FFN + post-LN (hidden stays in VMEM) ----------------------------
    hdn = jnp.maximum(mm(x, w1_ref[...]) + b1_ref[...], 0.0)
    ff = mm(hdn, w2_ref[...]) + b2_ref[...]
    x = layernorm(x + ff, g3_ref[...], be3_ref[...])

    o_ref[0] = x


def transformer_decoder_layer(x, mem, p, n_heads):
    B, S, D = x.shape
    Sm = mem.shape[1]
    F = p["w1"].shape[1]
    kernel = functools.partial(_tdec_layer_kernel, n_heads=n_heads, eps=1e-5)

    def full(*s):
        return pl.BlockSpec(s, lambda b, _s=s: (0,) * len(_s))

    return pl.pallas_call(
        kernel,
        out_shape=jax.ShapeDtypeStruct((B, S, D), jnp.float32),
        grid=(B,),
        in_specs=[
            pl.BlockSpec((1, S, D), lambda b: (b, 0, 0)),
            pl.BlockSpec((1, Sm, D), lambda b: (b, 0, 0)),
            full(D, 3 * D), full(1, 3 * D),
            full(D, D), full(1, D),
            full(D, D), full(1, D),
            full(D, 2 * D), full(1, 2 * D),
            full(D, D), full(1, D),
            full(D, F), full(1, F),
            full(F, D), full(1, D),
            full(1, D), full(1, D), full(1, D), full(1, D), full(1, D), full(1, D),
        ],
        out_specs=pl.BlockSpec((1, S, D), lambda b: (b, 0, 0)),
        compiler_params=pltpu.CompilerParams(dimension_semantics=("parallel",)),
    )(x, mem,
      p["wqkv"], p["bqkv"], p["wos"], p["bos"],
      p["wqc"], p["bqc"], p["wkvc"], p["bkvc"], p["woc"], p["boc"],
      p["w1"], p["b1"], p["w2"], p["b2"],
      p["ln1_g"], p["ln1_b"], p["ln2_g"], p["ln2_b"], p["ln3_g"], p["ln3_b"])


# ----------------------------------------------------------------------------
# Fused ResNet BasicBlock kernel (channels-first, spatial in lanes)
# ----------------------------------------------------------------------------
def _basic_block_kernel(x_ref, w1_ref, s1_ref, sh1_ref, w2_ref, s2_ref, sh2_ref,
                        wds_ref, bds_ref, o_ref, hp_ref, *, H, W):
    Cin = x_ref.shape[1]
    Cout = o_ref.shape[1]
    x = x_ref[0]                                          # (Cin, H+2, W+2)

    def mm(a, b):
        return jnp.dot(a.astype(jnp.bfloat16), b.astype(jnp.bfloat16),
                       preferred_element_type=jnp.float32)

    # conv1 (3x3, pad 1) + folded BN + ReLU, output (Cout, H*W) lane-dense
    acc = jnp.zeros((Cout, H * W), jnp.float32)
    for ky in range(3):
        for kx in range(3):
            patch = x[:, ky:ky + H, kx:kx + W].reshape(Cin, H * W)
            acc = acc + mm(w1_ref[ky * 3 + kx], patch)
    h = jnp.maximum(acc * s1_ref[...] + sh1_ref[...], 0.0)

    # zero-padded intermediate lives in a VMEM scratch (no HBM round trip)
    hp_ref[...] = jnp.zeros(hp_ref.shape, jnp.float32)
    hp_ref[:, 1:H + 1, 1:W + 1] = h.reshape(Cout, H, W)
    hp = hp_ref[...]                                      # (Cout, H+2, W+2)

    # conv2 (3x3, pad 1) + folded BN
    acc2 = jnp.zeros((Cout, H * W), jnp.float32)
    for ky in range(3):
        for kx in range(3):
            patch = hp[:, ky:ky + H, kx:kx + W].reshape(Cout, H * W)
            acc2 = acc2 + mm(w2_ref[ky * 3 + kx], patch)
    y = acc2 * s2_ref[...] + sh2_ref[...]

    # 1x1-conv + BN shortcut on the block input, residual add, ReLU
    x_int = x[:, 1:H + 1, 1:W + 1].reshape(Cin, H * W)
    y = y + mm(wds_ref[...], x_int) + bds_ref[...]
    o_ref[0] = jnp.maximum(y, 0.0).reshape(Cout, H, W)


def basic_block(x_nchw, p):
    """BasicBlock(2*in_ch, out_ch, stride=1, pad=1, bias=False), NCHW in/out."""
    B, Cin, H, W = x_nchw.shape
    Cout = p["w1"].shape[1]
    xp = jnp.pad(x_nchw, ((0, 0), (0, 0), (1, 1), (1, 1)))
    kernel = functools.partial(_basic_block_kernel, H=H, W=W)

    def full(*s):
        return pl.BlockSpec(s, lambda b, _s=s: (0,) * len(_s))

    return pl.pallas_call(
        kernel,
        out_shape=jax.ShapeDtypeStruct((B, Cout, H, W), jnp.float32),
        grid=(B,),
        in_specs=[
            pl.BlockSpec((1, Cin, H + 2, W + 2), lambda b: (b, 0, 0, 0)),
            full(9, Cout, Cin), full(Cout, 1), full(Cout, 1),
            full(9, Cout, Cout), full(Cout, 1), full(Cout, 1),
            full(Cout, Cin), full(Cout, 1),
        ],
        out_specs=pl.BlockSpec((1, Cout, H, W), lambda b: (b, 0, 0, 0)),
        scratch_shapes=[pltpu.VMEM((Cout, H + 2, W + 2), jnp.float32)],
        compiler_params=pltpu.CompilerParams(dimension_semantics=("parallel",)),
    )(xp, p["w1"], p["s1"], p["sh1"], p["w2"], p["s2"], p["sh2"],
      p["wds"], p["bds"])


# ----------------------------------------------------------------------------
# Upsample (ConvTranspose2d C->C, kernel=2, stride=2) kernel
# ----------------------------------------------------------------------------
def _upsample_kernel(x_ref, w_ref, b_ref, o_ref):
    x = x_ref[0]                                           # (C, H*W)
    y = jnp.dot(w_ref[...].astype(jnp.bfloat16), x.astype(jnp.bfloat16),
                preferred_element_type=jnp.float32) + b_ref[...]
    o_ref[0] = y                                           # (4C, H*W) lane-dense


def upsample(x_nchw, p):
    B, C, H, W = x_nchw.shape
    x_flat = x_nchw.reshape(B, C, H * W)
    y = pl.pallas_call(
        _upsample_kernel,
        out_shape=jax.ShapeDtypeStruct((B, 4 * C, H * W), jnp.float32),
        grid=(B,),
        in_specs=[pl.BlockSpec((1, C, H * W), lambda b: (b, 0, 0)),
                  pl.BlockSpec((4 * C, C), lambda b: (0, 0)),
                  pl.BlockSpec((4 * C, 1), lambda b: (0, 0))],
        out_specs=pl.BlockSpec((1, 4 * C, H * W), lambda b: (b, 0, 0)),
        compiler_params=pltpu.CompilerParams(dimension_semantics=("parallel",)),
    )(x_flat, p["w"], p["b"])
    # rows indexed co*4 + ky*2 + kx -> pixel-shuffle to NCHW (2H, 2W)
    # TODO(synk): pixel shuffle stays as an XLA transpose in the wrapper.
    y = y.reshape(B, C, 2, 2, H, W)
    y = jnp.transpose(y, (0, 1, 4, 2, 5, 3)).reshape(B, C, 2 * H, 2 * W)
    return y


# ----------------------------------------------------------------------------
# Module forward
# ----------------------------------------------------------------------------
def trans_decoder_block(x, context, p):
    x = upsample(x, p["up"])
    b, c, h, w = x.shape
    pp = p["p"]
    r_context, t_context = context
    tokens = jnp.transpose(x.reshape(b, c * pp, (h * w) // pp), (0, 2, 1))
    for lp in p["transformer"]:
        tokens = transformer_decoder_layer(tokens, t_context, lp, p["n_heads"])
    x = jnp.transpose(tokens, (0, 2, 1)).reshape(b, c, h, w)
    x = basic_block(jnp.concatenate([x, r_context], axis=1), p["resnet"])
    return x


def trans_decoder(x, skips, layer_params):
    skips = list(skips)
    for p in layer_params:
        x = trans_decoder_block(x, skips.pop(), p)
    return x


# ----------------------------------------------------------------------------
# Deterministic parameter initialization
# ----------------------------------------------------------------------------
def _key_iter(key):
    while True:
        key, sub = jax.random.split(key)
        yield sub


def init_block_params(key, in_ch, out_ch, patch_dim, n_heads, dim_ff, t_layers):
    nk = _key_iter(key)

    def rnd(shape, scale=0.1):
        return jax.random.normal(next(nk), shape, jnp.float32) * scale

    p2 = patch_dim * patch_dim
    d = p2 * in_ch
    dh = d // n_heads
    att_scale = 1.0 / math.sqrt(dh)

    # Upsample: ConvTranspose2d weight (Cin, Cout, 2, 2) -> (Cout*4, Cin) rows co*4+ky*2+kx
    wt = rnd((in_ch, in_ch, 2, 2))
    bt = rnd((in_ch,))
    up = {"w": jnp.transpose(wt, (1, 2, 3, 0)).reshape(in_ch * 4, in_ch),
          "b": jnp.repeat(bt, 4).reshape(in_ch * 4, 1)}

    def mha_self():
        wq, wk, wv = rnd((d, d)), rnd((d, d)), rnd((d, d))
        bq, bk, bv = rnd((1, d)), rnd((1, d)), rnd((1, d))
        return {"wqkv": jnp.concatenate([wq * att_scale, wk, wv], axis=1),
                "bqkv": jnp.concatenate([bq * att_scale, bk, bv], axis=1),
                "wos": rnd((d, d)), "bos": rnd((1, d))}

    def mha_cross():
        wq, wk, wv = rnd((d, d)), rnd((d, d)), rnd((d, d))
        bq, bk, bv = rnd((1, d)), rnd((1, d)), rnd((1, d))
        return {"wqc": wq * att_scale, "bqc": bq * att_scale,
                "wkvc": jnp.concatenate([wk, wv], axis=1),
                "bkvc": jnp.concatenate([bk, bv], axis=1),
                "woc": rnd((d, d)), "boc": rnd((1, d))}

    tlayers = []
    for _ in range(t_layers):
        lp = {}
        lp.update(mha_self())
        lp.update(mha_cross())
        lp.update({
            "w1": rnd((d, dim_ff)), "b1": rnd((1, dim_ff)),
            "w2": rnd((dim_ff, d)), "b2": rnd((1, d)),
            "ln1_g": jnp.ones((1, d)), "ln1_b": jnp.zeros((1, d)),
            "ln2_g": jnp.ones((1, d)), "ln2_b": jnp.zeros((1, d)),
            "ln3_g": jnp.ones((1, d)), "ln3_b": jnp.zeros((1, d)),
        })
        tlayers.append(lp)

    def bn_fold(c, eps=1e-5):      # inference-mode BatchNorm folded to scale/shift
        gamma = 1.0 + rnd((c,))
        beta = rnd((c,))
        mean = rnd((c,))
        var = 1.0 + jnp.abs(rnd((c,)))
        scale = gamma * lax.rsqrt(var + eps)
        shift = beta - mean * scale
        return scale.reshape(c, 1), shift.reshape(c, 1)

    cin_r = 2 * in_ch
    s1, sh1 = bn_fold(out_ch)
    s2, sh2 = bn_fold(out_ch)
    sds, shds = bn_fold(out_ch)
    resnet = {
        "w1": rnd((9, out_ch, cin_r)),        # tap-major conv weight, (Cout, Cin) per tap
        "s1": s1, "sh1": sh1,
        "w2": rnd((9, out_ch, out_ch)),
        "s2": s2, "sh2": sh2,
        "wds": rnd((out_ch, cin_r)) * sds,    # 1x1 shortcut conv with BN scale folded in
        "bds": shds,
    }
    return {"p": p2, "n_heads": n_heads, "up": up,
            "transformer": tlayers, "resnet": resnet}


# ----------------------------------------------------------------------------
# Main
# ----------------------------------------------------------------------------
if __name__ == "__main__":
    key = jax.random.PRNGKey(0)
    kp, kx, kr, kt = jax.random.split(key, 4)

    # TransDecoder(in_channels=[4], out_channels=[4], patch_dim=2, n_heads=2,
    #              dim_ff=32, t_layers=1, num_layers=1)
    B = 2
    in_channels, out_channels = [4], [4]
    patch_dim, n_heads, dim_ff, t_layers, num_layers = 2, 2, 32, 1, 1
    h0 = w0 = 8                                 # spatial before the 2x upsample

    layer_params = [
        init_block_params(jax.random.fold_in(kp, i), in_channels[i],
                          out_channels[i], patch_dim * 2 ** i, n_heads,
                          dim_ff, t_layers)
        for i in range(num_layers)
    ]

    x = jax.random.normal(kx, (B, in_channels[0], h0, w0), jnp.float32)
    H, W = 2 * h0, 2 * w0
    p2 = patch_dim * patch_dim
    d_model = p2 * in_channels[0]
    r_context = jax.random.normal(kr, (B, in_channels[0], H, W), jnp.float32)
    t_context = jax.random.normal(kt, (B, (H * W) // p2, d_model), jnp.float32)
    skips = [(r_context, t_context)]

    fwd = jax.jit(lambda xx, sk: trans_decoder(xx, list(sk), layer_params))
    out = jax.block_until_ready(fwd(x, tuple(skips)))
    assert out.shape == (B, out_channels[-1], H, W)
    print("KERNEL_OK")
</pallas_src>

<mosaic_0001>
module attributes {stable_mosaic.version = 11 : i64} {
  func.func @_upsample_kernel(%arg0: i32, %arg1: memref<1x4x64xf32, #tpu.memory_space<vmem>>, %arg2: memref<16x4xf32, #tpu.memory_space<vmem>>, %arg3: memref<16x1xf32, #tpu.memory_space<vmem>>, %arg4: memref<1x16x64xf32, #tpu.memory_space<vmem>>) attributes {dimension_semantics = [#tpu.dimension_semantics<parallel>], iteration_bounds = array<i64: 2>, scalar_prefetch = 0 : i64, scratch_operands = 0 : i64, tpu.core_type = #tpu.core_type<tc>, window_params = [{transform_indices = @transform_0, window_bounds = array<i64: 1, 4, 64>}, {pipeline_mode = #tpu.pipeline_mode<synchronous>, transform_indices = @transform_1, window_bounds = array<i64: 16, 4>}, {pipeline_mode = #tpu.pipeline_mode<synchronous>, transform_indices = @transform_2, window_bounds = array<i64: 16, 1>}, {transform_indices = @transform_3, window_bounds = array<i64: 1, 16, 64>}]} {
    %c0 = arith.constant 0 : index
    %c0_0 = arith.constant 0 : index
    %c0_1 = arith.constant 0 : index
    %0 = vector.load %arg1[%c0, %c0_0, %c0_1] : memref<1x4x64xf32, #tpu.memory_space<vmem>>, vector<1x4x64xf32>
    %1 = vector.shape_cast %0 : vector<1x4x64xf32> to vector<4x64xf32>
    %c0_2 = arith.constant 0 : index
    %c0_3 = arith.constant 0 : index
    %2 = vector.load %arg2[%c0_2, %c0_3] : memref<16x4xf32, #tpu.memory_space<vmem>>, vector<16x4xf32>
    %3 = arith.truncf %2 : vector<16x4xf32> to vector<16x4xbf16>
    %4 = arith.truncf %1 : vector<4x64xf32> to vector<4x64xbf16>
    %cst = arith.constant dense<0.000000e+00> : vector<16x64xf32>
    %5 = tpu.matmul %3, %4, %cst {dimension_numbers = #tpu.dot_dimension_numbers<[1], [0], [0], [1], [0, 0, 1, 1], [], []>} : vector<16x4xbf16>, vector<4x64xbf16>, vector<16x64xf32> -> vector<16x64xf32>
    %c0_4 = arith.constant 0 : index
    %c0_5 = arith.constant 0 : index
    %6 = vector.load %arg3[%c0_4, %c0_5] : memref<16x1xf32, #tpu.memory_space<vmem>>, vector<16x1xf32>
    %7 = vector.broadcast %6 : vector<16x1xf32> to vector<16x64xf32>
    %8 = arith.addf %5, %7 : vector<16x64xf32>
    %c0_6 = arith.constant 0 : index
    %c0_7 = arith.constant 0 : index
    %c0_8 = arith.constant 0 : index
    %9 = vector.load %arg4[%c0_6, %c0_7, %c0_8] : memref<1x16x64xf32, #tpu.memory_space<vmem>>, vector<1x16x64xf32>
    %10 = vector.shape_cast %9 : vector<1x16x64xf32> to vector<16x64xf32>
    %11 = vector.shape_cast %8 : vector<16x64xf32> to vector<1x16x64xf32>
    tpu.vector_store %arg4[%c0_6, %c0_7, %c0_8], %11 {strides = array<i32>} : memref<1x16x64xf32, #tpu.memory_space<vmem>>, vector<1x16x64xf32>,
    return
  }
  func.func @transform_0(%arg0: i32) -> (i32, i32, i32) {
    %c0_i32 = arith.constant 0 : i32
    %c0_i32_0 = arith.constant 0 : i32
    %c0_i32_1 = arith.constant 0 : i32
    return %arg0, %c0_i32, %c0_i32_0 : i32, i32, i32
  }
  func.func @transform_1(%arg0: i32) -> (i32, i32) {
    %c0_i32 = arith.constant 0 : i32
    %c0_i32_0 = arith.constant 0 : i32
    %c0_i32_1 = arith.constant 0 : i32
    return %c0_i32, %c0_i32_0 : i32, i32
  }
  func.func @transform_2(%arg0: i32) -> (i32, i32) {
    %c0_i32 = arith.constant 0 : i32
    %c0_i32_0 = arith.constant 0 : i32
    %c0_i32_1 = arith.constant 0 : i32
    return %c0_i32, %c0_i32_0 : i32, i32
  }
  func.func @transform_3(%arg0: i32) -> (i32, i32, i32) {
    %c0_i32 = arith.constant 0 : i32
    %c0_i32_0 = arith.constant 0 : i32
    %c0_i32_1 = arith.constant 0 : i32
    return %arg0, %c0_i32, %c0_i32_0 : i32, i32, i32
  }
}

module attributes {stable_mosaic.version = 11 : i64} {
  func.func @_tdec_layer_kernel(%arg0: i32, %arg1: memref<1x64x16xf32, #tpu.memory_space<vmem>>, %arg2: memref<1x64x16xf32, #tpu.memory_space<vmem>>, %arg3: memref<16x48xf32, #tpu.memory_space<vmem>>, %arg4: memref<1x48xf32, #tpu.memory_space<vmem>>, %arg5: memref<16x16xf32, #tpu.memory_space<vmem>>, %arg6: memref<1x16xf32, #tpu.memory_space<vmem>>, %arg7: memref<16x16xf32, #tpu.memory_space<vmem>>, %arg8: memref<1x16xf32, #tpu.memory_space<vmem>>, %arg9: memref<16x32xf32, #tpu.memory_space<vmem>>, %arg10: memref<1x32xf32, #tpu.memory_space<vmem>>, %arg11: memref<16x16xf32, #tpu.memory_space<vmem>>, %arg12: memref<1x16xf32, #tpu.memory_space<vmem>>, %arg13: memref<16x32xf32, #tpu.memory_space<vmem>>, %arg14: memref<1x32xf32, #tpu.memory_space<vmem>>, %arg15: memref<32x16xf32, #tpu.memory_space<vmem>>, %arg16: memref<1x16xf32, #tpu.memory_space<vmem>>, %arg17: memref<1x16xf32, #tpu.memory_space<vmem>>, %arg18: memref<1x16xf32, #tpu.memory_space<vmem>>, %arg19: memref<1x16xf32, #tpu.memory_space<vmem>>, %arg20: memref<1x16xf32, #tpu.memory_space<vmem>>, %arg21: memref<1x16xf32, #tpu.memory_space<vmem>>, %arg22: memref<1x16xf32, #tpu.memory_space<vmem>>, %arg23: memref<1x64x16xf32, #tpu.memory_space<vmem>>) attributes {dimension_semantics = [#tpu.dimension_semantics<parallel>], iteration_bounds = array<i64: 2>, scalar_prefetch = 0 : i64, scratch_operands = 0 : i64, tpu.core_type = #tpu.core_type<tc>, window_params = [{transform_indices = @transform_0, window_bounds = array<i64: 1, 64, 16>}, {transform_indices = @transform_1, window_bounds = array<i64: 1, 64, 16>}, {pipeline_mode = #tpu.pipeline_mode<synchronous>, transform_indices = @transform_2, window_bounds = array<i64: 16, 48>}, {pipeline_mode = #tpu.pipeline_mode<synchronous>, transform_indices = @transform_3, window_bounds = array<i64: 1, 48>}, {pipeline_mode = #tpu.pipeline_mode<synchronous>, transform_indices = @transform_4, window_bounds = array<i64: 16, 16>}, {pipeline_mode = #tpu.pipeline_mode<synchronous>, transform_indices = @transform_5, window_bounds = array<i64: 1, 16>}, {pipeline_mode = #tpu.pipeline_mode<synchronous>, transform_indices = @transform_6, window_bounds = array<i64: 16, 16>}, {pipeline_mode = #tpu.pipeline_mode<synchronous>, transform_indices = @transform_7, window_bounds = array<i64: 1, 16>}, {pipeline_mode = #tpu.pipeline_mode<synchronous>, transform_indices = @transform_8, window_bounds = array<i64: 16, 32>}, {pipeline_mode = #tpu.pipeline_mode<synchronous>, transform_indices = @transform_9, window_bounds = array<i64: 1, 32>}, {pipeline_mode = #tpu.pipeline_mode<synchronous>, transform_indices = @transform_10, window_bounds = array<i64: 16, 16>}, {pipeline_mode = #tpu.pipeline_mode<synchronous>, transform_indices = @transform_11, window_bounds = array<i64: 1, 16>}, {pipeline_mode = #tpu.pipeline_mode<synchronous>, transform_indices = @transform_12, window_bounds = array<i64: 16, 32>}, {pipeline_mode = #tpu.pipeline_mode<synchronous>, transform_indices = @transform_13, window_bounds = array<i64: 1, 32>}, {pipeline_mode = #tpu.pipeline_mode<synchronous>, transform_indices = @transform_14, window_bounds = array<i64: 32, 16>}, {pipeline_mode = #tpu.pipeline_mode<synchronous>, transform_indices = @transform_15, window_bounds = array<i64: 1, 16>}, {pipeline_mode = #tpu.pipeline_mode<synchronous>, transform_indices = @transform_16, window_bounds = array<i64: 1, 16>}, {pipeline_mode = #tpu.pipeline_mode<synchronous>, transform_indices = @transform_17, window_bounds = array<i64: 1, 16>}, {pipeline_mode = #tpu.pipeline_mode<synchronous>, transform_indices = @transform_18, window_bounds = array<i64: 1, 16>}, {pipeline_mode = #tpu.pipeline_mode<synchronous>, transform_indices = @transform_19, window_bounds = array<i64: 1, 16>}, {pipeline_mode = #tpu.pipeline_mode<synchronous>, transform_indices = @transform_20, window_bounds = array<i64: 1, 16>}, {pipeline_mode = #tpu.pipeline_mode<synchronous>, transform_indices = @transform_21, window_bounds = array<i64: 1, 16>}, {transform_indices = @transform_22, window_bounds = array<i64: 1, 64, 16>}]} {
    %c0 = arith.constant 0 : index
    %c0_0 = arith.constant 0 : index
    %c0_1 = arith.constant 0 : index
    %0 = vector.load %arg1[%c0, %c0_0, %c0_1] : memref<1x64x16xf32, #tpu.memory_space<vmem>>, vector<1x64x16xf32>
    %1 = vector.shape_cast %0 : vector<1x64x16xf32> to vector<64x16xf32>
    %c0_2 = arith.constant 0 : index
    %c0_3 = arith.constant 0 : index
    %c0_4 = arith.constant 0 : index
    %2 = vector.load %arg2[%c0_2, %c0_3, %c0_4] : memref<1x64x16xf32, #tpu.memory_space<vmem>>, vector<1x64x16xf32>
    %3 = vector.shape_cast %2 : vector<1x64x16xf32> to vector<64x16xf32>
    %c0_5 = arith.constant 0 : index
    %c0_6 = arith.constant 0 : index
    %4 = vector.load %arg3[%c0_5, %c0_6] : memref<16x48xf32, #tpu.memory_space<vmem>>, vector<16x48xf32>
    %5 = arith.truncf %1 : vector<64x16xf32> to vector<64x16xbf16>
    %6 = arith.truncf %4 : vector<16x48xf32> to vector<16x48xbf16>
    %cst = arith.constant dense<0.000000e+00> : vector<64x48xf32>
    %7 = tpu.matmul %5, %6, %cst {dimension_numbers = #tpu.dot_dimension_numbers<[1], [0], [0], [1], [0, 0, 1, 1], [], []>} : vector<64x16xbf16>, vector<16x48xbf16>, vector<64x48xf32> -> vector<64x48xf32>
    %c0_7 = arith.constant 0 : index
    %c0_8 = arith.constant 0 : index
    %8 = vector.load %arg4[%c0_7, %c0_8] : memref<1x48xf32, #tpu.memory_space<vmem>>, vector<1x48xf32>
    %9 = vector.broadcast %8 : vector<1x48xf32> to vector<64x48xf32>
    %10 = arith.addf %7, %9 : vector<64x48xf32>
    %11 = vector.extract_strided_slice %10 {offsets = [0, 0], sizes = [64, 16], strides = [1, 1]} : vector<64x48xf32> to vector<64x16xf32>
    %12 = vector.extract_strided_slice %10 {offsets = [0, 16], sizes = [64, 16], strides = [1, 1]} : vector<64x48xf32> to vector<64x16xf32>
    %13 = vector.extract_strided_slice %10 {offsets = [0, 32], sizes = [64, 16], strides = [1, 1]} : vector<64x48xf32> to vector<64x16xf32>
    %14 = vector.extract_strided_slice %11 {offsets = [0, 0], sizes = [64, 8], strides = [1, 1]} : vector<64x16xf32> to vector<64x8xf32>
    %15 = vector.extract_strided_slice %12 {offsets = [0, 0], sizes = [64, 8], strides = [1, 1]} : vector<64x16xf32> to vector<64x8xf32>
    %16 = arith.truncf %14 : vector<64x8xf32> to vector<64x8xbf16>
    %17 = arith.truncf %15 : vector<64x8xf32> to vector<64x8xbf16>
    %cst_9 = arith.constant dense<0.000000e+00> : vector<64x64xf32>
    %18 = tpu.matmul %16, %17, %cst_9 {dimension_numbers = #tpu.dot_dimension_numbers<[1], [1], [0], [0], [0, 0, 1, 0], [], []>} : vector<64x8xbf16>, vector<64x8xbf16>, vector<64x64xf32> -> vector<64x64xf32>
    %cst_10 = arith.constant dense<0xFF800000> : vector<64xf32>
    %19 = vector.multi_reduction <maximumf>, %18, %cst_10 [1] : vector<64x64xf32> to vector<64xf32>
    %20 = vector.shape_cast %19 : vector<64xf32> to vector<64x1xf32>
    %21 = vector.broadcast %20 : vector<64x1xf32> to vector<64x64xf32>
    %22 = arith.subf %18, %21 : vector<64x64xf32>
    %23 = math.exp %22 : vector<64x64xf32>
    %cst_11 = arith.constant dense<0.000000e+00> : vector<64xf32>
    %24 = vector.multi_reduction <add>, %23, %cst_11 [1] : vector<64x64xf32> to vector<64xf32>
    %25 = vector.shape_cast %24 : vector<64xf32> to vector<64x1xf32>
    %26 = tpu.reciprocal %25 {approx = true} : vector<64x1xf32> -> vector<64x1xf32>
    %27 = vector.broadcast %26 : vector<64x1xf32> to vector<64x64xf32>
    %28 = arith.mulf %23, %27 : vector<64x64xf32>
    %29 = vector.extract_strided_slice %13 {offsets = [0, 0], sizes = [64, 8], strides = [1, 1]} : vector<64x16xf32> to vector<64x8xf32>
    %30 = arith.truncf %28 : vector<64x64xf32> to vector<64x64xbf16>
    %31 = arith.truncf %29 : vector<64x8xf32> to vector<64x8xbf16>
    %cst_12 = arith.constant dense<0.000000e+00> : vector<64x8xf32>
    %32 = tpu.matmul %30, %31, %cst_12 {dimension_numbers = #tpu.dot_dimension_numbers<[1], [0], [0], [1], [0, 0, 1, 1], [], []>} : vector<64x64xbf16>, vector<64x8xbf16>, vector<64x8xf32> -> vector<64x8xf32>
    %33 = vector.extract_strided_slice %11 {offsets = [0, 8], sizes = [64, 8], strides = [1, 1]} : vector<64x16xf32> to vector<64x8xf32>
    %34 = vector.extract_strided_slice %12 {offsets = [0, 8], sizes = [64, 8], strides = [1, 1]} : vector<64x16xf32> to vector<64x8xf32>
    %35 = arith.truncf %33 : vector<64x8xf32> to vector<64x8xbf16>
    %36 = arith.truncf %34 : vector<64x8xf32> to vector<64x8xbf16>
    %cst_13 = arith.constant dense<0.000000e+00> : vector<64x64xf32>
    %37 = tpu.matmul %35, %36, %cst_13 {dimension_numbers = #tpu.dot_dimension_numbers<[1], [1], [0], [0], [0, 0, 1, 0], [], []>} : vector<64x8xbf16>, vector<64x8xbf16>, vector<64x64xf32> -> vector<64x64xf32>
    %cst_14 = arith.constant dense<0xFF800000> : vector<64xf32>
    %38 = vector.multi_reduction <maximumf>, %37, %cst_14 [1] : vector<64x64xf32> to vector<64xf32>
    %39 = vector.shape_cast %38 : vector<64xf32> to vector<64x1xf32>
    %40 = vector.broadcast %39 : vector<64x1xf32> to vector<64x64xf32>
    %41 = arith.subf %37, %40 : vector<64x64xf32>
    %42 = math.exp %41 : vector<64x64xf32>
    %cst_15 = arith.constant dense<0.000000e+00> : vector<64xf32>
    %43 = vector.multi_reduction <add>, %42, %cst_15 [1] : vector<64x64xf32> to vector<64xf32>
    %44 = vector.shape_cast %43 : vector<64xf32> to vector<64x1xf32>
    %45 = tpu.reciprocal %44 {approx = true} : vector<64x1xf32> -> vector<64x1xf32>
    %46 = vector.broadcast %45 : vector<64x1xf32> to vector<64x64xf32>
    %47 = arith.mulf %42, %46 : vector<64x64xf32>
    %48 = vector.extract_strided_slice %13 {offsets = [0, 8], sizes = [64, 8], strides = [1, 1]} : vector<64x16xf32> to vector<64x8xf32>
    %49 = arith.truncf %47 : vector<64x64xf32> to vector<64x64xbf16>
    %50 = arith.truncf %48 : vector<64x8xf32> to vector<64x8xbf16>
    %cst_16 = arith.constant dense<0.000000e+00> : vector<64x8xf32>
    %51 = tpu.matmul %49, %50, %cst_16 {dimension_numbers = #tpu.dot_dimension_numbers<[1], [0], [0], [1], [0, 0, 1, 1], [], []>} : vector<64x64xbf16>, vector<64x8xbf16>, vector<64x8xf32> -> vector<64x8xf32>
    %52 = tpu.concatenate %32, %51 in 1 : vector<64x8xf32>, vector<64x8xf32> -> vector<64x16xf32>
    %c0_17 = arith.constant 0 : index
    %c0_18 = arith.constant 0 : index
    %53 = vector.load %arg5[%c0_17, %c0_18] : memref<16x16xf32, #tpu.memory_space<vmem>>, vector<16x16xf32>
    %54 = arith.truncf %52 : vector<64x16xf32> to vector<64x16xbf16>
    %55 = arith.truncf %53 : vector<16x16xf32> to vector<16x16xbf16>
    %cst_19 = arith.constant dense<0.000000e+00> : vector<64x16xf32>
    %56 = tpu.matmul %54, %55, %cst_19 {dimension_numbers = #tpu.dot_dimension_numbers<[1], [0], [0], [1], [0, 0, 1, 1], [], []>} : vector<64x16xbf16>, vector<16x16xbf16>, vector<64x16xf32> -> vector<64x16xf32>
    %c0_20 = arith.constant 0 : index
    %c0_21 = arith.constant 0 : index
    %57 = vector.load %arg6[%c0_20, %c0_21] : memref<1x16xf32, #tpu.memory_space<vmem>>, vector<1x16xf32>
    %58 = vector.broadcast %57 : vector<1x16xf32> to vector<64x16xf32>
    %59 = arith.addf %56, %58 : vector<64x16xf32>
    %60 = arith.addf %1, %59 : vector<64x16xf32>
    %c0_22 = arith.constant 0 : index
    %c0_23 = arith.constant 0 : index
    %61 = vector.load %arg17[%c0_22, %c0_23] : memref<1x16xf32, #tpu.memory_space<vmem>>, vector<1x16xf32>
    %c0_24 = arith.constant 0 : index
    %c0_25 = arith.constant 0 : index
    %62 = vector.load %arg18[%c0_24, %c0_25] : memref<1x16xf32, #tpu.memory_space<vmem>>, vector<1x16xf32>
    %cst_26 = arith.constant dense<0.000000e+00> : vector<64xf32>
    %63 = vector.multi_reduction <add>, %60, %cst_26 [1] : vector<64x16xf32> to vector<64xf32>
    %64 = vector.shape_cast %63 : vector<64xf32> to vector<64x1xf32>
    %cst_27 = arith.constant 1.600000e+01 : f32
    %65 = vector.broadcast %cst_27 : f32 to vector<64x1xf32>
    %66 = arith.divf %64, %65 : vector<64x1xf32>
    %67 = vector.broadcast %66 : vector<64x1xf32> to vector<64x16xf32>
    %68 = arith.subf %60, %67 : vector<64x16xf32>
    %69 = arith.mulf %68, %68 : vector<64x16xf32>
    %cst_28 = arith.constant dense<0.000000e+00> : vector<64xf32>
    %70 = vector.multi_reduction <add>, %69, %cst_28 [1] : vector<64x16xf32> to vector<64xf32>
    %71 = vector.shape_cast %70 : vector<64xf32> to vector<64x1xf32>
    %cst_29 = arith.constant 1.600000e+01 : f32
    %72 = vector.broadcast %cst_29 : f32 to vector<64x1xf32>
    %73 = arith.divf %71, %72 : vector<64x1xf32>
    %74 = vector.broadcast %66 : vector<64x1xf32> to vector<64x16xf32>
    %75 = arith.subf %60, %74 : vector<64x16xf32>
    %cst_30 = arith.constant 9.99999974E-6 : f32
    %76 = vector.broadcast %cst_30 : f32 to vector<64x1xf32>
    %77 = arith.addf %73, %76 : vector<64x1xf32>
    %78 = math.rsqrt %77 : vector<64x1xf32>
    %79 = vector.broadcast %78 : vector<64x1xf32> to vector<64x16xf32>
    %80 = arith.mulf %75, %79 : vector<64x16xf32>
    %81 = vector.broadcast %61 : vector<1x16xf32> to vector<64x16xf32>
    %82 = arith.mulf %80, %81 : vector<64x16xf32>
    %83 = vector.broadcast %62 : vector<1x16xf32> to vector<64x16xf32>
    %84 = arith.addf %82, %83 : vector<64x16xf32>
    %c0_31 = arith.constant 0 : index
    %c0_32 = arith.constant 0 : index
    %85 = vector.load %arg7[%c0_31, %c0_32] : memref<16x16xf32, #tpu.memory_space<vmem>>, vector<16x16xf32>
    %86 = arith.truncf %84 : vector<64x16xf32> to vector<64x16xbf16>
    %87 = arith.truncf %85 : vector<16x16xf32> to vector<16x16xbf16>
    %cst_33 = arith.constant dense<0.000000e+00> : vector<64x16xf32>
    %88 = tpu.matmul %86, %87, %cst_33 {dimension_numbers = #tpu.dot_dimension_numbers<[1], [0], [0], [1], [0, 0, 1, 1], [], []>} : vector<64x16xbf16>, vector<16x16xbf16>, vector<64x16xf32> -> vector<64x16xf32>
    %c0_34 = arith.constant 0 : index
    %c0_35 = arith.constant 0 : index
    %89 = vector.load %arg8[%c0_34, %c0_35] : memref<1x16xf32, #tpu.memory_space<vmem>>, vector<1x16xf32>
    %90 = vector.broadcast %89 : vector<1x16xf32> to vector<64x16xf32>
    %91 = arith.addf %88, %90 : vector<64x16xf32>
    %c0_36 = arith.constant 0 : index
    %c0_37 = arith.constant 0 : index
    %92 = vector.load %arg9[%c0_36, %c0_37] : memref<16x32xf32, #tpu.memory_space<vmem>>, vector<16x32xf32>
    %93 = arith.truncf %3 : vector<64x16xf32> to vector<64x16xbf16>
    %94 = arith.truncf %92 : vector<16x32xf32> to vector<16x32xbf16>
    %cst_38 = arith.constant dense<0.000000e+00> : vector<64x32xf32>
    %95 = tpu.matmul %93, %94, %cst_38 {dimension_numbers = #tpu.dot_dimension_numbers<[1], [0], [0], [1], [0, 0, 1, 1], [], []>} : vector<64x16xbf16>, vector<16x32xbf16>, vector<64x32xf32> -> vector<64x32xf32>
    %c0_39 = arith.constant 0 : index
    %c0_40 = arith.constant 0 : index
    %96 = vector.load %arg10[%c0_39, %c0_40] : memref<1x32xf32, #tpu.memory_space<vmem>>, vector<1x32xf32>
    %97 = vector.broadcast %96 : vector<1x32xf32> to vector<64x32xf32>
    %98 = arith.addf %95, %97 : vector<64x32xf32>
    %99 = vector.extract_strided_slice %98 {offsets = [0, 0], sizes = [64, 16], strides = [1, 1]} : vector<64x32xf32> to vector<64x16xf32>
    %100 = vector.extract_strided_slice %98 {offsets = [0, 16], sizes = [64, 16], strides = [1, 1]} : vector<64x32xf32> to vector<64x16xf32>
    %101 = vector.extract_strided_slice %91 {offsets = [0, 0], sizes = [64, 8], strides = [1, 1]} : vector<64x16xf32> to vector<64x8xf32>
    %102 = vector.extract_strided_slice %99 {offsets = [0, 0], sizes = [64, 8], strides = [1, 1]} : vector<64x16xf32> to vector<64x8xf32>
    %103 = arith.truncf %101 : vector<64x8xf32> to vector<64x8xbf16>
    %104 = arith.truncf %102 : vector<64x8xf32> to vector<64x8xbf16>
    %cst_41 = arith.constant dense<0.000000e+00> : vector<64x64xf32>
    %105 = tpu.matmul %103, %104, %cst_41 {dimension_numbers = #tpu.dot_dimension_numbers<[1], [1], [0], [0], [0, 0, 1, 0], [], []>} : vector<64x8xbf16>, vector<64x8xbf16>, vector<64x64xf32> -> vector<64x64xf32>
    %cst_42 = arith.constant dense<0xFF800000> : vector<64xf32>
    %106 = vector.multi_reduction <maximumf>, %105, %cst_42 [1] : vector<64x64xf32> to vector<64xf32>
    %107 = vector.shape_cast %106 : vector<64xf32> to vector<64x1xf32>
    %108 = vector.broadcast %107 : vector<64x1xf32> to vector<64x64xf32>
    %109 = arith.subf %105, %108 : vector<64x64xf32>
    %110 = math.exp %109 : vector<64x64xf32>
    %cst_43 = arith.constant dense<0.000000e+00> : vector<64xf32>
    %111 = vector.multi_reduction <add>, %110, %cst_43 [1] : vector<64x64xf32> to vector<64xf32>
    %112 = vector.shape_cast %111 : vector<64xf32> to vector<64x1xf32>
    %113 = tpu.reciprocal %112 {approx = true} : vector<64x1xf32> -> vector<64x1xf32>
    %114 = vector.broadcast %113 : vector<64x1xf32> to vector<64x64xf32>
    %115 = arith.mulf %110, %114 : vector<64x64xf32>
    %116 = vector.extract_strided_slice %100 {offsets = [0, 0], sizes = [64, 8], strides = [1, 1]} : vector<64x16xf32> to vector<64x8xf32>
    %117 = arith.truncf %115 : vector<64x64xf32> to vector<64x64xbf16>
    %118 = arith.truncf %116 : vector<64x8xf32> to vector<64x8xbf16>
    %cst_44 = arith.constant dense<0.000000e+00> : vector<64x8xf32>
    %119 = tpu.matmul %117, %118, %cst_44 {dimension_numbers = #tpu.dot_dimension_numbers<[1], [0], [0], [1], [0, 0, 1, 1], [], []>} : vector<64x64xbf16>, vector<64x8xbf16>, vector<64x8xf32> -> vector<64x8xf32>
    %120 = vector.extract_strided_slice %91 {offsets = [0, 8], sizes = [64, 8], strides = [1, 1]} : vector<64x16xf32> to vector<64x8xf32>
    %121 = vector.extract_strided_slice %99 {offsets = [0, 8], sizes = [64, 8], strides = [1, 1]} : vector<64x16xf32> to vector<64x8xf32>
    %122 = arith.truncf %120 : vector<64x8xf32> to vector<64x8xbf16>
    %123 = arith.truncf %121 : vector<64x8xf32> to vector<64x8xbf16>
    %cst_45 = arith.constant dense<0.000000e+00> : vector<64x64xf32>
    %124 = tpu.matmul %122, %123, %cst_45 {dimension_numbers = #tpu.dot_dimension_numbers<[1], [1], [0], [0], [0, 0, 1, 0], [], []>} : vector<64x8xbf16>, vector<64x8xbf16>, vector<64x64xf32> -> vector<64x64xf32>
    %cst_46 = arith.constant dense<0xFF800000> : vector<64xf32>
    %125 = vector.multi_reduction <maximumf>, %124, %cst_46 [1] : vector<64x64xf32> to vector<64xf32>
    %126 = vector.shape_cast %125 : vector<64xf32> to vector<64x1xf32>
    %127 = vector.broadcast %126 : vector<64x1xf32> to vector<64x64xf32>
    %128 = arith.subf %124, %127 : vector<64x64xf32>
    %129 = math.exp %128 : vector<64x64xf32>
    %cst_47 = arith.constant dense<0.000000e+00> : vector<64xf32>
    %130 = vector.multi_reduction <add>, %129, %cst_47 [1] : vector<64x64xf32> to vector<64xf32>
    %131 = vector.shape_cast %130 : vector<64xf32> to vector<64x1xf32>
    %132 = tpu.reciprocal %131 {approx = true} : vector<64x1xf32> -> vector<64x1xf32>
    %133 = vector.broadcast %132 : vector<64x1xf32> to vector<64x64xf32>
    %134 = arith.mulf %129, %133 : vector<64x64xf32>
    %135 = vector.extract_strided_slice %100 {offsets = [0, 8], sizes = [64, 8], strides = [1, 1]} : vector<64x16xf32> to vector<64x8xf32>
    %136 = arith.truncf %134 : vector<64x64xf32> to vector<64x64xbf16>
    %137 = arith.truncf %135 : vector<64x8xf32> to vector<64x8xbf16>
    %cst_48 = arith.constant dense<0.000000e+00> : vector<64x8xf32>
    %138 = tpu.matmul %136, %137, %cst_48 {dimension_numbers = #tpu.dot_dimension_numbers<[1], [0], [0], [1], [0, 0, 1, 1], [], []>} : vector<64x64xbf16>, vector<64x8xbf16>, vector<64x8xf32> -> vector<64x8xf32>
    %139 = tpu.concatenate %119, %138 in 1 : vector<64x8xf32>, vector<64x8xf32> -> vector<64x16xf32>
    %c0_49 = arith.constant 0 : index
    %c0_50 = arith.constant 0 : index
    %140 = vector.load %arg11[%c0_49, %c0_50] : memref<16x16xf32, #tpu.memory_space<vmem>>, vector<16x16xf32>
    %141 = arith.truncf %139 : vector<64x16xf32> to vector<64x16xbf16>
    %142 = arith.truncf %140 : vector<16x16xf32> to vector<16x16xbf16>
    %cst_51 = arith.constant dense<0.000000e+00> : vector<64x16xf32>
    %143 = tpu.matmul %141, %142, %cst_51 {dimension_numbers = #tpu.dot_dimension_numbers<[1], [0], [0], [1], [0, 0, 1, 1], [], []>} : vector<64x16xbf16>, vector<16x16xbf16>, vector<64x16xf32> -> vector<64x16xf32>
    %c0_52 = arith.constant 0 : index
    %c0_53 = arith.constant 0 : index
    %144 = vector.load %arg12[%c0_52, %c0_53] : memref<1x16xf32, #tpu.memory_space<vmem>>, vector<1x16xf32>
    %145 = vector.broadcast %144 : vector<1x16xf32> to vector<64x16xf32>
    %146 = arith.addf %143, %145 : vector<64x16xf32>
    %147 = arith.addf %84, %146 : vector<64x16xf32>
    %c0_54 = arith.constant 0 : index
    %c0_55 = arith.constant 0 : index
    %148 = vector.load %arg19[%c0_54, %c0_55] : memref<1x16xf32, #tpu.memory_space<vmem>>, vector<1x16xf32>
    %c0_56 = arith.constant 0 : index
    %c0_57 = arith.constant 0 : index
    %149 = vector.load %arg20[%c0_56, %c0_57] : memref<1x16xf32, #tpu.memory_space<vmem>>, vector<1x16xf32>
    %cst_58 = arith.constant dense<0.000000e+00> : vector<64xf32>
    %150 = vector.multi_reduction <add>, %147, %cst_58 [1] : vector<64x16xf32> to vector<64xf32>
    %151 = vector.shape_cast %150 : vector<64xf32> to vector<64x1xf32>
    %cst_59 = arith.constant 1.600000e+01 : f32
    %152 = vector.broadcast %cst_59 : f32 to vector<64x1xf32>
    %153 = arith.divf %151, %152 : vector<64x1xf32>
    %154 = vector.broadcast %153 : vector<64x1xf32> to vector<64x16xf32>
    %155 = arith.subf %147, %154 : vector<64x16xf32>
    %156 = arith.mulf %155, %155 : vector<64x16xf32>
    %cst_60 = arith.constant dense<0.000000e+00> : vector<64xf32>
    %157 = vector.multi_reduction <add>, %156, %cst_60 [1] : vector<64x16xf32> to vector<64xf32>
    %158 = vector.shape_cast %157 : vector<64xf32> to vector<64x1xf32>
    %cst_61 = arith.constant 1.600000e+01 : f32
    %159 = vector.broadcast %cst_61 : f32 to vector<64x1xf32>
    %160 = arith.divf %158, %159 : vector<64x1xf32>
    %161 = vector.broadcast %153 : vector<64x1xf32> to vector<64x16xf32>
    %162 = arith.subf %147, %161 : vector<64x16xf32>
    %cst_62 = arith.constant 9.99999974E-6 : f32
    %163 = vector.broadcast %cst_62 : f32 to vector<64x1xf32>
    %164 = arith.addf %160, %163 : vector<64x1xf32>
    %165 = math.rsqrt %164 : vector<64x1xf32>
    %166 = vector.broadcast %165 : vector<64x1xf32> to vector<64x16xf32>
    %167 = arith.mulf %162, %166 : vector<64x16xf32>
    %168 = vector.broadcast %148 : vector<1x16xf32> to vector<64x16xf32>
    %169 = arith.mulf %167, %168 : vector<64x16xf32>
    %170 = vector.broadcast %149 : vector<1x16xf32> to vector<64x16xf32>
    %171 = arith.addf %169, %170 : vector<64x16xf32>
    %c0_63 = arith.constant 0 : index
    %c0_64 = arith.constant 0 : index
    %172 = vector.load %arg13[%c0_63, %c0_64] : memref<16x32xf32, #tpu.memory_space<vmem>>, vector<16x32xf32>
    %173 = arith.truncf %171 : vector<64x16xf32> to vector<64x16xbf16>
    %174 = arith.truncf %172 : vector<16x32xf32> to vector<16x32xbf16>
    %cst_65 = arith.constant dense<0.000000e+00> : vector<64x32xf32>
    %175 = tpu.matmul %173, %174, %cst_65 {dimension_numbers = #tpu.dot_dimension_numbers<[1], [0], [0], [1], [0, 0, 1, 1], [], []>} : vector<64x16xbf16>, vector<16x32xbf16>, vector<64x32xf32> -> vector<64x32xf32>
    %c0_66 = arith.constant 0 : index
    %c0_67 = arith.constant 0 : index
    %176 = vector.load %arg14[%c0_66, %c0_67] : memref<1x32xf32, #tpu.memory_space<vmem>>, vector<1x32xf32>
    %177 = vector.broadcast %176 : vector<1x32xf32> to vector<64x32xf32>
    %178 = arith.addf %175, %177 : vector<64x32xf32>
    %cst_68 = arith.constant 0.000000e+00 : f32
    %179 = vector.broadcast %cst_68 : f32 to vector<64x32xf32>
    %180 = arith.maximumf %178, %179 : vector<64x32xf32>
    %c0_69 = arith.constant 0 : index
    %c0_70 = arith.constant 0 : index
    %181 = vector.load %arg15[%c0_69, %c0_70] : memref<32x16xf32, #tpu.memory_space<vmem>>, vector<32x16xf32>
    %182 = arith.truncf %180 : vector<64x32xf32> to vector<64x32xbf16>
    %183 = arith.truncf %181 : vector<32x16xf32> to vector<32x16xbf16>
    %cst_71 = arith.constant dense<0.000000e+00> : vector<64x16xf32>
    %184 = tpu.matmul %182, %183, %cst_71 {dimension_numbers = #tpu.dot_dimension_numbers<[1], [0], [0], [1], [0, 0, 1, 1], [], []>} : vector<64x32xbf16>, vector<32x16xbf16>, vector<64x16xf32> -> vector<64x16xf32>
    %c0_72 = arith.constant 0 : index
    %c0_73 = arith.constant 0 : index
    %185 = vector.load %arg16[%c0_72, %c0_73] : memref<1x16xf32, #tpu.memory_space<vmem>>, vector<1x16xf32>
    %186 = vector.broadcast %185 : vector<1x16xf32> to vector<64x16xf32>
    %187 = arith.addf %184, %186 : vector<64x16xf32>
    %188 = arith.addf %171, %187 : vector<64x16xf32>
    %c0_74 = arith.constant 0 : index
    %c0_75 = arith.constant 0 : index
    %189 = vector.load %arg21[%c0_74, %c0_75] : memref<1x16xf32, #tpu.memory_space<vmem>>, vector<1x16xf32>
    %c0_76 = arith.constant 0 : index
    %c0_77 = arith.constant 0 : index
    %190 = vector.load %arg22[%c0_76, %c0_77] : memref<1x16xf32, #tpu.memory_space<vmem>>, vector<1x16xf32>
    %cst_78 = arith.constant dense<0.000000e+00> : vector<64xf32>
    %191 = vector.multi_reduction <add>, %188, %cst_78 [1] : vector<64x16xf32> to vector<64xf32>
    %192 = vector.shape_cast %191 : vector<64xf32> to vector<64x1xf32>
    %cst_79 = arith.constant 1.600000e+01 : f32
    %193 = vector.broadcast %cst_79 : f32 to vector<64x1xf32>
    %194 = arith.divf %192, %193 : vector<64x1xf32>
    %195 = vector.broadcast %194 : vector<64x1xf32> to vector<64x16xf32>
    %196 = arith.subf %188, %195 : vector<64x16xf32>
    %197 = arith.mulf %196, %196 : vector<64x16xf32>
    %cst_80 = arith.constant dense<0.000000e+00> : vector<64xf32>
    %198 = vector.multi_reduction <add>, %197, %cst_80 [1] : vector<64x16xf32> to vector<64xf32>
    %199 = vector.shape_cast %198 : vector<64xf32> to vector<64x1xf32>
    %cst_81 = arith.constant 1.600000e+01 : f32
    %200 = vector.broadcast %cst_81 : f32 to vector<64x1xf32>
    %201 = arith.divf %199, %200 : vector<64x1xf32>
    %202 = vector.broadcast %194 : vector<64x1xf32> to vector<64x16xf32>
    %203 = arith.subf %188, %202 : vector<64x16xf32>
    %cst_82 = arith.constant 9.99999974E-6 : f32
    %204 = vector.broadcast %cst_82 : f32 to vector<64x1xf32>
    %205 = arith.addf %201, %204 : vector<64x1xf32>
    %206 = math.rsqrt %205 : vector<64x1xf32>
    %207 = vector.broadcast %206 : vector<64x1xf32> to vector<64x16xf32>
    %208 = arith.mulf %203, %207 : vector<64x16xf32>
    %209 = vector.broadcast %189 : vector<1x16xf32> to vector<64x16xf32>
    %210 = arith.mulf %208, %209 : vector<64x16xf32>
    %211 = vector.broadcast %190 : vector<1x16xf32> to vector<64x16xf32>
    %212 = arith.addf %210, %211 : vector<64x16xf32>
    %c0_83 = arith.constant 0 : index
    %c0_84 = arith.constant 0 : index
    %c0_85 = arith.constant 0 : index
    %213 = vector.load %arg23[%c0_83, %c0_84, %c0_85] : memref<1x64x16xf32, #tpu.memory_space<vmem>>, vector<1x64x16xf32>
    %214 = vector.shape_cast %213 : vector<1x64x16xf32> to vector<64x16xf32>
    %215 = vector.shape_cast %212 : vector<64x16xf32> to vector<1x64x16xf32>
    tpu.vector_store %arg23[%c0_83, %c0_84, %c0_85], %215 {strides = array<i32>} : memref<1x64x16xf32, #tpu.memory_space<vmem>>, vector<1x64x16xf32>,
    return
  }
  func.func @transform_0(%arg0: i32) -> (i32, i32, i32) {
    %c0_i32 = arith.constant 0 : i32
    %c0_i32_0 = arith.constant 0 : i32
    %c0_i32_1 = arith.constant 0 : i32
    return %arg0, %c0_i32, %c0_i32_0 : i32, i32, i32
  }
  func.func @transform_1(%arg0: i32) -> (i32, i32, i32) {
    %c0_i32 = arith.constant 0 : i32
    %c0_i32_0 = arith.constant 0 : i32
    %c0_i32_1 = arith.constant 0 : i32
    return %arg0, %c0_i32, %c0_i32_0 : i32, i32, i32
  }
  func.func @transform_2(%arg0: i32) -> (i32, i32) {
    %c0_i32 = arith.constant 0 : i32
    %c0_i32_0 = arith.constant 0 : i32
    %c0_i32_1 = arith.constant 0 : i32
    return %c0_i32, %c0_i32_0 : i32, i32
  }
  func.func @transform_3(%arg0: i32) -> (i32, i32) {
    %c0_i32 = arith.constant 0 : i32
    %c0_i32_0 = arith.constant 0 : i32
    %c0_i32_1 = arith.constant 0 : i32
    return %c0_i32, %c0_i32_0 : i32, i32
  }
  func.func @transform_4(%arg0: i32) -> (i32, i32) {
    %c0_i32 = arith.constant 0 : i32
    %c0_i32_0 = arith.constant 0 : i32
    %c0_i32_1 = arith.constant 0 : i32
    return %c0_i32, %c0_i32_0 : i32, i32
  }
  func.func @transform_5(%arg0: i32) -> (i32, i32) {
    %c0_i32 = arith.constant 0 : i32
    %c0_i32_0 = arith.constant 0 : i32
    %c0_i32_1 = arith.constant 0 : i32
    return %c0_i32, %c0_i32_0 : i32, i32
  }
  func.func @transform_6(%arg0: i32) -> (i32, i32) {
    %c0_i32 = arith.constant 0 : i32
    %c0_i32_0 = arith.constant 0 : i32
    %c0_i32_1 = arith.constant 0 : i32
    return %c0_i32, %c0_i32_0 : i32, i32
  }
  func.func @transform_7(%arg0: i32) -> (i32, i32) {
    %c0_i32 = arith.constant 0 : i32
    %c0_i32_0 = arith.constant 0 : i32
    %c0_i32_1 = arith.constant 0 : i32
    return %c0_i32, %c0_i32_0 : i32, i32
  }
  func.func @transform_8(%arg0: i32) -> (i32, i32) {
    %c0_i32 = arith.constant 0 : i32
    %c0_i32_0 = arith.constant 0 : i32
    %c0_i32_1 = arith.constant 0 : i32
    return %c0_i32, %c0_i32_0 : i32, i32
  }
  func.func @transform_9(%arg0: i32) -> (i32, i32) {
    %c0_i32 = arith.constant 0 : i32
    %c0_i32_0 = arith.constant 0 : i32
    %c0_i32_1 = arith.constant 0 : i32
    return %c0_i32, %c0_i32_0 : i32, i32
  }
  func.func @transform_10(%arg0: i32) -> (i32, i32) {
    %c0_i32 = arith.constant 0 : i32
    %c0_i32_0 = arith.constant 0 : i32
    %c0_i32_1 = arith.constant 0 : i32
    return %c0_i32, %c0_i32_0 : i32, i32
  }
  func.func @transform_11(%arg0: i32) -> (i32, i32) {
    %c0_i32 = arith.constant 0 : i32
    %c0_i32_0 = arith.constant 0 : i32
    %c0_i32_1 = arith.constant 0 : i32
    return %c0_i32, %c0_i32_0 : i32, i32
  }
  func.func @transform_12(%arg0: i32) -> (i32, i32) {
    %c0_i32 = arith.constant 0 : i32
    %c0_i32_0 = arith.constant 0 : i32
    %c0_i32_1 = arith.constant 0 : i32
    return %c0_i32, %c0_i32_0 : i32, i32
  }
  func.func @transform_13(%arg0: i32) -> (i32, i32) {
    %c0_i32 = arith.constant 0 : i32
    %c0_i32_0 = arith.constant 0 : i32
    %c0_i32_1 = arith.constant 0 : i32
    return %c0_i32, %c0_i32_0 : i32, i32
  }
  func.func @transform_14(%arg0: i32) -> (i32, i32) {
    %c0_i32 = arith.constant 0 : i32
    %c0_i32_0 = arith.constant 0 : i32
    %c0_i32_1 = arith.constant 0 : i32
    return %c0_i32, %c0_i32_0 : i32, i32
  }
  func.func @transform_15(%arg0: i32) -> (i32, i32) {
    %c0_i32 = arith.constant 0 : i32
    %c0_i32_0 = arith.constant 0 : i32
    %c0_i32_1 = arith.constant 0 : i32
    return %c0_i32, %c0_i32_0 : i32, i32
  }
  func.func @transform_16(%arg0: i32) -> (i32, i32) {
    %c0_i32 = arith.constant 0 : i32
    %c0_i32_0 = arith.constant 0 : i32
    %c0_i32_1 = arith.constant 0 : i32
    return %c0_i32, %c0_i32_0 : i32, i32
  }
  func.func @transform_17(%arg0: i32) -> (i32, i32) {
    %c0_i32 = arith.constant 0 : i32
    %c0_i32_0 = arith.constant 0 : i32
    %c0_i32_1 = arith.constant 0 : i32
    return %c0_i32, %c0_i32_0 : i32, i32
  }
  func.func @transform_18(%arg0: i32) -> (i32, i32) {
    %c0_i32 = arith.constant 0 : i32
    %c0_i32_0 = arith.constant 0 : i32
    %c0_i32_1 = arith.constant 0 : i32
    return %c0_i32, %c0_i32_0 : i32, i32
  }
  func.func @transform_19(%arg0: i32) -> (i32, i32) {
    %c0_i32 = arith.constant 0 : i32
    %c0_i32_0 = arith.constant 0 : i32
    %c0_i32_1 = arith.constant 0 : i32
    return %c0_i32, %c0_i32_0 : i32, i32
  }
  func.func @transform_20(%arg0: i32) -> (i32, i32) {
    %c0_i32 = arith.constant 0 : i32
    %c0_i32_0 = arith.constant 0 : i32
    %c0_i32_1 = arith.constant 0 : i32
    return %c0_i32, %c0_i32_0 : i32, i32
  }
  func.func @transform_21(%arg0: i32) -> (i32, i32) {
    %c0_i32 = arith.constant 0 : i32
    %c0_i32_0 = arith.constant 0 : i32
    %c0_i32_1 = arith.constant 0 : i32
    return %c0_i32, %c0_i32_0 : i32, i32
  }
  func.func @transform_22(%arg0: i32) -> (i32, i32, i32) {
    %c0_i32 = arith.constant 0 : i32
    %c0_i32_0 = arith.constant 0 : i32
    %c0_i32_1 = arith.constant 0 : i32
    return %arg0, %c0_i32, %c0_i32_0 : i32, i32, i32
  }
}

module attributes {stable_mosaic.version = 11 : i64} {
  func.func @_basic_block_kernel(%arg0: i32, %arg1: memref<1x8x18x18xf32, #tpu.memory_space<vmem>>, %arg2: memref<9x4x8xf32, #tpu.memory_space<vmem>>, %arg3: memref<4x1xf32, #tpu.memory_space<vmem>>, %arg4: memref<4x1xf32, #tpu.memory_space<vmem>>, %arg5: memref<9x4x4xf32, #tpu.memory_space<vmem>>, %arg6: memref<4x1xf32, #tpu.memory_space<vmem>>, %arg7: memref<4x1xf32, #tpu.memory_space<vmem>>, %arg8: memref<4x8xf32, #tpu.memory_space<vmem>>, %arg9: memref<4x1xf32, #tpu.memory_space<vmem>>, %arg10: memref<1x4x16x16xf32, #tpu.memory_space<vmem>>, %arg11: memref<4x18x18xf32, #tpu.memory_space<vmem>>) attributes {dimension_semantics = [#tpu.dimension_semantics<parallel>], iteration_bounds = array<i64: 2>, scalar_prefetch = 0 : i64, scratch_operands = 1 : i64, tpu.core_type = #tpu.core_type<tc>, window_params = [{transform_indices = @transform_0, window_bounds = array<i64: 1, 8, 18, 18>}, {pipeline_mode = #tpu.pipeline_mode<synchronous>, transform_indices = @transform_1, window_bounds = array<i64: 9, 4, 8>}, {pipeline_mode = #tpu.pipeline_mode<synchronous>, transform_indices = @transform_2, window_bounds = array<i64: 4, 1>}, {pipeline_mode = #tpu.pipeline_mode<synchronous>, transform_indices = @transform_3, window_bounds = array<i64: 4, 1>}, {pipeline_mode = #tpu.pipeline_mode<synchronous>, transform_indices = @transform_4, window_bounds = array<i64: 9, 4, 4>}, {pipeline_mode = #tpu.pipeline_mode<synchronous>, transform_indices = @transform_5, window_bounds = array<i64: 4, 1>}, {pipeline_mode = #tpu.pipeline_mode<synchronous>, transform_indices = @transform_6, window_bounds = array<i64: 4, 1>}, {pipeline_mode = #tpu.pipeline_mode<synchronous>, transform_indices = @transform_7, window_bounds = array<i64: 4, 8>}, {pipeline_mode = #tpu.pipeline_mode<synchronous>, transform_indices = @transform_8, window_bounds = array<i64: 4, 1>}, {transform_indices = @transform_9, window_bounds = array<i64: 1, 4, 16, 16>}]} {
    %c0 = arith.constant 0 : index
    %c0_0 = arith.constant 0 : index
    %c0_1 = arith.constant 0 : index
    %c0_2 = arith.constant 0 : index
    %0 = vector.load %arg1[%c0, %c0_0, %c0_1, %c0_2] : memref<1x8x18x18xf32, #tpu.memory_space<vmem>>, vector<1x8x18x18xf32>
    %1 = vector.shape_cast %0 : vector<1x8x18x18xf32> to vector<8x18x18xf32>
    %cst = arith.constant 0.000000e+00 : f32
    %2 = vector.broadcast %cst : f32 to vector<4x256xf32>
    %3 = vector.extract_strided_slice %1 {offsets = [0, 0, 0], sizes = [8, 16, 16], strides = [1, 1, 1]} : vector<8x18x18xf32> to vector<8x16x16xf32>
    %4 = vector.shape_cast %3 : vector<8x16x16xf32> to vector<8x256xf32>
    %c0_3 = arith.constant 0 : index
    %c0_4 = arith.constant 0 : index
    %c0_5 = arith.constant 0 : index
    %5 = vector.load %arg2[%c0_3, %c0_4, %c0_5] : memref<9x4x8xf32, #tpu.memory_space<vmem>>, vector<1x4x8xf32>
    %6 = vector.shape_cast %5 : vector<1x4x8xf32> to vector<4x8xf32>
    %7 = arith.truncf %6 : vector<4x8xf32> to vector<4x8xbf16>
    %8 = arith.truncf %4 : vector<8x256xf32> to vector<8x256xbf16>
    %cst_6 = arith.constant dense<0.000000e+00> : vector<4x256xf32>
    %9 = tpu.matmul %7, %8, %cst_6 {dimension_numbers = #tpu.dot_dimension_numbers<[1], [0], [0], [1], [0, 0, 1, 1], [], []>} : vector<4x8xbf16>, vector<8x256xbf16>, vector<4x256xf32> -> vector<4x256xf32>
    %10 = arith.addf %2, %9 : vector<4x256xf32>
    %11 = vector.extract_strided_slice %1 {offsets = [0, 0, 1], sizes = [8, 16, 16], strides = [1, 1, 1]} : vector<8x18x18xf32> to vector<8x16x16xf32>
    %12 = vector.shape_cast %11 : vector<8x16x16xf32> to vector<8x256xf32>
    %c1 = arith.constant 1 : index
    %c0_7 = arith.constant 0 : index
    %c0_8 = arith.constant 0 : index
    %13 = vector.load %arg2[%c1, %c0_7, %c0_8] : memref<9x4x8xf32, #tpu.memory_space<vmem>>, vector<1x4x8xf32>
    %14 = vector.shape_cast %13 : vector<1x4x8xf32> to vector<4x8xf32>
    %15 = arith.truncf %14 : vector<4x8xf32> to vector<4x8xbf16>
    %16 = arith.truncf %12 : vector<8x256xf32> to vector<8x256xbf16>
    %cst_9 = arith.constant dense<0.000000e+00> : vector<4x256xf32>
    %17 = tpu.matmul %15, %16, %cst_9 {dimension_numbers = #tpu.dot_dimension_numbers<[1], [0], [0], [1], [0, 0, 1, 1], [], []>} : vector<4x8xbf16>, vector<8x256xbf16>, vector<4x256xf32> -> vector<4x256xf32>
    %18 = arith.addf %10, %17 : vector<4x256xf32>
    %19 = vector.extract_strided_slice %1 {offsets = [0, 0, 2], sizes = [8, 16, 16], strides = [1, 1, 1]} : vector<8x18x18xf32> to vector<8x16x16xf32>
    %20 = vector.shape_cast %19 : vector<8x16x16xf32> to vector<8x256xf32>
    %c2 = arith.constant 2 : index
    %c0_10 = arith.constant 0 : index
    %c0_11 = arith.constant 0 : index
    %21 = vector.load %arg2[%c2, %c0_10, %c0_11] : memref<9x4x8xf32, #tpu.memory_space<vmem>>, vector<1x4x8xf32>
    %22 = vector.shape_cast %21 : vector<1x4x8xf32> to vector<4x8xf32>
    %23 = arith.truncf %22 : vector<4x8xf32> to vector<4x8xbf16>
    %24 = arith.truncf %20 : vector<8x256xf32> to vector<8x256xbf16>
    %cst_12 = arith.constant dense<0.000000e+00> : vector<4x256xf32>
    %25 = tpu.matmul %23, %24, %cst_12 {dimension_numbers = #tpu.dot_dimension_numbers<[1], [0], [0], [1], [0, 0, 1, 1], [], []>} : vector<4x8xbf16>, vector<8x256xbf16>, vector<4x256xf32> -> vector<4x256xf32>
    %26 = arith.addf %18, %25 : vector<4x256xf32>
    %27 = vector.extract_strided_slice %1 {offsets = [0, 1, 0], sizes = [8, 16, 16], strides = [1, 1, 1]} : vector<8x18x18xf32> to vector<8x16x16xf32>
    %28 = vector.shape_cast %27 : vector<8x16x16xf32> to vector<8x256xf32>
    %c3 = arith.constant 3 : index
    %c0_13 = arith.constant 0 : index
    %c0_14 = arith.constant 0 : index
    %29 = vector.load %arg2[%c3, %c0_13, %c0_14] : memref<9x4x8xf32, #tpu.memory_space<vmem>>, vector<1x4x8xf32>
    %30 = vector.shape_cast %29 : vector<1x4x8xf32> to vector<4x8xf32>
    %31 = arith.truncf %30 : vector<4x8xf32> to vector<4x8xbf16>
    %32 = arith.truncf %28 : vector<8x256xf32> to vector<8x256xbf16>
    %cst_15 = arith.constant dense<0.000000e+00> : vector<4x256xf32>
    %33 = tpu.matmul %31, %32, %cst_15 {dimension_numbers = #tpu.dot_dimension_numbers<[1], [0], [0], [1], [0, 0, 1, 1], [], []>} : vector<4x8xbf16>, vector<8x256xbf16>, vector<4x256xf32> -> vector<4x256xf32>
    %34 = arith.addf %26, %33 : vector<4x256xf32>
    %35 = vector.extract_strided_slice %1 {offsets = [0, 1, 1], sizes = [8, 16, 16], strides = [1, 1, 1]} : vector<8x18x18xf32> to vector<8x16x16xf32>
    %36 = vector.shape_cast %35 : vector<8x16x16xf32> to vector<8x256xf32>
    %c4 = arith.constant 4 : index
    %c0_16 = arith.constant 0 : index
    %c0_17 = arith.constant 0 : index
    %37 = vector.load %arg2[%c4, %c0_16, %c0_17] : memref<9x4x8xf32, #tpu.memory_space<vmem>>, vector<1x4x8xf32>
    %38 = vector.shape_cast %37 : vector<1x4x8xf32> to vector<4x8xf32>
    %39 = arith.truncf %38 : vector<4x8xf32> to vector<4x8xbf16>
    %40 = arith.truncf %36 : vector<8x256xf32> to vector<8x256xbf16>
    %cst_18 = arith.constant dense<0.000000e+00> : vector<4x256xf32>
    %41 = tpu.matmul %39, %40, %cst_18 {dimension_numbers = #tpu.dot_dimension_numbers<[1], [0], [0], [1], [0, 0, 1, 1], [], []>} : vector<4x8xbf16>, vector<8x256xbf16>, vector<4x256xf32> -> vector<4x256xf32>
    %42 = arith.addf %34, %41 : vector<4x256xf32>
    %43 = vector.extract_strided_slice %1 {offsets = [0, 1, 2], sizes = [8, 16, 16], strides = [1, 1, 1]} : vector<8x18x18xf32> to vector<8x16x16xf32>
    %44 = vector.shape_cast %43 : vector<8x16x16xf32> to vector<8x256xf32>
    %c5 = arith.constant 5 : index
    %c0_19 = arith.constant 0 : index
    %c0_20 = arith.constant 0 : index
    %45 = vector.load %arg2[%c5, %c0_19, %c0_20] : memref<9x4x8xf32, #tpu.memory_space<vmem>>, vector<1x4x8xf32>
    %46 = vector.shape_cast %45 : vector<1x4x8xf32> to vector<4x8xf32>
    %47 = arith.truncf %46 : vector<4x8xf32> to vector<4x8xbf16>
    %48 = arith.truncf %44 : vector<8x256xf32> to vector<8x256xbf16>
    %cst_21 = arith.constant dense<0.000000e+00> : vector<4x256xf32>
    %49 = tpu.matmul %47, %48, %cst_21 {dimension_numbers = #tpu.dot_dimension_numbers<[1], [0], [0], [1], [0, 0, 1, 1], [], []>} : vector<4x8xbf16>, vector<8x256xbf16>, vector<4x256xf32> -> vector<4x256xf32>
    %50 = arith.addf %42, %49 : vector<4x256xf32>
    %51 = vector.extract_strided_slice %1 {offsets = [0, 2, 0], sizes = [8, 16, 16], strides = [1, 1, 1]} : vector<8x18x18xf32> to vector<8x16x16xf32>
    %52 = vector.shape_cast %51 : vector<8x16x16xf32> to vector<8x256xf32>
    %c6 = arith.constant 6 : index
    %c0_22 = arith.constant 0 : index
    %c0_23 = arith.constant 0 : index
    %53 = vector.load %arg2[%c6, %c0_22, %c0_23] : memref<9x4x8xf32, #tpu.memory_space<vmem>>, vector<1x4x8xf32>
    %54 = vector.shape_cast %53 : vector<1x4x8xf32> to vector<4x8xf32>
    %55 = arith.truncf %54 : vector<4x8xf32> to vector<4x8xbf16>
    %56 = arith.truncf %52 : vector<8x256xf32> to vector<8x256xbf16>
    %cst_24 = arith.constant dense<0.000000e+00> : vector<4x256xf32>
    %57 = tpu.matmul %55, %56, %cst_24 {dimension_numbers = #tpu.dot_dimension_numbers<[1], [0], [0], [1], [0, 0, 1, 1], [], []>} : vector<4x8xbf16>, vector<8x256xbf16>, vector<4x256xf32> -> vector<4x256xf32>
    %58 = arith.addf %50, %57 : vector<4x256xf32>
    %59 = vector.extract_strided_slice %1 {offsets = [0, 2, 1], sizes = [8, 16, 16], strides = [1, 1, 1]} : vector<8x18x18xf32> to vector<8x16x16xf32>
    %60 = vector.shape_cast %59 : vector<8x16x16xf32> to vector<8x256xf32>
    %c7 = arith.constant 7 : index
    %c0_25 = arith.constant 0 : index
    %c0_26 = arith.constant 0 : index
    %61 = vector.load %arg2[%c7, %c0_25, %c0_26] : memref<9x4x8xf32, #tpu.memory_space<vmem>>, vector<1x4x8xf32>
    %62 = vector.shape_cast %61 : vector<1x4x8xf32> to vector<4x8xf32>
    %63 = arith.truncf %62 : vector<4x8xf32> to vector<4x8xbf16>
    %64 = arith.truncf %60 : vector<8x256xf32> to vector<8x256xbf16>
    %cst_27 = arith.constant dense<0.000000e+00> : vector<4x256xf32>
    %65 = tpu.matmul %63, %64, %cst_27 {dimension_numbers = #tpu.dot_dimension_numbers<[1], [0], [0], [1], [0, 0, 1, 1], [], []>} : vector<4x8xbf16>, vector<8x256xbf16>, vector<4x256xf32> -> vector<4x256xf32>
    %66 = arith.addf %58, %65 : vector<4x256xf32>
    %67 = vector.extract_strided_slice %1 {offsets = [0, 2, 2], sizes = [8, 16, 16], strides = [1, 1, 1]} : vector<8x18x18xf32> to vector<8x16x16xf32>
    %68 = vector.shape_cast %67 : vector<8x16x16xf32> to vector<8x256xf32>
    %c8 = arith.constant 8 : index
    %c0_28 = arith.constant 0 : index
    %c0_29 = arith.constant 0 : index
    %69 = vector.load %arg2[%c8, %c0_28, %c0_29] : memref<9x4x8xf32, #tpu.memory_space<vmem>>, vector<1x4x8xf32>
    %70 = vector.shape_cast %69 : vector<1x4x8xf32> to vector<4x8xf32>
    %71 = arith.truncf %70 : vector<4x8xf32> to vector<4x8xbf16>
    %72 = arith.truncf %68 : vector<8x256xf32> to vector<8x256xbf16>
    %cst_30 = arith.constant dense<0.000000e+00> : vector<4x256xf32>
    %73 = tpu.matmul %71, %72, %cst_30 {dimension_numbers = #tpu.dot_dimension_numbers<[1], [0], [0], [1], [0, 0, 1, 1], [], []>} : vector<4x8xbf16>, vector<8x256xbf16>, vector<4x256xf32> -> vector<4x256xf32>
    %74 = arith.addf %66, %73 : vector<4x256xf32>
    %c0_31 = arith.constant 0 : index
    %c0_32 = arith.constant 0 : index
    %75 = vector.load %arg3[%c0_31, %c0_32] : memref<4x1xf32, #tpu.memory_space<vmem>>, vector<4x1xf32>
    %76 = vector.broadcast %75 : vector<4x1xf32> to vector<4x256xf32>
    %77 = arith.mulf %74, %76 : vector<4x256xf32>
    %c0_33 = arith.constant 0 : index
    %c0_34 = arith.constant 0 : index
    %78 = vector.load %arg4[%c0_33, %c0_34] : memref<4x1xf32, #tpu.memory_space<vmem>>, vector<4x1xf32>
    %79 = vector.broadcast %78 : vector<4x1xf32> to vector<4x256xf32>
    %80 = arith.addf %77, %79 : vector<4x256xf32>
    %cst_35 = arith.constant 0.000000e+00 : f32
    %81 = vector.broadcast %cst_35 : f32 to vector<4x256xf32>
    %82 = arith.maximumf %80, %81 : vector<4x256xf32>
    %cst_36 = arith.constant 0.000000e+00 : f32
    %83 = vector.broadcast %cst_36 : f32 to vector<4x18x18xf32>
    %c0_37 = arith.constant 0 : index
    %c0_38 = arith.constant 0 : index
    %c0_39 = arith.constant 0 : index
    %84 = vector.load %arg11[%c0_37, %c0_38, %c0_39] : memref<4x18x18xf32, #tpu.memory_space<vmem>>, vector<4x18x18xf32>
    tpu.vector_store %arg11[%c0_37, %c0_38, %c0_39], %83 {strides = array<i32>} : memref<4x18x18xf32, #tpu.memory_space<vmem>>, vector<4x18x18xf32>,
    %85 = vector.shape_cast %82 : vector<4x256xf32> to vector<4x16x16xf32>
    %c0_40 = arith.constant 0 : index
    %c1_41 = arith.constant 1 : index
    %c1_42 = arith.constant 1 : index
    %86 = vector.load %arg11[%c0_40, %c1_41, %c1_42] : memref<4x18x18xf32, #tpu.memory_space<vmem>>, vector<4x16x16xf32>
    tpu.vector_store %arg11[%c0_40, %c1_41, %c1_42], %85 {strides = array<i32>} : memref<4x18x18xf32, #tpu.memory_space<vmem>>, vector<4x16x16xf32>,
    %c0_43 = arith.constant 0 : index
    %c0_44 = arith.constant 0 : index
    %c0_45 = arith.constant 0 : index
    %87 = vector.load %arg11[%c0_43, %c0_44, %c0_45] : memref<4x18x18xf32, #tpu.memory_space<vmem>>, vector<4x18x18xf32>
    %cst_46 = arith.constant 0.000000e+00 : f32
    %88 = vector.broadcast %cst_46 : f32 to vector<4x256xf32>
    %89 = vector.extract_strided_slice %87 {offsets = [0, 0, 0], sizes = [4, 16, 16], strides = [1, 1, 1]} : vector<4x18x18xf32> to vector<4x16x16xf32>
    %90 = vector.shape_cast %89 : vector<4x16x16xf32> to vector<4x256xf32>
    %c0_47 = arith.constant 0 : index
    %c0_48 = arith.constant 0 : index
    %c0_49 = arith.constant 0 : index
    %91 = vector.load %arg5[%c0_47, %c0_48, %c0_49] : memref<9x4x4xf32, #tpu.memory_space<vmem>>, vector<1x4x4xf32>
    %92 = vector.shape_cast %91 : vector<1x4x4xf32> to vector<4x4xf32>
    %93 = arith.truncf %92 : vector<4x4xf32> to vector<4x4xbf16>
    %94 = arith.truncf %90 : vector<4x256xf32> to vector<4x256xbf16>
    %cst_50 = arith.constant dense<0.000000e+00> : vector<4x256xf32>
    %95 = tpu.matmul %93, %94, %cst_50 {dimension_numbers = #tpu.dot_dimension_numbers<[1], [0], [0], [1], [0, 0, 1, 1], [], []>} : vector<4x4xbf16>, vector<4x256xbf16>, vector<4x256xf32> -> vector<4x256xf32>
    %96 = arith.addf %88, %95 : vector<4x256xf32>
    %97 = vector.extract_strided_slice %87 {offsets = [0, 0, 1], sizes = [4, 16, 16], strides = [1, 1, 1]} : vector<4x18x18xf32> to vector<4x16x16xf32>
    %98 = vector.shape_cast %97 : vector<4x16x16xf32> to vector<4x256xf32>
    %c1_51 = arith.constant 1 : index
    %c0_52 = arith.constant 0 : index
    %c0_53 = arith.constant 0 : index
    %99 = vector.load %arg5[%c1_51, %c0_52, %c0_53] : memref<9x4x4xf32, #tpu.memory_space<vmem>>, vector<1x4x4xf32>
    %100 = vector.shape_cast %99 : vector<1x4x4xf32> to vector<4x4xf32>
    %101 = arith.truncf %100 : vector<4x4xf32> to vector<4x4xbf16>
    %102 = arith.truncf %98 : vector<4x256xf32> to vector<4x256xbf16>
    %cst_54 = arith.constant dense<0.000000e+00> : vector<4x256xf32>
    %103 = tpu.matmul %101, %102, %cst_54 {dimension_numbers = #tpu.dot_dimension_numbers<[1], [0], [0], [1], [0, 0, 1, 1], [], []>} : vector<4x4xbf16>, vector<4x256xbf16>, vector<4x256xf32> -> vector<4x256xf32>
    %104 = arith.addf %96, %103 : vector<4x256xf32>
    %105 = vector.extract_strided_slice %87 {offsets = [0, 0, 2], sizes = [4, 16, 16], strides = [1, 1, 1]} : vector<4x18x18xf32> to vector<4x16x16xf32>
    %106 = vector.shape_cast %105 : vector<4x16x16xf32> to vector<4x256xf32>
    %c2_55 = arith.constant 2 : index
    %c0_56 = arith.constant 0 : index
    %c0_57 = arith.constant 0 : index
    %107 = vector.load %arg5[%c2_55, %c0_56, %c0_57] : memref<9x4x4xf32, #tpu.memory_space<vmem>>, vector<1x4x4xf32>
    %108 = vector.shape_cast %107 : vector<1x4x4xf32> to vector<4x4xf32>
    %109 = arith.truncf %108 : vector<4x4xf32> to vector<4x4xbf16>
    %110 = arith.truncf %106 : vector<4x256xf32> to vector<4x256xbf16>
    %cst_58 = arith.constant dense<0.000000e+00> : vector<4x256xf32>
    %111 = tpu.matmul %109, %110, %cst_58 {dimension_numbers = #tpu.dot_dimension_numbers<[1], [0], [0], [1], [0, 0, 1, 1], [], []>} : vector<4x4xbf16>, vector<4x256xbf16>, vector<4x256xf32> -> vector<4x256xf32>
    %112 = arith.addf %104, %111 : vector<4x256xf32>
    %113 = vector.extract_strided_slice %87 {offsets = [0, 1, 0], sizes = [4, 16, 16], strides = [1, 1, 1]} : vector<4x18x18xf32> to vector<4x16x16xf32>
    %114 = vector.shape_cast %113 : vector<4x16x16xf32> to vector<4x256xf32>
    %c3_59 = arith.constant 3 : index
    %c0_60 = arith.constant 0 : index
    %c0_61 = arith.constant 0 : index
    %115 = vector.load %arg5[%c3_59, %c0_60, %c0_61] : memref<9x4x4xf32, #tpu.memory_space<vmem>>, vector<1x4x4xf32>
    %116 = vector.shape_cast %115 : vector<1x4x4xf32> to vector<4x4xf32>
    %117 = arith.truncf %116 : vector<4x4xf32> to vector<4x4xbf16>
    %118 = arith.truncf %114 : vector<4x256xf32> to vector<4x256xbf16>
    %cst_62 = arith.constant dense<0.000000e+00> : vector<4x256xf32>
    %119 = tpu.matmul %117, %118, %cst_62 {dimension_numbers = #tpu.dot_dimension_numbers<[1], [0], [0], [1], [0, 0, 1, 1], [], []>} : vector<4x4xbf16>, vector<4x256xbf16>, vector<4x256xf32> -> vector<4x256xf32>
    %120 = arith.addf %112, %119 : vector<4x256xf32>
    %121 = vector.extract_strided_slice %87 {offsets = [0, 1, 1], sizes = [4, 16, 16], strides = [1, 1, 1]} : vector<4x18x18xf32> to vector<4x16x16xf32>
    %122 = vector.shape_cast %121 : vector<4x16x16xf32> to vector<4x256xf32>
    %c4_63 = arith.constant 4 : index
    %c0_64 = arith.constant 0 : index
    %c0_65 = arith.constant 0 : index
    %123 = vector.load %arg5[%c4_63, %c0_64, %c0_65] : memref<9x4x4xf32, #tpu.memory_space<vmem>>, vector<1x4x4xf32>
    %124 = vector.shape_cast %123 : vector<1x4x4xf32> to vector<4x4xf32>
    %125 = arith.truncf %124 : vector<4x4xf32> to vector<4x4xbf16>
    %126 = arith.truncf %122 : vector<4x256xf32> to vector<4x256xbf16>
    %cst_66 = arith.constant dense<0.000000e+00> : vector<4x256xf32>
    %127 = tpu.matmul %125, %126, %cst_66 {dimension_numbers = #tpu.dot_dimension_numbers<[1], [0], [0], [1], [0, 0, 1, 1], [], []>} : vector<4x4xbf16>, vector<4x256xbf16>, vector<4x256xf32> -> vector<4x256xf32>
    %128 = arith.addf %120, %127 : vector<4x256xf32>
    %129 = vector.extract_strided_slice %87 {offsets = [0, 1, 2], sizes = [4, 16, 16], strides = [1, 1, 1]} : vector<4x18x18xf32> to vector<4x16x16xf32>
    %130 = vector.shape_cast %129 : vector<4x16x16xf32> to vector<4x256xf32>
    %c5_67 = arith.constant 5 : index
    %c0_68 = arith.constant 0 : index
    %c0_69 = arith.constant 0 : index
    %131 = vector.load %arg5[%c5_67, %c0_68, %c0_69] : memref<9x4x4xf32, #tpu.memory_space<vmem>>, vector<1x4x4xf32>
    %132 = vector.shape_cast %131 : vector<1x4x4xf32> to vector<4x4xf32>
    %133 = arith.truncf %132 : vector<4x4xf32> to vector<4x4xbf16>
    %134 = arith.truncf %130 : vector<4x256xf32> to vector<4x256xbf16>
    %cst_70 = arith.constant dense<0.000000e+00> : vector<4x256xf32>
    %135 = tpu.matmul %133, %134, %cst_70 {dimension_numbers = #tpu.dot_dimension_numbers<[1], [0], [0], [1], [0, 0, 1, 1], [], []>} : vector<4x4xbf16>, vector<4x256xbf16>, vector<4x256xf32> -> vector<4x256xf32>
    %136 = arith.addf %128, %135 : vector<4x256xf32>
    %137 = vector.extract_strided_slice %87 {offsets = [0, 2, 0], sizes = [4, 16, 16], strides = [1, 1, 1]} : vector<4x18x18xf32> to vector<4x16x16xf32>
    %138 = vector.shape_cast %137 : vector<4x16x16xf32> to vector<4x256xf32>
    %c6_71 = arith.constant 6 : index
    %c0_72 = arith.constant 0 : index
    %c0_73 = arith.constant 0 : index
    %139 = vector.load %arg5[%c6_71, %c0_72, %c0_73] : memref<9x4x4xf32, #tpu.memory_space<vmem>>, vector<1x4x4xf32>
    %140 = vector.shape_cast %139 : vector<1x4x4xf32> to vector<4x4xf32>
    %141 = arith.truncf %140 : vector<4x4xf32> to vector<4x4xbf16>
    %142 = arith.truncf %138 : vector<4x256xf32> to vector<4x256xbf16>
    %cst_74 = arith.constant dense<0.000000e+00> : vector<4x256xf32>
    %143 = tpu.matmul %141, %142, %cst_74 {dimension_numbers = #tpu.dot_dimension_numbers<[1], [0], [0], [1], [0, 0, 1, 1], [], []>} : vector<4x4xbf16>, vector<4x256xbf16>, vector<4x256xf32> -> vector<4x256xf32>
    %144 = arith.addf %136, %143 : vector<4x256xf32>
    %145 = vector.extract_strided_slice %87 {offsets = [0, 2, 1], sizes = [4, 16, 16], strides = [1, 1, 1]} : vector<4x18x18xf32> to vector<4x16x16xf32>
    %146 = vector.shape_cast %145 : vector<4x16x16xf32> to vector<4x256xf32>
    %c7_75 = arith.constant 7 : index
    %c0_76 = arith.constant 0 : index
    %c0_77 = arith.constant 0 : index
    %147 = vector.load %arg5[%c7_75, %c0_76, %c0_77] : memref<9x4x4xf32, #tpu.memory_space<vmem>>, vector<1x4x4xf32>
    %148 = vector.shape_cast %147 : vector<1x4x4xf32> to vector<4x4xf32>
    %149 = arith.truncf %148 : vector<4x4xf32> to vector<4x4xbf16>
    %150 = arith.truncf %146 : vector<4x256xf32> to vector<4x256xbf16>
    %cst_78 = arith.constant dense<0.000000e+00> : vector<4x256xf32>
    %151 = tpu.matmul %149, %150, %cst_78 {dimension_numbers = #tpu.dot_dimension_numbers<[1], [0], [0], [1], [0, 0, 1, 1], [], []>} : vector<4x4xbf16>, vector<4x256xbf16>, vector<4x256xf32> -> vector<4x256xf32>
    %152 = arith.addf %144, %151 : vector<4x256xf32>
    %153 = vector.extract_strided_slice %87 {offsets = [0, 2, 2], sizes = [4, 16, 16], strides = [1, 1, 1]} : vector<4x18x18xf32> to vector<4x16x16xf32>
    %154 = vector.shape_cast %153 : vector<4x16x16xf32> to vector<4x256xf32>
    %c8_79 = arith.constant 8 : index
    %c0_80 = arith.constant 0 : index
    %c0_81 = arith.constant 0 : index
    %155 = vector.load %arg5[%c8_79, %c0_80, %c0_81] : memref<9x4x4xf32, #tpu.memory_space<vmem>>, vector<1x4x4xf32>
    %156 = vector.shape_cast %155 : vector<1x4x4xf32> to vector<4x4xf32>
    %157 = arith.truncf %156 : vector<4x4xf32> to vector<4x4xbf16>
    %158 = arith.truncf %154 : vector<4x256xf32> to vector<4x256xbf16>
    %cst_82 = arith.constant dense<0.000000e+00> : vector<4x256xf32>
    %159 = tpu.matmul %157, %158, %cst_82 {dimension_numbers = #tpu.dot_dimension_numbers<[1], [0], [0], [1], [0, 0, 1, 1], [], []>} : vector<4x4xbf16>, vector<4x256xbf16>, vector<4x256xf32> -> vector<4x256xf32>
    %160 = arith.addf %152, %159 : vector<4x256xf32>
    %c0_83 = arith.constant 0 : index
    %c0_84 = arith.constant 0 : index
    %161 = vector.load %arg6[%c0_83, %c0_84] : memref<4x1xf32, #tpu.memory_space<vmem>>, vector<4x1xf32>
    %162 = vector.broadcast %161 : vector<4x1xf32> to vector<4x256xf32>
    %163 = arith.mulf %160, %162 : vector<4x256xf32>
    %c0_85 = arith.constant 0 : index
    %c0_86 = arith.constant 0 : index
    %164 = vector.load %arg7[%c0_85, %c0_86] : memref<4x1xf32, #tpu.memory_space<vmem>>, vector<4x1xf32>
    %165 = vector.broadcast %164 : vector<4x1xf32> to vector<4x256xf32>
    %166 = arith.addf %163, %165 : vector<4x256xf32>
    %167 = vector.extract_strided_slice %1 {offsets = [0, 1, 1], sizes = [8, 16, 16], strides = [1, 1, 1]} : vector<8x18x18xf32> to vector<8x16x16xf32>
    %168 = vector.shape_cast %167 : vector<8x16x16xf32> to vector<8x256xf32>
    %c0_87 = arith.constant 0 : index
    %c0_88 = arith.constant 0 : index
    %169 = vector.load %arg8[%c0_87, %c0_88] : memref<4x8xf32, #tpu.memory_space<vmem>>, vector<4x8xf32>
    %170 = arith.truncf %169 : vector<4x8xf32> to vector<4x8xbf16>
    %171 = arith.truncf %168 : vector<8x256xf32> to vector<8x256xbf16>
    %cst_89 = arith.constant dense<0.000000e+00> : vector<4x256xf32>
    %172 = tpu.matmul %170, %171, %cst_89 {dimension_numbers = #tpu.dot_dimension_numbers<[1], [0], [0], [1], [0, 0, 1, 1], [], []>} : vector<4x8xbf16>, vector<8x256xbf16>, vector<4x256xf32> -> vector<4x256xf32>
    %173 = arith.addf %166, %172 : vector<4x256xf32>
    %c0_90 = arith.constant 0 : index
    %c0_91 = arith.constant 0 : index
    %174 = vector.load %arg9[%c0_90, %c0_91] : memref<4x1xf32, #tpu.memory_space<vmem>>, vector<4x1xf32>
    %175 = vector.broadcast %174 : vector<4x1xf32> to vector<4x256xf32>
    %176 = arith.addf %173, %175 : vector<4x256xf32>
    %cst_92 = arith.constant 0.000000e+00 : f32
    %177 = vector.broadcast %cst_92 : f32 to vector<4x256xf32>
    %178 = arith.maximumf %176, %177 : vector<4x256xf32>
    %179 = vector.shape_cast %178 : vector<4x256xf32> to vector<4x16x16xf32>
    %c0_93 = arith.constant 0 : index
    %c0_94 = arith.constant 0 : index
    %c0_95 = arith.constant 0 : index
    %c0_96 = arith.constant 0 : index
    %180 = vector.load %arg10[%c0_93, %c0_94, %c0_95, %c0_96] : memref<1x4x16x16xf32, #tpu.memory_space<vmem>>, vector<1x4x16x16xf32>
    %181 = vector.shape_cast %180 : vector<1x4x16x16xf32> to vector<4x16x16xf32>
    %182 = vector.shape_cast %179 : vector<4x16x16xf32> to vector<1x4x16x16xf32>
    tpu.vector_store %arg10[%c0_93, %c0_94, %c0_95, %c0_96], %182 {strides = array<i32>} : memref<1x4x16x16xf32, #tpu.memory_space<vmem>>, vector<1x4x16x16xf32>,
    return
  }
  func.func @transform_0(%arg0: i32) -> (i32, i32, i32, i32) {
    %c0_i32 = arith.constant 0 : i32
    %c0_i32_0 = arith.constant 0 : i32
    %c0_i32_1 = arith.constant 0 : i32
    %c0_i32_2 = arith.constant 0 : i32
    return %arg0, %c0_i32, %c0_i32_0, %c0_i32_1 : i32, i32, i32, i32
  }
  func.func @transform_1(%arg0: i32) -> (i32, i32, i32) {
    %c0_i32 = arith.constant 0 : i32
    %c0_i32_0 = arith.constant 0 : i32
    %c0_i32_1 = arith.constant 0 : i32
    %c0_i32_2 = arith.constant 0 : i32
    return %c0_i32, %c0_i32_0, %c0_i32_1 : i32, i32, i32
  }
  func.func @transform_2(%arg0: i32) -> (i32, i32) {
    %c0_i32 = arith.constant 0 : i32
    %c0_i32_0 = arith.constant 0 : i32
    %c0_i32_1 = arith.constant 0 : i32
    return %c0_i32, %c0_i32_0 : i32, i32
  }
  func.func @transform_3(%arg0: i32) -> (i32, i32) {
    %c0_i32 = arith.constant 0 : i32
    %c0_i32_0 = arith.constant 0 : i32
    %c0_i32_1 = arith.constant 0 : i32
    return %c0_i32, %c0_i32_0 : i32, i32
  }
  func.func @transform_4(%arg0: i32) -> (i32, i32, i32) {
    %c0_i32 = arith.constant 0 : i32
    %c0_i32_0 = arith.constant 0 : i32
    %c0_i32_1 = arith.constant 0 : i32
    %c0_i32_2 = arith.constant 0 : i32
    return %c0_i32, %c0_i32_0, %c0_i32_1 : i32, i32, i32
  }
  func.func @transform_5(%arg0: i32) -> (i32, i32) {
    %c0_i32 = arith.constant 0 : i32
    %c0_i32_0 = arith.constant 0 : i32
    %c0_i32_1 = arith.constant 0 : i32
    return %c0_i32, %c0_i32_0 : i32, i32
  }
  func.func @transform_6(%arg0: i32) -> (i32, i32) {
    %c0_i32 = arith.constant 0 : i32
    %c0_i32_0 = arith.constant 0 : i32
    %c0_i32_1 = arith.constant 0 : i32
    return %c0_i32, %c0_i32_0 : i32, i32
  }
  func.func @transform_7(%arg0: i32) -> (i32, i32) {
    %c0_i32 = arith.constant 0 : i32
    %c0_i32_0 = arith.constant 0 : i32
    %c0_i32_1 = arith.constant 0 : i32
    return %c0_i32, %c0_i32_0 : i32, i32
  }
  func.func @transform_8(%arg0: i32) -> (i32, i32) {
    %c0_i32 = arith.constant 0 : i32
    %c0_i32_0 = arith.constant 0 : i32
    %c0_i32_1 = arith.constant 0 : i32
    return %c0_i32, %c0_i32_0 : i32, i32
  }
  func.func @transform_9(%arg0: i32) -> (i32, i32, i32, i32) {
    %c0_i32 = arith.constant 0 : i32
    %c0_i32_0 = arith.constant 0 : i32
    %c0_i32_1 = arith.constant 0 : i32
    %c0_i32_2 = arith.constant 0 : i32
    return %arg0, %c0_i32, %c0_i32_0, %c0_i32_1 : i32, i32, i32, i32
  }
}

</mosaic_0001>

<llo_original>
// kernel: _lambda_.3
$region0: #{_lambda_.3}
  #allocation0 [shape = 'u32[]', space=smem, size = 0x4, offset = 0x4, fixed_abs, tag = 'smem constant byte address 0x4 - core index']
  #allocation1 [shape = 'u32[144,128]{1,0:T(1,128)}', space=vmem, size = 0x12000, scoped, tag = 'internal scratch']
  %s0 = inlined_call_operand.vmem [shape: f32[2,4,64], index: 0, kind: input, shape index: {}]
  %s1 = inlined_call_operand.vmem [shape: f32[16,4], index: 1, kind: input, shape index: {}]
  %s2 = inlined_call_operand.vmem [shape: f32[16,1], index: 2, kind: input, shape index: {}]
  %s3 = inlined_call_operand.vmem [shape: f32[2,16,64], index: 3, kind: output, shape index: {}]
  %s4 = sld [smem:[#allocation0]]
  $region45: #{_lambda_.3} parent=0
    _
  %s6 = ssub.s32 1, %s4
  %s7 = scalar_select 0, %s6, %s4
  loop: start=0, step=1, limit=4
  $region2: #{_lambda_.3} parent=0 // loop_pre_header
    _
  $region3: #{_lambda_.3} parent=0 // loop_header
    %s9 = sphi 0, %s13
    %p10 = scmp.ge.s32.totalorder %s9, 4
    %s19 = sphi 0, %s21
    %s22 = sphi 0, %s19
    %s23 = sphi 0, %s22
    %s39 = sphi 0, %s23
    %s43 = sphi 0, %s43
    %s45 = sphi 0, %s43
    %s46 = sphi 0, %s45
    %s60 = sphi 0, %s46
    %s64 = sphi 0, %s64
    %s66 = sphi 0, %s64
    %s67 = sphi 0, %s66
    %s81 = sphi 0, %s67
    %s87 = sphi 0, %s89
    %s90 = sphi 0, %s87
    %s91 = sphi 0, %s90
    %s107 = sphi 0, %s91
  $region4: #{_lambda_.3} parent=0 // loop_header_branch
    %12 = sbr.rel (%p10) target = $region8
  $region5: #{_lambda_.3} parent=0 // loop_body
    %s14 = ssub.s32 %s9, 1
    %s15 = ssub.s32 %s9, 2
    %s16 = sadd.s32 %s9, 1
    %s17 = ssub.s32 %s9, %s16
    %p18 = scmp.eq.s32.totalorder %s17, 0
    %s20 = sadd.s32 %s19, 1
    %s21 = scalar_select %p18, %s19, %s20
    %p24 = pneg %p18
    %p25 = scmp.eq.s32.totalorder %s9, 1
    %p26 = por %p24, %p25
    %p27 = scmp.ne.s32.totalorder %s19, %s22
    %p28 = scmp.eq.s32.totalorder %s9, 0
    %p29 = por %p27, %p28
    %p30 = scmp.ne.s32.totalorder %s19, %s22
    %p31 = scmp.eq.s32.totalorder %s14, 1
    %p32 = por %p30, %p31
    %p33 = scmp.ne.s32.totalorder %s22, %s23
    %p34 = scmp.eq.s32.totalorder %s14, 0
    %p35 = por %p33, %p34
    %p36 = scmp.ne.s32.totalorder %s22, %s23
    %p37 = scmp.eq.s32.totalorder %s15, 1
    %p38 = por %p36, %p37
    %p40 = scmp.ne.s32.totalorder %s23, %s39
    %p41 = scmp.eq.s32.totalorder %s15, 0
    %p42 = por %p40, %p41
    %s44 = sadd.s32 %s43, 1
    %p47 = scmp.eq.s32.totalorder %s9, 1
    %p48 = scmp.ne.s32.totalorder %s43, %s45
    %p49 = scmp.eq.s32.totalorder %s9, 0
    %p50 = por %p48, %p49
    %p51 = scmp.ne.s32.totalorder %s43, %s45
    %p52 = scmp.eq.s32.totalorder %s14, 1
    %p53 = por %p51, %p52
    %p54 = scmp.ne.s32.totalorder %s45, %s46
    %p55 = scmp.eq.s32.totalorder %s14, 0
    %p56 = por %p54, %p55
    %p57 = scmp.ne.s32.totalorder %s45, %s46
    %p58 = scmp.eq.s32.totalorder %s15, 1
    %p59 = por %p57, %p58
    %p61 = scmp.ne.s32.totalorder %s46, %s60
    %p62 = scmp.eq.s32.totalorder %s15, 0
    %p63 = por %p61, %p62
    %s65 = sadd.s32 %s64, 1
    %p68 = scmp.eq.s32.totalorder %s9, 1
    %p69 = scmp.ne.s32.totalorder %s64, %s66
    %p70 = scmp.eq.s32.totalorder %s9, 0
    %p71 = por %p69, %p70
    %p72 = scmp.ne.s32.totalorder %s64, %s66
    %p73 = scmp.eq.s32.totalorder %s14, 1
    %p74 = por %p72, %p73
    %p75 = scmp.ne.s32.totalorder %s66, %s67
    %p76 = scmp.eq.s32.totalorder %s14, 0
    %p77 = por %p75, %p76
    %p78 = scmp.ne.s32.totalorder %s66, %s67
    %p79 = scmp.eq.s32.totalorder %s15, 1
    %p80 = por %p78, %p79
    %p82 = scmp.ne.s32.totalorder %s67, %s81
    %p83 = scmp.eq.s32.totalorder %s15, 0
    %p84 = por %p82, %p83
    %s85 = ssub.s32 %s9, %s16
    %p86 = scmp.eq.s32.totalorder %s85, 0
    %s88 = sadd.s32 %s87, 1
    %s89 = scalar_select %p86, %s87, %s88
    %p92 = pneg %p86
    %p93 = scmp.eq.s32.totalorder %s9, 1
    %p94 = por %p92, %p93
    %p95 = scmp.ne.s32.totalorder %s87, %s90
    %p96 = scmp.eq.s32.totalorder %s9, 0
    %p97 = por %p95, %p96
    %p98 = scmp.ne.s32.totalorder %s87, %s90
    %p99 = scmp.eq.s32.totalorder %s14, 1
    %p100 = por %p98, %p99
    %p101 = scmp.ne.s32.totalorder %s90, %s91
    %p102 = scmp.eq.s32.totalorder %s14, 0
    %p103 = por %p101, %p102
    %p104 = scmp.ne.s32.totalorder %s90, %s91
    %p105 = scmp.eq.s32.totalorder %s15, 1
    %p106 = por %p104, %p105
    %p108 = scmp.ne.s32.totalorder %s91, %s107
    %p109 = scmp.eq.s32.totalorder %s15, 0
    %p110 = por %p108, %p109
    %p111 = scmp.le.s32.totalorder 1, %s9
    %p112 = scmp.lt.s32.totalorder %s9, 3
    %p113 = pnand %p111, %p112
    %p114 = pneg %p113
    // Predicated region
    $region9: #{_lambda_.3} parent=5 // pred_check
      _
    $region10: #{_lambda_.3} parent=5 // pred_check_branch
      %116 = sbr.rel (%p113) target = $region12
    $region11: #{_lambda_.3} parent=5 // pred_region
      %s117 = ssub.s32 %s9, 1
      // Predicated region
      $region13: #{_lambda_.3} parent=11 // pred_check
        %p118 = pneg %p56
      $region14: #{_lambda_.3} parent=11 // pred_check_branch
        %120 = sbr.rel (%p118) target = $region16
      $region15: #{_lambda_.3} parent=11 // pred_region
        _
      $region16: #{_lambda_.3} parent=11 // pred_fallthru
        _
      // Predicated region
      $region17: #{_lambda_.3} parent=11 // pred_check
        %p121 = pneg %p77
      $region18: #{_lambda_.3} parent=11 // pred_check_branch
        %123 = sbr.rel (%p121) target = $region20
      $region19: #{_lambda_.3} parent=11 // pred_region
        _
      $region20: #{_lambda_.3} parent=11 // pred_fallthru
        _
    $region12: #{_lambda_.3} parent=5 // pred_fallthru
      _
    %p124 = scmp.lt.s32.totalorder %s9, 2
    // Predicated region
    $region21: #{_lambda_.3} parent=5 // pred_check
      %p125 = pneg %p124
    $region22: #{_lambda_.3} parent=5 // pred_check_branch
      %127 = sbr.rel (%p125) target = $region24
    $region23: #{_lambda_.3} parent=5 // pred_region
      // Predicated region
      $region25: #{_lambda_.3} parent=23 // pred_check
        %p128 = pneg %p29
      $region26: #{_lambda_.3} parent=23 // pred_check_branch
        %130 = sbr.rel (%p128) target = $region28
      $region27: #{_lambda_.3} parent=23 // pred_region
        %p131 = scmp.lt.s32.totalorder %s9, 1
        %s132 = scalar_select %p131, %s9, 1
        %s133 = smul.addr %s132, 4
        %s134 = scalar_lea.vmem %s0, %s133
      $region28: #{_lambda_.3} parent=23 // pred_fallthru
        _
    $region24: #{_lambda_.3} parent=5 // pred_fallthru
      _
    %p135 = scmp.le.s32.totalorder 1, %s9
    %p136 = scmp.lt.s32.totalorder %s9, 3
    %p137 = pnand %p135, %p136
    %p138 = pneg %p137
    // Predicated region
    $region29: #{_lambda_.3} parent=5 // pred_check
      _
    $region30: #{_lambda_.3} parent=5 // pred_check_branch
      %140 = sbr.rel (%p137) target = $region32
    $region31: #{_lambda_.3} parent=5 // pred_region
      %s141 = ssub.s32 %s9, 1
      %p142 = scmp.lt.s32.totalorder %s14, 1
      %s143 = scalar_select %p142, %s14, 1
      %s144 = smul.addr %s143, 4
      %s145 = scalar_lea.vmem %s0, %s144
      %p146 = pneg %p35
      %p147 = pneg %p32
      %p148 = pneg %p56
      %p149 = pneg %p53
      %p150 = pneg %p77
      %p151 = pneg %p74
      %p152 = pneg %p103
      %p153 = pneg %p100
      %p154 = scmp.lt.s32.totalorder %s14, 1
      %s155 = scalar_select %p154, %s14, 1
      %s156 = smul.addr %s155, 2
      %s157 = smul.addr %s156, 8
      %s158 = scalar_lea.vmem %s3, %s157
      %p159 = scmp.lt.s32.totalorder %s14, 1
      %s160 = scalar_select %p159, %s14, 1
      %s161 = smul.addr %s160, 4
      %s162 = scalar_lea.vmem %s0, %s161
      %p163 = scmp.lt.s32.totalorder %s14, 1
      %s164 = scalar_select %p163, %s14, 1
      %s165 = smul.addr %s164, 2
      %s166 = smul.addr %s165, 8
      %s167 = scalar_lea.vmem %s3, %s166
      %v169 = vld [vmem:[%s162] sm:$0xf]
      %v170 = vld [vmem:[%s1] sm:$0xff]
      %v171 = vld [vmem:[%s1 + $0x8] sm:$0xff]
      %v172 = vpack.c.bf16 %v171, %v170
      %v173 = vpack.c.bf16 %v169, %v169
      %v174 = vld [vmem:[%s2] sm:$0xff]
      %v175 = vld [vmem:[%s2 + $0x8] sm:$0xff]
      %177 = vset.pattern.permute.xlu0 0
      %178 = vperm.xlu0 %177, %v174
      %v179 = vpop.permute.xlu0 %178
      %182 = vset.pattern.permute.xlu0 0
      %183 = vperm.xlu0 %182, %v175
      %v184 = vpop.permute.xlu0 %183
      %vm186 = vcmask 31744
      %v188 = vsel %vm186, %v172, 0
      %vm190 = vcmask 1041408
      %v192 = vsel %vm190, %v173, 0
      %194 = vmatprep.subr.bf16.mxu0 0
      %195 = vmatpush1.bf16.msra.mxu0 0
      %196 = vmatprep.subr.bf16.mxu0 0
      %197 = vmatpush1.bf16.msra.mxu0 0
      %198 = vmatprep.subr.bf16.mxu0 0
      %199 = vmatpush1.bf16.msra.mxu0 0
      %200 = vmatprep.subr.bf16.mxu0 0
      %201 = vmatpush1.bf16.msra.mxu0 0
      %202 = vmatprep.subr.bf16.mxu0 0
      %203 = vmatpush1.bf16.msra.mxu0 0
      %204 = vmatprep.subr.bf16.mxu0 0
      %205 = vmatpush1.bf16.msra.mxu0 0
      %206 = vmatprep.subr.bf16.mxu0 0
      %207 = vmatpush1.bf16.msra.mxu0 0
      %208 = vmatprep.subr.bf16.mxu0 0
      %209 = vmatpush1.bf16.msra.mxu0 %v192
      %210 = vmatprep.subr.bf16.mxu0 0
      %211 = vmatpush2.bf16.msra.mxu0 0
      %212 = vmatprep.subr.bf16.mxu0 0
      %213 = vmatpush2.bf16.msra.mxu0 0
      %214 = vmatprep.subr.bf16.mxu0 0
      %215 = vmatpush2.bf16.msra.mxu0 0
      %216 = vmatprep.subr.bf16.mxu0 0
      %217 = vmatpush2.bf16.msra.mxu0 0
      %218 = vmatprep.subr.bf16.mxu0 0
      %219 = vmatpush2.bf16.msra.mxu0 0
      %220 = vmatprep.subr.bf16.mxu0 0
      %221 = vmatpush2.bf16.msra.mxu0 0
      %222 = vmatprep.subr.bf16.mxu0 0
      %223 = vmatpush2.bf16.msra.mxu0 0
      %224 = vmatprep.subr.bf16.mxu0 0
      %225 = vmatpush2.bf16.msra.mxu0 0
      %226 = vmatprep.mubr.bf16.mxu0 0
      %227 = vmatmul.mubr.bf16.gmra.mxu0 %v188
      %v228 = vpop.f32.mrf.mxu0
      %v229 = vadd.f32 %v179, %v228
      %v230 = vpop.f32.mrf.mxu0
      %v231 = vpop.f32.mrf.mxu0
      %v232 = vadd.f32 %v184, %v231
      %v233 = vpop.f32.mrf.mxu0
      %234 = vdwg.mxu0
      %vm235 = vcmask 523264
      %236 = vst.msk [vmem:[%s167] sm:$0xff] %vm235, %v229
      %237 = vst.msk [vmem:[%s167 + $0x8] sm:$0xff] %vm235, %v232
      %p238 = scmp.lt.s32.totalorder %s14, 1
      %s239 = scalar_select %p238, %s14, 1
      %s240 = smul.addr %s239, 2
      %s241 = smul.addr %s240, 8
      %s242 = scalar_lea.vmem %s3, %s241
      // Predicated region
      $region33: #{_lambda_.3} parent=31 // pred_check
        %p243 = pneg %p100
      $region34: #{_lambda_.3} parent=31 // pred_check_branch
        %245 = sbr.rel (%p243) target = $region36
      $region35: #{_lambda_.3} parent=31 // pred_region
        _
      $region36: #{_lambda_.3} parent=31 // pred_fallthru
        _
    $region32: #{_lambda_.3} parent=5 // pred_fallthru
      _
    %p246 = scmp.le.s32.totalorder 2, %s9
    // Predicated region
    $region37: #{_lambda_.3} parent=5 // pred_check
      %p247 = pneg %p246
    $region38: #{_lambda_.3} parent=5 // pred_check_branch
      %249 = sbr.rel (%p247) target = $region40
    $region39: #{_lambda_.3} parent=5 // pred_region
      %s250 = ssub.s32 %s9, 2
      // Predicated region
      $region41: #{_lambda_.3} parent=39 // pred_check
        %p251 = pneg %p106
      $region42: #{_lambda_.3} parent=39 // pred_check_branch
        %253 = sbr.rel (%p251) target = $region44
      $region43: #{_lambda_.3} parent=39 // pred_region
        %p254 = scmp.lt.s32.totalorder %s15, 1
        %s255 = scalar_select %p254, %s15, 1
        %s256 = smul.addr %s255, 2
        %s257 = smul.addr %s256, 8
        %s258 = scalar_lea.vmem %s3, %s257
      $region44: #{_lambda_.3} parent=39 // pred_fallthru
        _
    $region40: #{_lambda_.3} parent=5 // pred_fallthru
      _
  $region6: #{_lambda_.3} parent=0 // loop_footer
    %s13 = sadd.s32 1, %s9
  $region7: #{_lambda_.3} parent=0 // loop_footer_branch
    %8 = sbr.rel target = $region3
  $region8: #{_lambda_.3} parent=0 // loop_exit
    _

// kernel: _lambda_.4
$region0: #{_lambda_.4}
  #allocation0 [shape = 'u32[]', space=smem, size = 0x4, offset = 0x4, fixed_abs, tag = 'smem constant byte address 0x4 - core index']
  #allocation1 [shape = 'u32[144,128]{1,0:T(1,128)}', space=vmem, size = 0x12000, scoped, tag = 'internal scratch']
  %s0 = inlined_call_operand.vmem [shape: f32[2,64,16], index: 0, kind: input, shape index: {}]
  %s1 = inlined_call_operand.vmem [shape: f32[2,64,16], index: 1, kind: input, shape index: {}]
  %s2 = inlined_call_operand.vmem [shape: f32[16,48], index: 2, kind: input, shape index: {}]
  %s3 = inlined_call_operand.vmem [shape: f32[1,48], index: 3, kind: input, shape index: {}]
  %s4 = inlined_call_operand.vmem [shape: f32[16,16], index: 4, kind: input, shape index: {}]
  %s5 = inlined_call_operand.vmem [shape: f32[1,16], index: 5, kind: input, shape index: {}]
  %s6 = inlined_call_operand.vmem [shape: f32[16,16], index: 6, kind: input, shape index: {}]
  %s7 = inlined_call_operand.vmem [shape: f32[1,16], index: 7, kind: input, shape index: {}]
  %s8 = inlined_call_operand.vmem [shape: f32[16,32], index: 8, kind: input, shape index: {}]
  %s9 = inlined_call_operand.vmem [shape: f32[1,32], index: 9, kind: input, shape index: {}]
  %s10 = inlined_call_operand.vmem [shape: f32[16,16], index: 10, kind: input, shape index: {}]
  %s11 = inlined_call_operand.vmem [shape: f32[1,16], index: 11, kind: input, shape index: {}]
  %s12 = inlined_call_operand.vmem [shape: f32[16,32], index: 12, kind: input, shape index: {}]
  %s13 = inlined_call_operand.vmem [shape: f32[1,32], index: 13, kind: input, shape index: {}]
  %s14 = inlined_call_operand.vmem [shape: f32[32,16], index: 14, kind: input, shape index: {}]
  %s15 = inlined_call_operand.vmem [shape: f32[1,16], index: 15, kind: input, shape index: {}]
  %s16 = inlined_call_operand.vmem [shape: f32[1,16], index: 16, kind: input, shape index: {}, may-alias: {16,18,20}]
  %s17 = inlined_call_operand.vmem [shape: f32[1,16], index: 17, kind: input, shape index: {}, may-alias: {17,19,21}]
  %s18 = inlined_call_operand.vmem [shape: f32[1,16], index: 18, kind: input, shape index: {}, may-alias: {16,18,20}]
  %s19 = inlined_call_operand.vmem [shape: f32[1,16], index: 19, kind: input, shape index: {}, may-alias: {17,19,21}]
  %s20 = inlined_call_operand.vmem [shape: f32[1,16], index: 20, kind: input, shape index: {}, may-alias: {16,18,20}]
  %s21 = inlined_call_operand.vmem [shape: f32[1,16], index: 21, kind: input, shape index: {}, may-alias: {17,19,21}]
  %s22 = inlined_call_operand.vmem [shape: f32[2,64,16], index: 22, kind: output, shape index: {}]
  %s23 = sld [smem:[#allocation0]]
  $region121: #{_lambda_.4} parent=0
    _
  %s25 = ssub.s32 1, %s23
  %s26 = scalar_select 0, %s25, %s23
  loop: start=0, step=1, limit=4
  $region2: #{_lambda_.4} parent=0 // loop_pre_header
    _
  $region3: #{_lambda_.4} parent=0 // loop_header
    %s28 = sphi 0, %s32
    %p29 = scmp.ge.s32.totalorder %s28, 4
    %s38 = sphi 0, %s40
    %s41 = sphi 0, %s38
    %s42 = sphi 0, %s41
    %s58 = sphi 0, %s42
    %s64 = sphi 0, %s66
    %s67 = sphi 0, %s64
    %s68 = sphi 0, %s67
    %s84 = sphi 0, %s68
    %s88 = sphi 0, %s88
    %s90 = sphi 0, %s88
    %s91 = sphi 0, %s90
    %s105 = sphi 0, %s91
    %s109 = sphi 0, %s109
    %s111 = sphi 0, %s109
    %s112 = sphi 0, %s111
    %s126 = sphi 0, %s112
    %s130 = sphi 0, %s130
    %s132 = sphi 0, %s130
    %s133 = sphi 0, %s132
    %s147 = sphi 0, %s133
    %s151 = sphi 0, %s151
    %s153 = sphi 0, %s151
    %s154 = sphi 0, %s153
    %s168 = sphi 0, %s154
    %s172 = sphi 0, %s172
    %s174 = sphi 0, %s172
    %s175 = sphi 0, %s174
    %s189 = sphi 0, %s175
    %s193 = sphi 0, %s193
    %s195 = sphi 0, %s193
    %s196 = sphi 0, %s195
    %s210 = sphi 0, %s196
    %s214 = sphi 0, %s214
    %s216 = sphi 0, %s214
    %s217 = sphi 0, %s216
    %s231 = sphi 0, %s217
    %s235 = sphi 0, %s235
    %s237 = sphi 0, %s235
    %s238 = sphi 0, %s237
    %s252 = sphi 0, %s238
    %s256 = sphi 0, %s256
    %s258 = sphi 0, %s256
    %s259 = sphi 0, %s258
    %s273 = sphi 0, %s259
    %s277 = sphi 0, %s277
    %s279 = sphi 0, %s277
    %s280 = sphi 0, %s279
    %s294 = sphi 0, %s280
    %s298 = sphi 0, %s298
    %s300 = sphi 0, %s298
    %s301 = sphi 0, %s300
    %s315 = sphi 0, %s301
    %s319 = sphi 0, %s319
    %s321 = sphi 0, %s319
    %s322 = sphi 0, %s321
    %s336 = sphi 0, %s322
    %s340 = sphi 0, %s340
    %s342 = sphi 0, %s340
    %s343 = sphi 0, %s342
    %s357 = sphi 0, %s343
    %s361 = sphi 0, %s361
    %s363 = sphi 0, %s361
    %s364 = sphi 0, %s363
    %s378 = sphi 0, %s364
    %s382 = sphi 0, %s382
    %s384 = sphi 0, %s382
    %s385 = sphi 0, %s384
    %s399 = sphi 0, %s385
    %s403 = sphi 0, %s403
    %s405 = sphi 0, %s403
    %s406 = sphi 0, %s405
    %s420 = sphi 0, %s406
    %s424 = sphi 0, %s424
    %s426 = sphi 0, %s424
    %s427 = sphi 0, %s426
    %s441 = sphi 0, %s427
    %s445 = sphi 0, %s445
    %s447 = sphi 0, %s445
    %s448 = sphi 0, %s447
    %s462 = sphi 0, %s448
    %s466 = sphi 0, %s466
    %s468 = sphi 0, %s466
    %s469 = sphi 0, %s468
    %s483 = sphi 0, %s469
    %s487 = sphi 0, %s487
    %s489 = sphi 0, %s487
    %s490 = sphi 0, %s489
    %s504 = sphi 0, %s490
    %s510 = sphi 0, %s512
    %s513 = sphi 0, %s510
    %s514 = sphi 0, %s513
    %s530 = sphi 0, %s514
  $region4: #{_lambda_.4} parent=0 // loop_header_branch
    %31 = sbr.rel (%p29) target = $region8
  $region5: #{_lambda_.4} parent=0 // loop_body
    %s33 = ssub.s32 %s28, 1
    %s34 = ssub.s32 %s28, 2
    %s35 = sadd.s32 %s28, 1
    %s36 = ssub.s32 %s28, %s35
    %p37 = scmp.eq.s32.totalorder %s36, 0
    %s39 = sadd.s32 %s38, 1
    %s40 = scalar_select %p37, %s38, %s39
    %p43 = pneg %p37
    %p44 = scmp.eq.s32.totalorder %s28, 1
    %p45 = por %p43, %p44
    %p46 = scmp.ne.s32.totalorder %s38, %s41
    %p47 = scmp.eq.s32.totalorder %s28, 0
    %p48 = por %p46, %p47
    %p49 = scmp.ne.s32.totalorder %s38, %s41
    %p50 = scmp.eq.s32.totalorder %s33, 1
    %p51 = por %p49, %p50
    %p52 = scmp.ne.s32.totalorder %s41, %s42
    %p53 = scmp.eq.s32.totalorder %s33, 0
    %p54 = por %p52, %p53
    %p55 = scmp.ne.s32.totalorder %s41, %s42
    %p56 = scmp.eq.s32.totalorder %s34, 1
    %p57 = por %p55, %p56
    %p59 = scmp.ne.s32.totalorder %s42, %s58
    %p60 = scmp.eq.s32.totalorder %s34, 0
    %p61 = por %p59, %p60
    %s62 = ssub.s32 %s28, %s35
    %p63 = scmp.eq.s32.totalorder %s62, 0
    %s65 = sadd.s32 %s64, 1
    %s66 = scalar_select %p63, %s64, %s65
    %p69 = pneg %p63
    %p70 = scmp.eq.s32.totalorder %s28, 1
    %p71 = por %p69, %p70
    %p72 = scmp.ne.s32.totalorder %s64, %s67
    %p73 = scmp.eq.s32.totalorder %s28, 0
    %p74 = por %p72, %p73
    %p75 = scmp.ne.s32.totalorder %s64, %s67
    %p76 = scmp.eq.s32.totalorder %s33, 1
    %p77 = por %p75, %p76
    %p78 = scmp.ne.s32.totalorder %s67, %s68
    %p79 = scmp.eq.s32.totalorder %s33, 0
    %p80 = por %p78, %p79
    %p81 = scmp.ne.s32.totalorder %s67, %s68
    %p82 = scmp.eq.s32.totalorder %s34, 1
    %p83 = por %p81, %p82
    %p85 = scmp.ne.s32.totalorder %s68, %s84
    %p86 = scmp.eq.s32.totalorder %s34, 0
    %p87 = por %p85, %p86
    %s89 = sadd.s32 %s88, 1
    %p92 = scmp.eq.s32.totalorder %s28, 1
    %p93 = scmp.ne.s32.totalorder %s88, %s90
    %p94 = scmp.eq.s32.totalorder %s28, 0
    %p95 = por %p93, %p94
    %p96 = scmp.ne.s32.totalorder %s88, %s90
    %p97 = scmp.eq.s32.totalorder %s33, 1
    %p98 = por %p96, %p97
    %p99 = scmp.ne.s32.totalorder %s90, %s91
    %p100 = scmp.eq.s32.totalorder %s33, 0
    %p101 = por %p99, %p100
    %p102 = scmp.ne.s32.totalorder %s90, %s91
    %p103 = scmp.eq.s32.totalorder %s34, 1
    %p104 = por %p102, %p103
    %p106 = scmp.ne.s32.totalorder %s91, %s105
    %p107 = scmp.eq.s32.totalorder %s34, 0
    %p108 = por %p106, %p107
    %s110 = sadd.s32 %s109, 1
    %p113 = scmp.eq.s32.totalorder %s28, 1
    %p114 = scmp.ne.s32.totalorder %s109, %s111
    %p115 = scmp.eq.s32.totalorder %s28, 0
    %p116 = por %p114, %p115
    %p117 = scmp.ne.s32.totalorder %s109, %s111
    %p118 = scmp.eq.s32.totalorder %s33, 1
    %p119 = por %p117, %p118
    %p120 = scmp.ne.s32.totalorder %s111, %s112
    %p121 = scmp.eq.s32.totalorder %s33, 0
    %p122 = por %p120, %p121
    %p123 = scmp.ne.s32.totalorder %s111, %s112
    %p124 = scmp.eq.s32.totalorder %s34, 1
    %p125 = por %p123, %p124
    %p127 = scmp.ne.s32.totalorder %s112, %s126
    %p128 = scmp.eq.s32.totalorder %s34, 0
    %p129 = por %p127, %p128
    %s131 = sadd.s32 %s130, 1
    %p134 = scmp.eq.s32.totalorder %s28, 1
    %p135 = scmp.ne.s32.totalorder %s130, %s132
    %p136 = scmp.eq.s32.totalorder %s28, 0
    %p137 = por %p135, %p136
    %p138 = scmp.ne.s32.totalorder %s130, %s132
    %p139 = scmp.eq.s32.totalorder %s33, 1
    %p140 = por %p138, %p139
    %p141 = scmp.ne.s32.totalorder %s132, %s133
    %p142 = scmp.eq.s32.totalorder %s33, 0
    %p143 = por %p141, %p142
    %p144 = scmp.ne.s32.totalorder %s132, %s133
    %p145 = scmp.eq.s32.totalorder %s34, 1
    %p146 = por %p144, %p145
    %p148 = scmp.ne.s32.totalorder %s133, %s147
    %p149 = scmp.eq.s32.totalorder %s34, 0
    %p150 = por %p148, %p149
    %s152 = sadd.s32 %s151, 1
    %p155 = scmp.eq.s32.totalorder %s28, 1
    %p156 = scmp.ne.s32.totalorder %s151, %s153
    %p157 = scmp.eq.s32.totalorder %s28, 0
    %p158 = por %p156, %p157
    %p159 = scmp.ne.s32.totalorder %s151, %s153
    %p160 = scmp.eq.s32.totalorder %s33, 1
    %p161 = por %p159, %p160
    %p162 = scmp.ne.s32.totalorder %s153, %s154
    %p163 = scmp.eq.s32.totalorder %s33, 0
    %p164 = por %p162, %p163
    %p165 = scmp.ne.s32.totalorder %s153, %s154
    %p166 = scmp.eq.s32.totalorder %s34, 1
    %p167 = por %p165, %p166
    %p169 = scmp.ne.s32.totalorder %s154, %s168
    %p170 = scmp.eq.s32.totalorder %s34, 0
    %p171 = por %p169, %p170
    %s173 = sadd.s32 %s172, 1
    %p176 = scmp.eq.s32.totalorder %s28, 1
    %p177 = scmp.ne.s32.totalorder %s172, %s174
    %p178 = scmp.eq.s32.totalorder %s28, 0
    %p179 = por %p177, %p178
    %p180 = scmp.ne.s32.totalorder %s172, %s174
    %p181 = scmp.eq.s32.totalorder %s33, 1
    %p182 = por %p180, %p181
    %p183 = scmp.ne.s32.totalorder %s174, %s175
    %p184 = scmp.eq.s32.totalorder %s33, 0
    %p185 = por %p183, %p184
    %p186 = scmp.ne.s32.totalorder %s174, %s175
    %p187 = scmp.eq.s32.totalorder %s34, 1
    %p188 = por %p186, %p187
    %p190 = scmp.ne.s32.totalorder %s175, %s189
    %p191 = scmp.eq.s32.totalorder %s34, 0
    %p192 = por %p190, %p191
    %s194 = sadd.s32 %s193, 1
    %p197 = scmp.eq.s32.totalorder %s28, 1
    %p198 = scmp.ne.s32.totalorder %s193, %s195
    %p199 = scmp.eq.s32.totalorder %s28, 0
    %p200 = por %p198, %p199
    %p201 = scmp.ne.s32.totalorder %s193, %s195
    %p202 = scmp.eq.s32.totalorder %s33, 1
    %p203 = por %p201, %p202
    %p204 = scmp.ne.s32.totalorder %s195, %s196
    %p205 = scmp.eq.s32.totalorder %s33, 0
    %p206 = por %p204, %p205
    %p207 = scmp.ne.s32.totalorder %s195, %s196
    %p208 = scmp.eq.s32.totalorder %s34, 1
    %p209 = por %p207, %p208
    %p211 = scmp.ne.s32.totalorder %s196, %s210
    %p212 = scmp.eq.s32.totalorder %s34, 0
    %p213 = por %p211, %p212
    %s215 = sadd.s32 %s214, 1
    %p218 = scmp.eq.s32.totalorder %s28, 1
    %p219 = scmp.ne.s32.totalorder %s214, %s216
    %p220 = scmp.eq.s32.totalorder %s28, 0
    %p221 = por %p219, %p220
    %p222 = scmp.ne.s32.totalorder %s214, %s216
    %p223 = scmp.eq.s32.totalorder %s33, 1
    %p224 = por %p222, %p223
    %p225 = scmp.ne.s32.totalorder %s216, %s217
    %p226 = scmp.eq.s32.totalorder %s33, 0
    %p227 = por %p225, %p226
    %p228 = scmp.ne.s32.totalorder %s216, %s217
    %p229 = scmp.eq.s32.totalorder %s34, 1
    %p230 = por %p228, %p229
    %p232 = scmp.ne.s32.totalorder %s217, %s231
    %p233 = scmp.eq.s32.totalorder %s34, 0
    %p234 = por %p232, %p233
    %s236 = sadd.s32 %s235, 1
    %p239 = scmp.eq.s32.totalorder %s28, 1
    %p240 = scmp.ne.s32.totalorder %s235, %s237
    %p241 = scmp.eq.s32.totalorder %s28, 0
    %p242 = por %p240, %p241
    %p243 = scmp.ne.s32.totalorder %s235, %s237
    %p244 = scmp.eq.s32.totalorder %s33, 1
    %p245 = por %p243, %p244
    %p246 = scmp.ne.s32.totalorder %s237, %s238
    %p247 = scmp.eq.s32.totalorder %s33, 0
    %p248 = por %p246, %p247
    %p249 = scmp.ne.s32.totalorder %s237, %s238
    %p250 = scmp.eq.s32.totalorder %s34, 1
    %p251 = por %p249, %p250
    %p253 = scmp.ne.s32.totalorder %s238, %s252
    %p254 = scmp.eq.s32.totalorder %s34, 0
    %p255 = por %p253, %p254
    %s257 = sadd.s32 %s256, 1
    %p260 = scmp.eq.s32.totalorder %s28, 1
    %p261 = scmp.ne.s32.totalorder %s256, %s258
    %p262 = scmp.eq.s32.totalorder %s28, 0
    %p263 = por %p261, %p262
    %p264 = scmp.ne.s32.totalorder %s256, %s258
    %p265 = scmp.eq.s32.totalorder %s33, 1
    %p266 = por %p264, %p265
    %p267 = scmp.ne.s32.totalorder %s258, %s259
    %p268 = scmp.eq.s32.totalorder %s33, 0
    %p269 = por %p267, %p268
    %p270 = scmp.ne.s32.totalorder %s258, %s259
    %p271 = scmp.eq.s32.totalorder %s34, 1
    %p272 = por %p270, %p271
    %p274 = scmp.ne.s32.totalorder %s259, %s273
    %p275 = scmp.eq.s32.totalorder %s34, 0
    %p276 = por %p274, %p275
    %s278 = sadd.s32 %s277, 1
    %p281 = scmp.eq.s32.totalorder %s28, 1
    %p282 = scmp.ne.s32.totalorder %s277, %s279
    %p283 = scmp.eq.s32.totalorder %s28, 0
    %p284 = por %p282, %p283
    %p285 = scmp.ne.s32.totalorder %s277, %s279
    %p286 = scmp.eq.s32.totalorder %s33, 1
    %p287 = por %p285, %p286
    %p288 = scmp.ne.s32.totalorder %s279, %s280
    %p289 = scmp.eq.s32.totalorder %s33, 0
    %p290 = por %p288, %p289
    %p291 = scmp.ne.s32.totalorder %s279, %s280
    %p292 = scmp.eq.s32.totalorder %s34, 1
    %p293 = por %p291, %p292
    %p295 = scmp.ne.s32.totalorder %s280, %s294
    %p296 = scmp.eq.s32.totalorder %s34, 0
    %p297 = por %p295, %p296
    %s299 = sadd.s32 %s298, 1
    %p302 = scmp.eq.s32.totalorder %s28, 1
    %p303 = scmp.ne.s32.totalorder %s298, %s300
    %p304 = scmp.eq.s32.totalorder %s28, 0
    %p305 = por %p303, %p304
    %p306 = scmp.ne.s32.totalorder %s298, %s300
    %p307 = scmp.eq.s32.totalorder %s33, 1
    %p308 = por %p306, %p307
    %p309 = scmp.ne.s32.totalorder %s300, %s301
    %p310 = scmp.eq.s32.totalorder %s33, 0
    %p311 = por %p309, %p310
    %p312 = scmp.ne.s32.totalorder %s300, %s301
    %p313 = scmp.eq.s32.totalorder %s34, 1
    %p314 = por %p312, %p313
    %p316 = scmp.ne.s32.totalorder %s301, %s315
    %p317 = scmp.eq.s32.totalorder %s34, 0
    %p318 = por %p316, %p317
    %s320 = sadd.s32 %s319, 1
    %p323 = scmp.eq.s32.totalorder %s28, 1
    %p324 = scmp.ne.s32.totalorder %s319, %s321
    %p325 = scmp.eq.s32.totalorder %s28, 0
    %p326 = por %p324, %p325
    %p327 = scmp.ne.s32.totalorder %s319, %s321
    %p328 = scmp.eq.s32.totalorder %s33, 1
    %p329 = por %p327, %p328
    %p330 = scmp.ne.s32.totalorder %s321, %s322
    %p331 = scmp.eq.s32.totalorder %s33, 0
    %p332 = por %p330, %p331
    %p333 = scmp.ne.s32.totalorder %s321, %s322
    %p334 = scmp.eq.s32.totalorder %s34, 1
    %p335 = por %p333, %p334
    %p337 = scmp.ne.s32.totalorder %s322, %s336
    %p338 = scmp.eq.s32.totalorder %s34, 0
    %p339 = por %p337, %p338
    %s341 = sadd.s32 %s340, 1
    %p344 = scmp.eq.s32.totalorder %s28, 1
    %p345 = scmp.ne.s32.totalorder %s340, %s342
    %p346 = scmp.eq.s32.totalorder %s28, 0
    %p347 = por %p345, %p346
    %p348 = scmp.ne.s32.totalorder %s340, %s342
    %p349 = scmp.eq.s32.totalorder %s33, 1
    %p350 = por %p348, %p349
    %p351 = scmp.ne.s32.totalorder %s342, %s343
    %p352 = scmp.eq.s32.totalorder %s33, 0
    %p353 = por %p351, %p352
    %p354 = scmp.ne.s32.totalorder %s342, %s343
    %p355 = scmp.eq.s32.totalorder %s34, 1
    %p356 = por %p354, %p355
    %p358 = scmp.ne.s32.totalorder %s343, %s357
    %p359 = scmp.eq.s32.totalorder %s34, 0
    %p360 = por %p358, %p359
    %s362 = sadd.s32 %s361, 1
    %p365 = scmp.eq.s32.totalorder %s28, 1
    %p366 = scmp.ne.s32.totalorder %s361, %s363
    %p367 = scmp.eq.s32.totalorder %s28, 0
    %p368 = por %p366, %p367
    %p369 = scmp.ne.s32.totalorder %s361, %s363
    %p370 = scmp.eq.s32.totalorder %s33, 1
    %p371 = por %p369, %p370
    %p372 = scmp.ne.s32.totalorder %s363, %s364
    %p373 = scmp.eq.s32.totalorder %s33, 0
    %p374 = por %p372, %p373
    %p375 = scmp.ne.s32.totalorder %s363, %s364
    %p376 = scmp.eq.s32.totalorder %s34, 1
    %p377 = por %p375, %p376
    %p379 = scmp.ne.s32.totalorder %s364, %s378
    %p380 = scmp.eq.s32.totalorder %s34, 0
    %p381 = por %p379, %p380
    %s383 = sadd.s32 %s382, 1
    %p386 = scmp.eq.s32.totalorder %s28, 1
    %p387 = scmp.ne.s32.totalorder %s382, %s384
    %p388 = scmp.eq.s32.totalorder %s28, 0
    %p389 = por %p387, %p388
    %p390 = scmp.ne.s32.totalorder %s382, %s384
    %p391 = scmp.eq.s32.totalorder %s33, 1
    %p392 = por %p390, %p391
    %p393 = scmp.ne.s32.totalorder %s384, %s385
    %p394 = scmp.eq.s32.totalorder %s33, 0
    %p395 = por %p393, %p394
    %p396 = scmp.ne.s32.totalorder %s384, %s385
    %p397 = scmp.eq.s32.totalorder %s34, 1
    %p398 = por %p396, %p397
    %p400 = scmp.ne.s32.totalorder %s385, %s399
    %p401 = scmp.eq.s32.totalorder %s34, 0
    %p402 = por %p400, %p401
    %s404 = sadd.s32 %s403, 1
    %p407 = scmp.eq.s32.totalorder %s28, 1
    %p408 = scmp.ne.s32.totalorder %s403, %s405
    %p409 = scmp.eq.s32.totalorder %s28, 0
    %p410 = por %p408, %p409
    %p411 = scmp.ne.s32.totalorder %s403, %s405
    %p412 = scmp.eq.s32.totalorder %s33, 1
    %p413 = por %p411, %p412
    %p414 = scmp.ne.s32.totalorder %s405, %s406
    %p415 = scmp.eq.s32.totalorder %s33, 0
    %p416 = por %p414, %p415
    %p417 = scmp.ne.s32.totalorder %s405, %s406
    %p418 = scmp.eq.s32.totalorder %s34, 1
    %p419 = por %p417, %p418
    %p421 = scmp.ne.s32.totalorder %s406, %s420
    %p422 = scmp.eq.s32.totalorder %s34, 0
    %p423 = por %p421, %p422
    %s425 = sadd.s32 %s424, 1
    %p428 = scmp.eq.s32.totalorder %s28, 1
    %p429 = scmp.ne.s32.totalorder %s424, %s426
    %p430 = scmp.eq.s32.totalorder %s28, 0
    %p431 = por %p429, %p430
    %p432 = scmp.ne.s32.totalorder %s424, %s426
    %p433 = scmp.eq.s32.totalorder %s33, 1
    %p434 = por %p432, %p433
    %p435 = scmp.ne.s32.totalorder %s426, %s427
    %p436 = scmp.eq.s32.totalorder %s33, 0
    %p437 = por %p435, %p436
    %p438 = scmp.ne.s32.totalorder %s426, %s427
    %p439 = scmp.eq.s32.totalorder %s34, 1
    %p440 = por %p438, %p439
    %p442 = scmp.ne.s32.totalorder %s427, %s441
    %p443 = scmp.eq.s32.totalorder %s34, 0
    %p444 = por %p442, %p443
    %s446 = sadd.s32 %s445, 1
    %p449 = scmp.eq.s32.totalorder %s28, 1
    %p450 = scmp.ne.s32.totalorder %s445, %s447
    %p451 = scmp.eq.s32.totalorder %s28, 0
    %p452 = por %p450, %p451
    %p453 = scmp.ne.s32.totalorder %s445, %s447
    %p454 = scmp.eq.s32.totalorder %s33, 1
    %p455 = por %p453, %p454
    %p456 = scmp.ne.s32.totalorder %s447, %s448
    %p457 = scmp.eq.s32.totalorder %s33, 0
    %p458 = por %p456, %p457
    %p459 = scmp.ne.s32.totalorder %s447, %s448
    %p460 = scmp.eq.s32.totalorder %s34, 1
    %p461 = por %p459, %p460
    %p463 = scmp.ne.s32.totalorder %s448, %s462
    %p464 = scmp.eq.s32.totalorder %s34, 0
    %p465 = por %p463, %p464
    %s467 = sadd.s32 %s466, 1
    %p470 = scmp.eq.s32.totalorder %s28, 1
    %p471 = scmp.ne.s32.totalorder %s466, %s468
    %p472 = scmp.eq.s32.totalorder %s28, 0
    %p473 = por %p471, %p472
    %p474 = scmp.ne.s32.totalorder %s466, %s468
    %p475 = scmp.eq.s32.totalorder %s33, 1
    %p476 = por %p474, %p475
    %p477 = scmp.ne.s32.totalorder %s468, %s469
    %p478 = scmp.eq.s32.totalorder %s33, 0
    %p479 = por %p477, %p478
    %p480 = scmp.ne.s32.totalorder %s468, %s469
    %p481 = scmp.eq.s32.totalorder %s34, 1
    %p482 = por %p480, %p481
    %p484 = scmp.ne.s32.totalorder %s469, %s483
    %p485 = scmp.eq.s32.totalorder %s34, 0
    %p486 = por %p484, %p485
    %s488 = sadd.s32 %s487, 1
    %p491 = scmp.eq.s32.totalorder %s28, 1
    %p492 = scmp.ne.s32.totalorder %s487, %s489
    %p493 = scmp.eq.s32.totalorder %s28, 0
    %p494 = por %p492, %p493
    %p495 = scmp.ne.s32.totalorder %s487, %s489
    %p496 = scmp.eq.s32.totalorder %s33, 1
    %p497 = por %p495, %p496
    %p498 = scmp.ne.s32.totalorder %s489, %s490
    %p499 = scmp.eq.s32.totalorder %s33, 0
    %p500 = por %p498, %p499
    %p501 = scmp.ne.s32.totalorder %s489, %s490
    %p502 = scmp.eq.s32.totalorder %s34, 1
    %p503 = por %p501, %p502
    %p505 = scmp.ne.s32.totalorder %s490, %s504
    %p506 = scmp.eq.s32.totalorder %s34, 0
    %p507 = por %p505, %p506
    %s508 = ssub.s32 %s28, %s35
    %p509 = scmp.eq.s32.totalorder %s508, 0
    %s511 = sadd.s32 %s510, 1
    %s512 = scalar_select %p509, %s510, %s511
    %p515 = pneg %p509
    %p516 = scmp.eq.s32.totalorder %s28, 1
    %p517 = por %p515, %p516
    %p518 = scmp.ne.s32.totalorder %s510, %s513
    %p519 = scmp.eq.s32.totalorder %s28, 0
    %p520 = por %p518, %p519
    %p521 = scmp.ne.s32.totalorder %s510, %s513
    %p522 = scmp.eq.s32.totalorder %s33, 1
    %p523 = por %p521, %p522
    %p524 = scmp.ne.s32.totalorder %s513, %s514
    %p525 = scmp.eq.s32.totalorder %s33, 0
    %p526 = por %p524, %p525
    %p527 = scmp.ne.s32.totalorder %s513, %s514
    %p528 = scmp.eq.s32.totalorder %s34, 1
    %p529 = por %p527, %p528
    %p531 = scmp.ne.s32.totalorder %s514, %s530
    %p532 = scmp.eq.s32.totalorder %s34, 0
    %p533 = por %p531, %p532
    %p534 = scmp.le.s32.totalorder 1, %s28
    %p535 = scmp.lt.s32.totalorder %s28, 3
    %p536 = pnand %p534, %p535
    %p537 = pneg %p536
    // Predicated region
    $region9: #{_lambda_.4} parent=5 // pred_check
      _
    $region10: #{_lambda_.4} parent=5 // pred_check_branch
      %539 = sbr.rel (%p536) target = $region12
    $region11: #{_lambda_.4} parent=5 // pred_region
      %s540 = ssub.s32 %s28, 1
      // Predicated region
      $region13: #{_lambda_.4} parent=11 // pred_check
        %p541 = pneg %p101
      $region14: #{_lambda_.4} parent=11 // pred_check_branch
        %543 = sbr.rel (%p541) target = $region16
      $region15: #{_lambda_.4} parent=11 // pred_region
        _
      $region16: #{_lambda_.4} parent=11 // pred_fallthru
        _
      // Predicated region
      $region17: #{_lambda_.4} parent=11 // pred_check
        %p544 = pneg %p122
      $region18: #{_lambda_.4} parent=11 // pred_check_branch
        %546 = sbr.rel (%p544) target = $region20
      $region19: #{_lambda_.4} parent=11 // pred_region
        _
      $region20: #{_lambda_.4} parent=11 // pred_fallthru
        _
      // Predicated region
      $region21: #{_lambda_.4} parent=11 // pred_check
        %p547 = pneg %p143
      $region22: #{_lambda_.4} parent=11 // pred_check_branch
        %549 = sbr.rel (%p547) target = $region24
      $region23: #{_lambda_.4} parent=11 // pred_region
        _
      $region24: #{_lambda_.4} parent=11 // pred_fallthru
        _
      // Predicated region
      $region25: #{_lambda_.4} parent=11 // pred_check
        %p550 = pneg %p164
      $region26: #{_lambda_.4} parent=11 // pred_check_branch
        %552 = sbr.rel (%p550) target = $region28
      $region27: #{_lambda_.4} parent=11 // pred_region
        _
      $region28: #{_lambda_.4} parent=11 // pred_fallthru
        _
      // Predicated region
      $region29: #{_lambda_.4} parent=11 // pred_check
        %p553 = pneg %p185
      $region30: #{_lambda_.4} parent=11 // pred_check_branch
        %555 = sbr.rel (%p553) target = $region32
      $region31: #{_lambda_.4} parent=11 // pred_region
        _
      $region32: #{_lambda_.4} parent=11 // pred_fallthru
        _
      // Predicated region
      $region33: #{_lambda_.4} parent=11 // pred_check
        %p556 = pneg %p206
      $region34: #{_lambda_.4} parent=11 // pred_check_branch
        %558 = sbr.rel (%p556) target = $region36
      $region35: #{_lambda_.4} parent=11 // pred_region
        _
      $region36: #{_lambda_.4} parent=11 // pred_fallthru
        _
      // Predicated region
      $region37: #{_lambda_.4} parent=11 // pred_check
        %p559 = pneg %p227
      $region38: #{_lambda_.4} parent=11 // pred_check_branch
        %561 = sbr.rel (%p559) target = $region40
      $region39: #{_lambda_.4} parent=11 // pred_region
        _
      $region40: #{_lambda_.4} parent=11 // pred_fallthru
        _
      // Predicated region
      $region41: #{_lambda_.4} parent=11 // pred_check
        %p562 = pneg %p248
      $region42: #{_lambda_.4} parent=11 // pred_check_branch
        %564 = sbr.rel (%p562) target = $region44
      $region43: #{_lambda_.4} parent=11 // pred_region
        _
      $region44: #{_lambda_.4} parent=11 // pred_fallthru
        _
      // Predicated region
      $region45: #{_lambda_.4} parent=11 // pred_check
        %p565 = pneg %p269
      $region46: #{_lambda_.4} parent=11 // pred_check_branch
        %567 = sbr.rel (%p565) target = $region48
      $region47: #{_lambda_.4} parent=11 // pred_region
        _
      $region48: #{_lambda_.4} parent=11 // pred_fallthru
        _
      // Predicated region
      $region49: #{_lambda_.4} parent=11 // pred_check
        %p568 = pneg %p290
      $region50: #{_lambda_.4} parent=11 // pred_check_branch
        %570 = sbr.rel (%p568) target = $region52
      $region51: #{_lambda_.4} parent=11 // pred_region
        _
      $region52: #{_lambda_.4} parent=11 // pred_fallthru
        _
      // Predicated region
      $region53: #{_lambda_.4} parent=11 // pred_check
        %p571 = pneg %p311
      $region54: #{_lambda_.4} parent=11 // pred_check_branch
        %573 = sbr.rel (%p571) target = $region56
      $region55: #{_lambda_.4} parent=11 // pred_region
        _
      $region56: #{_lambda_.4} parent=11 // pred_fallthru
        _
      // Predicated region
      $region57: #{_lambda_.4} parent=11 // pred_check
        %p574 = pneg %p332
      $region58: #{_lambda_.4} parent=11 // pred_check_branch
        %576 = sbr.rel (%p574) target = $region60
      $region59: #{_lambda_.4} parent=11 // pred_region
        _
      $region60: #{_lambda_.4} parent=11 // pred_fallthru
        _
      // Predicated region
      $region61: #{_lambda_.4} parent=11 // pred_check
        %p577 = pneg %p353
      $region62: #{_lambda_.4} parent=11 // pred_check_branch
        %579 = sbr.rel (%p577) target = $region64
      $region63: #{_lambda_.4} parent=11 // pred_region
        _
      $region64: #{_lambda_.4} parent=11 // pred_fallthru
        _
      // Predicated region
      $region65: #{_lambda_.4} parent=11 // pred_check
        %p580 = pneg %p374
      $region66: #{_lambda_.4} parent=11 // pred_check_branch
        %582 = sbr.rel (%p580) target = $region68
      $region67: #{_lambda_.4} parent=11 // pred_region
        _
      $region68: #{_lambda_.4} parent=11 // pred_fallthru
        _
      // Predicated region
      $region69: #{_lambda_.4} parent=11 // pred_check
        %p583 = pneg %p395
      $region70: #{_lambda_.4} parent=11 // pred_check_branch
        %585 = sbr.rel (%p583) target = $region72
      $region71: #{_lambda_.4} parent=11 // pred_region
        _
      $region72: #{_lambda_.4} parent=11 // pred_fallthru
        _
      // Predicated region
      $region73: #{_lambda_.4} parent=11 // pred_check
        %p586 = pneg %p416
      $region74: #{_lambda_.4} parent=11 // pred_check_branch
        %588 = sbr.rel (%p586) target = $region76
      $region75: #{_lambda_.4} parent=11 // pred_region
        _
      $region76: #{_lambda_.4} parent=11 // pred_fallthru
        _
      // Predicated region
      $region77: #{_lambda_.4} parent=11 // pred_check
        %p589 = pneg %p437
      $region78: #{_lambda_.4} parent=11 // pred_check_branch
        %591 = sbr.rel (%p589) target = $region80
      $region79: #{_lambda_.4} parent=11 // pred_region
        _
      $region80: #{_lambda_.4} parent=11 // pred_fallthru
        _
      // Predicated region
      $region81: #{_lambda_.4} parent=11 // pred_check
        %p592 = pneg %p458
      $region82: #{_lambda_.4} parent=11 // pred_check_branch
        %594 = sbr.rel (%p592) target = $region84
      $region83: #{_lambda_.4} parent=11 // pred_region
        _
      $region84: #{_lambda_.4} parent=11 // pred_fallthru
        _
      // Predicated region
      $region85: #{_lambda_.4} parent=11 // pred_check
        %p595 = pneg %p479
      $region86: #{_lambda_.4} parent=11 // pred_check_branch
        %597 = sbr.rel (%p595) target = $region88
      $region87: #{_lambda_.4} parent=11 // pred_region
        _
      $region88: #{_lambda_.4} parent=11 // pred_fallthru
        _
      // Predicated region
      $region89: #{_lambda_.4} parent=11 // pred_check
        %p598 = pneg %p500
      $region90: #{_lambda_.4} parent=11 // pred_check_branch
        %600 = sbr.rel (%p598) target = $region92
      $region91: #{_lambda_.4} parent=11 // pred_region
        _
      $region92: #{_lambda_.4} parent=11 // pred_fallthru
        _
    $region12: #{_lambda_.4} parent=5 // pred_fallthru
      _
    %p601 = scmp.lt.s32.totalorder %s28, 2
    // Predicated region
    $region93: #{_lambda_.4} parent=5 // pred_check
      %p602 = pneg %p601
    $region94: #{_lambda_.4} parent=5 // pred_check_branch
      %604 = sbr.rel (%p602) target = $region96
    $region95: #{_lambda_.4} parent=5 // pred_region
      // Predicated region
      $region97: #{_lambda_.4} parent=95 // pred_check
        %p605 = pneg %p48
      $region98: #{_lambda_.4} parent=95 // pred_check_branch
        %607 = sbr.rel (%p605) target = $region100
      $region99: #{_lambda_.4} parent=95 // pred_region
        %p608 = scmp.lt.s32.totalorder %s28, 1
        %s609 = scalar_select %p608, %s28, 1
        %s610 = smul.addr %s609, 8
        %s611 = smul.addr %s610, 8
        %s612 = scalar_lea.vmem %s0, %s611
      $region100: #{_lambda_.4} parent=95 // pred_fallthru
        _
      // Predicated region
      $region101: #{_lambda_.4} parent=95 // pred_check
        %p613 = pneg %p74
      $region102: #{_lambda_.4} parent=95 // pred_check_branch
        %615 = sbr.rel (%p613) target = $region104
      $region103: #{_lambda_.4} parent=95 // pred_region
        %p616 = scmp.lt.s32.totalorder %s28, 1
        %s617 = scalar_select %p616, %s28, 1
        %s618 = smul.addr %s617, 8
        %s619 = smul.addr %s618, 8
        %s620 = scalar_lea.vmem %s1, %s619
      $region104: #{_lambda_.4} parent=95 // pred_fallthru
        _
    $region96: #{_lambda_.4} parent=5 // pred_fallthru
      _
    %p621 = scmp.le.s32.totalorder 1, %s28
    %p622 = scmp.lt.s32.totalorder %s28, 3
    %p623 = pnand %p621, %p622
    %p624 = pneg %p623
    // Predicated region
    $region105: #{_lambda_.4} parent=5 // pred_check
      _
    $region106: #{_lambda_.4} parent=5 // pred_check_branch
      %626 = sbr.rel (%p623) target = $region108
    $region107: #{_lambda_.4} parent=5 // pred_region
      %s627 = ssub.s32 %s28, 1
      %p628 = scmp.lt.s32.totalorder %s33, 1
      %s629 = scalar_select %p628, %s33, 1
      %s630 = smul.addr %s629, 8
      %s631 = smul.addr %s630, 8
      %s632 = scalar_lea.vmem %s0, %s631
      %p633 = pneg %p54
      %p634 = pneg %p51
      %p635 = scmp.lt.s32.totalorder %s33, 1
      %s636 = scalar_select %p635, %s33, 1
      %s637 = smul.addr %s636, 8
      %s638 = smul.addr %s637, 8
      %s639 = scalar_lea.vmem %s1, %s638
      %p640 = pneg %p80
      %p641 = pneg %p77
      %p642 = pneg %p101
      %p643 = pneg %p98
      %p644 = pneg %p122
      %p645 = pneg %p119
      %p646 = pneg %p143
      %p647 = pneg %p140
      %p648 = pneg %p164
      %p649 = pneg %p161
      %p650 = pneg %p185
      %p651 = pneg %p182
      %p652 = pneg %p206
      %p653 = pneg %p203
      %p654 = pneg %p227
      %p655 = pneg %p224
      %p656 = pneg %p248
      %p657 = pneg %p245
      %p658 = pneg %p269
      %p659 = pneg %p266
      %p660 = pneg %p290
      %p661 = pneg %p287
      %p662 = pneg %p311
      %p663 = pneg %p308
      %p664 = pneg %p332
      %p665 = pneg %p329
      %p666 = pneg %p353
      %p667 = pneg %p350
      %p668 = pneg %p374
      %p669 = pneg %p371
      %p670 = pneg %p395
      %p671 = pneg %p392
      %p672 = pneg %p416
      %p673 = pneg %p413
      %p674 = pneg %p437
      %p675 = pneg %p434
      %p676 = pneg %p458
      %p677 = pneg %p455
      %p678 = pneg %p479
      %p679 = pneg %p476
      %p680 = pneg %p500
      %p681 = pneg %p497
      %p682 = pneg %p526
      %p683 = pneg %p523
      %p684 = scmp.lt.s32.totalorder %s33, 1
      %s685 = scalar_select %p684, %s33, 1
      %s686 = smul.addr %s685, 8
      %s687 = smul.addr %s686, 8
      %s688 = scalar_lea.vmem %s22, %s687
      %p689 = scmp.lt.s32.totalorder %s33, 1
      %s690 = scalar_select %p689, %s33, 1
      %s691 = smul.addr %s690, 8
      %s692 = smul.addr %s691, 8
      %s693 = scalar_lea.vmem %s0, %s692
      %p694 = scmp.lt.s32.totalorder %s33, 1
      %s695 = scalar_select %p694, %s33, 1
      %s696 = smul.addr %s695, 8
      %s697 = smul.addr %s696, 8
      %s698 = scalar_lea.vmem %s1, %s697
      %p699 = scmp.lt.s32.totalorder %s33, 1
      %s700 = scalar_select %p699, %s33, 1
      %s701 = smul.addr %s700, 8
      %s702 = smul.addr %s701, 8
      %s703 = scalar_lea.vmem %s22, %s702
      %v705 = vld [vmem:[%s693] sm:$0xff]
      %v706 = vld [vmem:[%s693 + $0x8] sm:$0xff]
      %v707 = vld [vmem:[%s693 + $0x10] sm:$0xff]
      %v708 = vld [vmem:[%s693 + $0x18] sm:$0xff]
      %v709 = vld [vmem:[%s693 + $0x20] sm:$0xff]
      %v710 = vld [vmem:[%s693 + $0x28] sm:$0xff]
      %v711 = vld [vmem:[%s693 + $0x30] sm:$0xff]
      %v712 = vld [vmem:[%s693 + $0x38] sm:$0xff]
      %v713 = vld [vmem:[%s698] sm:$0xff]
      %v714 = vld [vmem:[%s698 + $0x8] sm:$0xff]
      %v715 = vld [vmem:[%s698 + $0x10] sm:$0xff]
      %v716 = vld [vmem:[%s698 + $0x18] sm:$0xff]
      %v717 = vld [vmem:[%s698 + $0x20] sm:$0xff]
      %v718 = vld [vmem:[%s698 + $0x28] sm:$0xff]
      %v719 = vld [vmem:[%s698 + $0x30] sm:$0xff]
      %v720 = vld [vmem:[%s698 + $0x38] sm:$0xff]
      %v721 = vld [vmem:[%s2] sm:$0xff]
      %v722 = vld [vmem:[%s2 + $0x8] sm:$0xff]
      %v723 = vpack.c.bf16 %v706, %v705
      %v724 = vpack.c.bf16 %v708, %v707
      %v725 = vpack.c.bf16 %v710, %v709
      %v726 = vpack.c.bf16 %v712, %v711
      %v727 = vpack.c.bf16 %v722, %v721
      %v728 = vld [vmem:[%s3] sm:$0x1]
      %v730 = vlaneseq
      %v731 = vshrl.u32 %v730, 7
      %v732 = vsub.s32 0, %v731
      %v733 = vrot.slane %v728, %v732
      %vm735 = vcmask 130048
      %v737 = vsel %vm735, %v723, 0
      %v740 = vsel %vm735, %v724, 0
      %v743 = vsel %vm735, %v725, 0
      %v746 = vsel %vm735, %v726, 0
      %748 = vmatprep.subr.bf16.mxu0 0
      %749 = vmatpush1.bf16.msra.mxu0 0
      %750 = vmatprep.subr.bf16.mxu0 0
      %751 = vmatpush1.bf16.msra.mxu0 0
      %752 = vmatprep.subr.bf16.mxu0 0
      %753 = vmatpush1.bf16.msra.mxu0 0
      %754 = vmatprep.subr.bf16.mxu0 0
      %755 = vmatpush1.bf16.msra.mxu0 0
      %756 = vmatprep.subr.bf16.mxu0 0
      %757 = vmatpush1.bf16.msra.mxu0 0
      %758 = vmatprep.subr.bf16.mxu0 0
      %759 = vmatpush1.bf16.msra.mxu0 0
      %760 = vmatprep.subr.bf16.mxu0 0
      %761 = vmatpush1.bf16.msra.mxu0 0
      %762 = vmatprep.subr.bf16.mxu0 0
      %763 = vmatpush1.bf16.msra.mxu0 %v727
      %764 = vmatprep.subr.bf16.mxu0 0
      %765 = vmatpush2.bf16.msra.mxu0 0
      %766 = vmatprep.subr.bf16.mxu0 0
      %767 = vmatpush2.bf16.msra.mxu0 0
      %768 = vmatprep.subr.bf16.mxu0 0
      %769 = vmatpush2.bf16.msra.mxu0 0
      %770 = vmatprep.subr.bf16.mxu0 0
      %771 = vmatpush2.bf16.msra.mxu0 0
      %772 = vmatprep.subr.bf16.mxu0 0
      %773 = vmatpush2.bf16.msra.mxu0 0
      %774 = vmatprep.subr.bf16.mxu0 0
      %775 = vmatpush2.bf16.msra.mxu0 0
      %776 = vmatprep.subr.bf16.mxu0 0
      %777 = vmatpush2.bf16.msra.mxu0 0
      %778 = vmatprep.subr.bf16.mxu0 0
      %779 = vmatpush2.bf16.msra.mxu0 0
      %780 = vmatprep.mubr.bf16.mxu0 0
      %781 = vmatmul.mubr.bf16.gmra.mxu0 %v737
      %v782 = vpop.f32.mrf.mxu0
      %v783 = vadd.f32 %v733, %v782
      %v784 = vpop.f32.mrf.mxu0
      %v785 = vpop.f32.mrf.mxu0
      %v786 = vadd.f32 %v733, %v785
      %v787 = vpop.f32.mrf.mxu0
      %788 = vmatprep.mubr.bf16.mxu0 0
      %789 = vmatmul.mubr.bf16.gmra.mxu0 %v740
      %v790 = vpop.f32.mrf.mxu0
      %v791 = vadd.f32 %v733, %v790
      %v792 = vpop.f32.mrf.mxu0
      %v793 = vpop.f32.mrf.mxu0
      %v794 = vadd.f32 %v733, %v793
      %v795 = vpop.f32.mrf.mxu0
      %796 = vmatprep.mubr.bf16.mxu0 0
      %797 = vmatmul.mubr.bf16.gmra.mxu0 %v743
      %v798 = vpop.f32.mrf.mxu0
      %v799 = vadd.f32 %v733, %v798
      %v800 = vpop.f32.mrf.mxu0
      %v801 = vpop.f32.mrf.mxu0
      %v802 = vadd.f32 %v733, %v801
      %v803 = vpop.f32.mrf.mxu0
      %804 = vmatprep.mubr.bf16.mxu0 0
      %805 = vmatmul.mubr.bf16.gmra.mxu0 %v746
      %v806 = vpop.f32.mrf.mxu0
      %v807 = vadd.f32 %v733, %v806
      %v808 = vpop.f32.mrf.mxu0
      %v809 = vpop.f32.mrf.mxu0
      %v810 = vadd.f32 %v733, %v809
      %v811 = vpop.f32.mrf.mxu0
      %812 = vdwg.mxu0
      %v813 = vpack.c.bf16 %v786, %v783
      %v814 = vpack.c.bf16 %v794, %v791
      %v815 = vpack.c.bf16 %v802, %v799
      %v816 = vpack.c.bf16 %v810, %v807
      %821 = vrot.lane.b32.xlu0 %v813, 112
      %v822 = vpop.permute.xlu0 %821
      %823 = vrot.lane.b32.xlu0 %v814, 112
      %v824 = vpop.permute.xlu0 %823
      %825 = vrot.lane.b32.xlu0 %v815, 112
      %v826 = vpop.permute.xlu0 %825
      %827 = vrot.lane.b32.xlu0 %v816, 112
      %v828 = vpop.permute.xlu0 %827
      %vm829 = vcmask 64512
      %v831 = vsel %vm829, %v813, 0
      %v834 = vsel %vm829, %v814, 0
      %v837 = vsel %vm829, %v815, 0
      %v840 = vsel %vm829, %v816, 0
      %v843 = vsel %vm829, %v822, 0
      %v846 = vsel %vm829, %v824, 0
      %v849 = vsel %vm829, %v826, 0
      %v852 = vsel %vm829, %v828, 0
      %854 = vmatprep.subr.bf16.mxu0 0
      %855 = vmatpush1.bf16.xpose.msra.mxu0 0
      %856 = vmatprep.subr.bf16.mxu0 0
      %857 = vmatpush1.bf16.xpose.msra.mxu0 0
      %858 = vmatprep.subr.bf16.mxu0 0
      %859 = vmatpush1.bf16.xpose.msra.mxu0 0
      %860 = vmatprep.subr.bf16.mxu0 0
      %861 = vmatpush1.bf16.xpose.msra.mxu0 0
      %862 = vmatprep.subr.bf16.mxu0 0
      %863 = vmatpush1.bf16.xpose.msra.mxu0 %v852
      %864 = vmatprep.subr.bf16.mxu0 0
      %865 = vmatpush1.bf16.xpose.msra.mxu0 %v849
      %866 = vmatprep.subr.bf16.mxu0 0
      %867 = vmatpush1.bf16.xpose.msra.mxu0 %v846
      %868 = vmatprep.subr.bf16.mxu0 0
      %869 = vmatpush1.bf16.xpose.msra.mxu0 %v843
      %870 = vmatprep.subr.bf16.mxu0 0
      %871 = vmatpush2.bf16.xpose.msra.mxu0 0
      %872 = vmatprep.subr.bf16.mxu0 0
      %873 = vmatpush2.bf16.xpose.msra.mxu0 0
      %874 = vmatprep.subr.bf16.mxu0 0
      %875 = vmatpush2.bf16.xpose.msra.mxu0 0
      %876 = vmatprep.subr.bf16.mxu0 0
      %877 = vmatpush2.bf16.xpose.msra.mxu0 0
      %878 = vmatprep.subr.bf16.mxu0 0
      %879 = vmatpush2.bf16.xpose.msra.mxu0 0
      %880 = vmatprep.subr.bf16.mxu0 0
      %881 = vmatpush2.bf16.xpose.msra.mxu0 0
      %882 = vmatprep.subr.bf16.mxu0 0
      %883 = vmatpush2.bf16.xpose.msra.mxu0 0
      %884 = vmatprep.subr.bf16.mxu0 0
      %885 = vmatpush2.bf16.xpose.msra.mxu0 0
      %886 = vmatprep.mubr.bf16.mxu0 0
      %887 = vmatmul.mubr.bf16.gmra.mxu0 %v831
      %v888 = vpop.f32.mrf.mxu0
      %v889 = vadd.f32 0.0, %v888
      %v890 = vpop.f32.mrf.mxu0
      %v891 = vpop.f32.mrf.mxu0
      %v892 = vadd.f32 0.0, %v891
      %v893 = vpop.f32.mrf.mxu0
      %894 = vmatprep.mubr.bf16.mxu0 0
      %895 = vmatmul.mubr.bf16.gmra.mxu0 %v834
      %v896 = vpop.f32.mrf.mxu0
      %v897 = vadd.f32 0.0, %v896
      %v898 = vpop.f32.mrf.mxu0
      %v899 = vpop.f32.mrf.mxu0
      %v900 = vadd.f32 0.0, %v899
      %v901 = vpop.f32.mrf.mxu0
      %902 = vmatprep.mubr.bf16.mxu0 0
      %903 = vmatmul.mubr.bf16.gmra.mxu0 %v837
      %v904 = vpop.f32.mrf.mxu0
      %v905 = vadd.f32 0.0, %v904
      %v906 = vpop.f32.mrf.mxu0
      %v907 = vpop.f32.mrf.mxu0
      %v908 = vadd.f32 0.0, %v907
      %v909 = vpop.f32.mrf.mxu0
      %910 = vmatprep.mubr.bf16.mxu0 0
      %911 = vmatmul.mubr.bf16.gmra.mxu0 %v840
      %v912 = vpop.f32.mrf.mxu0
      %v913 = vadd.f32 0.0, %v912
      %v914 = vpop.f32.mrf.mxu0
      %v915 = vpop.f32.mrf.mxu0
      %v916 = vadd.f32 0.0, %v915
      %v917 = vpop.f32.mrf.mxu0
      %918 = vdwg.mxu0
      %vm919 = vcmask 523264
      %v920 = vsel %vm919, %v889, -inf
      %921 = vmax.xlane.f32.xlu0 %v920
      %v922 = vpop.xlane.xlu0 %921
      %v923 = vsel %vm919, %v892, -inf
      %924 = vmax.xlane.f32.xlu0 %v923
      %v925 = vpop.xlane.xlu0 %924
      %v926 = vsel %vm919, %v897, -inf
      %927 = vmax.xlane.f32.xlu0 %v926
      %v928 = vpop.xlane.xlu0 %927
      %v929 = vsel %vm919, %v900, -inf
      %930 = vmax.xlane.f32.xlu0 %v929
      %v931 = vpop.xlane.xlu0 %930
      %v932 = vsel %vm919, %v905, -inf
      %933 = vmax.xlane.f32.xlu0 %v932
      %v934 = vpop.xlane.xlu0 %933
      %v935 = vsel %vm919, %v908, -inf
      %936 = vmax.xlane.f32.xlu0 %v935
      %v937 = vpop.xlane.xlu0 %936
      %v938 = vsel %vm919, %v913, -inf
      %939 = vmax.xlane.f32.xlu0 %v938
      %v940 = vpop.xlane.xlu0 %939
      %v941 = vsel %vm919, %v916, -inf
      %942 = vmax.xlane.f32.xlu0 %v941
      %v943 = vpop.xlane.xlu0 %942
      %v944 = vsub.f32 %v889, %v922
      %v945 = vsub.f32 %v892, %v925
      %v946 = vsub.f32 %v897, %v928
      %v947 = vsub.f32 %v900, %v931
      %v948 = vsub.f32 %v905, %v934
      %v949 = vsub.f32 %v908, %v937
      %v950 = vsub.f32 %v913, %v940
      %v951 = vsub.f32 %v916, %v943
      %v952 = vmul.f32 %v944, 1.442695
      %v953 = vpow.pop %v952
      %v954 = vmul.f32 %v945, 1.442695
      %v955 = vpow.pop %v954
      %v956 = vmul.f32 %v946, 1.442695
      %v957 = vpow.pop %v956
      %v958 = vmul.f32 %v947, 1.442695
      %v959 = vpow.pop %v958
      %v960 = vmul.f32 %v948, 1.442695
      %v961 = vpow.pop %v960
      %v962 = vmul.f32 %v949, 1.442695
      %v963 = vpow.pop %v962
      %v964 = vmul.f32 %v950, 1.442695
      %v965 = vpow.pop %v964
      %v966 = vmul.f32 %v951, 1.442695
      %v967 = vpow.pop %v966
      %v968 = vsel %vm919, %v953, 0.0
      %969 = vadd.xlane.f32.xlu0 %v968
      %v970 = vpop.xlane.xlu0 %969
      %v971 = vsel %vm919, %v955, 0.0
      %972 = vadd.xlane.f32.xlu0 %v971
      %v973 = vpop.xlane.xlu0 %972
      %v974 = vsel %vm919, %v957, 0.0
      %975 = vadd.xlane.f32.xlu0 %v974
      %v976 = vpop.xlane.xlu0 %975
      %v977 = vsel %vm919, %v959, 0.0
      %978 = vadd.xlane.f32.xlu0 %v977
      %v979 = vpop.xlane.xlu0 %978
      %v980 = vsel %vm919, %v961, 0.0
      %981 = vadd.xlane.f32.xlu0 %v980
      %v982 = vpop.xlane.xlu0 %981
      %v983 = vsel %vm919, %v963, 0.0
      %984 = vadd.xlane.f32.xlu0 %v983
      %v985 = vpop.xlane.xlu0 %984
      %v986 = vsel %vm919, %v965, 0.0
      %987 = vadd.xlane.f32.xlu0 %v986
      %v988 = vpop.xlane.xlu0 %987
      %v989 = vsel %vm919, %v967, 0.0
      %990 = vadd.xlane.f32.xlu0 %v989
      %v991 = vpop.xlane.xlu0 %990
      %v992 = vrcp.pop %v970
      %v993 = vrcp.pop %v973
      %v994 = vrcp.pop %v976
      %v995 = vrcp.pop %v979
      %v996 = vrcp.pop %v982
      %v997 = vrcp.pop %v985
      %v998 = vrcp.pop %v988
      %v999 = vrcp.pop %v991
      %v1000 = vmul.f32 %v953, %v992
      %v1001 = vmul.f32 %v955, %v993
      %v1002 = vmul.f32 %v957, %v994
      %v1003 = vmul.f32 %v959, %v995
      %v1004 = vmul.f32 %v961, %v996
      %v1005 = vmul.f32 %v963, %v997
      %v1006 = vmul.f32 %v965, %v998
      %v1007 = vmul.f32 %v967, %v999
      %v1008 = vpack.c.bf16 %v1001, %v1000
      %v1009 = vpack.c.bf16 %v1003, %v1002
      %v1010 = vpack.c.bf16 %v1005, %v1004
      %v1011 = vpack.c.bf16 %v1007, %v1006
      %1012 = vrot.lane.b32.xlu0 %v813, 96
      %v1013 = vpop.permute.xlu0 %1012
      %1014 = vrot.lane.b32.xlu0 %v814, 96
      %v1015 = vpop.permute.xlu0 %1014
      %1016 = vrot.lane.b32.xlu0 %v815, 96
      %v1017 = vpop.permute.xlu0 %1016
      %1018 = vrot.lane.b32.xlu0 %v816, 96
      %v1019 = vpop.permute.xlu0 %1018
      %v1025 = vsel %vm919, %v1008, 0
      %v1028 = vsel %vm919, %v1009, 0
      %v1031 = vsel %vm919, %v1010, 0
      %v1034 = vsel %vm919, %v1011, 0
      %1036 = vmatprep.subr.bf16.mxu0 0
      %1037 = vmatpush1.bf16.msra.mxu0 0
      %1038 = vmatprep.subr.bf16.mxu0 0
      %1039 = vmatpush1.bf16.msra.mxu0 0
      %1040 = vmatprep.subr.bf16.mxu0 0
      %1041 = vmatpush1.bf16.msra.mxu0 0
      %1042 = vmatprep.subr.bf16.mxu0 0
      %1043 = vmatpush1.bf16.msra.mxu0 0
      %1044 = vmatprep.subr.bf16.mxu0 0
      %1045 = vmatpush1.bf16.msra.mxu0 %v1019
      %1046 = vmatprep.subr.bf16.mxu0 0
      %1047 = vmatpush1.bf16.msra.mxu0 %v1017
      %1048 = vmatprep.subr.bf16.mxu0 0
      %1049 = vmatpush1.bf16.msra.mxu0 %v1015
      %1050 = vmatprep.subr.bf16.mxu0 0
      %1051 = vmatpush1.bf16.msra.mxu0 %v1013
      %1052 = vmatprep.subr.bf16.mxu0 0
      %1053 = vmatpush2.bf16.msra.mxu0 0
      %1054 = vmatprep.subr.bf16.mxu0 0
      %1055 = vmatpush2.bf16.msra.mxu0 0
      %1056 = vmatprep.subr.bf16.mxu0 0
      %1057 = vmatpush2.bf16.msra.mxu0 0
      %1058 = vmatprep.subr.bf16.mxu0 0
      %1059 = vmatpush2.bf16.msra.mxu0 0
      %1060 = vmatprep.subr.bf16.mxu0 0
      %1061 = vmatpush2.bf16.msra.mxu0 0
      %1062 = vmatprep.subr.bf16.mxu0 0
      %1063 = vmatpush2.bf16.msra.mxu0 0
      %1064 = vmatprep.subr.bf16.mxu0 0
      %1065 = vmatpush2.bf16.msra.mxu0 0
      %1066 = vmatprep.subr.bf16.mxu0 0
      %1067 = vmatpush2.bf16.msra.mxu0 0
      %1068 = vmatprep.mubr.bf16.mxu0 0
      %1069 = vmatmul.mubr.bf16.gmra.mxu0 %v1025
      %v1070 = vpop.f32.mrf.mxu0
      %v1071 = vadd.f32 0.0, %v1070
      %v1072 = vpop.f32.mrf.mxu0
      %v1073 = vpop.f32.mrf.mxu0
      %v1074 = vadd.f32 0.0, %v1073
      %v1075 = vpop.f32.mrf.mxu0
      %1076 = vmatprep.mubr.bf16.mxu0 0
      %1077 = vmatmul.mubr.bf16.gmra.mxu0 %v1028
      %v1078 = vpop.f32.mrf.mxu0
      %v1079 = vadd.f32 0.0, %v1078
      %v1080 = vpop.f32.mrf.mxu0
      %v1081 = vpop.f32.mrf.mxu0
      %v1082 = vadd.f32 0.0, %v1081
      %v1083 = vpop.f32.mrf.mxu0
      %1084 = vmatprep.mubr.bf16.mxu0 0
      %1085 = vmatmul.mubr.bf16.gmra.mxu0 %v1031
      %v1086 = vpop.f32.mrf.mxu0
      %v1087 = vadd.f32 0.0, %v1086
      %v1088 = vpop.f32.mrf.mxu0
      %v1089 = vpop.f32.mrf.mxu0
      %v1090 = vadd.f32 0.0, %v1089
      %v1091 = vpop.f32.mrf.mxu0
      %1092 = vmatprep.mubr.bf16.mxu0 0
      %1093 = vmatmul.mubr.bf16.gmra.mxu0 %v1034
      %v1094 = vpop.f32.mrf.mxu0
      %v1095 = vadd.f32 0.0, %v1094
      %v1096 = vpop.f32.mrf.mxu0
      %v1097 = vpop.f32.mrf.mxu0
      %v1098 = vadd.f32 0.0, %v1097
      %v1099 = vpop.f32.mrf.mxu0
      %1100 = vdwg.mxu0
      %1101 = vrot.lane.b32.xlu0 %v813, 120
      %v1102 = vpop.permute.xlu0 %1101
      %1103 = vrot.lane.b32.xlu0 %v814, 120
      %v1104 = vpop.permute.xlu0 %1103
      %1105 = vrot.lane.b32.xlu0 %v815, 120
      %v1106 = vpop.permute.xlu0 %1105
      %1107 = vrot.lane.b32.xlu0 %v816, 120
      %v1108 = vpop.permute.xlu0 %1107
      %1109 = vrot.lane.b32.xlu0 %v813, 104
      %v1110 = vpop.permute.xlu0 %1109
      %1111 = vrot.lane.b32.xlu0 %v814, 104
      %v1112 = vpop.permute.xlu0 %1111
      %1113 = vrot.lane.b32.xlu0 %v815, 104
      %v1114 = vpop.permute.xlu0 %1113
      %1115 = vrot.lane.b32.xlu0 %v816, 104
      %v1116 = vpop.permute.xlu0 %1115
      %v1118 = vsel %vm829, %v1102, 0
      %v1121 = vsel %vm829, %v1104, 0
      %v1124 = vsel %vm829, %v1106, 0
      %v1127 = vsel %vm829, %v1108, 0
      %v1130 = vsel %vm829, %v1110, 0
      %v1133 = vsel %vm829, %v1112, 0
      %v1136 = vsel %vm829, %v1114, 0
      %v1139 = vsel %vm829, %v1116, 0
      %1141 = vmatprep.subr.bf16.mxu0 0
      %1142 = vmatpush1.bf16.xpose.msra.mxu0 0
      %1143 = vmatprep.subr.bf16.mxu0 0
      %1144 = vmatpush1.bf16.xpose.msra.mxu0 0
      %1145 = vmatprep.subr.bf16.mxu0 0
      %1146 = vmatpush1.bf16.xpose.msra.mxu0 0
      %1147 = vmatprep.subr.bf16.mxu0 0
      %1148 = vmatpush1.bf16.xpose.msra.mxu0 0
      %1149 = vmatprep.subr.bf16.mxu0 0
      %1150 = vmatpush1.bf16.xpose.msra.mxu0 %v1139
      %1151 = vmatprep.subr.bf16.mxu0 0
      %1152 = vmatpush1.bf16.xpose.msra.mxu0 %v1136
      %1153 = vmatprep.subr.bf16.mxu0 0
      %1154 = vmatpush1.bf16.xpose.msra.mxu0 %v1133
      %1155 = vmatprep.subr.bf16.mxu0 0
      %1156 = vmatpush1.bf16.xpose.msra.mxu0 %v1130
      %1157 = vmatprep.subr.bf16.mxu0 0
      %1158 = vmatpush2.bf16.xpose.msra.mxu0 0
      %1159 = vmatprep.subr.bf16.mxu0 0
      %1160 = vmatpush2.bf16.xpose.msra.mxu0 0
      %1161 = vmatprep.subr.bf16.mxu0 0
      %1162 = vmatpush2.bf16.xpose.msra.mxu0 0
      %1163 = vmatprep.subr.bf16.mxu0 0
      %1164 = vmatpush2.bf16.xpose.msra.mxu0 0
      %1165 = vmatprep.subr.bf16.mxu0 0
      %1166 = vmatpush2.bf16.xpose.msra.mxu0 0
      %1167 = vmatprep.subr.bf16.mxu0 0
      %1168 = vmatpush2.bf16.xpose.msra.mxu0 0
      %1169 = vmatprep.subr.bf16.mxu0 0
      %1170 = vmatpush2.bf16.xpose.msra.mxu0 0
      %1171 = vmatprep.subr.bf16.mxu0 0
      %1172 = vmatpush2.bf16.xpose.msra.mxu0 0
      %1173 = vmatprep.mubr.bf16.mxu0 0
      %1174 = vmatmul.mubr.bf16.gmra.mxu0 %v1118
      %v1175 = vpop.f32.mrf.mxu0
      %v1176 = vadd.f32 0.0, %v1175
      %v1177 = vpop.f32.mrf.mxu0
      %v1178 = vpop.f32.mrf.mxu0
      %v1179 = vadd.f32 0.0, %v1178
      %v1180 = vpop.f32.mrf.mxu0
      %1181 = vmatprep.mubr.bf16.mxu0 0
      %1182 = vmatmul.mubr.bf16.gmra.mxu0 %v1121
      %v1183 = vpop.f32.mrf.mxu0
      %v1184 = vadd.f32 0.0, %v1183
      %v1185 = vpop.f32.mrf.mxu0
      %v1186 = vpop.f32.mrf.mxu0
      %v1187 = vadd.f32 0.0, %v1186
      %v1188 = vpop.f32.mrf.mxu0
      %1189 = vmatprep.mubr.bf16.mxu0 0
      %1190 = vmatmul.mubr.bf16.gmra.mxu0 %v1124
      %v1191 = vpop.f32.mrf.mxu0
      %v1192 = vadd.f32 0.0, %v1191
      %v1193 = vpop.f32.mrf.mxu0
      %v1194 = vpop.f32.mrf.mxu0
      %v1195 = vadd.f32 0.0, %v1194
      %v1196 = vpop.f32.mrf.mxu0
      %1197 = vmatprep.mubr.bf16.mxu0 0
      %1198 = vmatmul.mubr.bf16.gmra.mxu0 %v1127
      %v1199 = vpop.f32.mrf.mxu0
      %v1200 = vadd.f32 0.0, %v1199
      %v1201 = vpop.f32.mrf.mxu0
      %v1202 = vpop.f32.mrf.mxu0
      %v1203 = vadd.f32 0.0, %v1202
      %v1204 = vpop.f32.mrf.mxu0
      %1205 = vdwg.mxu0
      %v1206 = vsel %vm919, %v1176, -inf
      %1207 = vmax.xlane.f32.xlu0 %v1206
      %v1208 = vpop.xlane.xlu0 %1207
      %v1209 = vsel %vm919, %v1179, -inf
      %1210 = vmax.xlane.f32.xlu0 %v1209
      %v1211 = vpop.xlane.xlu0 %1210
      %v1212 = vsel %vm919, %v1184, -inf
      %1213 = vmax.xlane.f32.xlu0 %v1212
      %v1214 = vpop.xlane.xlu0 %1213
      %v1215 = vsel %vm919, %v1187, -inf
      %1216 = vmax.xlane.f32.xlu0 %v1215
      %v1217 = vpop.xlane.xlu0 %1216
      %v1218 = vsel %vm919, %v1192, -inf
      %1219 = vmax.xlane.f32.xlu0 %v1218
      %v1220 = vpop.xlane.xlu0 %1219
      %v1221 = vsel %vm919, %v1195, -inf
      %1222 = vmax.xlane.f32.xlu0 %v1221
      %v1223 = vpop.xlane.xlu0 %1222
      %v1224 = vsel %vm919, %v1200, -inf
      %1225 = vmax.xlane.f32.xlu0 %v1224
      %v1226 = vpop.xlane.xlu0 %1225
      %v1227 = vsel %vm919, %v1203, -inf
      %1228 = vmax.xlane.f32.xlu0 %v1227
      %v1229 = vpop.xlane.xlu0 %1228
      %v1230 = vsub.f32 %v1176, %v1208
      %v1231 = vsub.f32 %v1179, %v1211
      %v1232 = vsub.f32 %v1184, %v1214
      %v1233 = vsub.f32 %v1187, %v1217
      %v1234 = vsub.f32 %v1192, %v1220
      %v1235 = vsub.f32 %v1195, %v1223
      %v1236 = vsub.f32 %v1200, %v1226
      %v1237 = vsub.f32 %v1203, %v1229
      %v1238 = vmul.f32 %v1230, 1.442695
      %v1239 = vpow.pop %v1238
      %v1240 = vmul.f32 %v1231, 1.442695
      %v1241 = vpow.pop %v1240
      %v1242 = vmul.f32 %v1232, 1.442695
      %v1243 = vpow.pop %v1242
      %v1244 = vmul.f32 %v1233, 1.442695
      %v1245 = vpow.pop %v1244
      %v1246 = vmul.f32 %v1234, 1.442695
      %v1247 = vpow.pop %v1246
      %v1248 = vmul.f32 %v1235, 1.442695
      %v1249 = vpow.pop %v1248
      %v1250 = vmul.f32 %v1236, 1.442695
      %v1251 = vpow.pop %v1250
      %v1252 = vmul.f32 %v1237, 1.442695
      %v1253 = vpow.pop %v1252
      %v1254 = vsel %vm919, %v1239, 0.0
      %1255 = vadd.xlane.f32.xlu0 %v1254
      %v1256 = vpop.xlane.xlu0 %1255
      %v1257 = vsel %vm919, %v1241, 0.0
      %1258 = vadd.xlane.f32.xlu0 %v1257
      %v1259 = vpop.xlane.xlu0 %1258
      %v1260 = vsel %vm919, %v1243, 0.0
      %1261 = vadd.xlane.f32.xlu0 %v1260
      %v1262 = vpop.xlane.xlu0 %1261
      %v1263 = vsel %vm919, %v1245, 0.0
      %1264 = vadd.xlane.f32.xlu0 %v1263
      %v1265 = vpop.xlane.xlu0 %1264
      %v1266 = vsel %vm919, %v1247, 0.0
      %1267 = vadd.xlane.f32.xlu0 %v1266
      %v1268 = vpop.xlane.xlu0 %1267
      %v1269 = vsel %vm919, %v1249, 0.0
      %1270 = vadd.xlane.f32.xlu0 %v1269
      %v1271 = vpop.xlane.xlu0 %1270
      %v1272 = vsel %vm919, %v1251, 0.0
      %1273 = vadd.xlane.f32.xlu0 %v1272
      %v1274 = vpop.xlane.xlu0 %1273
      %v1275 = vsel %vm919, %v1253, 0.0
      %1276 = vadd.xlane.f32.xlu0 %v1275
      %v1277 = vpop.xlane.xlu0 %1276
      %v1278 = vrcp.pop %v1256
      %v1279 = vrcp.pop %v1259
      %v1280 = vrcp.pop %v1262
      %v1281 = vrcp.pop %v1265
      %v1282 = vrcp.pop %v1268
      %v1283 = vrcp.pop %v1271
      %v1284 = vrcp.pop %v1274
      %v1285 = vrcp.pop %v1277
      %v1286 = vmul.f32 %v1239, %v1278
      %v1287 = vmul.f32 %v1241, %v1279
      %v1288 = vmul.f32 %v1243, %v1280
      %v1289 = vmul.f32 %v1245, %v1281
      %v1290 = vmul.f32 %v1247, %v1282
      %v1291 = vmul.f32 %v1249, %v1283
      %v1292 = vmul.f32 %v1251, %v1284
      %v1293 = vmul.f32 %v1253, %v1285
      %v1294 = vpack.c.bf16 %v1287, %v1286
      %v1295 = vpack.c.bf16 %v1289, %v1288
      %v1296 = vpack.c.bf16 %v1291, %v1290
      %v1297 = vpack.c.bf16 %v1293, %v1292
      %1298 = vrot.lane.b32.xlu0 %v813, 88
      %v1299 = vpop.permute.xlu0 %1298
      %1300 = vrot.lane.b32.xlu0 %v814, 88
      %v1301 = vpop.permute.xlu0 %1300
      %1302 = vrot.lane.b32.xlu0 %v815, 88
      %v1303 = vpop.permute.xlu0 %1302
      %1304 = vrot.lane.b32.xlu0 %v816, 88
      %v1305 = vpop.permute.xlu0 %1304
      %v1311 = vsel %vm919, %v1294, 0
      %v1314 = vsel %vm919, %v1295, 0
      %v1317 = vsel %vm919, %v1296, 0
      %v1320 = vsel %vm919, %v1297, 0
      %1322 = vmatprep.subr.bf16.mxu0 0
      %1323 = vmatpush1.bf16.msra.mxu0 0
      %1324 = vmatprep.subr.bf16.mxu0 0
      %1325 = vmatpush1.bf16.msra.mxu0 0
      %1326 = vmatprep.subr.bf16.mxu0 0
      %1327 = vmatpush1.bf16.msra.mxu0 0
      %1328 = vmatprep.subr.bf16.mxu0 0
      %1329 = vmatpush1.bf16.msra.mxu0 0
      %1330 = vmatprep.subr.bf16.mxu0 0
      %1331 = vmatpush1.bf16.msra.mxu0 %v1305
      %1332 = vmatprep.subr.bf16.mxu0 0
      %1333 = vmatpush1.bf16.msra.mxu0 %v1303
      %1334 = vmatprep.subr.bf16.mxu0 0
      %1335 = vmatpush1.bf16.msra.mxu0 %v1301
      %1336 = vmatprep.subr.bf16.mxu0 0
      %1337 = vmatpush1.bf16.msra.mxu0 %v1299
      %1338 = vmatprep.subr.bf16.mxu0 0
      %1339 = vmatpush2.bf16.msra.mxu0 0
      %1340 = vmatprep.subr.bf16.mxu0 0
      %1341 = vmatpush2.bf16.msra.mxu0 0
      %1342 = vmatprep.subr.bf16.mxu0 0
      %1343 = vmatpush2.bf16.msra.mxu0 0
      %1344 = vmatprep.subr.bf16.mxu0 0
      %1345 = vmatpush2.bf16.msra.mxu0 0
      %1346 = vmatprep.subr.bf16.mxu0 0
      %1347 = vmatpush2.bf16.msra.mxu0 0
      %1348 = vmatprep.subr.bf16.mxu0 0
      %1349 = vmatpush2.bf16.msra.mxu0 0
      %1350 = vmatprep.subr.bf16.mxu0 0
      %1351 = vmatpush2.bf16.msra.mxu0 0
      %1352 = vmatprep.subr.bf16.mxu0 0
      %1353 = vmatpush2.bf16.msra.mxu0 0
      %1354 = vmatprep.mubr.bf16.mxu0 0
      %1355 = vmatmul.mubr.bf16.gmra.mxu0 %v1311
      %v1356 = vpop.f32.mrf.mxu0
      %v1357 = vadd.f32 0.0, %v1356
      %v1358 = vpop.f32.mrf.mxu0
      %v1359 = vpop.f32.mrf.mxu0
      %v1360 = vadd.f32 0.0, %v1359
      %v1361 = vpop.f32.mrf.mxu0
      %1362 = vmatprep.mubr.bf16.mxu0 0
      %1363 = vmatmul.mubr.bf16.gmra.mxu0 %v1314
      %v1364 = vpop.f32.mrf.mxu0
      %v1365 = vadd.f32 0.0, %v1364
      %v1366 = vpop.f32.mrf.mxu0
      %v1367 = vpop.f32.mrf.mxu0
      %v1368 = vadd.f32 0.0, %v1367
      %v1369 = vpop.f32.mrf.mxu0
      %1370 = vmatprep.mubr.bf16.mxu0 0
      %1371 = vmatmul.mubr.bf16.gmra.mxu0 %v1317
      %v1372 = vpop.f32.mrf.mxu0
      %v1373 = vadd.f32 0.0, %v1372
      %v1374 = vpop.f32.mrf.mxu0
      %v1375 = vpop.f32.mrf.mxu0
      %v1376 = vadd.f32 0.0, %v1375
      %v1377 = vpop.f32.mrf.mxu0
      %1378 = vmatprep.mubr.bf16.mxu0 0
      %1379 = vmatmul.mubr.bf16.gmra.mxu0 %v1320
      %v1380 = vpop.f32.mrf.mxu0
      %v1381 = vadd.f32 0.0, %v1380
      %v1382 = vpop.f32.mrf.mxu0
      %v1383 = vpop.f32.mrf.mxu0
      %v1384 = vadd.f32 0.0, %v1383
      %v1385 = vpop.f32.mrf.mxu0
      %1386 = vdwg.mxu0
      %1395 = vrot.lane.b32.xlu0 %v1357, 8
      %v1396 = vpop.permute.xlu0 %1395
      %1397 = vrot.lane.b32.xlu0 %v1360, 8
      %v1398 = vpop.permute.xlu0 %1397
      %1399 = vrot.lane.b32.xlu0 %v1365, 8
      %v1400 = vpop.permute.xlu0 %1399
      %1401 = vrot.lane.b32.xlu0 %v1368, 8
      %v1402 = vpop.permute.xlu0 %1401
      %1403 = vrot.lane.b32.xlu0 %v1373, 8
      %v1404 = vpop.permute.xlu0 %1403
      %1405 = vrot.lane.b32.xlu0 %v1376, 8
      %v1406 = vpop.permute.xlu0 %1405
      %1407 = vrot.lane.b32.xlu0 %v1381, 8
      %v1408 = vpop.permute.xlu0 %1407
      %1409 = vrot.lane.b32.xlu0 %v1384, 8
      %v1410 = vpop.permute.xlu0 %1409
      %v1419 = vsel %vm829, %v1071, %v1396
      %v1420 = vsel %vm829, %v1074, %v1398
      %v1421 = vsel %vm829, %v1079, %v1400
      %v1422 = vsel %vm829, %v1082, %v1402
      %v1423 = vsel %vm829, %v1087, %v1404
      %v1424 = vsel %vm829, %v1090, %v1406
      %v1425 = vsel %vm829, %v1095, %v1408
      %v1426 = vsel %vm829, %v1098, %v1410
      %v1427 = vld [vmem:[%s4] sm:$0xff]
      %v1428 = vld [vmem:[%s4 + $0x8] sm:$0xff]
      %v1429 = vpack.c.bf16 %v1420, %v1419
      %v1430 = vpack.c.bf16 %v1422, %v1421
      %v1431 = vpack.c.bf16 %v1424, %v1423
      %v1432 = vpack.c.bf16 %v1426, %v1425
      %v1433 = vpack.c.bf16 %v1428, %v1427
      %v1434 = vld [vmem:[%s5] sm:$0x1]
      %v1436 = vlaneseq
      %v1437 = vshrl.u32 %v1436, 7
      %v1438 = vsub.s32 0, %v1437
      %v1439 = vrot.slane %v1434, %v1438
      %v1442 = vsel %vm735, %v1429, 0
      %v1445 = vsel %vm735, %v1430, 0
      %v1448 = vsel %vm735, %v1431, 0
      %v1451 = vsel %vm735, %v1432, 0
      %1453 = vmatprep.subr.bf16.mxu0 0
      %1454 = vmatpush1.bf16.msra.mxu0 0
      %1455 = vmatprep.subr.bf16.mxu0 0
      %1456 = vmatpush1.bf16.msra.mxu0 0
      %1457 = vmatprep.subr.bf16.mxu0 0
      %1458 = vmatpush1.bf16.msra.mxu0 0
      %1459 = vmatprep.subr.bf16.mxu0 0
      %1460 = vmatpush1.bf16.msra.mxu0 0
      %1461 = vmatprep.subr.bf16.mxu0 0
      %1462 = vmatpush1.bf16.msra.mxu0 0
      %1463 = vmatprep.subr.bf16.mxu0 0
      %1464 = vmatpush1.bf16.msra.mxu0 0
      %1465 = vmatprep.subr.bf16.mxu0 0
      %1466 = vmatpush1.bf16.msra.mxu0 0
      %1467 = vmatprep.subr.bf16.mxu0 0
      %1468 = vmatpush1.bf16.msra.mxu0 %v1433
      %1469 = vmatprep.subr.bf16.mxu0 0
      %1470 = vmatpush2.bf16.msra.mxu0 0
      %1471 = vmatprep.subr.bf16.mxu0 0
      %1472 = vmatpush2.bf16.msra.mxu0 0
      %1473 = vmatprep.subr.bf16.mxu0 0
      %1474 = vmatpush2.bf16.msra.mxu0 0
      %1475 = vmatprep.subr.bf16.mxu0 0
      %1476 = vmatpush2.bf16.msra.mxu0 0
      %1477 = vmatprep.subr.bf16.mxu0 0
      %1478 = vmatpush2.bf16.msra.mxu0 0
      %1479 = vmatprep.subr.bf16.mxu0 0
      %1480 = vmatpush2.bf16.msra.mxu0 0
      %1481 = vmatprep.subr.bf16.mxu0 0
      %1482 = vmatpush2.bf16.msra.mxu0 0
      %1483 = vmatprep.subr.bf16.mxu0 0
      %1484 = vmatpush2.bf16.msra.mxu0 0
      %1485 = vmatprep.mubr.bf16.mxu0 0
      %1486 = vmatmul.mubr.bf16.gmra.mxu0 %v1442
      %v1487 = vpop.f32.mrf.mxu0
      %v1488 = vadd.f32 %v1439, %v1487
      %v1489 = vpop.f32.mrf.mxu0
      %v1490 = vpop.f32.mrf.mxu0
      %v1491 = vadd.f32 %v1439, %v1490
      %v1492 = vpop.f32.mrf.mxu0
      %1493 = vmatprep.mubr.bf16.mxu0 0
      %1494 = vmatmul.mubr.bf16.gmra.mxu0 %v1445
      %v1495 = vpop.f32.mrf.mxu0
      %v1496 = vadd.f32 %v1439, %v1495
      %v1497 = vpop.f32.mrf.mxu0
      %v1498 = vpop.f32.mrf.mxu0
      %v1499 = vadd.f32 %v1439, %v1498
      %v1500 = vpop.f32.mrf.mxu0
      %1501 = vmatprep.mubr.bf16.mxu0 0
      %1502 = vmatmul.mubr.bf16.gmra.mxu0 %v1448
      %v1503 = vpop.f32.mrf.mxu0
      %v1504 = vadd.f32 %v1439, %v1503
      %v1505 = vpop.f32.mrf.mxu0
      %v1506 = vpop.f32.mrf.mxu0
      %v1507 = vadd.f32 %v1439, %v1506
      %v1508 = vpop.f32.mrf.mxu0
      %1509 = vmatprep.mubr.bf16.mxu0 0
      %1510 = vmatmul.mubr.bf16.gmra.mxu0 %v1451
      %v1511 = vpop.f32.mrf.mxu0
      %v1512 = vadd.f32 %v1439, %v1511
      %v1513 = vpop.f32.mrf.mxu0
      %v1514 = vpop.f32.mrf.mxu0
      %v1515 = vadd.f32 %v1439, %v1514
      %v1516 = vpop.f32.mrf.mxu0
      %1517 = vdwg.mxu0
      %v1518 = vadd.f32 %v705, %v1488
      %v1519 = vadd.f32 %v706, %v1491
      %v1520 = vadd.f32 %v707, %v1496
      %v1521 = vadd.f32 %v708, %v1499
      %v1522 = vadd.f32 %v709, %v1504
      %v1523 = vadd.f32 %v710, %v1507
      %v1524 = vadd.f32 %v711, %v1512
      %v1525 = vadd.f32 %v712, %v1515
      %v1526 = vld [vmem:[%s16] sm:$0x1]
      %v1527 = vld [vmem:[%s17] sm:$0x1]
      %v1528 = vsel %vm735, %v1518, 0.0
      %1529 = vadd.xlane.f32.xlu0 %v1528
      %v1530 = vpop.xlane.xlu0 %1529
      %v1531 = vsel %vm735, %v1519, 0.0
      %1532 = vadd.xlane.f32.xlu0 %v1531
      %v1533 = vpop.xlane.xlu0 %1532
      %v1534 = vsel %vm735, %v1520, 0.0
      %1535 = vadd.xlane.f32.xlu0 %v1534
      %v1536 = vpop.xlane.xlu0 %1535
      %v1537 = vsel %vm735, %v1521, 0.0
      %1538 = vadd.xlane.f32.xlu0 %v1537
      %v1539 = vpop.xlane.xlu0 %1538
      %v1540 = vsel %vm735, %v1522, 0.0
      %1541 = vadd.xlane.f32.xlu0 %v1540
      %v1542 = vpop.xlane.xlu0 %1541
      %v1543 = vsel %vm735, %v1523, 0.0
      %1544 = vadd.xlane.f32.xlu0 %v1543
      %v1545 = vpop.xlane.xlu0 %1544
      %v1546 = vsel %vm735, %v1524, 0.0
      %1547 = vadd.xlane.f32.xlu0 %v1546
      %v1548 = vpop.xlane.xlu0 %1547
      %v1549 = vsel %vm735, %v1525, 0.0
      %1550 = vadd.xlane.f32.xlu0 %v1549
      %v1551 = vpop.xlane.xlu0 %1550
      %v1552 = vrcp.pop 16.0
      %v1553 = vmul.f32 %v1530, %v1552
      %v1554 = vmul.f32 %v1533, %v1552
      %v1555 = vmul.f32 %v1536, %v1552
      %v1556 = vmul.f32 %v1539, %v1552
      %v1557 = vmul.f32 %v1542, %v1552
      %v1558 = vmul.f32 %v1545, %v1552
      %v1559 = vmul.f32 %v1548, %v1552
      %v1560 = vmul.f32 %v1551, %v1552
      %v1561 = vsub.f32 %v1518, %v1553
      %v1562 = vsub.f32 %v1519, %v1554
      %v1563 = vsub.f32 %v1520, %v1555
      %v1564 = vsub.f32 %v1521, %v1556
      %v1565 = vsub.f32 %v1522, %v1557
      %v1566 = vsub.f32 %v1523, %v1558
      %v1567 = vsub.f32 %v1524, %v1559
      %v1568 = vsub.f32 %v1525, %v1560
      %v1569 = vmul.f32 %v1561, %v1561
      %v1570 = vmul.f32 %v1562, %v1562
      %v1571 = vmul.f32 %v1563, %v1563
      %v1572 = vmul.f32 %v1564, %v1564
      %v1573 = vmul.f32 %v1565, %v1565
      %v1574 = vmul.f32 %v1566, %v1566
      %v1575 = vmul.f32 %v1567, %v1567
      %v1576 = vmul.f32 %v1568, %v1568
      %v1577 = vsel %vm735, %v1569, 0.0
      %1578 = vadd.xlane.f32.xlu0 %v1577
      %v1579 = vpop.xlane.xlu0 %1578
      %v1580 = vsel %vm735, %v1570, 0.0
      %1581 = vadd.xlane.f32.xlu0 %v1580
      %v1582 = vpop.xlane.xlu0 %1581
      %v1583 = vsel %vm735, %v1571, 0.0
      %1584 = vadd.xlane.f32.xlu0 %v1583
      %v1585 = vpop.xlane.xlu0 %1584
      %v1586 = vsel %vm735, %v1572, 0.0
      %1587 = vadd.xlane.f32.xlu0 %v1586
      %v1588 = vpop.xlane.xlu0 %1587
      %v1589 = vsel %vm735, %v1573, 0.0
      %1590 = vadd.xlane.f32.xlu0 %v1589
      %v1591 = vpop.xlane.xlu0 %1590
      %v1592 = vsel %vm735, %v1574, 0.0
      %1593 = vadd.xlane.f32.xlu0 %v1592
      %v1594 = vpop.xlane.xlu0 %1593
      %v1595 = vsel %vm735, %v1575, 0.0
      %1596 = vadd.xlane.f32.xlu0 %v1595
      %v1597 = vpop.xlane.xlu0 %1596
      %v1598 = vsel %vm735, %v1576, 0.0
      %1599 = vadd.xlane.f32.xlu0 %v1598
      %v1600 = vpop.xlane.xlu0 %1599
      %v1601 = vmul.f32 %v1579, %v1552
      %v1602 = vmul.f32 %v1582, %v1552
      %v1603 = vmul.f32 %v1585, %v1552
      %v1604 = vmul.f32 %v1588, %v1552
      %v1605 = vmul.f32 %v1591, %v1552
      %v1606 = vmul.f32 %v1594, %v1552
      %v1607 = vmul.f32 %v1597, %v1552
      %v1608 = vmul.f32 %v1600, %v1552
      %v1609 = vadd.f32 %v1601, 1e-05
      %v1610 = vadd.f32 %v1602, 1e-05
      %v1611 = vadd.f32 %v1603, 1e-05
      %v1612 = vadd.f32 %v1604, 1e-05
      %v1613 = vadd.f32 %v1605, 1e-05
      %v1614 = vadd.f32 %v1606, 1e-05
      %v1615 = vadd.f32 %v1607, 1e-05
      %v1616 = vadd.f32 %v1608, 1e-05
      %v1617 = vrsqrt.pop %v1609
      %v1618 = vrsqrt.pop %v1610
      %v1619 = vrsqrt.pop %v1611
      %v1620 = vrsqrt.pop %v1612
      %v1621 = vrsqrt.pop %v1613
      %v1622 = vrsqrt.pop %v1614
      %v1623 = vrsqrt.pop %v1615
      %v1624 = vrsqrt.pop %v1616
      %v1625 = vmul.f32 %v1561, %v1617
      %v1626 = vmul.f32 %v1562, %v1618
      %v1627 = vmul.f32 %v1563, %v1619
      %v1628 = vmul.f32 %v1564, %v1620
      %v1629 = vmul.f32 %v1565, %v1621
      %v1630 = vmul.f32 %v1566, %v1622
      %v1631 = vmul.f32 %v1567, %v1623
      %v1632 = vmul.f32 %v1568, %v1624
      %v1634 = vlaneseq
      %v1635 = vshrl.u32 %v1634, 7
      %v1636 = vsub.s32 0, %v1635
      %v1637 = vrot.slane %v1526, %v1636
      %v1639 = vmul.f32 %v1625, %v1637
      %v1640 = vmul.f32 %v1626, %v1637
      %v1641 = vmul.f32 %v1627, %v1637
      %v1642 = vmul.f32 %v1628, %v1637
      %v1643 = vmul.f32 %v1629, %v1637
      %v1644 = vmul.f32 %v1630, %v1637
      %v1645 = vmul.f32 %v1631, %v1637
      %v1646 = vmul.f32 %v1632, %v1637
      %v1648 = vlaneseq
      %v1649 = vshrl.u32 %v1648, 7
      %v1650 = vsub.s32 0, %v1649
      %v1651 = vrot.slane %v1527, %v1650
      %v1653 = vadd.f32 %v1639, %v1651
      %v1654 = vadd.f32 %v1640, %v1651
      %v1655 = vadd.f32 %v1641, %v1651
      %v1656 = vadd.f32 %v1642, %v1651
      %v1657 = vadd.f32 %v1643, %v1651
      %v1658 = vadd.f32 %v1644, %v1651
      %v1659 = vadd.f32 %v1645, %v1651
      %v1660 = vadd.f32 %v1646, %v1651
      %v1661 = vld [vmem:[%s6] sm:$0xff]
      %v1662 = vld [vmem:[%s6 + $0x8] sm:$0xff]
      %v1663 = vpack.c.bf16 %v1654, %v1653
      %v1664 = vpack.c.bf16 %v1656, %v1655
      %v1665 = vpack.c.bf16 %v1658, %v1657
      %v1666 = vpack.c.bf16 %v1660, %v1659
      %v1667 = vpack.c.bf16 %v1662, %v1661
      %v1668 = vld [vmem:[%s7] sm:$0x1]
      %v1670 = vlaneseq
      %v1671 = vshrl.u32 %v1670, 7
      %v1672 = vsub.s32 0, %v1671
      %v1673 = vrot.slane %v1668, %v1672
      %v1676 = vsel %vm735, %v1663, 0
      %v1679 = vsel %vm735, %v1664, 0
      %v1682 = vsel %vm735, %v1665, 0
      %v1685 = vsel %vm735, %v1666, 0
      %1687 = vmatprep.subr.bf16.mxu0 0
      %1688 = vmatpush1.bf16.msra.mxu0 0
      %1689 = vmatprep.subr.bf16.mxu0 0
      %1690 = vmatpush1.bf16.msra.mxu0 0
      %1691 = vmatprep.subr.bf16.mxu0 0
      %1692 = vmatpush1.bf16.msra.mxu0 0
      %1693 = vmatprep.subr.bf16.mxu0 0
      %1694 = vmatpush1.bf16.msra.mxu0 0
      %1695 = vmatprep.subr.bf16.mxu0 0
      %1696 = vmatpush1.bf16.msra.mxu0 0
      %1697 = vmatprep.subr.bf16.mxu0 0
      %1698 = vmatpush1.bf16.msra.mxu0 0
      %1699 = vmatprep.subr.bf16.mxu0 0
      %1700 = vmatpush1.bf16.msra.mxu0 0
      %1701 = vmatprep.subr.bf16.mxu0 0
      %1702 = vmatpush1.bf16.msra.mxu0 %v1667
      %1703 = vmatprep.subr.bf16.mxu0 0
      %1704 = vmatpush2.bf16.msra.mxu0 0
      %1705 = vmatprep.subr.bf16.mxu0 0
      %1706 = vmatpush2.bf16.msra.mxu0 0
      %1707 = vmatprep.subr.bf16.mxu0 0
      %1708 = vmatpush2.bf16.msra.mxu0 0
      %1709 = vmatprep.subr.bf16.mxu0 0
      %1710 = vmatpush2.bf16.msra.mxu0 0
      %1711 = vmatprep.subr.bf16.mxu0 0
      %1712 = vmatpush2.bf16.msra.mxu0 0
      %1713 = vmatprep.subr.bf16.mxu0 0
      %1714 = vmatpush2.bf16.msra.mxu0 0
      %1715 = vmatprep.subr.bf16.mxu0 0
      %1716 = vmatpush2.bf16.msra.mxu0 0
      %1717 = vmatprep.subr.bf16.mxu0 0
      %1718 = vmatpush2.bf16.msra.mxu0 0
      %1719 = vmatprep.mubr.bf16.mxu0 0
      %1720 = vmatmul.mubr.bf16.gmra.mxu0 %v1676
      %v1721 = vpop.f32.mrf.mxu0
      %v1722 = vadd.f32 %v1673, %v1721
      %v1723 = vpop.f32.mrf.mxu0
      %v1724 = vpop.f32.mrf.mxu0
      %v1725 = vadd.f32 %v1673, %v1724
      %v1726 = vpop.f32.mrf.mxu0
      %1727 = vmatprep.mubr.bf16.mxu0 0
      %1728 = vmatmul.mubr.bf16.gmra.mxu0 %v1679
      %v1729 = vpop.f32.mrf.mxu0
      %v1730 = vadd.f32 %v1673, %v1729
      %v1731 = vpop.f32.mrf.mxu0
      %v1732 = vpop.f32.mrf.mxu0
      %v1733 = vadd.f32 %v1673, %v1732
      %v1734 = vpop.f32.mrf.mxu0
      %1735 = vmatprep.mubr.bf16.mxu0 0
      %1736 = vmatmul.mubr.bf16.gmra.mxu0 %v1682
      %v1737 = vpop.f32.mrf.mxu0
      %v1738 = vadd.f32 %v1673, %v1737
      %v1739 = vpop.f32.mrf.mxu0
      %v1740 = vpop.f32.mrf.mxu0
      %v1741 = vadd.f32 %v1673, %v1740
      %v1742 = vpop.f32.mrf.mxu0
      %1743 = vmatprep.mubr.bf16.mxu0 0
      %1744 = vmatmul.mubr.bf16.gmra.mxu0 %v1685
      %v1745 = vpop.f32.mrf.mxu0
      %v1746 = vadd.f32 %v1673, %v1745
      %v1747 = vpop.f32.mrf.mxu0
      %v1748 = vpop.f32.mrf.mxu0
      %v1749 = vadd.f32 %v1673, %v1748
      %v1750 = vpop.f32.mrf.mxu0
      %1751 = vdwg.mxu0
      %v1752 = vld [vmem:[%s8] sm:$0xff]
      %v1753 = vld [vmem:[%s8 + $0x8] sm:$0xff]
      %v1754 = vpack.c.bf16 %v714, %v713
      %v1755 = vpack.c.bf16 %v716, %v715
      %v1756 = vpack.c.bf16 %v718, %v717
      %v1757 = vpack.c.bf16 %v720, %v719
      %v1758 = vpack.c.bf16 %v1753, %v1752
      %v1759 = vld [vmem:[%s9] sm:$0x1]
      %v1761 = vlaneseq
      %v1762 = vshrl.u32 %v1761, 7
      %v1763 = vsub.s32 0, %v1762
      %v1764 = vrot.slane %v1759, %v1763
      %v1767 = vsel %vm735, %v1754, 0
      %v1770 = vsel %vm735, %v1755, 0
      %v1773 = vsel %vm735, %v1756, 0
      %v1776 = vsel %vm735, %v1757, 0
      %1778 = vmatprep.subr.bf16.mxu0 0
      %1779 = vmatpush1.bf16.msra.mxu0 0
      %1780 = vmatprep.subr.bf16.mxu0 0
      %1781 = vmatpush1.bf16.msra.mxu0 0
      %1782 = vmatprep.subr.bf16.mxu0 0
      %1783 = vmatpush1.bf16.msra.mxu0 0
      %1784 = vmatprep.subr.bf16.mxu0 0
      %1785 = vmatpush1.bf16.msra.mxu0 0
      %1786 = vmatprep.subr.bf16.mxu0 0
      %1787 = vmatpush1.bf16.msra.mxu0 0
      %1788 = vmatprep.subr.bf16.mxu0 0
      %1789 = vmatpush1.bf16.msra.mxu0 0
      %1790 = vmatprep.subr.bf16.mxu0 0
      %1791 = vmatpush1.bf16.msra.mxu0 0
      %1792 = vmatprep.subr.bf16.mxu0 0
      %1793 = vmatpush1.bf16.msra.mxu0 %v1758
      %1794 = vmatprep.subr.bf16.mxu0 0
      %1795 = vmatpush2.bf16.msra.mxu0 0
      %1796 = vmatprep.subr.bf16.mxu0 0
      %1797 = vmatpush2.bf16.msra.mxu0 0
      %1798 = vmatprep.subr.bf16.mxu0 0
      %1799 = vmatpush2.bf16.msra.mxu0 0
      %1800 = vmatprep.subr.bf16.mxu0 0
      %1801 = vmatpush2.bf16.msra.mxu0 0
      %1802 = vmatprep.subr.bf16.mxu0 0
      %1803 = vmatpush2.bf16.msra.mxu0 0
      %1804 = vmatprep.subr.bf16.mxu0 0
      %1805 = vmatpush2.bf16.msra.mxu0 0
      %1806 = vmatprep.subr.bf16.mxu0 0
      %1807 = vmatpush2.bf16.msra.mxu0 0
      %1808 = vmatprep.subr.bf16.mxu0 0
      %1809 = vmatpush2.bf16.msra.mxu0 0
      %1810 = vmatprep.mubr.bf16.mxu0 0
      %1811 = vmatmul.mubr.bf16.gmra.mxu0 %v1767
      %v1812 = vpop.f32.mrf.mxu0
      %v1813 = vadd.f32 %v1764, %v1812
      %v1814 = vpop.f32.mrf.mxu0
      %v1815 = vpop.f32.mrf.mxu0
      %v1816 = vadd.f32 %v1764, %v1815
      %v1817 = vpop.f32.mrf.mxu0
      %1818 = vmatprep.mubr.bf16.mxu0 0
      %1819 = vmatmul.mubr.bf16.gmra.mxu0 %v1770
      %v1820 = vpop.f32.mrf.mxu0
      %v1821 = vadd.f32 %v1764, %v1820
      %v1822 = vpop.f32.mrf.mxu0
      %v1823 = vpop.f32.mrf.mxu0
      %v1824 = vadd.f32 %v1764, %v1823
      %v1825 = vpop.f32.mrf.mxu0
      %1826 = vmatprep.mubr.bf16.mxu0 0
      %1827 = vmatmul.mubr.bf16.gmra.mxu0 %v1773
      %v1828 = vpop.f32.mrf.mxu0
      %v1829 = vadd.f32 %v1764, %v1828
      %v1830 = vpop.f32.mrf.mxu0
      %v1831 = vpop.f32.mrf.mxu0
      %v1832 = vadd.f32 %v1764, %v1831
      %v1833 = vpop.f32.mrf.mxu0
      %1834 = vmatprep.mubr.bf16.mxu0 0
      %1835 = vmatmul.mubr.bf16.gmra.mxu0 %v1776
      %v1836 = vpop.f32.mrf.mxu0
      %v1837 = vadd.f32 %v1764, %v1836
      %v1838 = vpop.f32.mrf.mxu0
      %v1839 = vpop.f32.mrf.mxu0
      %v1840 = vadd.f32 %v1764, %v1839
      %v1841 = vpop.f32.mrf.mxu0
      %1842 = vdwg.mxu0
      %v1843 = vpack.c.bf16 %v1725, %v1722
      %v1844 = vpack.c.bf16 %v1733, %v1730
      %v1845 = vpack.c.bf16 %v1741, %v1738
      %v1846 = vpack.c.bf16 %v1749, %v1746
      %v1847 = vpack.c.bf16 %v1816, %v1813
      %v1848 = vpack.c.bf16 %v1824, %v1821
      %v1849 = vpack.c.bf16 %v1832, %v1829
      %v1850 = vpack.c.bf16 %v1840, %v1837
      %v1852 = vsel %vm829, %v1843, 0
      %v1855 = vsel %vm829, %v1844, 0
      %v1858 = vsel %vm829, %v1845, 0
      %v1861 = vsel %vm829, %v1846, 0
      %v1864 = vsel %vm829, %v1847, 0
      %v1867 = vsel %vm829, %v1848, 0
      %v1870 = vsel %vm829, %v1849, 0
      %v1873 = vsel %vm829, %v1850, 0
      %1875 = vmatprep.subr.bf16.mxu0 0
      %1876 = vmatpush1.bf16.xpose.msra.mxu0 0
      %1877 = vmatprep.subr.bf16.mxu0 0
      %1878 = vmatpush1.bf16.xpose.msra.mxu0 0
      %1879 = vmatprep.subr.bf16.mxu0 0
      %1880 = vmatpush1.bf16.xpose.msra.mxu0 0
      %1881 = vmatprep.subr.bf16.mxu0 0
      %1882 = vmatpush1.bf16.xpose.msra.mxu0 0
      %1883 = vmatprep.subr.bf16.mxu0 0
      %1884 = vmatpush1.bf16.xpose.msra.mxu0 %v1873
      %1885 = vmatprep.subr.bf16.mxu0 0
      %1886 = vmatpush1.bf16.xpose.msra.mxu0 %v1870
      %1887 = vmatprep.subr.bf16.mxu0 0
      %1888 = vmatpush1.bf16.xpose.msra.mxu0 %v1867
      %1889 = vmatprep.subr.bf16.mxu0 0
      %1890 = vmatpush1.bf16.xpose.msra.mxu0 %v1864
      %1891 = vmatprep.subr.bf16.mxu0 0
      %1892 = vmatpush2.bf16.xpose.msra.mxu0 0
      %1893 = vmatprep.subr.bf16.mxu0 0
      %1894 = vmatpush2.bf16.xpose.msra.mxu0 0
      %1895 = vmatprep.subr.bf16.mxu0 0
      %1896 = vmatpush2.bf16.xpose.msra.mxu0 0
      %1897 = vmatprep.subr.bf16.mxu0 0
      %1898 = vmatpush2.bf16.xpose.msra.mxu0 0
      %1899 = vmatprep.subr.bf16.mxu0 0
      %1900 = vmatpush2.bf16.xpose.msra.mxu0 0
      %1901 = vmatprep.subr.bf16.mxu0 0
      %1902 = vmatpush2.bf16.xpose.msra.mxu0 0
      %1903 = vmatprep.subr.bf16.mxu0 0
      %1904 = vmatpush2.bf16.xpose.msra.mxu0 0
      %1905 = vmatprep.subr.bf16.mxu0 0
      %1906 = vmatpush2.bf16.xpose.msra.mxu0 0
      %1907 = vmatprep.mubr.bf16.mxu0 0
      %1908 = vmatmul.mubr.bf16.gmra.mxu0 %v1852
      %v1909 = vpop.f32.mrf.mxu0
      %v1910 = vadd.f32 0.0, %v1909
      %v1911 = vpop.f32.mrf.mxu0
      %v1912 = vpop.f32.mrf.mxu0
      %v1913 = vadd.f32 0.0, %v1912
      %v1914 = vpop.f32.mrf.mxu0
      %1915 = vmatprep.mubr.bf16.mxu0 0
      %1916 = vmatmul.mubr.bf16.gmra.mxu0 %v1855
      %v1917 = vpop.f32.mrf.mxu0
      %v1918 = vadd.f32 0.0, %v1917
      %v1919 = vpop.f32.mrf.mxu0
      %v1920 = vpop.f32.mrf.mxu0
      %v1921 = vadd.f32 0.0, %v1920
      %v1922 = vpop.f32.mrf.mxu0
      %1923 = vmatprep.mubr.bf16.mxu0 0
      %1924 = vmatmul.mubr.bf16.gmra.mxu0 %v1858
      %v1925 = vpop.f32.mrf.mxu0
      %v1926 = vadd.f32 0.0, %v1925
      %v1927 = vpop.f32.mrf.mxu0
      %v1928 = vpop.f32.mrf.mxu0
      %v1929 = vadd.f32 0.0, %v1928
      %v1930 = vpop.f32.mrf.mxu0
      %1931 = vmatprep.mubr.bf16.mxu0 0
      %1932 = vmatmul.mubr.bf16.gmra.mxu0 %v1861
      %v1933 = vpop.f32.mrf.mxu0
      %v1934 = vadd.f32 0.0, %v1933
      %v1935 = vpop.f32.mrf.mxu0
      %v1936 = vpop.f32.mrf.mxu0
      %v1937 = vadd.f32 0.0, %v1936
      %v1938 = vpop.f32.mrf.mxu0
      %1939 = vdwg.mxu0
      %v1940 = vsel %vm919, %v1910, -inf
      %1941 = vmax.xlane.f32.xlu0 %v1940
      %v1942 = vpop.xlane.xlu0 %1941
      %v1943 = vsel %vm919, %v1913, -inf
      %1944 = vmax.xlane.f32.xlu0 %v1943
      %v1945 = vpop.xlane.xlu0 %1944
      %v1946 = vsel %vm919, %v1918, -inf
      %1947 = vmax.xlane.f32.xlu0 %v1946
      %v1948 = vpop.xlane.xlu0 %1947
      %v1949 = vsel %vm919, %v1921, -inf
      %1950 = vmax.xlane.f32.xlu0 %v1949
      %v1951 = vpop.xlane.xlu0 %1950
      %v1952 = vsel %vm919, %v1926, -inf
      %1953 = vmax.xlane.f32.xlu0 %v1952
      %v1954 = vpop.xlane.xlu0 %1953
      %v1955 = vsel %vm919, %v1929, -inf
      %1956 = vmax.xlane.f32.xlu0 %v1955
      %v1957 = vpop.xlane.xlu0 %1956
      %v1958 = vsel %vm919, %v1934, -inf
      %1959 = vmax.xlane.f32.xlu0 %v1958
      %v1960 = vpop.xlane.xlu0 %1959
      %v1961 = vsel %vm919, %v1937, -inf
      %1962 = vmax.xlane.f32.xlu0 %v1961
      %v1963 = vpop.xlane.xlu0 %1962
      %v1964 = vsub.f32 %v1910, %v1942
      %v1965 = vsub.f32 %v1913, %v1945
      %v1966 = vsub.f32 %v1918, %v1948
      %v1967 = vsub.f32 %v1921, %v1951
      %v1968 = vsub.f32 %v1926, %v1954
      %v1969 = vsub.f32 %v1929, %v1957
      %v1970 = vsub.f32 %v1934, %v1960
      %v1971 = vsub.f32 %v1937, %v1963
      %v1972 = vmul.f32 %v1964, 1.442695
      %v1973 = vpow.pop %v1972
      %v1974 = vmul.f32 %v1965, 1.442695
      %v1975 = vpow.pop %v1974
      %v1976 = vmul.f32 %v1966, 1.442695
      %v1977 = vpow.pop %v1976
      %v1978 = vmul.f32 %v1967, 1.442695
      %v1979 = vpow.pop %v1978
      %v1980 = vmul.f32 %v1968, 1.442695
      %v1981 = vpow.pop %v1980
      %v1982 = vmul.f32 %v1969, 1.442695
      %v1983 = vpow.pop %v1982
      %v1984 = vmul.f32 %v1970, 1.442695
      %v1985 = vpow.pop %v1984
      %v1986 = vmul.f32 %v1971, 1.442695
      %v1987 = vpow.pop %v1986
      %v1988 = vsel %vm919, %v1973, 0.0
      %1989 = vadd.xlane.f32.xlu0 %v1988
      %v1990 = vpop.xlane.xlu0 %1989
      %v1991 = vsel %vm919, %v1975, 0.0
      %1992 = vadd.xlane.f32.xlu0 %v1991
      %v1993 = vpop.xlane.xlu0 %1992
      %v1994 = vsel %vm919, %v1977, 0.0
      %1995 = vadd.xlane.f32.xlu0 %v1994
      %v1996 = vpop.xlane.xlu0 %1995
      %v1997 = vsel %vm919, %v1979, 0.0
      %1998 = vadd.xlane.f32.xlu0 %v1997
      %v1999 = vpop.xlane.xlu0 %1998
      %v2000 = vsel %vm919, %v1981, 0.0
      %2001 = vadd.xlane.f32.xlu0 %v2000
      %v2002 = vpop.xlane.xlu0 %2001
      %v2003 = vsel %vm919, %v1983, 0.0
      %2004 = vadd.xlane.f32.xlu0 %v2003
      %v2005 = vpop.xlane.xlu0 %2004
      %v2006 = vsel %vm919, %v1985, 0.0
      %2007 = vadd.xlane.f32.xlu0 %v2006
      %v2008 = vpop.xlane.xlu0 %2007
      %v2009 = vsel %vm919, %v1987, 0.0
      %2010 = vadd.xlane.f32.xlu0 %v2009
      %v2011 = vpop.xlane.xlu0 %2010
      %v2012 = vrcp.pop %v1990
      %v2013 = vrcp.pop %v1993
      %v2014 = vrcp.pop %v1996
      %v2015 = vrcp.pop %v1999
      %v2016 = vrcp.pop %v2002
      %v2017 = vrcp.pop %v2005
      %v2018 = vrcp.pop %v2008
      %v2019 = vrcp.pop %v2011
      %v2020 = vmul.f32 %v1973, %v2012
      %v2021 = vmul.f32 %v1975, %v2013
      %v2022 = vmul.f32 %v1977, %v2014
      %v2023 = vmul.f32 %v1979, %v2015
      %v2024 = vmul.f32 %v1981, %v2016
      %v2025 = vmul.f32 %v1983, %v2017
      %v2026 = vmul.f32 %v1985, %v2018
      %v2027 = vmul.f32 %v1987, %v2019
      %v2028 = vpack.c.bf16 %v2021, %v2020
      %v2029 = vpack.c.bf16 %v2023, %v2022
      %v2030 = vpack.c.bf16 %v2025, %v2024
      %v2031 = vpack.c.bf16 %v2027, %v2026
      %2036 = vrot.lane.b32.xlu0 %v1847, 112
      %v2037 = vpop.permute.xlu0 %2036
      %2038 = vrot.lane.b32.xlu0 %v1848, 112
      %v2039 = vpop.permute.xlu0 %2038
      %2040 = vrot.lane.b32.xlu0 %v1849, 112
      %v2041 = vpop.permute.xlu0 %2040
      %2042 = vrot.lane.b32.xlu0 %v1850, 112
      %v2043 = vpop.permute.xlu0 %2042
      %v2049 = vsel %vm919, %v2028, 0
      %v2052 = vsel %vm919, %v2029, 0
      %v2055 = vsel %vm919, %v2030, 0
      %v2058 = vsel %vm919, %v2031, 0
      %2060 = vmatprep.subr.bf16.mxu0 0
      %2061 = vmatpush1.bf16.msra.mxu0 0
      %2062 = vmatprep.subr.bf16.mxu0 0
      %2063 = vmatpush1.bf16.msra.mxu0 0
      %2064 = vmatprep.subr.bf16.mxu0 0
      %2065 = vmatpush1.bf16.msra.mxu0 0
      %2066 = vmatprep.subr.bf16.mxu0 0
      %2067 = vmatpush1.bf16.msra.mxu0 0
      %2068 = vmatprep.subr.bf16.mxu0 0
      %2069 = vmatpush1.bf16.msra.mxu0 %v2043
      %2070 = vmatprep.subr.bf16.mxu0 0
      %2071 = vmatpush1.bf16.msra.mxu0 %v2041
      %2072 = vmatprep.subr.bf16.mxu0 0
      %2073 = vmatpush1.bf16.msra.mxu0 %v2039
      %2074 = vmatprep.subr.bf16.mxu0 0
      %2075 = vmatpush1.bf16.msra.mxu0 %v2037
      %2076 = vmatprep.subr.bf16.mxu0 0
      %2077 = vmatpush2.bf16.msra.mxu0 0
      %2078 = vmatprep.subr.bf16.mxu0 0
      %2079 = vmatpush2.bf16.msra.mxu0 0
      %2080 = vmatprep.subr.bf16.mxu0 0
      %2081 = vmatpush2.bf16.msra.mxu0 0
      %2082 = vmatprep.subr.bf16.mxu0 0
      %2083 = vmatpush2.bf16.msra.mxu0 0
      %2084 = vmatprep.subr.bf16.mxu0 0
      %2085 = vmatpush2.bf16.msra.mxu0 0
      %2086 = vmatprep.subr.bf16.mxu0 0
      %2087 = vmatpush2.bf16.msra.mxu0 0
      %2088 = vmatprep.subr.bf16.mxu0 0
      %2089 = vmatpush2.bf16.msra.mxu0 0
      %2090 = vmatprep.subr.bf16.mxu0 0
      %2091 = vmatpush2.bf16.msra.mxu0 0
      %2092 = vmatprep.mubr.bf16.mxu0 0
      %2093 = vmatmul.mubr.bf16.gmra.mxu0 %v2049
      %v2094 = vpop.f32.mrf.mxu0
      %v2095 = vadd.f32 0.0, %v2094
      %v2096 = vpop.f32.mrf.mxu0
      %v2097 = vpop.f32.mrf.mxu0
      %v2098 = vadd.f32 0.0, %v2097
      %v2099 = vpop.f32.mrf.mxu0
      %2100 = vmatprep.mubr.bf16.mxu0 0
      %2101 = vmatmul.mubr.bf16.gmra.mxu0 %v2052
      %v2102 = vpop.f32.mrf.mxu0
      %v2103 = vadd.f32 0.0, %v2102
      %v2104 = vpop.f32.mrf.mxu0
      %v2105 = vpop.f32.mrf.mxu0
      %v2106 = vadd.f32 0.0, %v2105
      %v2107 = vpop.f32.mrf.mxu0
      %2108 = vmatprep.mubr.bf16.mxu0 0
      %2109 = vmatmul.mubr.bf16.gmra.mxu0 %v2055
      %v2110 = vpop.f32.mrf.mxu0
      %v2111 = vadd.f32 0.0, %v2110
      %v2112 = vpop.f32.mrf.mxu0
      %v2113 = vpop.f32.mrf.mxu0
      %v2114 = vadd.f32 0.0, %v2113
      %v2115 = vpop.f32.mrf.mxu0
      %2116 = vmatprep.mubr.bf16.mxu0 0
      %2117 = vmatmul.mubr.bf16.gmra.mxu0 %v2058
      %v2118 = vpop.f32.mrf.mxu0
      %v2119 = vadd.f32 0.0, %v2118
      %v2120 = vpop.f32.mrf.mxu0
      %v2121 = vpop.f32.mrf.mxu0
      %v2122 = vadd.f32 0.0, %v2121
      %v2123 = vpop.f32.mrf.mxu0
      %2124 = vdwg.mxu0
      %2129 = vrot.lane.b32.xlu0 %v1843, 120
      %v2130 = vpop.permute.xlu0 %2129
      %2131 = vrot.lane.b32.xlu0 %v1844, 120
      %v2132 = vpop.permute.xlu0 %2131
      %2133 = vrot.lane.b32.xlu0 %v1845, 120
      %v2134 = vpop.permute.xlu0 %2133
      %2135 = vrot.lane.b32.xlu0 %v1846, 120
      %v2136 = vpop.permute.xlu0 %2135
      %2137 = vrot.lane.b32.xlu0 %v1847, 120
      %v2138 = vpop.permute.xlu0 %2137
      %2139 = vrot.lane.b32.xlu0 %v1848, 120
      %v2140 = vpop.permute.xlu0 %2139
      %2141 = vrot.lane.b32.xlu0 %v1849, 120
      %v2142 = vpop.permute.xlu0 %2141
      %2143 = vrot.lane.b32.xlu0 %v1850, 120
      %v2144 = vpop.permute.xlu0 %2143
      %v2146 = vsel %vm829, %v2130, 0
      %v2149 = vsel %vm829, %v2132, 0
      %v2152 = vsel %vm829, %v2134, 0
      %v2155 = vsel %vm829, %v2136, 0
      %v2158 = vsel %vm829, %v2138, 0
      %v2161 = vsel %vm829, %v2140, 0
      %v2164 = vsel %vm829, %v2142, 0
      %v2167 = vsel %vm829, %v2144, 0
      %2169 = vmatprep.subr.bf16.mxu0 0
      %2170 = vmatpush1.bf16.xpose.msra.mxu0 0
      %2171 = vmatprep.subr.bf16.mxu0 0
      %2172 = vmatpush1.bf16.xpose.msra.mxu0 0
      %2173 = vmatprep.subr.bf16.mxu0 0
      %2174 = vmatpush1.bf16.xpose.msra.mxu0 0
      %2175 = vmatprep.subr.bf16.mxu0 0
      %2176 = vmatpush1.bf16.xpose.msra.mxu0 0
      %2177 = vmatprep.subr.bf16.mxu0 0
      %2178 = vmatpush1.bf16.xpose.msra.mxu0 %v2167
      %2179 = vmatprep.subr.bf16.mxu0 0
      %2180 = vmatpush1.bf16.xpose.msra.mxu0 %v2164
      %2181 = vmatprep.subr.bf16.mxu0 0
      %2182 = vmatpush1.bf16.xpose.msra.mxu0 %v2161
      %2183 = vmatprep.subr.bf16.mxu0 0
      %2184 = vmatpush1.bf16.xpose.msra.mxu0 %v2158
      %2185 = vmatprep.subr.bf16.mxu0 0
      %2186 = vmatpush2.bf16.xpose.msra.mxu0 0
      %2187 = vmatprep.subr.bf16.mxu0 0
      %2188 = vmatpush2.bf16.xpose.msra.mxu0 0
      %2189 = vmatprep.subr.bf16.mxu0 0
      %2190 = vmatpush2.bf16.xpose.msra.mxu0 0
      %2191 = vmatprep.subr.bf16.mxu0 0
      %2192 = vmatpush2.bf16.xpose.msra.mxu0 0
      %2193 = vmatprep.subr.bf16.mxu0 0
      %2194 = vmatpush2.bf16.xpose.msra.mxu0 0
      %2195 = vmatprep.subr.bf16.mxu0 0
      %2196 = vmatpush2.bf16.xpose.msra.mxu0 0
      %2197 = vmatprep.subr.bf16.mxu0 0
      %2198 = vmatpush2.bf16.xpose.msra.mxu0 0
      %2199 = vmatprep.subr.bf16.mxu0 0
      %2200 = vmatpush2.bf16.xpose.msra.mxu0 0
      %2201 = vmatprep.mubr.bf16.mxu0 0
      %2202 = vmatmul.mubr.bf16.gmra.mxu0 %v2146
      %v2203 = vpop.f32.mrf.mxu0
      %v2204 = vadd.f32 0.0, %v2203
      %v2205 = vpop.f32.mrf.mxu0
      %v2206 = vpop.f32.mrf.mxu0
      %v2207 = vadd.f32 0.0, %v2206
      %v2208 = vpop.f32.mrf.mxu0
      %2209 = vmatprep.mubr.bf16.mxu0 0
      %2210 = vmatmul.mubr.bf16.gmra.mxu0 %v2149
      %v2211 = vpop.f32.mrf.mxu0
      %v2212 = vadd.f32 0.0, %v2211
      %v2213 = vpop.f32.mrf.mxu0
      %v2214 = vpop.f32.mrf.mxu0
      %v2215 = vadd.f32 0.0, %v2214
      %v2216 = vpop.f32.mrf.mxu0
      %2217 = vmatprep.mubr.bf16.mxu0 0
      %2218 = vmatmul.mubr.bf16.gmra.mxu0 %v2152
      %v2219 = vpop.f32.mrf.mxu0
      %v2220 = vadd.f32 0.0, %v2219
      %v2221 = vpop.f32.mrf.mxu0
      %v2222 = vpop.f32.mrf.mxu0
      %v2223 = vadd.f32 0.0, %v2222
      %v2224 = vpop.f32.mrf.mxu0
      %2225 = vmatprep.mubr.bf16.mxu0 0
      %2226 = vmatmul.mubr.bf16.gmra.mxu0 %v2155
      %v2227 = vpop.f32.mrf.mxu0
      %v2228 = vadd.f32 0.0, %v2227
      %v2229 = vpop.f32.mrf.mxu0
      %v2230 = vpop.f32.mrf.mxu0
      %v2231 = vadd.f32 0.0, %v2230
      %v2232 = vpop.f32.mrf.mxu0
      %2233 = vdwg.mxu0
      %v2234 = vsel %vm919, %v2204, -inf
      %2235 = vmax.xlane.f32.xlu0 %v2234
      %v2236 = vpop.xlane.xlu0 %2235
      %v2237 = vsel %vm919, %v2207, -inf
      %2238 = vmax.xlane.f32.xlu0 %v2237
      %v2239 = vpop.xlane.xlu0 %2238
      %v2240 = vsel %vm919, %v2212, -inf
      %2241 = vmax.xlane.f32.xlu0 %v2240
      %v2242 = vpop.xlane.xlu0 %2241
      %v2243 = vsel %vm919, %v2215, -inf
      %2244 = vmax.xlane.f32.xlu0 %v2243
      %v2245 = vpop.xlane.xlu0 %2244
      %v2246 = vsel %vm919, %v2220, -inf
      %2247 = vmax.xlane.f32.xlu0 %v2246
      %v2248 = vpop.xlane.xlu0 %2247
      %v2249 = vsel %vm919, %v2223, -inf
      %2250 = vmax.xlane.f32.xlu0 %v2249
      %v2251 = vpop.xlane.xlu0 %2250
      %v2252 = vsel %vm919, %v2228, -inf
      %2253 = vmax.xlane.f32.xlu0 %v2252
      %v2254 = vpop.xlane.xlu0 %2253
      %v2255 = vsel %vm919, %v2231, -inf
      %2256 = vmax.xlane.f32.xlu0 %v2255
      %v2257 = vpop.xlane.xlu0 %2256
      %v2258 = vsub.f32 %v2204, %v2236
      %v2259 = vsub.f32 %v2207, %v2239
      %v2260 = vsub.f32 %v2212, %v2242
      %v2261 = vsub.f32 %v2215, %v2245
      %v2262 = vsub.f32 %v2220, %v2248
      %v2263 = vsub.f32 %v2223, %v2251
      %v2264 = vsub.f32 %v2228, %v2254
      %v2265 = vsub.f32 %v2231, %v2257
      %v2266 = vmul.f32 %v2258, 1.442695
      %v2267 = vpow.pop %v2266
      %v2268 = vmul.f32 %v2259, 1.442695
      %v2269 = vpow.pop %v2268
      %v2270 = vmul.f32 %v2260, 1.442695
      %v2271 = vpow.pop %v2270
      %v2272 = vmul.f32 %v2261, 1.442695
      %v2273 = vpow.pop %v2272
      %v2274 = vmul.f32 %v2262, 1.442695
      %v2275 = vpow.pop %v2274
      %v2276 = vmul.f32 %v2263, 1.442695
      %v2277 = vpow.pop %v2276
      %v2278 = vmul.f32 %v2264, 1.442695
      %v2279 = vpow.pop %v2278
      %v2280 = vmul.f32 %v2265, 1.442695
      %v2281 = vpow.pop %v2280
      %v2282 = vsel %vm919, %v2267, 0.0
      %2283 = vadd.xlane.f32.xlu0 %v2282
      %v2284 = vpop.xlane.xlu0 %2283
      %v2285 = vsel %vm919, %v2269, 0.0
      %2286 = vadd.xlane.f32.xlu0 %v2285
      %v2287 = vpop.xlane.xlu0 %2286
      %v2288 = vsel %vm919, %v2271, 0.0
      %2289 = vadd.xlane.f32.xlu0 %v2288
      %v2290 = vpop.xlane.xlu0 %2289
      %v2291 = vsel %vm919, %v2273, 0.0
      %2292 = vadd.xlane.f32.xlu0 %v2291
      %v2293 = vpop.xlane.xlu0 %2292
      %v2294 = vsel %vm919, %v2275, 0.0
      %2295 = vadd.xlane.f32.xlu0 %v2294
      %v2296 = vpop.xlane.xlu0 %2295
      %v2297 = vsel %vm919, %v2277, 0.0
      %2298 = vadd.xlane.f32.xlu0 %v2297
      %v2299 = vpop.xlane.xlu0 %2298
      %v2300 = vsel %vm919, %v2279, 0.0
      %2301 = vadd.xlane.f32.xlu0 %v2300
      %v2302 = vpop.xlane.xlu0 %2301
      %v2303 = vsel %vm919, %v2281, 0.0
      %2304 = vadd.xlane.f32.xlu0 %v2303
      %v2305 = vpop.xlane.xlu0 %2304
      %v2306 = vrcp.pop %v2284
      %v2307 = vrcp.pop %v2287
      %v2308 = vrcp.pop %v2290
      %v2309 = vrcp.pop %v2293
      %v2310 = vrcp.pop %v2296
      %v2311 = vrcp.pop %v2299
      %v2312 = vrcp.pop %v2302
      %v2313 = vrcp.pop %v2305
      %v2314 = vmul.f32 %v2267, %v2306
      %v2315 = vmul.f32 %v2269, %v2307
      %v2316 = vmul.f32 %v2271, %v2308
      %v2317 = vmul.f32 %v2273, %v2309
      %v2318 = vmul.f32 %v2275, %v2310
      %v2319 = vmul.f32 %v2277, %v2311
      %v2320 = vmul.f32 %v2279, %v2312
      %v2321 = vmul.f32 %v2281, %v2313
      %v2322 = vpack.c.bf16 %v2315, %v2314
      %v2323 = vpack.c.bf16 %v2317, %v2316
      %v2324 = vpack.c.bf16 %v2319, %v2318
      %v2325 = vpack.c.bf16 %v2321, %v2320
      %2326 = vrot.lane.b32.xlu0 %v1847, 104
      %v2327 = vpop.permute.xlu0 %2326
      %2328 = vrot.lane.b32.xlu0 %v1848, 104
      %v2329 = vpop.permute.xlu0 %2328
      %2330 = vrot.lane.b32.xlu0 %v1849, 104
      %v2331 = vpop.permute.xlu0 %2330
      %2332 = vrot.lane.b32.xlu0 %v1850, 104
      %v2333 = vpop.permute.xlu0 %2332
      %v2339 = vsel %vm919, %v2322, 0
      %v2342 = vsel %vm919, %v2323, 0
      %v2345 = vsel %vm919, %v2324, 0
      %v2348 = vsel %vm919, %v2325, 0
      %2350 = vmatprep.subr.bf16.mxu0 0
      %2351 = vmatpush1.bf16.msra.mxu0 0
      %2352 = vmatprep.subr.bf16.mxu0 0
      %2353 = vmatpush1.bf16.msra.mxu0 0
      %2354 = vmatprep.subr.bf16.mxu0 0
      %2355 = vmatpush1.bf16.msra.mxu0 0
      %2356 = vmatprep.subr.bf16.mxu0 0
      %2357 = vmatpush1.bf16.msra.mxu0 0
      %2358 = vmatprep.subr.bf16.mxu0 0
      %2359 = vmatpush1.bf16.msra.mxu0 %v2333
      %2360 = vmatprep.subr.bf16.mxu0 0
      %2361 = vmatpush1.bf16.msra.mxu0 %v2331
      %2362 = vmatprep.subr.bf16.mxu0 0
      %2363 = vmatpush1.bf16.msra.mxu0 %v2329
      %2364 = vmatprep.subr.bf16.mxu0 0
      %2365 = vmatpush1.bf16.msra.mxu0 %v2327
      %2366 = vmatprep.subr.bf16.mxu0 0
      %2367 = vmatpush2.bf16.msra.mxu0 0
      %2368 = vmatprep.subr.bf16.mxu0 0
      %2369 = vmatpush2.bf16.msra.mxu0 0
      %2370 = vmatprep.subr.bf16.mxu0 0
      %2371 = vmatpush2.bf16.msra.mxu0 0
      %2372 = vmatprep.subr.bf16.mxu0 0
      %2373 = vmatpush2.bf16.msra.mxu0 0
      %2374 = vmatprep.subr.bf16.mxu0 0
      %2375 = vmatpush2.bf16.msra.mxu0 0
      %2376 = vmatprep.subr.bf16.mxu0 0
      %2377 = vmatpush2.bf16.msra.mxu0 0
      %2378 = vmatprep.subr.bf16.mxu0 0
      %2379 = vmatpush2.bf16.msra.mxu0 0
      %2380 = vmatprep.subr.bf16.mxu0 0
      %2381 = vmatpush2.bf16.msra.mxu0 0
      %2382 = vmatprep.mubr.bf16.mxu0 0
      %2383 = vmatmul.mubr.bf16.gmra.mxu0 %v2339
      %v2384 = vpop.f32.mrf.mxu0
      %v2385 = vadd.f32 0.0, %v2384
      %v2386 = vpop.f32.mrf.mxu0
      %v2387 = vpop.f32.mrf.mxu0
      %v2388 = vadd.f32 0.0, %v2387
      %v2389 = vpop.f32.mrf.mxu0
      %2390 = vmatprep.mubr.bf16.mxu0 0
      %2391 = vmatmul.mubr.bf16.gmra.mxu0 %v2342
      %v2392 = vpop.f32.mrf.mxu0
      %v2393 = vadd.f32 0.0, %v2392
      %v2394 = vpop.f32.mrf.mxu0
      %v2395 = vpop.f32.mrf.mxu0
      %v2396 = vadd.f32 0.0, %v2395
      %v2397 = vpop.f32.mrf.mxu0
      %2398 = vmatprep.mubr.bf16.mxu0 0
      %2399 = vmatmul.mubr.bf16.gmra.mxu0 %v2345
      %v2400 = vpop.f32.mrf.mxu0
      %v2401 = vadd.f32 0.0, %v2400
      %v2402 = vpop.f32.mrf.mxu0
      %v2403 = vpop.f32.mrf.mxu0
      %v2404 = vadd.f32 0.0, %v2403
      %v2405 = vpop.f32.mrf.mxu0
      %2406 = vmatprep.mubr.bf16.mxu0 0
      %2407 = vmatmul.mubr.bf16.gmra.mxu0 %v2348
      %v2408 = vpop.f32.mrf.mxu0
      %v2409 = vadd.f32 0.0, %v2408
      %v2410 = vpop.f32.mrf.mxu0
      %v2411 = vpop.f32.mrf.mxu0
      %v2412 = vadd.f32 0.0, %v2411
      %v2413 = vpop.f32.mrf.mxu0
      %2414 = vdwg.mxu0
      %2423 = vrot.lane.b32.xlu0 %v2385, 8
      %v2424 = vpop.permute.xlu0 %2423
      %2425 = vrot.lane.b32.xlu0 %v2388, 8
      %v2426 = vpop.permute.xlu0 %2425
      %2427 = vrot.lane.b32.xlu0 %v2393, 8
      %v2428 = vpop.permute.xlu0 %2427
      %2429 = vrot.lane.b32.xlu0 %v2396, 8
      %v2430 = vpop.permute.xlu0 %2429
      %2431 = vrot.lane.b32.xlu0 %v2401, 8
      %v2432 = vpop.permute.xlu0 %2431
      %2433 = vrot.lane.b32.xlu0 %v2404, 8
      %v2434 = vpop.permute.xlu0 %2433
      %2435 = vrot.lane.b32.xlu0 %v2409, 8
      %v2436 = vpop.permute.xlu0 %2435
      %2437 = vrot.lane.b32.xlu0 %v2412, 8
      %v2438 = vpop.permute.xlu0 %2437
      %v2447 = vsel %vm829, %v2095, %v2424
      %v2448 = vsel %vm829, %v2098, %v2426
      %v2449 = vsel %vm829, %v2103, %v2428
      %v2450 = vsel %vm829, %v2106, %v2430
      %v2451 = vsel %vm829, %v2111, %v2432
      %v2452 = vsel %vm829, %v2114, %v2434
      %v2453 = vsel %vm829, %v2119, %v2436
      %v2454 = vsel %vm829, %v2122, %v2438
      %v2455 = vld [vmem:[%s10] sm:$0xff]
      %v2456 = vld [vmem:[%s10 + $0x8] sm:$0xff]
      %v2457 = vpack.c.bf16 %v2448, %v2447
      %v2458 = vpack.c.bf16 %v2450, %v2449
      %v2459 = vpack.c.bf16 %v2452, %v2451
      %v2460 = vpack.c.bf16 %v2454, %v2453
      %v2461 = vpack.c.bf16 %v2456, %v2455
      %v2462 = vld [vmem:[%s11] sm:$0x1]
      %v2464 = vlaneseq
      %v2465 = vshrl.u32 %v2464, 7
      %v2466 = vsub.s32 0, %v2465
      %v2467 = vrot.slane %v2462, %v2466
      %v2470 = vsel %vm735, %v2457, 0
      %v2473 = vsel %vm735, %v2458, 0
      %v2476 = vsel %vm735, %v2459, 0
      %v2479 = vsel %vm735, %v2460, 0
      %2481 = vmatprep.subr.bf16.mxu0 0
      %2482 = vmatpush1.bf16.msra.mxu0 0
      %2483 = vmatprep.subr.bf16.mxu0 0
      %2484 = vmatpush1.bf16.msra.mxu0 0
      %2485 = vmatprep.subr.bf16.mxu0 0
      %2486 = vmatpush1.bf16.msra.mxu0 0
      %2487 = vmatprep.subr.bf16.mxu0 0
      %2488 = vmatpush1.bf16.msra.mxu0 0
      %2489 = vmatprep.subr.bf16.mxu0 0
      %2490 = vmatpush1.bf16.msra.mxu0 0
      %2491 = vmatprep.subr.bf16.mxu0 0
      %2492 = vmatpush1.bf16.msra.mxu0 0
      %2493 = vmatprep.subr.bf16.mxu0 0
      %2494 = vmatpush1.bf16.msra.mxu0 0
      %2495 = vmatprep.subr.bf16.mxu0 0
      %2496 = vmatpush1.bf16.msra.mxu0 %v2461
      %2497 = vmatprep.subr.bf16.mxu0 0
      %2498 = vmatpush2.bf16.msra.mxu0 0
      %2499 = vmatprep.subr.bf16.mxu0 0
      %2500 = vmatpush2.bf16.msra.mxu0 0
      %2501 = vmatprep.subr.bf16.mxu0 0
      %2502 = vmatpush2.bf16.msra.mxu0 0
      %2503 = vmatprep.subr.bf16.mxu0 0
      %2504 = vmatpush2.bf16.msra.mxu0 0
      %2505 = vmatprep.subr.bf16.mxu0 0
      %2506 = vmatpush2.bf16.msra.mxu0 0
      %2507 = vmatprep.subr.bf16.mxu0 0
      %2508 = vmatpush2.bf16.msra.mxu0 0
      %2509 = vmatprep.subr.bf16.mxu0 0
      %2510 = vmatpush2.bf16.msra.mxu0 0
      %2511 = vmatprep.subr.bf16.mxu0 0
      %2512 = vmatpush2.bf16.msra.mxu0 0
      %2513 = vmatprep.mubr.bf16.mxu0 0
      %2514 = vmatmul.mubr.bf16.gmra.mxu0 %v2470
      %v2515 = vpop.f32.mrf.mxu0
      %v2516 = vadd.f32 %v2467, %v2515
      %v2517 = vpop.f32.mrf.mxu0
      %v2518 = vpop.f32.mrf.mxu0
      %v2519 = vadd.f32 %v2467, %v2518
      %v2520 = vpop.f32.mrf.mxu0
      %2521 = vmatprep.mubr.bf16.mxu0 0
      %2522 = vmatmul.mubr.bf16.gmra.mxu0 %v2473
      %v2523 = vpop.f32.mrf.mxu0
      %v2524 = vadd.f32 %v2467, %v2523
      %v2525 = vpop.f32.mrf.mxu0
      %v2526 = vpop.f32.mrf.mxu0
      %v2527 = vadd.f32 %v2467, %v2526
      %v2528 = vpop.f32.mrf.mxu0
      %2529 = vmatprep.mubr.bf16.mxu0 0
      %2530 = vmatmul.mubr.bf16.gmra.mxu0 %v2476
      %v2531 = vpop.f32.mrf.mxu0
      %v2532 = vadd.f32 %v2467, %v2531
      %v2533 = vpop.f32.mrf.mxu0
      %v2534 = vpop.f32.mrf.mxu0
      %v2535 = vadd.f32 %v2467, %v2534
      %v2536 = vpop.f32.mrf.mxu0
      %2537 = vmatprep.mubr.bf16.mxu0 0
      %2538 = vmatmul.mubr.bf16.gmra.mxu0 %v2479
      %v2539 = vpop.f32.mrf.mxu0
      %v2540 = vadd.f32 %v2467, %v2539
      %v2541 = vpop.f32.mrf.mxu0
      %v2542 = vpop.f32.mrf.mxu0
      %v2543 = vadd.f32 %v2467, %v2542
      %v2544 = vpop.f32.mrf.mxu0
      %2545 = vdwg.mxu0
      %v2546 = vadd.f32 %v1653, %v2516
      %v2547 = vadd.f32 %v1654, %v2519
      %v2548 = vadd.f32 %v1655, %v2524
      %v2549 = vadd.f32 %v1656, %v2527
      %v2550 = vadd.f32 %v1657, %v2532
      %v2551 = vadd.f32 %v1658, %v2535
      %v2552 = vadd.f32 %v1659, %v2540
      %v2553 = vadd.f32 %v1660, %v2543
      %v2554 = vld [vmem:[%s18] sm:$0x1]
      %v2555 = vld [vmem:[%s19] sm:$0x1]
      %v2556 = vsel %vm735, %v2546, 0.0
      %2557 = vadd.xlane.f32.xlu0 %v2556
      %v2558 = vpop.xlane.xlu0 %2557
      %v2559 = vsel %vm735, %v2547, 0.0
      %2560 = vadd.xlane.f32.xlu0 %v2559
      %v2561 = vpop.xlane.xlu0 %2560
      %v2562 = vsel %vm735, %v2548, 0.0
      %2563 = vadd.xlane.f32.xlu0 %v2562
      %v2564 = vpop.xlane.xlu0 %2563
      %v2565 = vsel %vm735, %v2549, 0.0
      %2566 = vadd.xlane.f32.xlu0 %v2565
      %v2567 = vpop.xlane.xlu0 %2566
      %v2568 = vsel %vm735, %v2550, 0.0
      %2569 = vadd.xlane.f32.xlu0 %v2568
      %v2570 = vpop.xlane.xlu0 %2569
      %v2571 = vsel %vm735, %v2551, 0.0
      %2572 = vadd.xlane.f32.xlu0 %v2571
      %v2573 = vpop.xlane.xlu0 %2572
      %v2574 = vsel %vm735, %v2552, 0.0
      %2575 = vadd.xlane.f32.xlu0 %v2574
      %v2576 = vpop.xlane.xlu0 %2575
      %v2577 = vsel %vm735, %v2553, 0.0
      %2578 = vadd.xlane.f32.xlu0 %v2577
      %v2579 = vpop.xlane.xlu0 %2578
      %v2580 = vmul.f32 %v2558, %v1552
      %v2581 = vmul.f32 %v2561, %v1552
      %v2582 = vmul.f32 %v2564, %v1552
      %v2583 = vmul.f32 %v2567, %v1552
      %v2584 = vmul.f32 %v2570, %v1552
      %v2585 = vmul.f32 %v2573, %v1552
      %v2586 = vmul.f32 %v2576, %v1552
      %v2587 = vmul.f32 %v2579, %v1552
      %v2588 = vsub.f32 %v2546, %v2580
      %v2589 = vsub.f32 %v2547, %v2581
      %v2590 = vsub.f32 %v2548, %v2582
      %v2591 = vsub.f32 %v2549, %v2583
      %v2592 = vsub.f32 %v2550, %v2584
      %v2593 = vsub.f32 %v2551, %v2585
      %v2594 = vsub.f32 %v2552, %v2586
      %v2595 = vsub.f32 %v2553, %v2587
      %v2596 = vmul.f32 %v2588, %v2588
      %v2597 = vmul.f32 %v2589, %v2589
      %v2598 = vmul.f32 %v2590, %v2590
      %v2599 = vmul.f32 %v2591, %v2591
      %v2600 = vmul.f32 %v2592, %v2592
      %v2601 = vmul.f32 %v2593, %v2593
      %v2602 = vmul.f32 %v2594, %v2594
      %v2603 = vmul.f32 %v2595, %v2595
      %v2604 = vsel %vm735, %v2596, 0.0
      %2605 = vadd.xlane.f32.xlu0 %v2604
      %v2606 = vpop.xlane.xlu0 %2605
      %v2607 = vsel %vm735, %v2597, 0.0
      %2608 = vadd.xlane.f32.xlu0 %v2607
      %v2609 = vpop.xlane.xlu0 %2608
      %v2610 = vsel %vm735, %v2598, 0.0
      %2611 = vadd.xlane.f32.xlu0 %v2610
      %v2612 = vpop.xlane.xlu0 %2611
      %v2613 = vsel %vm735, %v2599, 0.0
      %2614 = vadd.xlane.f32.xlu0 %v2613
      %v2615 = vpop.xlane.xlu0 %2614
      %v2616 = vsel %vm735, %v2600, 0.0
      %2617 = vadd.xlane.f32.xlu0 %v2616
      %v2618 = vpop.xlane.xlu0 %2617
      %v2619 = vsel %vm735, %v2601, 0.0
      %2620 = vadd.xlane.f32.xlu0 %v2619
      %v2621 = vpop.xlane.xlu0 %2620
      %v2622 = vsel %vm735, %v2602, 0.0
      %2623 = vadd.xlane.f32.xlu0 %v2622
      %v2624 = vpop.xlane.xlu0 %2623
      %v2625 = vsel %vm735, %v2603, 0.0
      %2626 = vadd.xlane.f32.xlu0 %v2625
      %v2627 = vpop.xlane.xlu0 %2626
      %v2628 = vmul.f32 %v2606, %v1552
      %v2629 = vmul.f32 %v2609, %v1552
      %v2630 = vmul.f32 %v2612, %v1552
      %v2631 = vmul.f32 %v2615, %v1552
      %v2632 = vmul.f32 %v2618, %v1552
      %v2633 = vmul.f32 %v2621, %v1552
      %v2634 = vmul.f32 %v2624, %v1552
      %v2635 = vmul.f32 %v2627, %v1552
      %v2636 = vadd.f32 %v2628, 1e-05
      %v2637 = vadd.f32 %v2629, 1e-05
      %v2638 = vadd.f32 %v2630, 1e-05
      %v2639 = vadd.f32 %v2631, 1e-05
      %v2640 = vadd.f32 %v2632, 1e-05
      %v2641 = vadd.f32 %v2633, 1e-05
      %v2642 = vadd.f32 %v2634, 1e-05
      %v2643 = vadd.f32 %v2635, 1e-05
      %v2644 = vrsqrt.pop %v2636
      %v2645 = vrsqrt.pop %v2637
      %v2646 = vrsqrt.pop %v2638
      %v2647 = vrsqrt.pop %v2639
      %v2648 = vrsqrt.pop %v2640
      %v2649 = vrsqrt.pop %v2641
      %v2650 = vrsqrt.pop %v2642
      %v2651 = vrsqrt.pop %v2643
      %v2652 = vmul.f32 %v2588, %v2644
      %v2653 = vmul.f32 %v2589, %v2645
      %v2654 = vmul.f32 %v2590, %v2646
      %v2655 = vmul.f32 %v2591, %v2647
      %v2656 = vmul.f32 %v2592, %v2648
      %v2657 = vmul.f32 %v2593, %v2649
      %v2658 = vmul.f32 %v2594, %v2650
      %v2659 = vmul.f32 %v2595, %v2651
      %v2661 = vlaneseq
      %v2662 = vshrl.u32 %v2661, 7
      %v2663 = vsub.s32 0, %v2662
      %v2664 = vrot.slane %v2554, %v2663
      %v2666 = vmul.f32 %v2652, %v2664
      %v2667 = vmul.f32 %v2653, %v2664
      %v2668 = vmul.f32 %v2654, %v2664
      %v2669 = vmul.f32 %v2655, %v2664
      %v2670 = vmul.f32 %v2656, %v2664
      %v2671 = vmul.f32 %v2657, %v2664
      %v2672 = vmul.f32 %v2658, %v2664
      %v2673 = vmul.f32 %v2659, %v2664
      %v2675 = vlaneseq
      %v2676 = vshrl.u32 %v2675, 7
      %v2677 = vsub.s32 0, %v2676
      %v2678 = vrot.slane %v2555, %v2677
      %v2680 = vadd.f32 %v2666, %v2678
      %v2681 = vadd.f32 %v2667, %v2678
      %v2682 = vadd.f32 %v2668, %v2678
      %v2683 = vadd.f32 %v2669, %v2678
      %v2684 = vadd.f32 %v2670, %v2678
      %v2685 = vadd.f32 %v2671, %v2678
      %v2686 = vadd.f32 %v2672, %v2678
      %v2687 = vadd.f32 %v2673, %v2678
      %v2688 = vld [vmem:[%s12] sm:$0xff]
      %v2689 = vld [vmem:[%s12 + $0x8] sm:$0xff]
      %v2690 = vpack.c.bf16 %v2681, %v2680
      %v2691 = vpack.c.bf16 %v2683, %v2682
      %v2692 = vpack.c.bf16 %v2685, %v2684
      %v2693 = vpack.c.bf16 %v2687, %v2686
      %v2694 = vpack.c.bf16 %v2689, %v2688
      %v2695 = vld [vmem:[%s13] sm:$0x1]
      %v2697 = vlaneseq
      %v2698 = vshrl.u32 %v2697, 7
      %v2699 = vsub.s32 0, %v2698
      %v2700 = vrot.slane %v2695, %v2699
      %v2703 = vsel %vm735, %v2690, 0
      %v2706 = vsel %vm735, %v2691, 0
      %v2709 = vsel %vm735, %v2692, 0
      %v2712 = vsel %vm735, %v2693, 0
      %2714 = vmatprep.subr.bf16.mxu0 0
      %2715 = vmatpush1.bf16.msra.mxu0 0
      %2716 = vmatprep.subr.bf16.mxu0 0
      %2717 = vmatpush1.bf16.msra.mxu0 0
      %2718 = vmatprep.subr.bf16.mxu0 0
      %2719 = vmatpush1.bf16.msra.mxu0 0
      %2720 = vmatprep.subr.bf16.mxu0 0
      %2721 = vmatpush1.bf16.msra.mxu0 0
      %2722 = vmatprep.subr.bf16.mxu0 0
      %2723 = vmatpush1.bf16.msra.mxu0 0
      %2724 = vmatprep.subr.bf16.mxu0 0
      %2725 = vmatpush1.bf16.msra.mxu0 0
      %2726 = vmatprep.subr.bf16.mxu0 0
      %2727 = vmatpush1.bf16.msra.mxu0 0
      %2728 = vmatprep.subr.bf16.mxu0 0
      %2729 = vmatpush1.bf16.msra.mxu0 %v2694
      %2730 = vmatprep.subr.bf16.mxu0 0
      %2731 = vmatpush2.bf16.msra.mxu0 0
      %2732 = vmatprep.subr.bf16.mxu0 0
      %2733 = vmatpush2.bf16.msra.mxu0 0
      %2734 = vmatprep.subr.bf16.mxu0 0
      %2735 = vmatpush2.bf16.msra.mxu0 0
      %2736 = vmatprep.subr.bf16.mxu0 0
      %2737 = vmatpush2.bf16.msra.mxu0 0
      %2738 = vmatprep.subr.bf16.mxu0 0
      %2739 = vmatpush2.bf16.msra.mxu0 0
      %2740 = vmatprep.subr.bf16.mxu0 0
      %2741 = vmatpush2.bf16.msra.mxu0 0
      %2742 = vmatprep.subr.bf16.mxu0 0
      %2743 = vmatpush2.bf16.msra.mxu0 0
      %2744 = vmatprep.subr.bf16.mxu0 0
      %2745 = vmatpush2.bf16.msra.mxu0 0
      %2746 = vmatprep.mubr.bf16.mxu0 0
      %2747 = vmatmul.mubr.bf16.gmra.mxu0 %v2703
      %v2748 = vpop.f32.mrf.mxu0
      %v2749 = vadd.f32 %v2700, %v2748
      %v2750 = vpop.f32.mrf.mxu0
      %v2751 = vpop.f32.mrf.mxu0
      %v2752 = vadd.f32 %v2700, %v2751
      %v2753 = vpop.f32.mrf.mxu0
      %2754 = vmatprep.mubr.bf16.mxu0 0
      %2755 = vmatmul.mubr.bf16.gmra.mxu0 %v2706
      %v2756 = vpop.f32.mrf.mxu0
      %v2757 = vadd.f32 %v2700, %v2756
      %v2758 = vpop.f32.mrf.mxu0
      %v2759 = vpop.f32.mrf.mxu0
      %v2760 = vadd.f32 %v2700, %v2759
      %v2761 = vpop.f32.mrf.mxu0
      %2762 = vmatprep.mubr.bf16.mxu0 0
      %2763 = vmatmul.mubr.bf16.gmra.mxu0 %v2709
      %v2764 = vpop.f32.mrf.mxu0
      %v2765 = vadd.f32 %v2700, %v2764
      %v2766 = vpop.f32.mrf.mxu0
      %v2767 = vpop.f32.mrf.mxu0
      %v2768 = vadd.f32 %v2700, %v2767
      %v2769 = vpop.f32.mrf.mxu0
      %2770 = vmatprep.mubr.bf16.mxu0 0
      %2771 = vmatmul.mubr.bf16.gmra.mxu0 %v2712
      %v2772 = vpop.f32.mrf.mxu0
      %v2773 = vadd.f32 %v2700, %v2772
      %v2774 = vpop.f32.mrf.mxu0
      %v2775 = vpop.f32.mrf.mxu0
      %v2776 = vadd.f32 %v2700, %v2775
      %v2777 = vpop.f32.mrf.mxu0
      %2778 = vdwg.mxu0
      %v2779 = vmax.f32 %v2749, 0.0
      %v2780 = vmax.f32 %v2752, 0.0
      %v2781 = vmax.f32 %v2757, 0.0
      %v2782 = vmax.f32 %v2760, 0.0
      %v2783 = vmax.f32 %v2765, 0.0
      %v2784 = vmax.f32 %v2768, 0.0
      %v2785 = vmax.f32 %v2773, 0.0
      %v2786 = vmax.f32 %v2776, 0.0
      %v2787 = vld [vmem:[%s14] sm:$0xff]
      %v2788 = vld [vmem:[%s14 + $0x8] sm:$0xff]
      %v2789 = vld [vmem:[%s14 + $0x10] sm:$0xff]
      %v2790 = vld [vmem:[%s14 + $0x18] sm:$0xff]
      %v2791 = vpack.c.bf16 %v2780, %v2779
      %v2792 = vpack.c.bf16 %v2782, %v2781
      %v2793 = vpack.c.bf16 %v2784, %v2783
      %v2794 = vpack.c.bf16 %v2786, %v2785
      %v2795 = vpack.c.bf16 %v2788, %v2787
      %v2796 = vpack.c.bf16 %v2790, %v2789
      %v2797 = vld [vmem:[%s15] sm:$0x1]
      %v2799 = vlaneseq
      %v2800 = vshrl.u32 %v2799, 7
      %v2801 = vsub.s32 0, %v2800
      %v2802 = vrot.slane %v2797, %v2801
      %vm2804 = vcmask 261120
      %v2806 = vsel %vm2804, %v2791, 0
      %v2809 = vsel %vm2804, %v2792, 0
      %v2812 = vsel %vm2804, %v2793, 0
      %v2815 = vsel %vm2804, %v2794, 0
      %2817 = vmatprep.subr.bf16.mxu0 0
      %2818 = vmatpush1.bf16.msra.mxu0 0
      %2819 = vmatprep.subr.bf16.mxu0 0
      %2820 = vmatpush1.bf16.msra.mxu0 0
      %2821 = vmatprep.subr.bf16.mxu0 0
      %2822 = vmatpush1.bf16.msra.mxu0 0
      %2823 = vmatprep.subr.bf16.mxu0 0
      %2824 = vmatpush1.bf16.msra.mxu0 0
      %2825 = vmatprep.subr.bf16.mxu0 0
      %2826 = vmatpush1.bf16.msra.mxu0 0
      %2827 = vmatprep.subr.bf16.mxu0 0
      %2828 = vmatpush1.bf16.msra.mxu0 0
      %2829 = vmatprep.subr.bf16.mxu0 0
      %2830 = vmatpush1.bf16.msra.mxu0 %v2796
      %2831 = vmatprep.subr.bf16.mxu0 0
      %2832 = vmatpush1.bf16.msra.mxu0 %v2795
      %2833 = vmatprep.subr.bf16.mxu0 0
      %2834 = vmatpush2.bf16.msra.mxu0 0
      %2835 = vmatprep.subr.bf16.mxu0 0
      %2836 = vmatpush2.bf16.msra.mxu0 0
      %2837 = vmatprep.subr.bf16.mxu0 0
      %2838 = vmatpush2.bf16.msra.mxu0 0
      %2839 = vmatprep.subr.bf16.mxu0 0
      %2840 = vmatpush2.bf16.msra.mxu0 0
      %2841 = vmatprep.subr.bf16.mxu0 0
      %2842 = vmatpush2.bf16.msra.mxu0 0
      %2843 = vmatprep.subr.bf16.mxu0 0
      %2844 = vmatpush2.bf16.msra.mxu0 0
      %2845 = vmatprep.subr.bf16.mxu0 0
      %2846 = vmatpush2.bf16.msra.mxu0 0
      %2847 = vmatprep.subr.bf16.mxu0 0
      %2848 = vmatpush2.bf16.msra.mxu0 0
      %2849 = vmatprep.mubr.bf16.mxu0 0
      %2850 = vmatmul.mubr.bf16.gmra.mxu0 %v2806
      %v2851 = vpop.f32.mrf.mxu0
      %v2852 = vadd.f32 %v2802, %v2851
      %v2853 = vpop.f32.mrf.mxu0
      %v2854 = vpop.f32.mrf.mxu0
      %v2855 = vadd.f32 %v2802, %v2854
      %v2856 = vpop.f32.mrf.mxu0
      %2857 = vmatprep.mubr.bf16.mxu0 0
      %2858 = vmatmul.mubr.bf16.gmra.mxu0 %v2809
      %v2859 = vpop.f32.mrf.mxu0
      %v2860 = vadd.f32 %v2802, %v2859
      %v2861 = vpop.f32.mrf.mxu0
      %v2862 = vpop.f32.mrf.mxu0
      %v2863 = vadd.f32 %v2802, %v2862
      %v2864 = vpop.f32.mrf.mxu0
      %2865 = vmatprep.mubr.bf16.mxu0 0
      %2866 = vmatmul.mubr.bf16.gmra.mxu0 %v2812
      %v2867 = vpop.f32.mrf.mxu0
      %v2868 = vadd.f32 %v2802, %v2867
      %v2869 = vpop.f32.mrf.mxu0
      %v2870 = vpop.f32.mrf.mxu0
      %v2871 = vadd.f32 %v2802, %v2870
      %v2872 = vpop.f32.mrf.mxu0
      %2873 = vmatprep.mubr.bf16.mxu0 0
      %2874 = vmatmul.mubr.bf16.gmra.mxu0 %v2815
      %v2875 = vpop.f32.mrf.mxu0
      %v2876 = vadd.f32 %v2802, %v2875
      %v2877 = vpop.f32.mrf.mxu0
      %v2878 = vpop.f32.mrf.mxu0
      %v2879 = vadd.f32 %v2802, %v2878
      %v2880 = vpop.f32.mrf.mxu0
      %2881 = vdwg.mxu0
      %v2882 = vadd.f32 %v2680, %v2852
      %v2883 = vadd.f32 %v2681, %v2855
      %v2884 = vadd.f32 %v2682, %v2860
      %v2885 = vadd.f32 %v2683, %v2863
      %v2886 = vadd.f32 %v2684, %v2868
      %v2887 = vadd.f32 %v2685, %v2871
      %v2888 = vadd.f32 %v2686, %v2876
      %v2889 = vadd.f32 %v2687, %v2879
      %v2890 = vld [vmem:[%s20] sm:$0x1]
      %v2891 = vld [vmem:[%s21] sm:$0x1]
      %v2892 = vsel %vm735, %v2882, 0.0
      %2893 = vadd.xlane.f32.xlu0 %v2892
      %v2894 = vpop.xlane.xlu0 %2893
      %v2895 = vsel %vm735, %v2883, 0.0
      %2896 = vadd.xlane.f32.xlu0 %v2895
      %v2897 = vpop.xlane.xlu0 %2896
      %v2898 = vsel %vm735, %v2884, 0.0
      %2899 = vadd.xlane.f32.xlu0 %v2898
      %v2900 = vpop.xlane.xlu0 %2899
      %v2901 = vsel %vm735, %v2885, 0.0
      %2902 = vadd.xlane.f32.xlu0 %v2901
      %v2903 = vpop.xlane.xlu0 %2902
      %v2904 = vsel %vm735, %v2886, 0.0
      %2905 = vadd.xlane.f32.xlu0 %v2904
      %v2906 = vpop.xlane.xlu0 %2905
      %v2907 = vsel %vm735, %v2887, 0.0
      %2908 = vadd.xlane.f32.xlu0 %v2907
      %v2909 = vpop.xlane.xlu0 %2908
      %v2910 = vsel %vm735, %v2888, 0.0
      %2911 = vadd.xlane.f32.xlu0 %v2910
      %v2912 = vpop.xlane.xlu0 %2911
      %v2913 = vsel %vm735, %v2889, 0.0
      %2914 = vadd.xlane.f32.xlu0 %v2913
      %v2915 = vpop.xlane.xlu0 %2914
      %v2916 = vmul.f32 %v2894, %v1552
      %v2917 = vmul.f32 %v2897, %v1552
      %v2918 = vmul.f32 %v2900, %v1552
      %v2919 = vmul.f32 %v2903, %v1552
      %v2920 = vmul.f32 %v2906, %v1552
      %v2921 = vmul.f32 %v2909, %v1552
      %v2922 = vmul.f32 %v2912, %v1552
      %v2923 = vmul.f32 %v2915, %v1552
      %v2924 = vsub.f32 %v2882, %v2916
      %v2925 = vsub.f32 %v2883, %v2917
      %v2926 = vsub.f32 %v2884, %v2918
      %v2927 = vsub.f32 %v2885, %v2919
      %v2928 = vsub.f32 %v2886, %v2920
      %v2929 = vsub.f32 %v2887, %v2921
      %v2930 = vsub.f32 %v2888, %v2922
      %v2931 = vsub.f32 %v2889, %v2923
      %v2932 = vmul.f32 %v2924, %v2924
      %v2933 = vmul.f32 %v2925, %v2925
      %v2934 = vmul.f32 %v2926, %v2926
      %v2935 = vmul.f32 %v2927, %v2927
      %v2936 = vmul.f32 %v2928, %v2928
      %v2937 = vmul.f32 %v2929, %v2929
      %v2938 = vmul.f32 %v2930, %v2930
      %v2939 = vmul.f32 %v2931, %v2931
      %v2940 = vsel %vm735, %v2932, 0.0
      %2941 = vadd.xlane.f32.xlu0 %v2940
      %v2942 = vpop.xlane.xlu0 %2941
      %v2943 = vsel %vm735, %v2933, 0.0
      %2944 = vadd.xlane.f32.xlu0 %v2943
      %v2945 = vpop.xlane.xlu0 %2944
      %v2946 = vsel %vm735, %v2934, 0.0
      %2947 = vadd.xlane.f32.xlu0 %v2946
      %v2948 = vpop.xlane.xlu0 %2947
      %v2949 = vsel %vm735, %v2935, 0.0
      %2950 = vadd.xlane.f32.xlu0 %v2949
      %v2951 = vpop.xlane.xlu0 %2950
      %v2952 = vsel %vm735, %v2936, 0.0
      %2953 = vadd.xlane.f32.xlu0 %v2952
      %v2954 = vpop.xlane.xlu0 %2953
      %v2955 = vsel %vm735, %v2937, 0.0
      %2956 = vadd.xlane.f32.xlu0 %v2955
      %v2957 = vpop.xlane.xlu0 %2956
      %v2958 = vsel %vm735, %v2938, 0.0
      %2959 = vadd.xlane.f32.xlu0 %v2958
      %v2960 = vpop.xlane.xlu0 %2959
      %v2961 = vsel %vm735, %v2939, 0.0
      %2962 = vadd.xlane.f32.xlu0 %v2961
      %v2963 = vpop.xlane.xlu0 %2962
      %v2964 = vmul.f32 %v2942, %v1552
      %v2965 = vmul.f32 %v2945, %v1552
      %v2966 = vmul.f32 %v2948, %v1552
      %v2967 = vmul.f32 %v2951, %v1552
      %v2968 = vmul.f32 %v2954, %v1552
      %v2969 = vmul.f32 %v2957, %v1552
      %v2970 = vmul.f32 %v2960, %v1552
      %v2971 = vmul.f32 %v2963, %v1552
      %v2972 = vadd.f32 %v2964, 1e-05
      %v2973 = vadd.f32 %v2965, 1e-05
      %v2974 = vadd.f32 %v2966, 1e-05
      %v2975 = vadd.f32 %v2967, 1e-05
      %v2976 = vadd.f32 %v2968, 1e-05
      %v2977 = vadd.f32 %v2969, 1e-05
      %v2978 = vadd.f32 %v2970, 1e-05
      %v2979 = vadd.f32 %v2971, 1e-05
      %v2980 = vrsqrt.pop %v2972
      %v2981 = vrsqrt.pop %v2973
      %v2982 = vrsqrt.pop %v2974
      %v2983 = vrsqrt.pop %v2975
      %v2984 = vrsqrt.pop %v2976
      %v2985 = vrsqrt.pop %v2977
      %v2986 = vrsqrt.pop %v2978
      %v2987 = vrsqrt.pop %v2979
      %v2988 = vmul.f32 %v2924, %v2980
      %v2989 = vmul.f32 %v2925, %v2981
      %v2990 = vmul.f32 %v2926, %v2982
      %v2991 = vmul.f32 %v2927, %v2983
      %v2992 = vmul.f32 %v2928, %v2984
      %v2993 = vmul.f32 %v2929, %v2985
      %v2994 = vmul.f32 %v2930, %v2986
      %v2995 = vmul.f32 %v2931, %v2987
      %v2997 = vlaneseq
      %v2998 = vshrl.u32 %v2997, 7
      %v2999 = vsub.s32 0, %v2998
      %v3000 = vrot.slane %v2890, %v2999
      %v3002 = vmul.f32 %v2988, %v3000
      %v3003 = vmul.f32 %v2989, %v3000
      %v3004 = vmul.f32 %v2990, %v3000
      %v3005 = vmul.f32 %v2991, %v3000
      %v3006 = vmul.f32 %v2992, %v3000
      %v3007 = vmul.f32 %v2993, %v3000
      %v3008 = vmul.f32 %v2994, %v3000
      %v3009 = vmul.f32 %v2995, %v3000
      %v3011 = vlaneseq
      %v3012 = vshrl.u32 %v3011, 7
      %v3013 = vsub.s32 0, %v3012
      %v3014 = vrot.slane %v2891, %v3013
      %v3016 = vadd.f32 %v3002, %v3014
      %v3017 = vadd.f32 %v3003, %v3014
      %v3018 = vadd.f32 %v3004, %v3014
      %v3019 = vadd.f32 %v3005, %v3014
      %v3020 = vadd.f32 %v3006, %v3014
      %v3021 = vadd.f32 %v3007, %v3014
      %v3022 = vadd.f32 %v3008, %v3014
      %v3023 = vadd.f32 %v3009, %v3014
      %3024 = vst.msk [vmem:[%s703] sm:$0xff] %vm735, %v3016
      %3025 = vst.msk [vmem:[%s703 + $0x8] sm:$0xff] %vm735, %v3017
      %3026 = vst.msk [vmem:[%s703 + $0x10] sm:$0xff] %vm735, %v3018
      %3027 = vst.msk [vmem:[%s703 + $0x18] sm:$0xff] %vm735, %v3019
      %3028 = vst.msk [vmem:[%s703 + $0x20] sm:$0xff] %vm735, %v3020
      %3029 = vst.msk [vmem:[%s703 + $0x28] sm:$0xff] %vm735, %v3021
      %3030 = vst.msk [vmem:[%s703 + $0x30] sm:$0xff] %vm735, %v3022
      %3031 = vst.msk [vmem:[%s703 + $0x38] sm:$0xff] %vm735, %v3023
      %p3032 = scmp.lt.s32.totalorder %s33, 1
      %s3033 = scalar_select %p3032, %s33, 1
      %s3034 = smul.addr %s3033, 8
      %s3035 = smul.addr %s3034, 8
      %s3036 = scalar_lea.vmem %s22, %s3035
      // Predicated region
      $region109: #{_lambda_.4} parent=107 // pred_check
        %p3037 = pneg %p523
      $region110: #{_lambda_.4} parent=107 // pred_check_branch
        %3039 = sbr.rel (%p3037) target = $region112
      $region111: #{_lambda_.4} parent=107 // pred_region
        _
      $region112: #{_lambda_.4} parent=107 // pred_fallthru
        _
    $region108: #{_lambda_.4} parent=5 // pred_fallthru
      _
    %p3040 = scmp.le.s32.totalorder 2, %s28
    // Predicated region
    $region113: #{_lambda_.4} parent=5 // pred_check
      %p3041 = pneg %p3040
    $region114: #{_lambda_.4} parent=5 // pred_check_branch
      %3043 = sbr.rel (%p3041) target = $region116
    $region115: #{_lambda_.4} parent=5 // pred_region
      %s3044 = ssub.s32 %s28, 2
      // Predicated region
      $region117: #{_lambda_.4} parent=115 // pred_check
        %p3045 = pneg %p529
      $region118: #{_lambda_.4} parent=115 // pred_check_branch
        %3047 = sbr.rel (%p3045) target = $region120
      $region119: #{_lambda_.4} parent=115 // pred_region
        %p3048 = scmp.lt.s32.totalorder %s34, 1
        %s3049 = scalar_select %p3048, %s34, 1
        %s3050 = smul.addr %s3049, 8
        %s3051 = smul.addr %s3050, 8
        %s3052 = scalar_lea.vmem %s22, %s3051
      $region120: #{_lambda_.4} parent=115 // pred_fallthru
        _
    $region116: #{_lambda_.4} parent=5 // pred_fallthru
      _
  $region6: #{_lambda_.4} parent=0 // loop_footer
    %s32 = sadd.s32 1, %s28
  $region7: #{_lambda_.4} parent=0 // loop_footer_branch
    %27 = sbr.rel target = $region3
  $region8: #{_lambda_.4} parent=0 // loop_exit
    _

// kernel: _lambda_.5
$region0: #{_lambda_.5}
  #allocation0 [shape = 'u32[]', space=smem, size = 0x4, offset = 0x4, fixed_abs, tag = 'smem constant byte address 0x4 - core index']
  #allocation1 [shape = 'u32[144,128]{1,0:T(1,128)}', space=vmem, size = 0x12000, scoped, tag = 'internal scratch']
  #allocation2 [shape = 'f32[4,18,18]{2,1,0:T(8,128)}', space=vmem, size = 0xc000, scoped, tag = 'scratch operand']
  %s0 = inlined_call_operand.vmem [shape: f32[2,8,18,18], index: 0, kind: input, shape index: {}]
  %s1 = inlined_call_operand.vmem [shape: f32[9,4,8], index: 1, kind: input, shape index: {}]
  %s2 = inlined_call_operand.vmem [shape: f32[4,1], index: 2, kind: input, shape index: {}]
  %s3 = inlined_call_operand.vmem [shape: f32[4,1], index: 3, kind: input, shape index: {}]
  %s4 = inlined_call_operand.vmem [shape: f32[9,4,4], index: 4, kind: input, shape index: {}]
  %s5 = inlined_call_operand.vmem [shape: f32[4,1], index: 5, kind: input, shape index: {}]
  %s6 = inlined_call_operand.vmem [shape: f32[4,1], index: 6, kind: input, shape index: {}]
  %s7 = inlined_call_operand.vmem [shape: f32[4,8], index: 7, kind: input, shape index: {}]
  %s8 = inlined_call_operand.vmem [shape: f32[4,1], index: 8, kind: input, shape index: {}]
  %s9 = inlined_call_operand.hbm [shape: f32[2,4,16,16], index: 9, kind: output, shape index: {}]
  %s10 = sld [smem:[#allocation0]]
  $region69: #{_lambda_.5} parent=0
    _
  %s12 = ssub.s32 1, %s10
  %s13 = scalar_select 0, %s12, %s10
  $region1: #{_lambda_.5} parent=0
    #allocation3 [shape = 'u8[65536]{0}', space=vmem, size = 0x10000, scoped, tag = 'output window, operand 0']
    #allocation4 [shape = 's32[2]{0}', space=sflag, size = 0x8, scoped, tag = 'scoped memory for _lambda_.5']
    %14 = vsyncpa [#allocation4], 0
    %s15 = scalar_lea.sflag [#allocation4], 1
    %16 = vsyncpa %s15, 0
    loop: start=0, step=1, limit=4
    $region2: #{_lambda_.5} parent=1 // loop_pre_header
      _
    $region3: #{_lambda_.5} parent=1 // loop_header
      %s18 = sphi 0, %s22
      %p19 = scmp.ge.s32.totalorder %s18, 4
      %s28 = sphi 0, %s30
      %s31 = sphi 0, %s28
      %s32 = sphi 0, %s31
      %s48 = sphi 0, %s32
      %s52 = sphi 0, %s52
      %s54 = sphi 0, %s52
      %s55 = sphi 0, %s54
      %s69 = sphi 0, %s55
      %s73 = sphi 0, %s73
      %s75 = sphi 0, %s73
      %s76 = sphi 0, %s75
      %s90 = sphi 0, %s76
      %s94 = sphi 0, %s94
      %s96 = sphi 0, %s94
      %s97 = sphi 0, %s96
      %s111 = sphi 0, %s97
      %s115 = sphi 0, %s115
      %s117 = sphi 0, %s115
      %s118 = sphi 0, %s117
      %s132 = sphi 0, %s118
      %s136 = sphi 0, %s136
      %s138 = sphi 0, %s136
      %s139 = sphi 0, %s138
      %s153 = sphi 0, %s139
      %s157 = sphi 0, %s157
      %s159 = sphi 0, %s157
      %s160 = sphi 0, %s159
      %s174 = sphi 0, %s160
      %s178 = sphi 0, %s178
      %s180 = sphi 0, %s178
      %s181 = sphi 0, %s180
      %s195 = sphi 0, %s181
      %s199 = sphi 0, %s199
      %s201 = sphi 0, %s199
      %s202 = sphi 0, %s201
      %s216 = sphi 0, %s202
      %s222 = sphi 0, %s224
      %s225 = sphi 0, %s222
      %s226 = sphi 0, %s225
      %s242 = sphi 0, %s226
    $region4: #{_lambda_.5} parent=1 // loop_header_branch
      %21 = sbr.rel (%p19) target = $region8
    $region5: #{_lambda_.5} parent=1 // loop_body
      %s23 = ssub.s32 %s18, 1
      %s24 = ssub.s32 %s18, 2
      %s25 = sadd.s32 %s18, 1
      %s26 = ssub.s32 %s18, %s25
      %p27 = scmp.eq.s32.totalorder %s26, 0
      %s29 = sadd.s32 %s28, 1
      %s30 = scalar_select %p27, %s28, %s29
      %p33 = pneg %p27
      %p34 = scmp.eq.s32.totalorder %s18, 1
      %p35 = por %p33, %p34
      %p36 = scmp.ne.s32.totalorder %s28, %s31
      %p37 = scmp.eq.s32.totalorder %s18, 0
      %p38 = por %p36, %p37
      %p39 = scmp.ne.s32.totalorder %s28, %s31
      %p40 = scmp.eq.s32.totalorder %s23, 1
      %p41 = por %p39, %p40
      %p42 = scmp.ne.s32.totalorder %s31, %s32
      %p43 = scmp.eq.s32.totalorder %s23, 0
      %p44 = por %p42, %p43
      %p45 = scmp.ne.s32.totalorder %s31, %s32
      %p46 = scmp.eq.s32.totalorder %s24, 1
      %p47 = por %p45, %p46
      %p49 = scmp.ne.s32.totalorder %s32, %s48
      %p50 = scmp.eq.s32.totalorder %s24, 0
      %p51 = por %p49, %p50
      %s53 = sadd.s32 %s52, 1
      %p56 = scmp.eq.s32.totalorder %s18, 1
      %p57 = scmp.ne.s32.totalorder %s52, %s54
      %p58 = scmp.eq.s32.totalorder %s18, 0
      %p59 = por %p57, %p58
      %p60 = scmp.ne.s32.totalorder %s52, %s54
      %p61 = scmp.eq.s32.totalorder %s23, 1
      %p62 = por %p60, %p61
      %p63 = scmp.ne.s32.totalorder %s54, %s55
      %p64 = scmp.eq.s32.totalorder %s23, 0
      %p65 = por %p63, %p64
      %p66 = scmp.ne.s32.totalorder %s54, %s55
      %p67 = scmp.eq.s32.totalorder %s24, 1
      %p68 = por %p66, %p67
      %p70 = scmp.ne.s32.totalorder %s55, %s69
      %p71 = scmp.eq.s32.totalorder %s24, 0
      %p72 = por %p70, %p71
      %s74 = sadd.s32 %s73, 1
      %p77 = scmp.eq.s32.totalorder %s18, 1
      %p78 = scmp.ne.s32.totalorder %s73, %s75
      %p79 = scmp.eq.s32.totalorder %s18, 0
      %p80 = por %p78, %p79
      %p81 = scmp.ne.s32.totalorder %s73, %s75
      %p82 = scmp.eq.s32.totalorder %s23, 1
      %p83 = por %p81, %p82
      %p84 = scmp.ne.s32.totalorder %s75, %s76
      %p85 = scmp.eq.s32.totalorder %s23, 0
      %p86 = por %p84, %p85
      %p87 = scmp.ne.s32.totalorder %s75, %s76
      %p88 = scmp.eq.s32.totalorder %s24, 1
      %p89 = por %p87, %p88
      %p91 = scmp.ne.s32.totalorder %s76, %s90
      %p92 = scmp.eq.s32.totalorder %s24, 0
      %p93 = por %p91, %p92
      %s95 = sadd.s32 %s94, 1
      %p98 = scmp.eq.s32.totalorder %s18, 1
      %p99 = scmp.ne.s32.totalorder %s94, %s96
      %p100 = scmp.eq.s32.totalorder %s18, 0
      %p101 = por %p99, %p100
      %p102 = scmp.ne.s32.totalorder %s94, %s96
      %p103 = scmp.eq.s32.totalorder %s23, 1
      %p104 = por %p102, %p103
      %p105 = scmp.ne.s32.totalorder %s96, %s97
      %p106 = scmp.eq.s32.totalorder %s23, 0
      %p107 = por %p105, %p106
      %p108 = scmp.ne.s32.totalorder %s96, %s97
      %p109 = scmp.eq.s32.totalorder %s24, 1
      %p110 = por %p108, %p109
      %p112 = scmp.ne.s32.totalorder %s97, %s111
      %p113 = scmp.eq.s32.totalorder %s24, 0
      %p114 = por %p112, %p113
      %s116 = sadd.s32 %s115, 1
      %p119 = scmp.eq.s32.totalorder %s18, 1
      %p120 = scmp.ne.s32.totalorder %s115, %s117
      %p121 = scmp.eq.s32.totalorder %s18, 0
      %p122 = por %p120, %p121
      %p123 = scmp.ne.s32.totalorder %s115, %s117
      %p124 = scmp.eq.s32.totalorder %s23, 1
      %p125 = por %p123, %p124
      %p126 = scmp.ne.s32.totalorder %s117, %s118
      %p127 = scmp.eq.s32.totalorder %s23, 0
      %p128 = por %p126, %p127
      %p129 = scmp.ne.s32.totalorder %s117, %s118
      %p130 = scmp.eq.s32.totalorder %s24, 1
      %p131 = por %p129, %p130
      %p133 = scmp.ne.s32.totalorder %s118, %s132
      %p134 = scmp.eq.s32.totalorder %s24, 0
      %p135 = por %p133, %p134
      %s137 = sadd.s32 %s136, 1
      %p140 = scmp.eq.s32.totalorder %s18, 1
      %p141 = scmp.ne.s32.totalorder %s136, %s138
      %p142 = scmp.eq.s32.totalorder %s18, 0
      %p143 = por %p141, %p142
      %p144 = scmp.ne.s32.totalorder %s136, %s138
      %p145 = scmp.eq.s32.totalorder %s23, 1
      %p146 = por %p144, %p145
      %p147 = scmp.ne.s32.totalorder %s138, %s139
      %p148 = scmp.eq.s32.totalorder %s23, 0
      %p149 = por %p147, %p148
      %p150 = scmp.ne.s32.totalorder %s138, %s139
      %p151 = scmp.eq.s32.totalorder %s24, 1
      %p152 = por %p150, %p151
      %p154 = scmp.ne.s32.totalorder %s139, %s153
      %p155 = scmp.eq.s32.totalorder %s24, 0
      %p156 = por %p154, %p155
      %s158 = sadd.s32 %s157, 1
      %p161 = scmp.eq.s32.totalorder %s18, 1
      %p162 = scmp.ne.s32.totalorder %s157, %s159
      %p163 = scmp.eq.s32.totalorder %s18, 0
      %p164 = por %p162, %p163
      %p165 = scmp.ne.s32.totalorder %s157, %s159
      %p166 = scmp.eq.s32.totalorder %s23, 1
      %p167 = por %p165, %p166
      %p168 = scmp.ne.s32.totalorder %s159, %s160
      %p169 = scmp.eq.s32.totalorder %s23, 0
      %p170 = por %p168, %p169
      %p171 = scmp.ne.s32.totalorder %s159, %s160
      %p172 = scmp.eq.s32.totalorder %s24, 1
      %p173 = por %p171, %p172
      %p175 = scmp.ne.s32.totalorder %s160, %s174
      %p176 = scmp.eq.s32.totalorder %s24, 0
      %p177 = por %p175, %p176
      %s179 = sadd.s32 %s178, 1
      %p182 = scmp.eq.s32.totalorder %s18, 1
      %p183 = scmp.ne.s32.totalorder %s178, %s180
      %p184 = scmp.eq.s32.totalorder %s18, 0
      %p185 = por %p183, %p184
      %p186 = scmp.ne.s32.totalorder %s178, %s180
      %p187 = scmp.eq.s32.totalorder %s23, 1
      %p188 = por %p186, %p187
      %p189 = scmp.ne.s32.totalorder %s180, %s181
      %p190 = scmp.eq.s32.totalorder %s23, 0
      %p191 = por %p189, %p190
      %p192 = scmp.ne.s32.totalorder %s180, %s181
      %p193 = scmp.eq.s32.totalorder %s24, 1
      %p194 = por %p192, %p193
      %p196 = scmp.ne.s32.totalorder %s181, %s195
      %p197 = scmp.eq.s32.totalorder %s24, 0
      %p198 = por %p196, %p197
      %s200 = sadd.s32 %s199, 1
      %p203 = scmp.eq.s32.totalorder %s18, 1
      %p204 = scmp.ne.s32.totalorder %s199, %s201
      %p205 = scmp.eq.s32.totalorder %s18, 0
      %p206 = por %p204, %p205
      %p207 = scmp.ne.s32.totalorder %s199, %s201
      %p208 = scmp.eq.s32.totalorder %s23, 1
      %p209 = por %p207, %p208
      %p210 = scmp.ne.s32.totalorder %s201, %s202
      %p211 = scmp.eq.s32.totalorder %s23, 0
      %p212 = por %p210, %p211
      %p213 = scmp.ne.s32.totalorder %s201, %s202
      %p214 = scmp.eq.s32.totalorder %s24, 1
      %p215 = por %p213, %p214
      %p217 = scmp.ne.s32.totalorder %s202, %s216
      %p218 = scmp.eq.s32.totalorder %s24, 0
      %p219 = por %p217, %p218
      %s220 = ssub.s32 %s18, %s25
      %p221 = scmp.eq.s32.totalorder %s220, 0
      %s223 = sadd.s32 %s222, 1
      %s224 = scalar_select %p221, %s222, %s223
      %p227 = pneg %p221
      %p228 = scmp.eq.s32.totalorder %s18, 1
      %p229 = por %p227, %p228
      %p230 = scmp.ne.s32.totalorder %s222, %s225
      %p231 = scmp.eq.s32.totalorder %s18, 0
      %p232 = por %p230, %p231
      %p233 = scmp.ne.s32.totalorder %s222, %s225
      %p234 = scmp.eq.s32.totalorder %s23, 1
      %p235 = por %p233, %p234
      %p236 = scmp.ne.s32.totalorder %s225, %s226
      %p237 = scmp.eq.s32.totalorder %s23, 0
      %p238 = por %p236, %p237
      %p239 = scmp.ne.s32.totalorder %s225, %s226
      %p240 = scmp.eq.s32.totalorder %s24, 1
      %p241 = por %p239, %p240
      %p243 = scmp.ne.s32.totalorder %s226, %s242
      %p244 = scmp.eq.s32.totalorder %s24, 0
      %p245 = por %p243, %p244
      %p246 = scmp.le.s32.totalorder 1, %s18
      %p247 = scmp.lt.s32.totalorder %s18, 3
      %p248 = pnand %p246, %p247
      %p249 = pneg %p248
      // Predicated region
      $region9: #{_lambda_.5} parent=5 // pred_check
        _
      $region10: #{_lambda_.5} parent=5 // pred_check_branch
        %251 = sbr.rel (%p248) target = $region12
      $region11: #{_lambda_.5} parent=5 // pred_region
        %s252 = ssub.s32 %s18, 1
        // Predicated region
        $region13: #{_lambda_.5} parent=11 // pred_check
          %p253 = pneg %p65
        $region14: #{_lambda_.5} parent=11 // pred_check_branch
          %255 = sbr.rel (%p253) target = $region16
        $region15: #{_lambda_.5} parent=11 // pred_region
          _
        $region16: #{_lambda_.5} parent=11 // pred_fallthru
          _
        // Predicated region
        $region17: #{_lambda_.5} parent=11 // pred_check
          %p256 = pneg %p86
        $region18: #{_lambda_.5} parent=11 // pred_check_branch
          %258 = sbr.rel (%p256) target = $region20
        $region19: #{_lambda_.5} parent=11 // pred_region
          _
        $region20: #{_lambda_.5} parent=11 // pred_fallthru
          _
        // Predicated region
        $region21: #{_lambda_.5} parent=11 // pred_check
          %p259 = pneg %p107
        $region22: #{_lambda_.5} parent=11 // pred_check_branch
          %261 = sbr.rel (%p259) target = $region24
        $region23: #{_lambda_.5} parent=11 // pred_region
          _
        $region24: #{_lambda_.5} parent=11 // pred_fallthru
          _
        // Predicated region
        $region25: #{_lambda_.5} parent=11 // pred_check
          %p262 = pneg %p128
        $region26: #{_lambda_.5} parent=11 // pred_check_branch
          %264 = sbr.rel (%p262) target = $region28
        $region27: #{_lambda_.5} parent=11 // pred_region
          _
        $region28: #{_lambda_.5} parent=11 // pred_fallthru
          _
        // Predicated region
        $region29: #{_lambda_.5} parent=11 // pred_check
          %p265 = pneg %p149
        $region30: #{_lambda_.5} parent=11 // pred_check_branch
          %267 = sbr.rel (%p265) target = $region32
        $region31: #{_lambda_.5} parent=11 // pred_region
          _
        $region32: #{_lambda_.5} parent=11 // pred_fallthru
          _
        // Predicated region
        $region33: #{_lambda_.5} parent=11 // pred_check
          %p268 = pneg %p170
        $region34: #{_lambda_.5} parent=11 // pred_check_branch
          %270 = sbr.rel (%p268) target = $region36
        $region35: #{_lambda_.5} parent=11 // pred_region
          _
        $region36: #{_lambda_.5} parent=11 // pred_fallthru
          _
        // Predicated region
        $region37: #{_lambda_.5} parent=11 // pred_check
          %p271 = pneg %p191
        $region38: #{_lambda_.5} parent=11 // pred_check_branch
          %273 = sbr.rel (%p271) target = $region40
        $region39: #{_lambda_.5} parent=11 // pred_region
          _
        $region40: #{_lambda_.5} parent=11 // pred_fallthru
          _
        // Predicated region
        $region41: #{_lambda_.5} parent=11 // pred_check
          %p274 = pneg %p212
        $region42: #{_lambda_.5} parent=11 // pred_check_branch
          %276 = sbr.rel (%p274) target = $region44
        $region43: #{_lambda_.5} parent=11 // pred_region
          _
        $region44: #{_lambda_.5} parent=11 // pred_fallthru
          _
      $region12: #{_lambda_.5} parent=5 // pred_fallthru
        _
      %p277 = scmp.lt.s32.totalorder %s18, 2
      // Predicated region
      $region45: #{_lambda_.5} parent=5 // pred_check
        %p278 = pneg %p277
      $region46: #{_lambda_.5} parent=5 // pred_check_branch
        %280 = sbr.rel (%p278) target = $region48
      $region47: #{_lambda_.5} parent=5 // pred_region
        // Predicated region
        $region49: #{_lambda_.5} parent=47 // pred_check
          %p281 = pneg %p38
        $region50: #{_lambda_.5} parent=47 // pred_check_branch
          %283 = sbr.rel (%p281) target = $region52
        $region51: #{_lambda_.5} parent=47 // pred_region
          %p284 = scmp.lt.s32.totalorder %s18, 1
          %s285 = scalar_select %p284, %s18, 1
          %s286 = smul.addr %s285, 24
          %s287 = smul.addr %s286, 8
          %s288 = scalar_lea.vmem %s0, %s287
        $region52: #{_lambda_.5} parent=47 // pred_fallthru
          _
      $region48: #{_lambda_.5} parent=5 // pred_fallthru
        _
      %p289 = scmp.le.s32.totalorder 1, %s18
      %p290 = scmp.lt.s32.totalorder %s18, 3
      %p291 = pnand %p289, %p290
      %p292 = pneg %p291
      // Predicated region
      $region53: #{_lambda_.5} parent=5 // pred_check
        _
      $region54: #{_lambda_.5} parent=5 // pred_check_branch
        %294 = sbr.rel (%p291) target = $region56
      $region55: #{_lambda_.5} parent=5 // pred_region
        %s295 = ssub.s32 %s18, 1
        %p296 = scmp.lt.s32.totalorder %s23, 1
        %s297 = scalar_select %p296, %s23, 1
        %s298 = smul.addr %s297, 24
        %s299 = smul.addr %s298, 8
        %s300 = scalar_lea.vmem %s0, %s299
        %p301 = pneg %p44
        %p302 = pneg %p41
        %p303 = pneg %p65
        %p304 = pneg %p62
        %p305 = pneg %p86
        %p306 = pneg %p83
        %p307 = pneg %p107
        %p308 = pneg %p104
        %p309 = pneg %p128
        %p310 = pneg %p125
        %p311 = pneg %p149
        %p312 = pneg %p146
        %p313 = pneg %p170
        %p314 = pneg %p167
        %p315 = pneg %p191
        %p316 = pneg %p188
        %p317 = pneg %p212
        %p318 = pneg %p209
        %p319 = pneg %p238
        %p320 = pneg %p235
        %s321 = sand.u32 %s225, 1
        %s322 = scalar_lea.sflag [#allocation4], %s321
        %s323 = sand.u32 %s225, 1
        %s324 = smul.addr %s323, 64
        %s325 = scalar_lea.vmem [#allocation3], %s324
        %p326 = scmp.lt.s32.totalorder %s23, 1
        %s327 = scalar_select %p326, %s23, 1
        %s328 = smul.addr %s327, 24
        %s329 = smul.addr %s328, 8
        %s330 = scalar_lea.vmem %s0, %s329
        %v332 = vld [vmem:[%s330] sm:$0xff]
        %v333 = vld [vmem:[%s330 + $0x8] sm:$0xff]
        %v334 = vld [vmem:[%s330 + $0x10] sm:$0x3]
        %v335 = vld [vmem:[%s330 + $0x18] sm:$0xff]
        %v336 = vld [vmem:[%s330 + $0x20] sm:$0xff]
        %v337 = vld [vmem:[%s330 + $0x28] sm:$0x3]
        %v338 = vld [vmem:[%s330 + $0x30] sm:$0xff]
        %v339 = vld [vmem:[%s330 + $0x38] sm:$0xff]
        %v340 = vld [vmem:[%s330 + $0x40] sm:$0x3]
        %v341 = vld [vmem:[%s330 + $0x48] sm:$0xff]
        %v342 = vld [vmem:[%s330 + $0x50] sm:$0xff]
        %v343 = vld [vmem:[%s330 + $0x58] sm:$0x3]
        %v344 = vld [vmem:[%s330 + $0x60] sm:$0xff]
        %v345 = vld [vmem:[%s330 + $0x68] sm:$0xff]
        %v346 = vld [vmem:[%s330 + $0x70] sm:$0x3]
        %v347 = vld [vmem:[%s330 + $0x78] sm:$0xff]
        %v348 = vld [vmem:[%s330 + $0x80] sm:$0xff]
        %v349 = vld [vmem:[%s330 + $0x88] sm:$0x3]
        %v350 = vld [vmem:[%s330 + $0x90] sm:$0xff]
        %v351 = vld [vmem:[%s330 + $0x98] sm:$0xff]
        %v352 = vld [vmem:[%s330 + $0xa0] sm:$0x3]
        %v353 = vld [vmem:[%s330 + $0xa8] sm:$0xff]
        %v354 = vld [vmem:[%s330 + $0xb0] sm:$0xff]
        %v355 = vld [vmem:[%s330 + $0xb8] sm:$0x3]
        %v356 = vcombine.low %v332, %v338
        %v357 = vcombine.high %v332, %v338
        %v359 = vunpack.c.l.s4 1983009808
        %v360 = vunpack.c.0.s8 %v359
        %v361 = vlaneseq
        %v362 = vshrl.u32 %v361, 7
        %v363 = vsub.s32 %v360, %v362
        %v364 = vrot.slane %v356, %v363
        %v366 = vunpack.c.l.s4 1983009808
        %v367 = vunpack.c.0.s8 %v366
        %v368 = vlaneseq
        %v369 = vshrl.u32 %v368, 7
        %v370 = vsub.s32 %v367, %v369
        %v371 = vrot.slane %v357, %v370
        %v372 = vcombine.low %v335, %v341
        %v373 = vcombine.high %v335, %v341
        %v375 = vunpack.c.l.s4 1983009808
        %v376 = vunpack.c.0.s8 %v375
        %v377 = vlaneseq
        %v378 = vshrl.u32 %v377, 7
        %v379 = vsub.s32 %v376, %v378
        %v380 = vrot.slane %v372, %v379
        %v382 = vunpack.c.l.s4 1983009808
        %v383 = vunpack.c.0.s8 %v382
        %v384 = vlaneseq
        %v385 = vshrl.u32 %v384, 7
        %v386 = vsub.s32 %v383, %v385
        %v387 = vrot.slane %v373, %v386
        %v388 = vcombine.low %v344, %v350
        %v389 = vcombine.high %v344, %v350
        %v391 = vunpack.c.l.s4 1983009808
        %v392 = vunpack.c.0.s8 %v391
        %v393 = vlaneseq
        %v394 = vshrl.u32 %v393, 7
        %v395 = vsub.s32 %v392, %v394
        %v396 = vrot.slane %v388, %v395
        %v398 = vunpack.c.l.s4 1983009808
        %v399 = vunpack.c.0.s8 %v398
        %v400 = vlaneseq
        %v401 = vshrl.u32 %v400, 7
        %v402 = vsub.s32 %v399, %v401
        %v403 = vrot.slane %v389, %v402
        %v404 = vcombine.low %v347, %v353
        %v405 = vcombine.high %v347, %v353
        %v407 = vunpack.c.l.s4 1983009808
        %v408 = vunpack.c.0.s8 %v407
        %v409 = vlaneseq
        %v410 = vshrl.u32 %v409, 7
        %v411 = vsub.s32 %v408, %v410
        %v412 = vrot.slane %v404, %v411
        %v414 = vunpack.c.l.s4 1983009808
        %v415 = vunpack.c.0.s8 %v414
        %v416 = vlaneseq
        %v417 = vshrl.u32 %v416, 7
        %v418 = vsub.s32 %v415, %v417
        %v419 = vrot.slane %v405, %v418
        %v420 = vcombine.low %v364, %v380
        %v421 = vcombine.high %v364, %v380
        %v423 = vunpack.c.l.s4 1934713408
        %v424 = vunpack.c.0.s8 %v423
        %v425 = vlaneseq
        %v426 = vshrl.u32 %v425, 7
        %v427 = vsub.s32 %v424, %v426
        %v428 = vrot.slane %v420, %v427
        %v430 = vunpack.c.l.s4 1934713408
        %v431 = vunpack.c.0.s8 %v430
        %v432 = vlaneseq
        %v433 = vshrl.u32 %v432, 7
        %v434 = vsub.s32 %v431, %v433
        %v435 = vrot.slane %v421, %v434
        %v436 = vcombine.low %v371, %v387
        %v437 = vcombine.high %v371, %v387
        %v439 = vunpack.c.l.s4 1934713408
        %v440 = vunpack.c.0.s8 %v439
        %v441 = vlaneseq
        %v442 = vshrl.u32 %v441, 7
        %v443 = vsub.s32 %v440, %v442
        %v444 = vrot.slane %v436, %v443
        %v446 = vunpack.c.l.s4 1934713408
        %v447 = vunpack.c.0.s8 %v446
        %v448 = vlaneseq
        %v449 = vshrl.u32 %v448, 7
        %v450 = vsub.s32 %v447, %v449
        %v451 = vrot.slane %v437, %v450
        %v452 = vcombine.low %v396, %v412
        %v453 = vcombine.high %v396, %v412
        %v455 = vunpack.c.l.s4 1934713408
        %v456 = vunpack.c.0.s8 %v455
        %v457 = vlaneseq
        %v458 = vshrl.u32 %v457, 7
        %v459 = vsub.s32 %v456, %v458
        %v460 = vrot.slane %v452, %v459
        %v462 = vunpack.c.l.s4 1934713408
        %v463 = vunpack.c.0.s8 %v462
        %v464 = vlaneseq
        %v465 = vshrl.u32 %v464, 7
        %v466 = vsub.s32 %v463, %v465
        %v467 = vrot.slane %v453, %v466
        %v468 = vcombine.low %v403, %v419
        %v469 = vcombine.high %v403, %v419
        %v471 = vunpack.c.l.s4 1934713408
        %v472 = vunpack.c.0.s8 %v471
        %v473 = vlaneseq
        %v474 = vshrl.u32 %v473, 7
        %v475 = vsub.s32 %v472, %v474
        %v476 = vrot.slane %v468, %v475
        %v478 = vunpack.c.l.s4 1934713408
        %v479 = vunpack.c.0.s8 %v478
        %v480 = vlaneseq
        %v481 = vshrl.u32 %v480, 7
        %v482 = vsub.s32 %v479, %v481
        %v483 = vrot.slane %v469, %v482
        %v484 = vcombine.low %v428, %v460
        %v485 = vcombine.high %v428, %v460
        %v486 = vcombine.low %v435, %v467
        %v487 = vcombine.high %v435, %v467
        %v488 = vcombine.low %v444, %v476
        %v489 = vcombine.high %v444, %v476
        %v490 = vcombine.low %v451, %v483
        %v491 = vcombine.high %v451, %v483
        %v492 = vcombine.low %v333, %v339
        %v493 = vcombine.high %v333, %v339
        %v495 = vunpack.c.l.s4 1983009808
        %v496 = vunpack.c.0.s8 %v495
        %v497 = vlaneseq
        %v498 = vshrl.u32 %v497, 7
        %v499 = vsub.s32 %v496, %v498
        %v500 = vrot.slane %v492, %v499
        %v502 = vunpack.c.l.s4 1983009808
        %v503 = vunpack.c.0.s8 %v502
        %v504 = vlaneseq
        %v505 = vshrl.u32 %v504, 7
        %v506 = vsub.s32 %v503, %v505
        %v507 = vrot.slane %v493, %v506
        %v508 = vcombine.low %v336, %v342
        %v509 = vcombine.high %v336, %v342
        %v511 = vunpack.c.l.s4 1983009808
        %v512 = vunpack.c.0.s8 %v511
        %v513 = vlaneseq
        %v514 = vshrl.u32 %v513, 7
        %v515 = vsub.s32 %v512, %v514
        %v516 = vrot.slane %v508, %v515
        %v518 = vunpack.c.l.s4 1983009808
        %v519 = vunpack.c.0.s8 %v518
        %v520 = vlaneseq
        %v521 = vshrl.u32 %v520, 7
        %v522 = vsub.s32 %v519, %v521
        %v523 = vrot.slane %v509, %v522
        %v524 = vcombine.low %v345, %v351
        %v525 = vcombine.high %v345, %v351
        %v527 = vunpack.c.l.s4 1983009808
        %v528 = vunpack.c.0.s8 %v527
        %v529 = vlaneseq
        %v530 = vshrl.u32 %v529, 7
        %v531 = vsub.s32 %v528, %v530
        %v532 = vrot.slane %v524, %v531
        %v534 = vunpack.c.l.s4 1983009808
        %v535 = vunpack.c.0.s8 %v534
        %v536 = vlaneseq
        %v537 = vshrl.u32 %v536, 7
        %v538 = vsub.s32 %v535, %v537
        %v539 = vrot.slane %v525, %v538
        %v540 = vcombine.low %v348, %v354
        %v541 = vcombine.high %v348, %v354
        %v543 = vunpack.c.l.s4 1983009808
        %v544 = vunpack.c.0.s8 %v543
        %v545 = vlaneseq
        %v546 = vshrl.u32 %v545, 7
        %v547 = vsub.s32 %v544, %v546
        %v548 = vrot.slane %v540, %v547
        %v550 = vunpack.c.l.s4 1983009808
        %v551 = vunpack.c.0.s8 %v550
        %v552 = vlaneseq
        %v553 = vshrl.u32 %v552, 7
        %v554 = vsub.s32 %v551, %v553
        %v555 = vrot.slane %v541, %v554
        %v556 = vcombine.low %v500, %v516
        %v557 = vcombine.high %v500, %v516
        %v559 = vunpack.c.l.s4 1934713408
        %v560 = vunpack.c.0.s8 %v559
        %v561 = vlaneseq
        %v562 = vshrl.u32 %v561, 7
        %v563 = vsub.s32 %v560, %v562
        %v564 = vrot.slane %v556, %v563
        %v566 = vunpack.c.l.s4 1934713408
        %v567 = vunpack.c.0.s8 %v566
        %v568 = vlaneseq
        %v569 = vshrl.u32 %v568, 7
        %v570 = vsub.s32 %v567, %v569
        %v571 = vrot.slane %v557, %v570
        %v572 = vcombine.low %v507, %v523
        %v573 = vcombine.high %v507, %v523
        %v575 = vunpack.c.l.s4 1934713408
        %v576 = vunpack.c.0.s8 %v575
        %v577 = vlaneseq
        %v578 = vshrl.u32 %v577, 7
        %v579 = vsub.s32 %v576, %v578
        %v580 = vrot.slane %v572, %v579
        %v582 = vunpack.c.l.s4 1934713408
        %v583 = vunpack.c.0.s8 %v582
        %v584 = vlaneseq
        %v585 = vshrl.u32 %v584, 7
        %v586 = vsub.s32 %v583, %v585
        %v587 = vrot.slane %v573, %v586
        %v588 = vcombine.low %v532, %v548
        %v589 = vcombine.high %v532, %v548
        %v591 = vunpack.c.l.s4 1934713408
        %v592 = vunpack.c.0.s8 %v591
        %v593 = vlaneseq
        %v594 = vshrl.u32 %v593, 7
        %v595 = vsub.s32 %v592, %v594
        %v596 = vrot.slane %v588, %v595
        %v598 = vunpack.c.l.s4 1934713408
        %v599 = vunpack.c.0.s8 %v598
        %v600 = vlaneseq
        %v601 = vshrl.u32 %v600, 7
        %v602 = vsub.s32 %v599, %v601
        %v603 = vrot.slane %v589, %v602
        %v604 = vcombine.low %v539, %v555
        %v605 = vcombine.high %v539, %v555
        %v607 = vunpack.c.l.s4 1934713408
        %v608 = vunpack.c.0.s8 %v607
        %v609 = vlaneseq
        %v610 = vshrl.u32 %v609, 7
        %v611 = vsub.s32 %v608, %v610
        %v612 = vrot.slane %v604, %v611
        %v614 = vunpack.c.l.s4 1934713408
        %v615 = vunpack.c.0.s8 %v614
        %v616 = vlaneseq
        %v617 = vshrl.u32 %v616, 7
        %v618 = vsub.s32 %v615, %v617
        %v619 = vrot.slane %v605, %v618
        %v620 = vcombine.low %v564, %v596
        %v621 = vcombine.high %v564, %v596
        %v622 = vcombine.low %v571, %v603
        %v623 = vcombine.high %v571, %v603
        %v624 = vcombine.low %v580, %v612
        %v625 = vcombine.high %v580, %v612
        %v626 = vcombine.low %v587, %v619
        %v627 = vcombine.high %v587, %v619
        %629 = vrot.lane.b32.xlu0 %v485, 16
        %v630 = vpop.permute.xlu0 %629
        %633 = vrot.lane.b32.xlu0 %v486, 32
        %v634 = vpop.permute.xlu0 %633
        %637 = vrot.lane.b32.xlu0 %v487, 48
        %v638 = vpop.permute.xlu0 %637
        %641 = vrot.lane.b32.xlu0 %v488, 64
        %v642 = vpop.permute.xlu0 %641
        %645 = vrot.lane.b32.xlu0 %v489, 80
        %v646 = vpop.permute.xlu0 %645
        %649 = vrot.lane.b32.xlu0 %v490, 96
        %v650 = vpop.permute.xlu0 %649
        %653 = vrot.lane.b32.xlu0 %v491, 112
        %v654 = vpop.permute.xlu0 %653
        %657 = vrot.lane.b32.xlu0 %v621, 16
        %v658 = vpop.permute.xlu0 %657
        %661 = vrot.lane.b32.xlu0 %v622, 32
        %v662 = vpop.permute.xlu0 %661
        %665 = vrot.lane.b32.xlu0 %v623, 48
        %v666 = vpop.permute.xlu0 %665
        %669 = vrot.lane.b32.xlu0 %v624, 64
        %v670 = vpop.permute.xlu0 %669
        %673 = vrot.lane.b32.xlu0 %v625, 80
        %v674 = vpop.permute.xlu0 %673
        %677 = vrot.lane.b32.xlu0 %v626, 96
        %v678 = vpop.permute.xlu0 %677
        %681 = vrot.lane.b32.xlu0 %v627, 112
        %v682 = vpop.permute.xlu0 %681
        %vm684 = vcmask 130048
        %v685 = vsel %vm684, %v484, %v630
        %vm686 = vcmask 261120
        %v687 = vsel %vm686, %v685, %v634
        %vm688 = vcmask 392192
        %v689 = vsel %vm688, %v687, %v638
        %vm690 = vcmask 523264
        %v691 = vsel %vm690, %v689, %v642
        %vm692 = vcmask 654336
        %v693 = vsel %vm692, %v691, %v646
        %vm694 = vcmask 785408
        %v695 = vsel %vm694, %v693, %v650
        %vm696 = vcmask 916480
        %v697 = vsel %vm696, %v695, %v654
        %v698 = vsel %vm684, %v620, %v658
        %v699 = vsel %vm686, %v698, %v662
        %v700 = vsel %vm688, %v699, %v666
        %v701 = vsel %vm690, %v700, %v670
        %v702 = vsel %vm692, %v701, %v674
        %v703 = vsel %vm694, %v702, %v678
        %v704 = vsel %vm696, %v703, %v682
        %v705 = vld [vmem:[%s1] sm:$0xf]
        %v706 = vpack.c.bf16 %v705, %v705
        %v707 = vpack.c.bf16 %v697, %v697
        %v708 = vpack.c.bf16 %v704, %v704
        %725 = vrot.lane.b32.xlu0 %v332, 127
        %v726 = vpop.permute.xlu0 %725
        %727 = vrot.lane.b32.xlu0 %v333, 127
        %v728 = vpop.permute.xlu0 %727
        %729 = vrot.lane.b32.xlu0 %v335, 127
        %v730 = vpop.permute.xlu0 %729
        %731 = vrot.lane.b32.xlu0 %v336, 127
        %v732 = vpop.permute.xlu0 %731
        %733 = vrot.lane.b32.xlu0 %v338, 127
        %v734 = vpop.permute.xlu0 %733
        %735 = vrot.lane.b32.xlu0 %v339, 127
        %v736 = vpop.permute.xlu0 %735
        %737 = vrot.lane.b32.xlu0 %v341, 127
        %v738 = vpop.permute.xlu0 %737
        %739 = vrot.lane.b32.xlu0 %v342, 127
        %v740 = vpop.permute.xlu0 %739
        %741 = vrot.lane.b32.xlu0 %v344, 127
        %v742 = vpop.permute.xlu0 %741
        %743 = vrot.lane.b32.xlu0 %v345, 127
        %v744 = vpop.permute.xlu0 %743
        %745 = vrot.lane.b32.xlu0 %v347, 127
        %v746 = vpop.permute.xlu0 %745
        %747 = vrot.lane.b32.xlu0 %v348, 127
        %v748 = vpop.permute.xlu0 %747
        %749 = vrot.lane.b32.xlu0 %v350, 127
        %v750 = vpop.permute.xlu0 %749
        %751 = vrot.lane.b32.xlu0 %v351, 127
        %v752 = vpop.permute.xlu0 %751
        %753 = vrot.lane.b32.xlu0 %v353, 127
        %v754 = vpop.permute.xlu0 %753
        %755 = vrot.lane.b32.xlu0 %v354, 127
        %v756 = vpop.permute.xlu0 %755
        %v773 = vcombine.low %v726, %v734
        %v774 = vcombine.high %v726, %v734
        %v776 = vunpack.c.l.s4 1983009808
        %v777 = vunpack.c.0.s8 %v776
        %v778 = vlaneseq
        %v779 = vshrl.u32 %v778, 7
        %v780 = vsub.s32 %v777, %v779
        %v781 = vrot.slane %v773, %v780
        %v783 = vunpack.c.l.s4 1983009808
        %v784 = vunpack.c.0.s8 %v783
        %v785 = vlaneseq
        %v786 = vshrl.u32 %v785, 7
        %v787 = vsub.s32 %v784, %v786
        %v788 = vrot.slane %v774, %v787
        %v789 = vcombine.low %v730, %v738
        %v790 = vcombine.high %v730, %v738
        %v792 = vunpack.c.l.s4 1983009808
        %v793 = vunpack.c.0.s8 %v792
        %v794 = vlaneseq
        %v795 = vshrl.u32 %v794, 7
        %v796 = vsub.s32 %v793, %v795
        %v797 = vrot.slane %v789, %v796
        %v799 = vunpack.c.l.s4 1983009808
        %v800 = vunpack.c.0.s8 %v799
        %v801 = vlaneseq
        %v802 = vshrl.u32 %v801, 7
        %v803 = vsub.s32 %v800, %v802
        %v804 = vrot.slane %v790, %v803
        %v805 = vcombine.low %v742, %v750
        %v806 = vcombine.high %v742, %v750
        %v808 = vunpack.c.l.s4 1983009808
        %v809 = vunpack.c.0.s8 %v808
        %v810 = vlaneseq
        %v811 = vshrl.u32 %v810, 7
        %v812 = vsub.s32 %v809, %v811
        %v813 = vrot.slane %v805, %v812
        %v815 = vunpack.c.l.s4 1983009808
        %v816 = vunpack.c.0.s8 %v815
        %v817 = vlaneseq
        %v818 = vshrl.u32 %v817, 7
        %v819 = vsub.s32 %v816, %v818
        %v820 = vrot.slane %v806, %v819
        %v821 = vcombine.low %v746, %v754
        %v822 = vcombine.high %v746, %v754
        %v824 = vunpack.c.l.s4 1983009808
        %v825 = vunpack.c.0.s8 %v824
        %v826 = vlaneseq
        %v827 = vshrl.u32 %v826, 7
        %v828 = vsub.s32 %v825, %v827
        %v829 = vrot.slane %v821, %v828
        %v831 = vunpack.c.l.s4 1983009808
        %v832 = vunpack.c.0.s8 %v831
        %v833 = vlaneseq
        %v834 = vshrl.u32 %v833, 7
        %v835 = vsub.s32 %v832, %v834
        %v836 = vrot.slane %v822, %v835
        %v837 = vcombine.low %v781, %v797
        %v838 = vcombine.high %v781, %v797
        %v840 = vunpack.c.l.s4 1934713408
        %v841 = vunpack.c.0.s8 %v840
        %v842 = vlaneseq
        %v843 = vshrl.u32 %v842, 7
        %v844 = vsub.s32 %v841, %v843
        %v845 = vrot.slane %v837, %v844
        %v847 = vunpack.c.l.s4 1934713408
        %v848 = vunpack.c.0.s8 %v847
        %v849 = vlaneseq
        %v850 = vshrl.u32 %v849, 7
        %v851 = vsub.s32 %v848, %v850
        %v852 = vrot.slane %v838, %v851
        %v853 = vcombine.low %v788, %v804
        %v854 = vcombine.high %v788, %v804
        %v856 = vunpack.c.l.s4 1934713408
        %v857 = vunpack.c.0.s8 %v856
        %v858 = vlaneseq
        %v859 = vshrl.u32 %v858, 7
        %v860 = vsub.s32 %v857, %v859
        %v861 = vrot.slane %v853, %v860
        %v863 = vunpack.c.l.s4 1934713408
        %v864 = vunpack.c.0.s8 %v863
        %v865 = vlaneseq
        %v866 = vshrl.u32 %v865, 7
        %v867 = vsub.s32 %v864, %v866
        %v868 = vrot.slane %v854, %v867
        %v869 = vcombine.low %v813, %v829
        %v870 = vcombine.high %v813, %v829
        %v872 = vunpack.c.l.s4 1934713408
        %v873 = vunpack.c.0.s8 %v872
        %v874 = vlaneseq
        %v875 = vshrl.u32 %v874, 7
        %v876 = vsub.s32 %v873, %v875
        %v877 = vrot.slane %v869, %v876
        %v879 = vunpack.c.l.s4 1934713408
        %v880 = vunpack.c.0.s8 %v879
        %v881 = vlaneseq
        %v882 = vshrl.u32 %v881, 7
        %v883 = vsub.s32 %v880, %v882
        %v884 = vrot.slane %v870, %v883
        %v885 = vcombine.low %v820, %v836
        %v886 = vcombine.high %v820, %v836
        %v888 = vunpack.c.l.s4 1934713408
        %v889 = vunpack.c.0.s8 %v888
        %v890 = vlaneseq
        %v891 = vshrl.u32 %v890, 7
        %v892 = vsub.s32 %v889, %v891
        %v893 = vrot.slane %v885, %v892
        %v895 = vunpack.c.l.s4 1934713408
        %v896 = vunpack.c.0.s8 %v895
        %v897 = vlaneseq
        %v898 = vshrl.u32 %v897, 7
        %v899 = vsub.s32 %v896, %v898
        %v900 = vrot.slane %v886, %v899
        %v901 = vcombine.low %v845, %v877
        %v902 = vcombine.high %v845, %v877
        %v903 = vcombine.low %v852, %v884
        %v904 = vcombine.high %v852, %v884
        %v905 = vcombine.low %v861, %v893
        %v906 = vcombine.high %v861, %v893
        %v907 = vcombine.low %v868, %v900
        %v908 = vcombine.high %v868, %v900
        %v909 = vcombine.low %v728, %v736
        %v910 = vcombine.high %v728, %v736
        %v912 = vunpack.c.l.s4 1983009808
        %v913 = vunpack.c.0.s8 %v912
        %v914 = vlaneseq
        %v915 = vshrl.u32 %v914, 7
        %v916 = vsub.s32 %v913, %v915
        %v917 = vrot.slane %v909, %v916
        %v919 = vunpack.c.l.s4 1983009808
        %v920 = vunpack.c.0.s8 %v919
        %v921 = vlaneseq
        %v922 = vshrl.u32 %v921, 7
        %v923 = vsub.s32 %v920, %v922
        %v924 = vrot.slane %v910, %v923
        %v925 = vcombine.low %v732, %v740
        %v926 = vcombine.high %v732, %v740
        %v928 = vunpack.c.l.s4 1983009808
        %v929 = vunpack.c.0.s8 %v928
        %v930 = vlaneseq
        %v931 = vshrl.u32 %v930, 7
        %v932 = vsub.s32 %v929, %v931
        %v933 = vrot.slane %v925, %v932
        %v935 = vunpack.c.l.s4 1983009808
        %v936 = vunpack.c.0.s8 %v935
        %v937 = vlaneseq
        %v938 = vshrl.u32 %v937, 7
        %v939 = vsub.s32 %v936, %v938
        %v940 = vrot.slane %v926, %v939
        %v941 = vcombine.low %v744, %v752
        %v942 = vcombine.high %v744, %v752
        %v944 = vunpack.c.l.s4 1983009808
        %v945 = vunpack.c.0.s8 %v944
        %v946 = vlaneseq
        %v947 = vshrl.u32 %v946, 7
        %v948 = vsub.s32 %v945, %v947
        %v949 = vrot.slane %v941, %v948
        %v951 = vunpack.c.l.s4 1983009808
        %v952 = vunpack.c.0.s8 %v951
        %v953 = vlaneseq
        %v954 = vshrl.u32 %v953, 7
        %v955 = vsub.s32 %v952, %v954
        %v956 = vrot.slane %v942, %v955
        %v957 = vcombine.low %v748, %v756
        %v958 = vcombine.high %v748, %v756
        %v960 = vunpack.c.l.s4 1983009808
        %v961 = vunpack.c.0.s8 %v960
        %v962 = vlaneseq
        %v963 = vshrl.u32 %v962, 7
        %v964 = vsub.s32 %v961, %v963
        %v965 = vrot.slane %v957, %v964
        %v967 = vunpack.c.l.s4 1983009808
        %v968 = vunpack.c.0.s8 %v967
        %v969 = vlaneseq
        %v970 = vshrl.u32 %v969, 7
        %v971 = vsub.s32 %v968, %v970
        %v972 = vrot.slane %v958, %v971
        %v973 = vcombine.low %v917, %v933
        %v974 = vcombine.high %v917, %v933
        %v976 = vunpack.c.l.s4 1934713408
        %v977 = vunpack.c.0.s8 %v976
        %v978 = vlaneseq
        %v979 = vshrl.u32 %v978, 7
        %v980 = vsub.s32 %v977, %v979
        %v981 = vrot.slane %v973, %v980
        %v983 = vunpack.c.l.s4 1934713408
        %v984 = vunpack.c.0.s8 %v983
        %v985 = vlaneseq
        %v986 = vshrl.u32 %v985, 7
        %v987 = vsub.s32 %v984, %v986
        %v988 = vrot.slane %v974, %v987
        %v989 = vcombine.low %v924, %v940
        %v990 = vcombine.high %v924, %v940
        %v992 = vunpack.c.l.s4 1934713408
        %v993 = vunpack.c.0.s8 %v992
        %v994 = vlaneseq
        %v995 = vshrl.u32 %v994, 7
        %v996 = vsub.s32 %v993, %v995
        %v997 = vrot.slane %v989, %v996
        %v999 = vunpack.c.l.s4 1934713408
        %v1000 = vunpack.c.0.s8 %v999
        %v1001 = vlaneseq
        %v1002 = vshrl.u32 %v1001, 7
        %v1003 = vsub.s32 %v1000, %v1002
        %v1004 = vrot.slane %v990, %v1003
        %v1005 = vcombine.low %v949, %v965
        %v1006 = vcombine.high %v949, %v965
        %v1008 = vunpack.c.l.s4 1934713408
        %v1009 = vunpack.c.0.s8 %v1008
        %v1010 = vlaneseq
        %v1011 = vshrl.u32 %v1010, 7
        %v1012 = vsub.s32 %v1009, %v1011
        %v1013 = vrot.slane %v1005, %v1012
        %v1015 = vunpack.c.l.s4 1934713408
        %v1016 = vunpack.c.0.s8 %v1015
        %v1017 = vlaneseq
        %v1018 = vshrl.u32 %v1017, 7
        %v1019 = vsub.s32 %v1016, %v1018
        %v1020 = vrot.slane %v1006, %v1019
        %v1021 = vcombine.low %v956, %v972
        %v1022 = vcombine.high %v956, %v972
        %v1024 = vunpack.c.l.s4 1934713408
        %v1025 = vunpack.c.0.s8 %v1024
        %v1026 = vlaneseq
        %v1027 = vshrl.u32 %v1026, 7
        %v1028 = vsub.s32 %v1025, %v1027
        %v1029 = vrot.slane %v1021, %v1028
        %v1031 = vunpack.c.l.s4 1934713408
        %v1032 = vunpack.c.0.s8 %v1031
        %v1033 = vlaneseq
        %v1034 = vshrl.u32 %v1033, 7
        %v1035 = vsub.s32 %v1032, %v1034
        %v1036 = vrot.slane %v1022, %v1035
        %v1037 = vcombine.low %v981, %v1013
        %v1038 = vcombine.high %v981, %v1013
        %v1039 = vcombine.low %v988, %v1020
        %v1040 = vcombine.high %v988, %v1020
        %v1041 = vcombine.low %v997, %v1029
        %v1042 = vcombine.high %v997, %v1029
        %v1043 = vcombine.low %v1004, %v1036
        %v1044 = vcombine.high %v1004, %v1036
        %1046 = vrot.lane.b32.xlu0 %v902, 16
        %v1047 = vpop.permute.xlu0 %1046
        %1050 = vrot.lane.b32.xlu0 %v903, 32
        %v1051 = vpop.permute.xlu0 %1050
        %1054 = vrot.lane.b32.xlu0 %v904, 48
        %v1055 = vpop.permute.xlu0 %1054
        %1058 = vrot.lane.b32.xlu0 %v905, 64
        %v1059 = vpop.permute.xlu0 %1058
        %1062 = vrot.lane.b32.xlu0 %v906, 80
        %v1063 = vpop.permute.xlu0 %1062
        %1066 = vrot.lane.b32.xlu0 %v907, 96
        %v1067 = vpop.permute.xlu0 %1066
        %1070 = vrot.lane.b32.xlu0 %v908, 112
        %v1071 = vpop.permute.xlu0 %1070
        %1074 = vrot.lane.b32.xlu0 %v1038, 16
        %v1075 = vpop.permute.xlu0 %1074
        %1078 = vrot.lane.b32.xlu0 %v1039, 32
        %v1079 = vpop.permute.xlu0 %1078
        %1082 = vrot.lane.b32.xlu0 %v1040, 48
        %v1083 = vpop.permute.xlu0 %1082
        %1086 = vrot.lane.b32.xlu0 %v1041, 64
        %v1087 = vpop.permute.xlu0 %1086
        %1090 = vrot.lane.b32.xlu0 %v1042, 80
        %v1091 = vpop.permute.xlu0 %1090
        %1094 = vrot.lane.b32.xlu0 %v1043, 96
        %v1095 = vpop.permute.xlu0 %1094
        %1098 = vrot.lane.b32.xlu0 %v1044, 112
        %v1099 = vpop.permute.xlu0 %1098
        %v1101 = vsel %vm684, %v901, %v1047
        %v1102 = vsel %vm686, %v1101, %v1051
        %v1103 = vsel %vm688, %v1102, %v1055
        %v1104 = vsel %vm690, %v1103, %v1059
        %v1105 = vsel %vm692, %v1104, %v1063
        %v1106 = vsel %vm694, %v1105, %v1067
        %v1107 = vsel %vm696, %v1106, %v1071
        %v1108 = vsel %vm684, %v1037, %v1075
        %v1109 = vsel %vm686, %v1108, %v1079
        %v1110 = vsel %vm688, %v1109, %v1083
        %v1111 = vsel %vm690, %v1110, %v1087
        %v1112 = vsel %vm692, %v1111, %v1091
        %v1113 = vsel %vm694, %v1112, %v1095
        %v1114 = vsel %vm696, %v1113, %v1099
        %s1115 = scalar_lea.vmem %s1, 4
        %v1116 = vld [vmem:[%s1115] sm:$0xf]
        %v1117 = vpack.c.bf16 %v1116, %v1116
        %v1118 = vpack.c.bf16 %v1107, %v1107
        %v1119 = vpack.c.bf16 %v1114, %v1114
        %vm1120 = vcmask 64512
        %v1122 = vsel %vm1120, %v1117, 0
        %vm1124 = vcmask 1043456
        %v1126 = vsel %vm1124, %v1118, 0
        %v1129 = vsel %vm1124, %v1119, 0
        %1131 = vmatprep.subr.bf16.mxu0 0
        %1132 = vmatpush1.bf16.msra.mxu0 0
        %1133 = vmatprep.subr.bf16.mxu0 0
        %1134 = vmatpush1.bf16.msra.mxu0 0
        %1135 = vmatprep.subr.bf16.mxu0 0
        %1136 = vmatpush1.bf16.msra.mxu0 0
        %1137 = vmatprep.subr.bf16.mxu0 0
        %1138 = vmatpush1.bf16.msra.mxu0 0
        %1139 = vmatprep.subr.bf16.mxu0 0
        %1140 = vmatpush1.bf16.msra.mxu0 0
        %1141 = vmatprep.subr.bf16.mxu0 0
        %1142 = vmatpush1.bf16.msra.mxu0 0
        %1143 = vmatprep.subr.bf16.mxu0 0
        %1144 = vmatpush1.bf16.msra.mxu0 0
        %1145 = vmatprep.subr.bf16.mxu0 %v1129
        %1146 = vmatpush1.bf16.msra.mxu0 %v1126
        %1147 = vmatprep.subr.bf16.mxu0 0
        %1148 = vmatpush2.bf16.msra.mxu0 0
        %1149 = vmatprep.subr.bf16.mxu0 0
        %1150 = vmatpush2.bf16.msra.mxu0 0
        %1151 = vmatprep.subr.bf16.mxu0 0
        %1152 = vmatpush2.bf16.msra.mxu0 0
        %1153 = vmatprep.subr.bf16.mxu0 0
        %1154 = vmatpush2.bf16.msra.mxu0 0
        %1155 = vmatprep.subr.bf16.mxu0 0
        %1156 = vmatpush2.bf16.msra.mxu0 0
        %1157 = vmatprep.subr.bf16.mxu0 0
        %1158 = vmatpush2.bf16.msra.mxu0 0
        %1159 = vmatprep.subr.bf16.mxu0 0
        %1160 = vmatpush2.bf16.msra.mxu0 0
        %1161 = vmatprep.subr.bf16.mxu0 0
        %1162 = vmatpush2.bf16.msra.mxu0 0
        %1163 = vmatprep.mubr.bf16.mxu0 0
        %1164 = vmatmul.mubr.bf16.gmra.mxu0 %v1122
        %v1165 = vpop.f32.mrf.mxu0
        %v1166 = vadd.f32 0.0, %v1165
        %v1167 = vpop.f32.mrf.mxu0
        %v1168 = vadd.f32 0.0, %v1167
        %v1169 = vpop.f32.mrf.mxu0
        %v1170 = vpop.f32.mrf.mxu0
        %1171 = vdwg.mxu0
        %v1173 = vsel %vm1120, %v706, 0
        %v1176 = vsel %vm1124, %v707, 0
        %v1179 = vsel %vm1124, %v708, 0
        %1181 = vmatprep.subr.bf16.mxu0 0
        %1182 = vmatpush1.bf16.msra.mxu0 0
        %1183 = vmatprep.subr.bf16.mxu0 0
        %1184 = vmatpush1.bf16.msra.mxu0 0
        %1185 = vmatprep.subr.bf16.mxu0 0
        %1186 = vmatpush1.bf16.msra.mxu0 0
        %1187 = vmatprep.subr.bf16.mxu0 0
        %1188 = vmatpush1.bf16.msra.mxu0 0
        %1189 = vmatprep.subr.bf16.mxu0 0
        %1190 = vmatpush1.bf16.msra.mxu0 0
        %1191 = vmatprep.subr.bf16.mxu0 0
        %1192 = vmatpush1.bf16.msra.mxu0 0
        %1193 = vmatprep.subr.bf16.mxu0 0
        %1194 = vmatpush1.bf16.msra.mxu0 0
        %1195 = vmatprep.subr.bf16.mxu0 %v1179
        %1196 = vmatpush1.bf16.msra.mxu0 %v1176
        %1197 = vmatprep.subr.bf16.mxu0 0
        %1198 = vmatpush2.bf16.msra.mxu0 0
        %1199 = vmatprep.subr.bf16.mxu0 0
        %1200 = vmatpush2.bf16.msra.mxu0 0
        %1201 = vmatprep.subr.bf16.mxu0 0
        %1202 = vmatpush2.bf16.msra.mxu0 0
        %1203 = vmatprep.subr.bf16.mxu0 0
        %1204 = vmatpush2.bf16.msra.mxu0 0
        %1205 = vmatprep.subr.bf16.mxu0 0
        %1206 = vmatpush2.bf16.msra.mxu0 0
        %1207 = vmatprep.subr.bf16.mxu0 0
        %1208 = vmatpush2.bf16.msra.mxu0 0
        %1209 = vmatprep.subr.bf16.mxu0 0
        %1210 = vmatpush2.bf16.msra.mxu0 0
        %1211 = vmatprep.subr.bf16.mxu0 0
        %1212 = vmatpush2.bf16.msra.mxu0 0
        %1213 = vmatprep.mubr.bf16.mxu0 0
        %1214 = vmatmul.mubr.bf16.gmra.mxu0 %v1173
        %v1215 = vpop.f32.mrf.mxu0
        %v1216 = vadd.f32 %v1166, %v1215
        %v1217 = vpop.f32.mrf.mxu0
        %v1218 = vadd.f32 %v1168, %v1217
        %v1219 = vpop.f32.mrf.mxu0
        %v1220 = vpop.f32.mrf.mxu0
        %1221 = vdwg.mxu0
        %1222 = vrot.lane.b32.xlu0 %v332, 126
        %v1223 = vpop.permute.xlu0 %1222
        %1224 = vrot.lane.b32.xlu0 %v333, 126
        %v1225 = vpop.permute.xlu0 %1224
        %1226 = vrot.lane.b32.xlu0 %v335, 126
        %v1227 = vpop.permute.xlu0 %1226
        %1228 = vrot.lane.b32.xlu0 %v336, 126
        %v1229 = vpop.permute.xlu0 %1228
        %1230 = vrot.lane.b32.xlu0 %v338, 126
        %v1231 = vpop.permute.xlu0 %1230
        %1232 = vrot.lane.b32.xlu0 %v339, 126
        %v1233 = vpop.permute.xlu0 %1232
        %1234 = vrot.lane.b32.xlu0 %v341, 126
        %v1235 = vpop.permute.xlu0 %1234
        %1236 = vrot.lane.b32.xlu0 %v342, 126
        %v1237 = vpop.permute.xlu0 %1236
        %1238 = vrot.lane.b32.xlu0 %v344, 126
        %v1239 = vpop.permute.xlu0 %1238
        %1240 = vrot.lane.b32.xlu0 %v345, 126
        %v1241 = vpop.permute.xlu0 %1240
        %1242 = vrot.lane.b32.xlu0 %v347, 126
        %v1243 = vpop.permute.xlu0 %1242
        %1244 = vrot.lane.b32.xlu0 %v348, 126
        %v1245 = vpop.permute.xlu0 %1244
        %1246 = vrot.lane.b32.xlu0 %v350, 126
        %v1247 = vpop.permute.xlu0 %1246
        %1248 = vrot.lane.b32.xlu0 %v351, 126
        %v1249 = vpop.permute.xlu0 %1248
        %1250 = vrot.lane.b32.xlu0 %v353, 126
        %v1251 = vpop.permute.xlu0 %1250
        %1252 = vrot.lane.b32.xlu0 %v354, 126
        %v1253 = vpop.permute.xlu0 %1252
        %v1270 = vcombine.low %v1223, %v1231
        %v1271 = vcombine.high %v1223, %v1231
        %v1273 = vunpack.c.l.s4 1983009808
        %v1274 = vunpack.c.0.s8 %v1273
        %v1275 = vlaneseq
        %v1276 = vshrl.u32 %v1275, 7
        %v1277 = vsub.s32 %v1274, %v1276
        %v1278 = vrot.slane %v1270, %v1277
        %v1280 = vunpack.c.l.s4 1983009808
        %v1281 = vunpack.c.0.s8 %v1280
        %v1282 = vlaneseq
        %v1283 = vshrl.u32 %v1282, 7
        %v1284 = vsub.s32 %v1281, %v1283
        %v1285 = vrot.slane %v1271, %v1284
        %v1286 = vcombine.low %v1227, %v1235
        %v1287 = vcombine.high %v1227, %v1235
        %v1289 = vunpack.c.l.s4 1983009808
        %v1290 = vunpack.c.0.s8 %v1289
        %v1291 = vlaneseq
        %v1292 = vshrl.u32 %v1291, 7
        %v1293 = vsub.s32 %v1290, %v1292
        %v1294 = vrot.slane %v1286, %v1293
        %v1296 = vunpack.c.l.s4 1983009808
        %v1297 = vunpack.c.0.s8 %v1296
        %v1298 = vlaneseq
        %v1299 = vshrl.u32 %v1298, 7
        %v1300 = vsub.s32 %v1297, %v1299
        %v1301 = vrot.slane %v1287, %v1300
        %v1302 = vcombine.low %v1239, %v1247
        %v1303 = vcombine.high %v1239, %v1247
        %v1305 = vunpack.c.l.s4 1983009808
        %v1306 = vunpack.c.0.s8 %v1305
        %v1307 = vlaneseq
        %v1308 = vshrl.u32 %v1307, 7
        %v1309 = vsub.s32 %v1306, %v1308
        %v1310 = vrot.slane %v1302, %v1309
        %v1312 = vunpack.c.l.s4 1983009808
        %v1313 = vunpack.c.0.s8 %v1312
        %v1314 = vlaneseq
        %v1315 = vshrl.u32 %v1314, 7
        %v1316 = vsub.s32 %v1313, %v1315
        %v1317 = vrot.slane %v1303, %v1316
        %v1318 = vcombine.low %v1243, %v1251
        %v1319 = vcombine.high %v1243, %v1251
        %v1321 = vunpack.c.l.s4 1983009808
        %v1322 = vunpack.c.0.s8 %v1321
        %v1323 = vlaneseq
        %v1324 = vshrl.u32 %v1323, 7
        %v1325 = vsub.s32 %v1322, %v1324
        %v1326 = vrot.slane %v1318, %v1325
        %v1328 = vunpack.c.l.s4 1983009808
        %v1329 = vunpack.c.0.s8 %v1328
        %v1330 = vlaneseq
        %v1331 = vshrl.u32 %v1330, 7
        %v1332 = vsub.s32 %v1329, %v1331
        %v1333 = vrot.slane %v1319, %v1332
        %v1334 = vcombine.low %v1278, %v1294
        %v1335 = vcombine.high %v1278, %v1294
        %v1337 = vunpack.c.l.s4 1934713408
        %v1338 = vunpack.c.0.s8 %v1337
        %v1339 = vlaneseq
        %v1340 = vshrl.u32 %v1339, 7
        %v1341 = vsub.s32 %v1338, %v1340
        %v1342 = vrot.slane %v1334, %v1341
        %v1344 = vunpack.c.l.s4 1934713408
        %v1345 = vunpack.c.0.s8 %v1344
        %v1346 = vlaneseq
        %v1347 = vshrl.u32 %v1346, 7
        %v1348 = vsub.s32 %v1345, %v1347
        %v1349 = vrot.slane %v1335, %v1348
        %v1350 = vcombine.low %v1285, %v1301
        %v1351 = vcombine.high %v1285, %v1301
        %v1353 = vunpack.c.l.s4 1934713408
        %v1354 = vunpack.c.0.s8 %v1353
        %v1355 = vlaneseq
        %v1356 = vshrl.u32 %v1355, 7
        %v1357 = vsub.s32 %v1354, %v1356
        %v1358 = vrot.slane %v1350, %v1357
        %v1360 = vunpack.c.l.s4 1934713408
        %v1361 = vunpack.c.0.s8 %v1360
        %v1362 = vlaneseq
        %v1363 = vshrl.u32 %v1362, 7
        %v1364 = vsub.s32 %v1361, %v1363
        %v1365 = vrot.slane %v1351, %v1364
        %v1366 = vcombine.low %v1310, %v1326
        %v1367 = vcombine.high %v1310, %v1326
        %v1369 = vunpack.c.l.s4 1934713408
        %v1370 = vunpack.c.0.s8 %v1369
        %v1371 = vlaneseq
        %v1372 = vshrl.u32 %v1371, 7
        %v1373 = vsub.s32 %v1370, %v1372
        %v1374 = vrot.slane %v1366, %v1373
        %v1376 = vunpack.c.l.s4 1934713408
        %v1377 = vunpack.c.0.s8 %v1376
        %v1378 = vlaneseq
        %v1379 = vshrl.u32 %v1378, 7
        %v1380 = vsub.s32 %v1377, %v1379
        %v1381 = vrot.slane %v1367, %v1380
        %v1382 = vcombine.low %v1317, %v1333
        %v1383 = vcombine.high %v1317, %v1333
        %v1385 = vunpack.c.l.s4 1934713408
        %v1386 = vunpack.c.0.s8 %v1385
        %v1387 = vlaneseq
        %v1388 = vshrl.u32 %v1387, 7
        %v1389 = vsub.s32 %v1386, %v1388
        %v1390 = vrot.slane %v1382, %v1389
        %v1392 = vunpack.c.l.s4 1934713408
        %v1393 = vunpack.c.0.s8 %v1392
        %v1394 = vlaneseq
        %v1395 = vshrl.u32 %v1394, 7
        %v1396 = vsub.s32 %v1393, %v1395
        %v1397 = vrot.slane %v1383, %v1396
        %v1398 = vcombine.low %v1342, %v1374
        %v1399 = vcombine.high %v1342, %v1374
        %v1400 = vcombine.low %v1349, %v1381
        %v1401 = vcombine.high %v1349, %v1381
        %v1402 = vcombine.low %v1358, %v1390
        %v1403 = vcombine.high %v1358, %v1390
        %v1404 = vcombine.low %v1365, %v1397
        %v1405 = vcombine.high %v1365, %v1397
        %v1406 = vcombine.low %v1225, %v1233
        %v1407 = vcombine.high %v1225, %v1233
        %v1409 = vunpack.c.l.s4 1983009808
        %v1410 = vunpack.c.0.s8 %v1409
        %v1411 = vlaneseq
        %v1412 = vshrl.u32 %v1411, 7
        %v1413 = vsub.s32 %v1410, %v1412
        %v1414 = vrot.slane %v1406, %v1413
        %v1416 = vunpack.c.l.s4 1983009808
        %v1417 = vunpack.c.0.s8 %v1416
        %v1418 = vlaneseq
        %v1419 = vshrl.u32 %v1418, 7
        %v1420 = vsub.s32 %v1417, %v1419
        %v1421 = vrot.slane %v1407, %v1420
        %v1422 = vcombine.low %v1229, %v1237
        %v1423 = vcombine.high %v1229, %v1237
        %v1425 = vunpack.c.l.s4 1983009808
        %v1426 = vunpack.c.0.s8 %v1425
        %v1427 = vlaneseq
        %v1428 = vshrl.u32 %v1427, 7
        %v1429 = vsub.s32 %v1426, %v1428
        %v1430 = vrot.slane %v1422, %v1429
        %v1432 = vunpack.c.l.s4 1983009808
        %v1433 = vunpack.c.0.s8 %v1432
        %v1434 = vlaneseq
        %v1435 = vshrl.u32 %v1434, 7
        %v1436 = vsub.s32 %v1433, %v1435
        %v1437 = vrot.slane %v1423, %v1436
        %v1438 = vcombine.low %v1241, %v1249
        %v1439 = vcombine.high %v1241, %v1249
        %v1441 = vunpack.c.l.s4 1983009808
        %v1442 = vunpack.c.0.s8 %v1441
        %v1443 = vlaneseq
        %v1444 = vshrl.u32 %v1443, 7
        %v1445 = vsub.s32 %v1442, %v1444
        %v1446 = vrot.slane %v1438, %v1445
        %v1448 = vunpack.c.l.s4 1983009808
        %v1449 = vunpack.c.0.s8 %v1448
        %v1450 = vlaneseq
        %v1451 = vshrl.u32 %v1450, 7
        %v1452 = vsub.s32 %v1449, %v1451
        %v1453 = vrot.slane %v1439, %v1452
        %v1454 = vcombine.low %v1245, %v1253
        %v1455 = vcombine.high %v1245, %v1253
        %v1457 = vunpack.c.l.s4 1983009808
        %v1458 = vunpack.c.0.s8 %v1457
        %v1459 = vlaneseq
        %v1460 = vshrl.u32 %v1459, 7
        %v1461 = vsub.s32 %v1458, %v1460
        %v1462 = vrot.slane %v1454, %v1461
        %v1464 = vunpack.c.l.s4 1983009808
        %v1465 = vunpack.c.0.s8 %v1464
        %v1466 = vlaneseq
        %v1467 = vshrl.u32 %v1466, 7
        %v1468 = vsub.s32 %v1465, %v1467
        %v1469 = vrot.slane %v1455, %v1468
        %v1470 = vcombine.low %v1414, %v1430
        %v1471 = vcombine.high %v1414, %v1430
        %v1473 = vunpack.c.l.s4 1934713408
        %v1474 = vunpack.c.0.s8 %v1473
        %v1475 = vlaneseq
        %v1476 = vshrl.u32 %v1475, 7
        %v1477 = vsub.s32 %v1474, %v1476
        %v1478 = vrot.slane %v1470, %v1477
        %v1480 = vunpack.c.l.s4 1934713408
        %v1481 = vunpack.c.0.s8 %v1480
        %v1482 = vlaneseq
        %v1483 = vshrl.u32 %v1482, 7
        %v1484 = vsub.s32 %v1481, %v1483
        %v1485 = vrot.slane %v1471, %v1484
        %v1486 = vcombine.low %v1421, %v1437
        %v1487 = vcombine.high %v1421, %v1437
        %v1489 = vunpack.c.l.s4 1934713408
        %v1490 = vunpack.c.0.s8 %v1489
        %v1491 = vlaneseq
        %v1492 = vshrl.u32 %v1491, 7
        %v1493 = vsub.s32 %v1490, %v1492
        %v1494 = vrot.slane %v1486, %v1493
        %v1496 = vunpack.c.l.s4 1934713408
        %v1497 = vunpack.c.0.s8 %v1496
        %v1498 = vlaneseq
        %v1499 = vshrl.u32 %v1498, 7
        %v1500 = vsub.s32 %v1497, %v1499
        %v1501 = vrot.slane %v1487, %v1500
        %v1502 = vcombine.low %v1446, %v1462
        %v1503 = vcombine.high %v1446, %v1462
        %v1505 = vunpack.c.l.s4 1934713408
        %v1506 = vunpack.c.0.s8 %v1505
        %v1507 = vlaneseq
        %v1508 = vshrl.u32 %v1507, 7
        %v1509 = vsub.s32 %v1506, %v1508
        %v1510 = vrot.slane %v1502, %v1509
        %v1512 = vunpack.c.l.s4 1934713408
        %v1513 = vunpack.c.0.s8 %v1512
        %v1514 = vlaneseq
        %v1515 = vshrl.u32 %v1514, 7
        %v1516 = vsub.s32 %v1513, %v1515
        %v1517 = vrot.slane %v1503, %v1516
        %v1518 = vcombine.low %v1453, %v1469
        %v1519 = vcombine.high %v1453, %v1469
        %v1521 = vunpack.c.l.s4 1934713408
        %v1522 = vunpack.c.0.s8 %v1521
        %v1523 = vlaneseq
        %v1524 = vshrl.u32 %v1523, 7
        %v1525 = vsub.s32 %v1522, %v1524
        %v1526 = vrot.slane %v1518, %v1525
        %v1528 = vunpack.c.l.s4 1934713408
        %v1529 = vunpack.c.0.s8 %v1528
        %v1530 = vlaneseq
        %v1531 = vshrl.u32 %v1530, 7
        %v1532 = vsub.s32 %v1529, %v1531
        %v1533 = vrot.slane %v1519, %v1532
        %v1534 = vcombine.low %v1478, %v1510
        %v1535 = vcombine.high %v1478, %v1510
        %v1536 = vcombine.low %v1485, %v1517
        %v1537 = vcombine.high %v1485, %v1517
        %v1538 = vcombine.low %v1494, %v1526
        %v1539 = vcombine.high %v1494, %v1526
        %v1540 = vcombine.low %v1501, %v1533
        %v1541 = vcombine.high %v1501, %v1533
        %1543 = vrot.lane.b32.xlu0 %v1399, 16
        %v1544 = vpop.permute.xlu0 %1543
        %1547 = vrot.lane.b32.xlu0 %v1400, 32
        %v1548 = vpop.permute.xlu0 %1547
        %1551 = vrot.lane.b32.xlu0 %v1401, 48
        %v1552 = vpop.permute.xlu0 %1551
        %1555 = vrot.lane.b32.xlu0 %v1402, 64
        %v1556 = vpop.permute.xlu0 %1555
        %1559 = vrot.lane.b32.xlu0 %v1403, 80
        %v1560 = vpop.permute.xlu0 %1559
        %1563 = vrot.lane.b32.xlu0 %v1404, 96
        %v1564 = vpop.permute.xlu0 %1563
        %1567 = vrot.lane.b32.xlu0 %v1405, 112
        %v1568 = vpop.permute.xlu0 %1567
        %1571 = vrot.lane.b32.xlu0 %v1535, 16
        %v1572 = vpop.permute.xlu0 %1571
        %1575 = vrot.lane.b32.xlu0 %v1536, 32
        %v1576 = vpop.permute.xlu0 %1575
        %1579 = vrot.lane.b32.xlu0 %v1537, 48
        %v1580 = vpop.permute.xlu0 %1579
        %1583 = vrot.lane.b32.xlu0 %v1538, 64
        %v1584 = vpop.permute.xlu0 %1583
        %1587 = vrot.lane.b32.xlu0 %v1539, 80
        %v1588 = vpop.permute.xlu0 %1587
        %1591 = vrot.lane.b32.xlu0 %v1540, 96
        %v1592 = vpop.permute.xlu0 %1591
        %1595 = vrot.lane.b32.xlu0 %v1541, 112
        %v1596 = vpop.permute.xlu0 %1595
        %v1598 = vsel %vm684, %v1398, %v1544
        %v1599 = vsel %vm686, %v1598, %v1548
        %v1600 = vsel %vm688, %v1599, %v1552
        %v1601 = vsel %vm690, %v1600, %v1556
        %v1602 = vsel %vm692, %v1601, %v1560
        %v1603 = vsel %vm694, %v1602, %v1564
        %v1604 = vsel %vm696, %v1603, %v1568
        %v1605 = vsel %vm684, %v1534, %v1572
        %v1606 = vsel %vm686, %v1605, %v1576
        %v1607 = vsel %vm688, %v1606, %v1580
        %v1608 = vsel %vm690, %v1607, %v1584
        %v1609 = vsel %vm692, %v1608, %v1588
        %v1610 = vsel %vm694, %v1609, %v1592
        %v1611 = vsel %vm696, %v1610, %v1596
        %s1612 = scalar_lea.vmem %s1, 8
        %v1613 = vld [vmem:[%s1612] sm:$0xf]
        %v1614 = vpack.c.bf16 %v1613, %v1613
        %v1615 = vpack.c.bf16 %v1604, %v1604
        %v1616 = vpack.c.bf16 %v1611, %v1611
        %v1618 = vsel %vm1120, %v1614, 0
        %v1621 = vsel %vm1124, %v1615, 0
        %v1624 = vsel %vm1124, %v1616, 0
        %1626 = vmatprep.subr.bf16.mxu0 0
        %1627 = vmatpush1.bf16.msra.mxu0 0
        %1628 = vmatprep.subr.bf16.mxu0 0
        %1629 = vmatpush1.bf16.msra.mxu0 0
        %1630 = vmatprep.subr.bf16.mxu0 0
        %1631 = vmatpush1.bf16.msra.mxu0 0
        %1632 = vmatprep.subr.bf16.mxu0 0
        %1633 = vmatpush1.bf16.msra.mxu0 0
        %1634 = vmatprep.subr.bf16.mxu0 0
        %1635 = vmatpush1.bf16.msra.mxu0 0
        %1636 = vmatprep.subr.bf16.mxu0 0
        %1637 = vmatpush1.bf16.msra.mxu0 0
        %1638 = vmatprep.subr.bf16.mxu0 0
        %1639 = vmatpush1.bf16.msra.mxu0 0
        %1640 = vmatprep.subr.bf16.mxu0 %v1624
        %1641 = vmatpush1.bf16.msra.mxu0 %v1621
        %1642 = vmatprep.subr.bf16.mxu0 0
        %1643 = vmatpush2.bf16.msra.mxu0 0
        %1644 = vmatprep.subr.bf16.mxu0 0
        %1645 = vmatpush2.bf16.msra.mxu0 0
        %1646 = vmatprep.subr.bf16.mxu0 0
        %1647 = vmatpush2.bf16.msra.mxu0 0
        %1648 = vmatprep.subr.bf16.mxu0 0
        %1649 = vmatpush2.bf16.msra.mxu0 0
        %1650 = vmatprep.subr.bf16.mxu0 0
        %1651 = vmatpush2.bf16.msra.mxu0 0
        %1652 = vmatprep.subr.bf16.mxu0 0
        %1653 = vmatpush2.bf16.msra.mxu0 0
        %1654 = vmatprep.subr.bf16.mxu0 0
        %1655 = vmatpush2.bf16.msra.mxu0 0
        %1656 = vmatprep.subr.bf16.mxu0 0
        %1657 = vmatpush2.bf16.msra.mxu0 0
        %1658 = vmatprep.mubr.bf16.mxu0 0
        %1659 = vmatmul.mubr.bf16.gmra.mxu0 %v1618
        %v1660 = vpop.f32.mrf.mxu0
        %v1661 = vadd.f32 0.0, %v1660
        %v1662 = vpop.f32.mrf.mxu0
        %v1663 = vadd.f32 0.0, %v1662
        %v1664 = vpop.f32.mrf.mxu0
        %v1665 = vpop.f32.mrf.mxu0
        %1666 = vdwg.mxu0
        %v1667 = vadd.f32 %v1216, %v1661
        %v1668 = vadd.f32 %v1218, %v1663
        %vm1677 = vcmask 1046528
        %v1678 = vrot.slane %v332, 1
        %v1679 = vrot.slane %v333, 1
        %v1680 = vsel %vm1677, %v1678, %v1679
        %v1681 = vrot.slane %v334, 1
        %v1682 = vsel %vm1677, %v1679, %v1681
        %v1683 = vrot.slane %v335, 1
        %v1684 = vrot.slane %v336, 1
        %v1685 = vsel %vm1677, %v1683, %v1684
        %v1686 = vrot.slane %v337, 1
        %v1687 = vsel %vm1677, %v1684, %v1686
        %v1688 = vrot.slane %v338, 1
        %v1689 = vrot.slane %v339, 1
        %v1690 = vsel %vm1677, %v1688, %v1689
        %v1691 = vrot.slane %v340, 1
        %v1692 = vsel %vm1677, %v1689, %v1691
        %v1693 = vrot.slane %v341, 1
        %v1694 = vrot.slane %v342, 1
        %v1695 = vsel %vm1677, %v1693, %v1694
        %v1696 = vrot.slane %v343, 1
        %v1697 = vsel %vm1677, %v1694, %v1696
        %v1698 = vrot.slane %v344, 1
        %v1699 = vrot.slane %v345, 1
        %v1700 = vsel %vm1677, %v1698, %v1699
        %v1701 = vrot.slane %v346, 1
        %v1702 = vsel %vm1677, %v1699, %v1701
        %v1703 = vrot.slane %v347, 1
        %v1704 = vrot.slane %v348, 1
        %v1705 = vsel %vm1677, %v1703, %v1704
        %v1706 = vrot.slane %v349, 1
        %v1707 = vsel %vm1677, %v1704, %v1706
        %v1708 = vrot.slane %v350, 1
        %v1709 = vrot.slane %v351, 1
        %v1710 = vsel %vm1677, %v1708, %v1709
        %v1711 = vrot.slane %v352, 1
        %v1712 = vsel %vm1677, %v1709, %v1711
        %v1713 = vrot.slane %v353, 1
        %v1714 = vrot.slane %v354, 1
        %v1715 = vsel %vm1677, %v1713, %v1714
        %v1716 = vrot.slane %v355, 1
        %v1717 = vsel %vm1677, %v1714, %v1716
        %v1734 = vcombine.low %v1680, %v1690
        %v1735 = vcombine.high %v1680, %v1690
        %v1737 = vunpack.c.l.s4 1983009808
        %v1738 = vunpack.c.0.s8 %v1737
        %v1739 = vlaneseq
        %v1740 = vshrl.u32 %v1739, 7
        %v1741 = vsub.s32 %v1738, %v1740
        %v1742 = vrot.slane %v1734, %v1741
        %v1744 = vunpack.c.l.s4 1983009808
        %v1745 = vunpack.c.0.s8 %v1744
        %v1746 = vlaneseq
        %v1747 = vshrl.u32 %v1746, 7
        %v1748 = vsub.s32 %v1745, %v1747
        %v1749 = vrot.slane %v1735, %v1748
        %v1750 = vcombine.low %v1685, %v1695
        %v1751 = vcombine.high %v1685, %v1695
        %v1753 = vunpack.c.l.s4 1983009808
        %v1754 = vunpack.c.0.s8 %v1753
        %v1755 = vlaneseq
        %v1756 = vshrl.u32 %v1755, 7
        %v1757 = vsub.s32 %v1754, %v1756
        %v1758 = vrot.slane %v1750, %v1757
        %v1760 = vunpack.c.l.s4 1983009808
        %v1761 = vunpack.c.0.s8 %v1760
        %v1762 = vlaneseq
        %v1763 = vshrl.u32 %v1762, 7
        %v1764 = vsub.s32 %v1761, %v1763
        %v1765 = vrot.slane %v1751, %v1764
        %v1766 = vcombine.low %v1700, %v1710
        %v1767 = vcombine.high %v1700, %v1710
        %v1769 = vunpack.c.l.s4 1983009808
        %v1770 = vunpack.c.0.s8 %v1769
        %v1771 = vlaneseq
        %v1772 = vshrl.u32 %v1771, 7
        %v1773 = vsub.s32 %v1770, %v1772
        %v1774 = vrot.slane %v1766, %v1773
        %v1776 = vunpack.c.l.s4 1983009808
        %v1777 = vunpack.c.0.s8 %v1776
        %v1778 = vlaneseq
        %v1779 = vshrl.u32 %v1778, 7
        %v1780 = vsub.s32 %v1777, %v1779
        %v1781 = vrot.slane %v1767, %v1780
        %v1782 = vcombine.low %v1705, %v1715
        %v1783 = vcombine.high %v1705, %v1715
        %v1785 = vunpack.c.l.s4 1983009808
        %v1786 = vunpack.c.0.s8 %v1785
        %v1787 = vlaneseq
        %v1788 = vshrl.u32 %v1787, 7
        %v1789 = vsub.s32 %v1786, %v1788
        %v1790 = vrot.slane %v1782, %v1789
        %v1792 = vunpack.c.l.s4 1983009808
        %v1793 = vunpack.c.0.s8 %v1792
        %v1794 = vlaneseq
        %v1795 = vshrl.u32 %v1794, 7
        %v1796 = vsub.s32 %v1793, %v1795
        %v1797 = vrot.slane %v1783, %v1796
        %v1798 = vcombine.low %v1742, %v1758
        %v1799 = vcombine.high %v1742, %v1758
        %v1801 = vunpack.c.l.s4 1934713408
        %v1802 = vunpack.c.0.s8 %v1801
        %v1803 = vlaneseq
        %v1804 = vshrl.u32 %v1803, 7
        %v1805 = vsub.s32 %v1802, %v1804
        %v1806 = vrot.slane %v1798, %v1805
        %v1808 = vunpack.c.l.s4 1934713408
        %v1809 = vunpack.c.0.s8 %v1808
        %v1810 = vlaneseq
        %v1811 = vshrl.u32 %v1810, 7
        %v1812 = vsub.s32 %v1809, %v1811
        %v1813 = vrot.slane %v1799, %v1812
        %v1814 = vcombine.low %v1749, %v1765
        %v1815 = vcombine.high %v1749, %v1765
        %v1817 = vunpack.c.l.s4 1934713408
        %v1818 = vunpack.c.0.s8 %v1817
        %v1819 = vlaneseq
        %v1820 = vshrl.u32 %v1819, 7
        %v1821 = vsub.s32 %v1818, %v1820
        %v1822 = vrot.slane %v1814, %v1821
        %v1824 = vunpack.c.l.s4 1934713408
        %v1825 = vunpack.c.0.s8 %v1824
        %v1826 = vlaneseq
        %v1827 = vshrl.u32 %v1826, 7
        %v1828 = vsub.s32 %v1825, %v1827
        %v1829 = vrot.slane %v1815, %v1828
        %v1830 = vcombine.low %v1774, %v1790
        %v1831 = vcombine.high %v1774, %v1790
        %v1833 = vunpack.c.l.s4 1934713408
        %v1834 = vunpack.c.0.s8 %v1833
        %v1835 = vlaneseq
        %v1836 = vshrl.u32 %v1835, 7
        %v1837 = vsub.s32 %v1834, %v1836
        %v1838 = vrot.slane %v1830, %v1837
        %v1840 = vunpack.c.l.s4 1934713408
        %v1841 = vunpack.c.0.s8 %v1840
        %v1842 = vlaneseq
        %v1843 = vshrl.u32 %v1842, 7
        %v1844 = vsub.s32 %v1841, %v1843
        %v1845 = vrot.slane %v1831, %v1844
        %v1846 = vcombine.low %v1781, %v1797
        %v1847 = vcombine.high %v1781, %v1797
        %v1849 = vunpack.c.l.s4 1934713408
        %v1850 = vunpack.c.0.s8 %v1849
        %v1851 = vlaneseq
        %v1852 = vshrl.u32 %v1851, 7
        %v1853 = vsub.s32 %v1850, %v1852
        %v1854 = vrot.slane %v1846, %v1853
        %v1856 = vunpack.c.l.s4 1934713408
        %v1857 = vunpack.c.0.s8 %v1856
        %v1858 = vlaneseq
        %v1859 = vshrl.u32 %v1858, 7
        %v1860 = vsub.s32 %v1857, %v1859
        %v1861 = vrot.slane %v1847, %v1860
        %v1862 = vcombine.low %v1806, %v1838
        %v1863 = vcombine.high %v1806, %v1838
        %v1864 = vcombine.low %v1813, %v1845
        %v1865 = vcombine.high %v1813, %v1845
        %v1866 = vcombine.low %v1822, %v1854
        %v1867 = vcombine.high %v1822, %v1854
        %v1868 = vcombine.low %v1829, %v1861
        %v1869 = vcombine.high %v1829, %v1861
        %v1870 = vcombine.low %v1682, %v1692
        %v1871 = vcombine.high %v1682, %v1692
        %v1873 = vunpack.c.l.s4 1983009808
        %v1874 = vunpack.c.0.s8 %v1873
        %v1875 = vlaneseq
        %v1876 = vshrl.u32 %v1875, 7
        %v1877 = vsub.s32 %v1874, %v1876
        %v1878 = vrot.slane %v1870, %v1877
        %v1880 = vunpack.c.l.s4 1983009808
        %v1881 = vunpack.c.0.s8 %v1880
        %v1882 = vlaneseq
        %v1883 = vshrl.u32 %v1882, 7
        %v1884 = vsub.s32 %v1881, %v1883
        %v1885 = vrot.slane %v1871, %v1884
        %v1886 = vcombine.low %v1687, %v1697
        %v1887 = vcombine.high %v1687, %v1697
        %v1889 = vunpack.c.l.s4 1983009808
        %v1890 = vunpack.c.0.s8 %v1889
        %v1891 = vlaneseq
        %v1892 = vshrl.u32 %v1891, 7
        %v1893 = vsub.s32 %v1890, %v1892
        %v1894 = vrot.slane %v1886, %v1893
        %v1896 = vunpack.c.l.s4 1983009808
        %v1897 = vunpack.c.0.s8 %v1896
        %v1898 = vlaneseq
        %v1899 = vshrl.u32 %v1898, 7
        %v1900 = vsub.s32 %v1897, %v1899
        %v1901 = vrot.slane %v1887, %v1900
        %v1902 = vcombine.low %v1702, %v1712
        %v1903 = vcombine.high %v1702, %v1712
        %v1905 = vunpack.c.l.s4 1983009808
        %v1906 = vunpack.c.0.s8 %v1905
        %v1907 = vlaneseq
        %v1908 = vshrl.u32 %v1907, 7
        %v1909 = vsub.s32 %v1906, %v1908
        %v1910 = vrot.slane %v1902, %v1909
        %v1912 = vunpack.c.l.s4 1983009808
        %v1913 = vunpack.c.0.s8 %v1912
        %v1914 = vlaneseq
        %v1915 = vshrl.u32 %v1914, 7
        %v1916 = vsub.s32 %v1913, %v1915
        %v1917 = vrot.slane %v1903, %v1916
        %v1918 = vcombine.low %v1707, %v1717
        %v1919 = vcombine.high %v1707, %v1717
        %v1921 = vunpack.c.l.s4 1983009808
        %v1922 = vunpack.c.0.s8 %v1921
        %v1923 = vlaneseq
        %v1924 = vshrl.u32 %v1923, 7
        %v1925 = vsub.s32 %v1922, %v1924
        %v1926 = vrot.slane %v1918, %v1925
        %v1928 = vunpack.c.l.s4 1983009808
        %v1929 = vunpack.c.0.s8 %v1928
        %v1930 = vlaneseq
        %v1931 = vshrl.u32 %v1930, 7
        %v1932 = vsub.s32 %v1929, %v1931
        %v1933 = vrot.slane %v1919, %v1932
        %v1934 = vcombine.low %v1878, %v1894
        %v1935 = vcombine.high %v1878, %v1894
        %v1937 = vunpack.c.l.s4 1934713408
        %v1938 = vunpack.c.0.s8 %v1937
        %v1939 = vlaneseq
        %v1940 = vshrl.u32 %v1939, 7
        %v1941 = vsub.s32 %v1938, %v1940
        %v1942 = vrot.slane %v1934, %v1941
        %v1944 = vunpack.c.l.s4 1934713408
        %v1945 = vunpack.c.0.s8 %v1944
        %v1946 = vlaneseq
        %v1947 = vshrl.u32 %v1946, 7
        %v1948 = vsub.s32 %v1945, %v1947
        %v1949 = vrot.slane %v1935, %v1948
        %v1950 = vcombine.low %v1885, %v1901
        %v1951 = vcombine.high %v1885, %v1901
        %v1953 = vunpack.c.l.s4 1934713408
        %v1954 = vunpack.c.0.s8 %v1953
        %v1955 = vlaneseq
        %v1956 = vshrl.u32 %v1955, 7
        %v1957 = vsub.s32 %v1954, %v1956
        %v1958 = vrot.slane %v1950, %v1957
        %v1960 = vunpack.c.l.s4 1934713408
        %v1961 = vunpack.c.0.s8 %v1960
        %v1962 = vlaneseq
        %v1963 = vshrl.u32 %v1962, 7
        %v1964 = vsub.s32 %v1961, %v1963
        %v1965 = vrot.slane %v1951, %v1964
        %v1966 = vcombine.low %v1910, %v1926
        %v1967 = vcombine.high %v1910, %v1926
        %v1969 = vunpack.c.l.s4 1934713408
        %v1970 = vunpack.c.0.s8 %v1969
        %v1971 = vlaneseq
        %v1972 = vshrl.u32 %v1971, 7
        %v1973 = vsub.s32 %v1970, %v1972
        %v1974 = vrot.slane %v1966, %v1973
        %v1976 = vunpack.c.l.s4 1934713408
        %v1977 = vunpack.c.0.s8 %v1976
        %v1978 = vlaneseq
        %v1979 = vshrl.u32 %v1978, 7
        %v1980 = vsub.s32 %v1977, %v1979
        %v1981 = vrot.slane %v1967, %v1980
        %v1982 = vcombine.low %v1917, %v1933
        %v1983 = vcombine.high %v1917, %v1933
        %v1985 = vunpack.c.l.s4 1934713408
        %v1986 = vunpack.c.0.s8 %v1985
        %v1987 = vlaneseq
        %v1988 = vshrl.u32 %v1987, 7
        %v1989 = vsub.s32 %v1986, %v1988
        %v1990 = vrot.slane %v1982, %v1989
        %v1992 = vunpack.c.l.s4 1934713408
        %v1993 = vunpack.c.0.s8 %v1992
        %v1994 = vlaneseq
        %v1995 = vshrl.u32 %v1994, 7
        %v1996 = vsub.s32 %v1993, %v1995
        %v1997 = vrot.slane %v1983, %v1996
        %v1998 = vcombine.low %v1942, %v1974
        %v1999 = vcombine.high %v1942, %v1974
        %v2000 = vcombine.low %v1949, %v1981
        %v2001 = vcombine.high %v1949, %v1981
        %v2002 = vcombine.low %v1958, %v1990
        %v2003 = vcombine.high %v1958, %v1990
        %v2004 = vcombine.low %v1965, %v1997
        %v2005 = vcombine.high %v1965, %v1997
        %2007 = vrot.lane.b32.xlu0 %v1863, 16
        %v2008 = vpop.permute.xlu0 %2007
        %2011 = vrot.lane.b32.xlu0 %v1864, 32
        %v2012 = vpop.permute.xlu0 %2011
        %2015 = vrot.lane.b32.xlu0 %v1865, 48
        %v2016 = vpop.permute.xlu0 %2015
        %2019 = vrot.lane.b32.xlu0 %v1866, 64
        %v2020 = vpop.permute.xlu0 %2019
        %2023 = vrot.lane.b32.xlu0 %v1867, 80
        %v2024 = vpop.permute.xlu0 %2023
        %2027 = vrot.lane.b32.xlu0 %v1868, 96
        %v2028 = vpop.permute.xlu0 %2027
        %2031 = vrot.lane.b32.xlu0 %v1869, 112
        %v2032 = vpop.permute.xlu0 %2031
        %2035 = vrot.lane.b32.xlu0 %v1999, 16
        %v2036 = vpop.permute.xlu0 %2035
        %2039 = vrot.lane.b32.xlu0 %v2000, 32
        %v2040 = vpop.permute.xlu0 %2039
        %2043 = vrot.lane.b32.xlu0 %v2001, 48
        %v2044 = vpop.permute.xlu0 %2043
        %2047 = vrot.lane.b32.xlu0 %v2002, 64
        %v2048 = vpop.permute.xlu0 %2047
        %2051 = vrot.lane.b32.xlu0 %v2003, 80
        %v2052 = vpop.permute.xlu0 %2051
        %2055 = vrot.lane.b32.xlu0 %v2004, 96
        %v2056 = vpop.permute.xlu0 %2055
        %2059 = vrot.lane.b32.xlu0 %v2005, 112
        %v2060 = vpop.permute.xlu0 %2059
        %v2062 = vsel %vm684, %v1862, %v2008
        %v2063 = vsel %vm686, %v2062, %v2012
        %v2064 = vsel %vm688, %v2063, %v2016
        %v2065 = vsel %vm690, %v2064, %v2020
        %v2066 = vsel %vm692, %v2065, %v2024
        %v2067 = vsel %vm694, %v2066, %v2028
        %v2068 = vsel %vm696, %v2067, %v2032
        %v2069 = vsel %vm684, %v1998, %v2036
        %v2070 = vsel %vm686, %v2069, %v2040
        %v2071 = vsel %vm688, %v2070, %v2044
        %v2072 = vsel %vm690, %v2071, %v2048
        %v2073 = vsel %vm692, %v2072, %v2052
        %v2074 = vsel %vm694, %v2073, %v2056
        %v2075 = vsel %vm696, %v2074, %v2060
        %s2076 = scalar_lea.vmem %s1, 12
        %v2077 = vld [vmem:[%s2076] sm:$0xf]
        %v2078 = vpack.c.bf16 %v2077, %v2077
        %v2079 = vpack.c.bf16 %v2068, %v2068
        %v2080 = vpack.c.bf16 %v2075, %v2075
        %v2082 = vsel %vm1120, %v2078, 0
        %v2085 = vsel %vm1124, %v2079, 0
        %v2088 = vsel %vm1124, %v2080, 0
        %2090 = vmatprep.subr.bf16.mxu0 0
        %2091 = vmatpush1.bf16.msra.mxu0 0
        %2092 = vmatprep.subr.bf16.mxu0 0
        %2093 = vmatpush1.bf16.msra.mxu0 0
        %2094 = vmatprep.subr.bf16.mxu0 0
        %2095 = vmatpush1.bf16.msra.mxu0 0
        %2096 = vmatprep.subr.bf16.mxu0 0
        %2097 = vmatpush1.bf16.msra.mxu0 0
        %2098 = vmatprep.subr.bf16.mxu0 0
        %2099 = vmatpush1.bf16.msra.mxu0 0
        %2100 = vmatprep.subr.bf16.mxu0 0
        %2101 = vmatpush1.bf16.msra.mxu0 0
        %2102 = vmatprep.subr.bf16.mxu0 0
        %2103 = vmatpush1.bf16.msra.mxu0 0
        %2104 = vmatprep.subr.bf16.mxu0 %v2088
        %2105 = vmatpush1.bf16.msra.mxu0 %v2085
        %2106 = vmatprep.subr.bf16.mxu0 0
        %2107 = vmatpush2.bf16.msra.mxu0 0
        %2108 = vmatprep.subr.bf16.mxu0 0
        %2109 = vmatpush2.bf16.msra.mxu0 0
        %2110 = vmatprep.subr.bf16.mxu0 0
        %2111 = vmatpush2.bf16.msra.mxu0 0
        %2112 = vmatprep.subr.bf16.mxu0 0
        %2113 = vmatpush2.bf16.msra.mxu0 0
        %2114 = vmatprep.subr.bf16.mxu0 0
        %2115 = vmatpush2.bf16.msra.mxu0 0
        %2116 = vmatprep.subr.bf16.mxu0 0
        %2117 = vmatpush2.bf16.msra.mxu0 0
        %2118 = vmatprep.subr.bf16.mxu0 0
        %2119 = vmatpush2.bf16.msra.mxu0 0
        %2120 = vmatprep.subr.bf16.mxu0 0
        %2121 = vmatpush2.bf16.msra.mxu0 0
        %2122 = vmatprep.mubr.bf16.mxu0 0
        %2123 = vmatmul.mubr.bf16.gmra.mxu0 %v2082
        %v2124 = vpop.f32.mrf.mxu0
        %v2125 = vadd.f32 0.0, %v2124
        %v2126 = vpop.f32.mrf.mxu0
        %v2127 = vadd.f32 0.0, %v2126
        %v2128 = vpop.f32.mrf.mxu0
        %v2129 = vpop.f32.mrf.mxu0
        %2130 = vdwg.mxu0
        %v2131 = vadd.f32 %v1667, %v2125
        %v2132 = vadd.f32 %v1668, %v2127
        %2133 = vrot.lane.b32.xlu0 %v1680, 127
        %v2134 = vpop.permute.xlu0 %2133
        %2135 = vrot.lane.b32.xlu0 %v1682, 127
        %v2136 = vpop.permute.xlu0 %2135
        %2137 = vrot.lane.b32.xlu0 %v1685, 127
        %v2138 = vpop.permute.xlu0 %2137
        %2139 = vrot.lane.b32.xlu0 %v1687, 127
        %v2140 = vpop.permute.xlu0 %2139
        %2141 = vrot.lane.b32.xlu0 %v1690, 127
        %v2142 = vpop.permute.xlu0 %2141
        %2143 = vrot.lane.b32.xlu0 %v1692, 127
        %v2144 = vpop.permute.xlu0 %2143
        %2145 = vrot.lane.b32.xlu0 %v1695, 127
        %v2146 = vpop.permute.xlu0 %2145
        %2147 = vrot.lane.b32.xlu0 %v1697, 127
        %v2148 = vpop.permute.xlu0 %2147
        %2149 = vrot.lane.b32.xlu0 %v1700, 127
        %v2150 = vpop.permute.xlu0 %2149
        %2151 = vrot.lane.b32.xlu0 %v1702, 127
        %v2152 = vpop.permute.xlu0 %2151
        %2153 = vrot.lane.b32.xlu0 %v1705, 127
        %v2154 = vpop.permute.xlu0 %2153
        %2155 = vrot.lane.b32.xlu0 %v1707, 127
        %v2156 = vpop.permute.xlu0 %2155
        %2157 = vrot.lane.b32.xlu0 %v1710, 127
        %v2158 = vpop.permute.xlu0 %2157
        %2159 = vrot.lane.b32.xlu0 %v1712, 127
        %v2160 = vpop.permute.xlu0 %2159
        %2161 = vrot.lane.b32.xlu0 %v1715, 127
        %v2162 = vpop.permute.xlu0 %2161
        %2163 = vrot.lane.b32.xlu0 %v1717, 127
        %v2164 = vpop.permute.xlu0 %2163
        %v2181 = vcombine.low %v2134, %v2142
        %v2182 = vcombine.high %v2134, %v2142
        %v2184 = vunpack.c.l.s4 1983009808
        %v2185 = vunpack.c.0.s8 %v2184
        %v2186 = vlaneseq
        %v2187 = vshrl.u32 %v2186, 7
        %v2188 = vsub.s32 %v2185, %v2187
        %v2189 = vrot.slane %v2181, %v2188
        %v2191 = vunpack.c.l.s4 1983009808
        %v2192 = vunpack.c.0.s8 %v2191
        %v2193 = vlaneseq
        %v2194 = vshrl.u32 %v2193, 7
        %v2195 = vsub.s32 %v2192, %v2194
        %v2196 = vrot.slane %v2182, %v2195
        %v2197 = vcombine.low %v2138, %v2146
        %v2198 = vcombine.high %v2138, %v2146
        %v2200 = vunpack.c.l.s4 1983009808
        %v2201 = vunpack.c.0.s8 %v2200
        %v2202 = vlaneseq
        %v2203 = vshrl.u32 %v2202, 7
        %v2204 = vsub.s32 %v2201, %v2203
        %v2205 = vrot.slane %v2197, %v2204
        %v2207 = vunpack.c.l.s4 1983009808
        %v2208 = vunpack.c.0.s8 %v2207
        %v2209 = vlaneseq
        %v2210 = vshrl.u32 %v2209, 7
        %v2211 = vsub.s32 %v2208, %v2210
        %v2212 = vrot.slane %v2198, %v2211
        %v2213 = vcombine.low %v2150, %v2158
        %v2214 = vcombine.high %v2150, %v2158
        %v2216 = vunpack.c.l.s4 1983009808
        %v2217 = vunpack.c.0.s8 %v2216
        %v2218 = vlaneseq
        %v2219 = vshrl.u32 %v2218, 7
        %v2220 = vsub.s32 %v2217, %v2219
        %v2221 = vrot.slane %v2213, %v2220
        %v2223 = vunpack.c.l.s4 1983009808
        %v2224 = vunpack.c.0.s8 %v2223
        %v2225 = vlaneseq
        %v2226 = vshrl.u32 %v2225, 7
        %v2227 = vsub.s32 %v2224, %v2226
        %v2228 = vrot.slane %v2214, %v2227
        %v2229 = vcombine.low %v2154, %v2162
        %v2230 = vcombine.high %v2154, %v2162
        %v2232 = vunpack.c.l.s4 1983009808
        %v2233 = vunpack.c.0.s8 %v2232
        %v2234 = vlaneseq
        %v2235 = vshrl.u32 %v2234, 7
        %v2236 = vsub.s32 %v2233, %v2235
        %v2237 = vrot.slane %v2229, %v2236
        %v2239 = vunpack.c.l.s4 1983009808
        %v2240 = vunpack.c.0.s8 %v2239
        %v2241 = vlaneseq
        %v2242 = vshrl.u32 %v2241, 7
        %v2243 = vsub.s32 %v2240, %v2242
        %v2244 = vrot.slane %v2230, %v2243
        %v2245 = vcombine.low %v2189, %v2205
        %v2246 = vcombine.high %v2189, %v2205
        %v2248 = vunpack.c.l.s4 1934713408
        %v2249 = vunpack.c.0.s8 %v2248
        %v2250 = vlaneseq
        %v2251 = vshrl.u32 %v2250, 7
        %v2252 = vsub.s32 %v2249, %v2251
        %v2253 = vrot.slane %v2245, %v2252
        %v2255 = vunpack.c.l.s4 1934713408
        %v2256 = vunpack.c.0.s8 %v2255
        %v2257 = vlaneseq
        %v2258 = vshrl.u32 %v2257, 7
        %v2259 = vsub.s32 %v2256, %v2258
        %v2260 = vrot.slane %v2246, %v2259
        %v2261 = vcombine.low %v2196, %v2212
        %v2262 = vcombine.high %v2196, %v2212
        %v2264 = vunpack.c.l.s4 1934713408
        %v2265 = vunpack.c.0.s8 %v2264
        %v2266 = vlaneseq
        %v2267 = vshrl.u32 %v2266, 7
        %v2268 = vsub.s32 %v2265, %v2267
        %v2269 = vrot.slane %v2261, %v2268
        %v2271 = vunpack.c.l.s4 1934713408
        %v2272 = vunpack.c.0.s8 %v2271
        %v2273 = vlaneseq
        %v2274 = vshrl.u32 %v2273, 7
        %v2275 = vsub.s32 %v2272, %v2274
        %v2276 = vrot.slane %v2262, %v2275
        %v2277 = vcombine.low %v2221, %v2237
        %v2278 = vcombine.high %v2221, %v2237
        %v2280 = vunpack.c.l.s4 1934713408
        %v2281 = vunpack.c.0.s8 %v2280
        %v2282 = vlaneseq
        %v2283 = vshrl.u32 %v2282, 7
        %v2284 = vsub.s32 %v2281, %v2283
        %v2285 = vrot.slane %v2277, %v2284
        %v2287 = vunpack.c.l.s4 1934713408
        %v2288 = vunpack.c.0.s8 %v2287
        %v2289 = vlaneseq
        %v2290 = vshrl.u32 %v2289, 7
        %v2291 = vsub.s32 %v2288, %v2290
        %v2292 = vrot.slane %v2278, %v2291
        %v2293 = vcombine.low %v2228, %v2244
        %v2294 = vcombine.high %v2228, %v2244
        %v2296 = vunpack.c.l.s4 1934713408
        %v2297 = vunpack.c.0.s8 %v2296
        %v2298 = vlaneseq
        %v2299 = vshrl.u32 %v2298, 7
        %v2300 = vsub.s32 %v2297, %v2299
        %v2301 = vrot.slane %v2293, %v2300
        %v2303 = vunpack.c.l.s4 1934713408
        %v2304 = vunpack.c.0.s8 %v2303
        %v2305 = vlaneseq
        %v2306 = vshrl.u32 %v2305, 7
        %v2307 = vsub.s32 %v2304, %v2306
        %v2308 = vrot.slane %v2294, %v2307
        %v2309 = vcombine.low %v2253, %v2285
        %v2310 = vcombine.high %v2253, %v2285
        %v2311 = vcombine.low %v2260, %v2292
        %v2312 = vcombine.high %v2260, %v2292
        %v2313 = vcombine.low %v2269, %v2301
        %v2314 = vcombine.high %v2269, %v2301
        %v2315 = vcombine.low %v2276, %v2308
        %v2316 = vcombine.high %v2276, %v2308
        %v2317 = vcombine.low %v2136, %v2144
        %v2318 = vcombine.high %v2136, %v2144
        %v2320 = vunpack.c.l.s4 1983009808
        %v2321 = vunpack.c.0.s8 %v2320
        %v2322 = vlaneseq
        %v2323 = vshrl.u32 %v2322, 7
        %v2324 = vsub.s32 %v2321, %v2323
        %v2325 = vrot.slane %v2317, %v2324
        %v2327 = vunpack.c.l.s4 1983009808
        %v2328 = vunpack.c.0.s8 %v2327
        %v2329 = vlaneseq
        %v2330 = vshrl.u32 %v2329, 7
        %v2331 = vsub.s32 %v2328, %v2330
        %v2332 = vrot.slane %v2318, %v2331
        %v2333 = vcombine.low %v2140, %v2148
        %v2334 = vcombine.high %v2140, %v2148
        %v2336 = vunpack.c.l.s4 1983009808
        %v2337 = vunpack.c.0.s8 %v2336
        %v2338 = vlaneseq
        %v2339 = vshrl.u32 %v2338, 7
        %v2340 = vsub.s32 %v2337, %v2339
        %v2341 = vrot.slane %v2333, %v2340
        %v2343 = vunpack.c.l.s4 1983009808
        %v2344 = vunpack.c.0.s8 %v2343
        %v2345 = vlaneseq
        %v2346 = vshrl.u32 %v2345, 7
        %v2347 = vsub.s32 %v2344, %v2346
        %v2348 = vrot.slane %v2334, %v2347
        %v2349 = vcombine.low %v2152, %v2160
        %v2350 = vcombine.high %v2152, %v2160
        %v2352 = vunpack.c.l.s4 1983009808
        %v2353 = vunpack.c.0.s8 %v2352
        %v2354 = vlaneseq
        %v2355 = vshrl.u32 %v2354, 7
        %v2356 = vsub.s32 %v2353, %v2355
        %v2357 = vrot.slane %v2349, %v2356
        %v2359 = vunpack.c.l.s4 1983009808
        %v2360 = vunpack.c.0.s8 %v2359
        %v2361 = vlaneseq
        %v2362 = vshrl.u32 %v2361, 7
        %v2363 = vsub.s32 %v2360, %v2362
        %v2364 = vrot.slane %v2350, %v2363
        %v2365 = vcombine.low %v2156, %v2164
        %v2366 = vcombine.high %v2156, %v2164
        %v2368 = vunpack.c.l.s4 1983009808
        %v2369 = vunpack.c.0.s8 %v2368
        %v2370 = vlaneseq
        %v2371 = vshrl.u32 %v2370, 7
        %v2372 = vsub.s32 %v2369, %v2371
        %v2373 = vrot.slane %v2365, %v2372
        %v2375 = vunpack.c.l.s4 1983009808
        %v2376 = vunpack.c.0.s8 %v2375
        %v2377 = vlaneseq
        %v2378 = vshrl.u32 %v2377, 7
        %v2379 = vsub.s32 %v2376, %v2378
        %v2380 = vrot.slane %v2366, %v2379
        %v2381 = vcombine.low %v2325, %v2341
        %v2382 = vcombine.high %v2325, %v2341
        %v2384 = vunpack.c.l.s4 1934713408
        %v2385 = vunpack.c.0.s8 %v2384
        %v2386 = vlaneseq
        %v2387 = vshrl.u32 %v2386, 7
        %v2388 = vsub.s32 %v2385, %v2387
        %v2389 = vrot.slane %v2381, %v2388
        %v2391 = vunpack.c.l.s4 1934713408
        %v2392 = vunpack.c.0.s8 %v2391
        %v2393 = vlaneseq
        %v2394 = vshrl.u32 %v2393, 7
        %v2395 = vsub.s32 %v2392, %v2394
        %v2396 = vrot.slane %v2382, %v2395
        %v2397 = vcombine.low %v2332, %v2348
        %v2398 = vcombine.high %v2332, %v2348
        %v2400 = vunpack.c.l.s4 1934713408
        %v2401 = vunpack.c.0.s8 %v2400
        %v2402 = vlaneseq
        %v2403 = vshrl.u32 %v2402, 7
        %v2404 = vsub.s32 %v2401, %v2403
        %v2405 = vrot.slane %v2397, %v2404
        %v2407 = vunpack.c.l.s4 1934713408
        %v2408 = vunpack.c.0.s8 %v2407
        %v2409 = vlaneseq
        %v2410 = vshrl.u32 %v2409, 7
        %v2411 = vsub.s32 %v2408, %v2410
        %v2412 = vrot.slane %v2398, %v2411
        %v2413 = vcombine.low %v2357, %v2373
        %v2414 = vcombine.high %v2357, %v2373
        %v2416 = vunpack.c.l.s4 1934713408
        %v2417 = vunpack.c.0.s8 %v2416
        %v2418 = vlaneseq
        %v2419 = vshrl.u32 %v2418, 7
        %v2420 = vsub.s32 %v2417, %v2419
        %v2421 = vrot.slane %v2413, %v2420
        %v2423 = vunpack.c.l.s4 1934713408
        %v2424 = vunpack.c.0.s8 %v2423
        %v2425 = vlaneseq
        %v2426 = vshrl.u32 %v2425, 7
        %v2427 = vsub.s32 %v2424, %v2426
        %v2428 = vrot.slane %v2414, %v2427
        %v2429 = vcombine.low %v2364, %v2380
        %v2430 = vcombine.high %v2364, %v2380
        %v2432 = vunpack.c.l.s4 1934713408
        %v2433 = vunpack.c.0.s8 %v2432
        %v2434 = vlaneseq
        %v2435 = vshrl.u32 %v2434, 7
        %v2436 = vsub.s32 %v2433, %v2435
        %v2437 = vrot.slane %v2429, %v2436
        %v2439 = vunpack.c.l.s4 1934713408
        %v2440 = vunpack.c.0.s8 %v2439
        %v2441 = vlaneseq
        %v2442 = vshrl.u32 %v2441, 7
        %v2443 = vsub.s32 %v2440, %v2442
        %v2444 = vrot.slane %v2430, %v2443
        %v2445 = vcombine.low %v2389, %v2421
        %v2446 = vcombine.high %v2389, %v2421
        %v2447 = vcombine.low %v2396, %v2428
        %v2448 = vcombine.high %v2396, %v2428
        %v2449 = vcombine.low %v2405, %v2437
        %v2450 = vcombine.high %v2405, %v2437
        %v2451 = vcombine.low %v2412, %v2444
        %v2452 = vcombine.high %v2412, %v2444
        %2454 = vrot.lane.b32.xlu0 %v2310, 16
        %v2455 = vpop.permute.xlu0 %2454
        %2458 = vrot.lane.b32.xlu0 %v2311, 32
        %v2459 = vpop.permute.xlu0 %2458
        %2462 = vrot.lane.b32.xlu0 %v2312, 48
        %v2463 = vpop.permute.xlu0 %2462
        %2466 = vrot.lane.b32.xlu0 %v2313, 64
        %v2467 = vpop.permute.xlu0 %2466
        %2470 = vrot.lane.b32.xlu0 %v2314, 80
        %v2471 = vpop.permute.xlu0 %2470
        %2474 = vrot.lane.b32.xlu0 %v2315, 96
        %v2475 = vpop.permute.xlu0 %2474
        %2478 = vrot.lane.b32.xlu0 %v2316, 112
        %v2479 = vpop.permute.xlu0 %2478
        %2482 = vrot.lane.b32.xlu0 %v2446, 16
        %v2483 = vpop.permute.xlu0 %2482
        %2486 = vrot.lane.b32.xlu0 %v2447, 32
        %v2487 = vpop.permute.xlu0 %2486
        %2490 = vrot.lane.b32.xlu0 %v2448, 48
        %v2491 = vpop.permute.xlu0 %2490
        %2494 = vrot.lane.b32.xlu0 %v2449, 64
        %v2495 = vpop.permute.xlu0 %2494
        %2498 = vrot.lane.b32.xlu0 %v2450, 80
        %v2499 = vpop.permute.xlu0 %2498
        %2502 = vrot.lane.b32.xlu0 %v2451, 96
        %v2503 = vpop.permute.xlu0 %2502
        %2506 = vrot.lane.b32.xlu0 %v2452, 112
        %v2507 = vpop.permute.xlu0 %2506
        %v2509 = vsel %vm684, %v2309, %v2455
        %v2510 = vsel %vm686, %v2509, %v2459
        %v2511 = vsel %vm688, %v2510, %v2463
        %v2512 = vsel %vm690, %v2511, %v2467
        %v2513 = vsel %vm692, %v2512, %v2471
        %v2514 = vsel %vm694, %v2513, %v2475
        %v2515 = vsel %vm696, %v2514, %v2479
        %v2516 = vsel %vm684, %v2445, %v2483
        %v2517 = vsel %vm686, %v2516, %v2487
        %v2518 = vsel %vm688, %v2517, %v2491
        %v2519 = vsel %vm690, %v2518, %v2495
        %v2520 = vsel %vm692, %v2519, %v2499
        %v2521 = vsel %vm694, %v2520, %v2503
        %v2522 = vsel %vm696, %v2521, %v2507
        %s2523 = scalar_lea.vmem %s1, 16
        %v2524 = vld [vmem:[%s2523] sm:$0xf]
        %v2525 = vpack.c.bf16 %v2524, %v2524
        %v2526 = vpack.c.bf16 %v2515, %v2515
        %v2527 = vpack.c.bf16 %v2522, %v2522
        %v2529 = vsel %vm1120, %v2525, 0
        %v2532 = vsel %vm1124, %v2526, 0
        %v2535 = vsel %vm1124, %v2527, 0
        %2537 = vmatprep.subr.bf16.mxu0 0
        %2538 = vmatpush1.bf16.msra.mxu0 0
        %2539 = vmatprep.subr.bf16.mxu0 0
        %2540 = vmatpush1.bf16.msra.mxu0 0
        %2541 = vmatprep.subr.bf16.mxu0 0
        %2542 = vmatpush1.bf16.msra.mxu0 0
        %2543 = vmatprep.subr.bf16.mxu0 0
        %2544 = vmatpush1.bf16.msra.mxu0 0
        %2545 = vmatprep.subr.bf16.mxu0 0
        %2546 = vmatpush1.bf16.msra.mxu0 0
        %2547 = vmatprep.subr.bf16.mxu0 0
        %2548 = vmatpush1.bf16.msra.mxu0 0
        %2549 = vmatprep.subr.bf16.mxu0 0
        %2550 = vmatpush1.bf16.msra.mxu0 0
        %2551 = vmatprep.subr.bf16.mxu0 %v2535
        %2552 = vmatpush1.bf16.msra.mxu0 %v2532
        %2553 = vmatprep.subr.bf16.mxu0 0
        %2554 = vmatpush2.bf16.msra.mxu0 0
        %2555 = vmatprep.subr.bf16.mxu0 0
        %2556 = vmatpush2.bf16.msra.mxu0 0
        %2557 = vmatprep.subr.bf16.mxu0 0
        %2558 = vmatpush2.bf16.msra.mxu0 0
        %2559 = vmatprep.subr.bf16.mxu0 0
        %2560 = vmatpush2.bf16.msra.mxu0 0
        %2561 = vmatprep.subr.bf16.mxu0 0
        %2562 = vmatpush2.bf16.msra.mxu0 0
        %2563 = vmatprep.subr.bf16.mxu0 0
        %2564 = vmatpush2.bf16.msra.mxu0 0
        %2565 = vmatprep.subr.bf16.mxu0 0
        %2566 = vmatpush2.bf16.msra.mxu0 0
        %2567 = vmatprep.subr.bf16.mxu0 0
        %2568 = vmatpush2.bf16.msra.mxu0 0
        %2569 = vmatprep.mubr.bf16.mxu0 0
        %2570 = vmatmul.mubr.bf16.gmra.mxu0 %v2529
        %v2571 = vpop.f32.mrf.mxu0
        %v2572 = vadd.f32 0.0, %v2571
        %v2573 = vpop.f32.mrf.mxu0
        %v2574 = vadd.f32 0.0, %v2573
        %v2575 = vpop.f32.mrf.mxu0
        %v2576 = vpop.f32.mrf.mxu0
        %2577 = vdwg.mxu0
        %v2578 = vadd.f32 %v2131, %v2572
        %v2579 = vadd.f32 %v2132, %v2574
        %2580 = vrot.lane.b32.xlu0 %v1680, 126
        %v2581 = vpop.permute.xlu0 %2580
        %2582 = vrot.lane.b32.xlu0 %v1682, 126
        %v2583 = vpop.permute.xlu0 %2582
        %2584 = vrot.lane.b32.xlu0 %v1685, 126
        %v2585 = vpop.permute.xlu0 %2584
        %2586 = vrot.lane.b32.xlu0 %v1687, 126
        %v2587 = vpop.permute.xlu0 %2586
        %2588 = vrot.lane.b32.xlu0 %v1690, 126
        %v2589 = vpop.permute.xlu0 %2588
        %2590 = vrot.lane.b32.xlu0 %v1692, 126
        %v2591 = vpop.permute.xlu0 %2590
        %2592 = vrot.lane.b32.xlu0 %v1695, 126
        %v2593 = vpop.permute.xlu0 %2592
        %2594 = vrot.lane.b32.xlu0 %v1697, 126
        %v2595 = vpop.permute.xlu0 %2594
        %2596 = vrot.lane.b32.xlu0 %v1700, 126
        %v2597 = vpop.permute.xlu0 %2596
        %2598 = vrot.lane.b32.xlu0 %v1702, 126
        %v2599 = vpop.permute.xlu0 %2598
        %2600 = vrot.lane.b32.xlu0 %v1705, 126
        %v2601 = vpop.permute.xlu0 %2600
        %2602 = vrot.lane.b32.xlu0 %v1707, 126
        %v2603 = vpop.permute.xlu0 %2602
        %2604 = vrot.lane.b32.xlu0 %v1710, 126
        %v2605 = vpop.permute.xlu0 %2604
        %2606 = vrot.lane.b32.xlu0 %v1712, 126
        %v2607 = vpop.permute.xlu0 %2606
        %2608 = vrot.lane.b32.xlu0 %v1715, 126
        %v2609 = vpop.permute.xlu0 %2608
        %2610 = vrot.lane.b32.xlu0 %v1717, 126
        %v2611 = vpop.permute.xlu0 %2610
        %v2628 = vcombine.low %v2581, %v2589
        %v2629 = vcombine.high %v2581, %v2589
        %v2631 = vunpack.c.l.s4 1983009808
        %v2632 = vunpack.c.0.s8 %v2631
        %v2633 = vlaneseq
        %v2634 = vshrl.u32 %v2633, 7
        %v2635 = vsub.s32 %v2632, %v2634
        %v2636 = vrot.slane %v2628, %v2635
        %v2638 = vunpack.c.l.s4 1983009808
        %v2639 = vunpack.c.0.s8 %v2638
        %v2640 = vlaneseq
        %v2641 = vshrl.u32 %v2640, 7
        %v2642 = vsub.s32 %v2639, %v2641
        %v2643 = vrot.slane %v2629, %v2642
        %v2644 = vcombine.low %v2585, %v2593
        %v2645 = vcombine.high %v2585, %v2593
        %v2647 = vunpack.c.l.s4 1983009808
        %v2648 = vunpack.c.0.s8 %v2647
        %v2649 = vlaneseq
        %v2650 = vshrl.u32 %v2649, 7
        %v2651 = vsub.s32 %v2648, %v2650
        %v2652 = vrot.slane %v2644, %v2651
        %v2654 = vunpack.c.l.s4 1983009808
        %v2655 = vunpack.c.0.s8 %v2654
        %v2656 = vlaneseq
        %v2657 = vshrl.u32 %v2656, 7
        %v2658 = vsub.s32 %v2655, %v2657
        %v2659 = vrot.slane %v2645, %v2658
        %v2660 = vcombine.low %v2597, %v2605
        %v2661 = vcombine.high %v2597, %v2605
        %v2663 = vunpack.c.l.s4 1983009808
        %v2664 = vunpack.c.0.s8 %v2663
        %v2665 = vlaneseq
        %v2666 = vshrl.u32 %v2665, 7
        %v2667 = vsub.s32 %v2664, %v2666
        %v2668 = vrot.slane %v2660, %v2667
        %v2670 = vunpack.c.l.s4 1983009808
        %v2671 = vunpack.c.0.s8 %v2670
        %v2672 = vlaneseq
        %v2673 = vshrl.u32 %v2672, 7
        %v2674 = vsub.s32 %v2671, %v2673
        %v2675 = vrot.slane %v2661, %v2674
        %v2676 = vcombine.low %v2601, %v2609
        %v2677 = vcombine.high %v2601, %v2609
        %v2679 = vunpack.c.l.s4 1983009808
        %v2680 = vunpack.c.0.s8 %v2679
        %v2681 = vlaneseq
        %v2682 = vshrl.u32 %v2681, 7
        %v2683 = vsub.s32 %v2680, %v2682
        %v2684 = vrot.slane %v2676, %v2683
        %v2686 = vunpack.c.l.s4 1983009808
        %v2687 = vunpack.c.0.s8 %v2686
        %v2688 = vlaneseq
        %v2689 = vshrl.u32 %v2688, 7
        %v2690 = vsub.s32 %v2687, %v2689
        %v2691 = vrot.slane %v2677, %v2690
        %v2692 = vcombine.low %v2636, %v2652
        %v2693 = vcombine.high %v2636, %v2652
        %v2695 = vunpack.c.l.s4 1934713408
        %v2696 = vunpack.c.0.s8 %v2695
        %v2697 = vlaneseq
        %v2698 = vshrl.u32 %v2697, 7
        %v2699 = vsub.s32 %v2696, %v2698
        %v2700 = vrot.slane %v2692, %v2699
        %v2702 = vunpack.c.l.s4 1934713408
        %v2703 = vunpack.c.0.s8 %v2702
        %v2704 = vlaneseq
        %v2705 = vshrl.u32 %v2704, 7
        %v2706 = vsub.s32 %v2703, %v2705
        %v2707 = vrot.slane %v2693, %v2706
        %v2708 = vcombine.low %v2643, %v2659
        %v2709 = vcombine.high %v2643, %v2659
        %v2711 = vunpack.c.l.s4 1934713408
        %v2712 = vunpack.c.0.s8 %v2711
        %v2713 = vlaneseq
        %v2714 = vshrl.u32 %v2713, 7
        %v2715 = vsub.s32 %v2712, %v2714
        %v2716 = vrot.slane %v2708, %v2715
        %v2718 = vunpack.c.l.s4 1934713408
        %v2719 = vunpack.c.0.s8 %v2718
        %v2720 = vlaneseq
        %v2721 = vshrl.u32 %v2720, 7
        %v2722 = vsub.s32 %v2719, %v2721
        %v2723 = vrot.slane %v2709, %v2722
        %v2724 = vcombine.low %v2668, %v2684
        %v2725 = vcombine.high %v2668, %v2684
        %v2727 = vunpack.c.l.s4 1934713408
        %v2728 = vunpack.c.0.s8 %v2727
        %v2729 = vlaneseq
        %v2730 = vshrl.u32 %v2729, 7
        %v2731 = vsub.s32 %v2728, %v2730
        %v2732 = vrot.slane %v2724, %v2731
        %v2734 = vunpack.c.l.s4 1934713408
        %v2735 = vunpack.c.0.s8 %v2734
        %v2736 = vlaneseq
        %v2737 = vshrl.u32 %v2736, 7
        %v2738 = vsub.s32 %v2735, %v2737
        %v2739 = vrot.slane %v2725, %v2738
        %v2740 = vcombine.low %v2675, %v2691
        %v2741 = vcombine.high %v2675, %v2691
        %v2743 = vunpack.c.l.s4 1934713408
        %v2744 = vunpack.c.0.s8 %v2743
        %v2745 = vlaneseq
        %v2746 = vshrl.u32 %v2745, 7
        %v2747 = vsub.s32 %v2744, %v2746
        %v2748 = vrot.slane %v2740, %v2747
        %v2750 = vunpack.c.l.s4 1934713408
        %v2751 = vunpack.c.0.s8 %v2750
        %v2752 = vlaneseq
        %v2753 = vshrl.u32 %v2752, 7
        %v2754 = vsub.s32 %v2751, %v2753
        %v2755 = vrot.slane %v2741, %v2754
        %v2756 = vcombine.low %v2700, %v2732
        %v2757 = vcombine.high %v2700, %v2732
        %v2758 = vcombine.low %v2707, %v2739
        %v2759 = vcombine.high %v2707, %v2739
        %v2760 = vcombine.low %v2716, %v2748
        %v2761 = vcombine.high %v2716, %v2748
        %v2762 = vcombine.low %v2723, %v2755
        %v2763 = vcombine.high %v2723, %v2755
        %v2764 = vcombine.low %v2583, %v2591
        %v2765 = vcombine.high %v2583, %v2591
        %v2767 = vunpack.c.l.s4 1983009808
        %v2768 = vunpack.c.0.s8 %v2767
        %v2769 = vlaneseq
        %v2770 = vshrl.u32 %v2769, 7
        %v2771 = vsub.s32 %v2768, %v2770
        %v2772 = vrot.slane %v2764, %v2771
        %v2774 = vunpack.c.l.s4 1983009808
        %v2775 = vunpack.c.0.s8 %v2774
        %v2776 = vlaneseq
        %v2777 = vshrl.u32 %v2776, 7
        %v2778 = vsub.s32 %v2775, %v2777
        %v2779 = vrot.slane %v2765, %v2778
        %v2780 = vcombine.low %v2587, %v2595
        %v2781 = vcombine.high %v2587, %v2595
        %v2783 = vunpack.c.l.s4 1983009808
        %v2784 = vunpack.c.0.s8 %v2783
        %v2785 = vlaneseq
        %v2786 = vshrl.u32 %v2785, 7
        %v2787 = vsub.s32 %v2784, %v2786
        %v2788 = vrot.slane %v2780, %v2787
        %v2790 = vunpack.c.l.s4 1983009808
        %v2791 = vunpack.c.0.s8 %v2790
        %v2792 = vlaneseq
        %v2793 = vshrl.u32 %v2792, 7
        %v2794 = vsub.s32 %v2791, %v2793
        %v2795 = vrot.slane %v2781, %v2794
        %v2796 = vcombine.low %v2599, %v2607
        %v2797 = vcombine.high %v2599, %v2607
        %v2799 = vunpack.c.l.s4 1983009808
        %v2800 = vunpack.c.0.s8 %v2799
        %v2801 = vlaneseq
        %v2802 = vshrl.u32 %v2801, 7
        %v2803 = vsub.s32 %v2800, %v2802
        %v2804 = vrot.slane %v2796, %v2803
        %v2806 = vunpack.c.l.s4 1983009808
        %v2807 = vunpack.c.0.s8 %v2806
        %v2808 = vlaneseq
        %v2809 = vshrl.u32 %v2808, 7
        %v2810 = vsub.s32 %v2807, %v2809
        %v2811 = vrot.slane %v2797, %v2810
        %v2812 = vcombine.low %v2603, %v2611
        %v2813 = vcombine.high %v2603, %v2611
        %v2815 = vunpack.c.l.s4 1983009808
        %v2816 = vunpack.c.0.s8 %v2815
        %v2817 = vlaneseq
        %v2818 = vshrl.u32 %v2817, 7
        %v2819 = vsub.s32 %v2816, %v2818
        %v2820 = vrot.slane %v2812, %v2819
        %v2822 = vunpack.c.l.s4 1983009808
        %v2823 = vunpack.c.0.s8 %v2822
        %v2824 = vlaneseq
        %v2825 = vshrl.u32 %v2824, 7
        %v2826 = vsub.s32 %v2823, %v2825
        %v2827 = vrot.slane %v2813, %v2826
        %v2828 = vcombine.low %v2772, %v2788
        %v2829 = vcombine.high %v2772, %v2788
        %v2831 = vunpack.c.l.s4 1934713408
        %v2832 = vunpack.c.0.s8 %v2831
        %v2833 = vlaneseq
        %v2834 = vshrl.u32 %v2833, 7
        %v2835 = vsub.s32 %v2832, %v2834
        %v2836 = vrot.slane %v2828, %v2835
        %v2838 = vunpack.c.l.s4 1934713408
        %v2839 = vunpack.c.0.s8 %v2838
        %v2840 = vlaneseq
        %v2841 = vshrl.u32 %v2840, 7
        %v2842 = vsub.s32 %v2839, %v2841
        %v2843 = vrot.slane %v2829, %v2842
        %v2844 = vcombine.low %v2779, %v2795
        %v2845 = vcombine.high %v2779, %v2795
        %v2847 = vunpack.c.l.s4 1934713408
        %v2848 = vunpack.c.0.s8 %v2847
        %v2849 = vlaneseq
        %v2850 = vshrl.u32 %v2849, 7
        %v2851 = vsub.s32 %v2848, %v2850
        %v2852 = vrot.slane %v2844, %v2851
        %v2854 = vunpack.c.l.s4 1934713408
        %v2855 = vunpack.c.0.s8 %v2854
        %v2856 = vlaneseq
        %v2857 = vshrl.u32 %v2856, 7
        %v2858 = vsub.s32 %v2855, %v2857
        %v2859 = vrot.slane %v2845, %v2858
        %v2860 = vcombine.low %v2804, %v2820
        %v2861 = vcombine.high %v2804, %v2820
        %v2863 = vunpack.c.l.s4 1934713408
        %v2864 = vunpack.c.0.s8 %v2863
        %v2865 = vlaneseq
        %v2866 = vshrl.u32 %v2865, 7
        %v2867 = vsub.s32 %v2864, %v2866
        %v2868 = vrot.slane %v2860, %v2867
        %v2870 = vunpack.c.l.s4 1934713408
        %v2871 = vunpack.c.0.s8 %v2870
        %v2872 = vlaneseq
        %v2873 = vshrl.u32 %v2872, 7
        %v2874 = vsub.s32 %v2871, %v2873
        %v2875 = vrot.slane %v2861, %v2874
        %v2876 = vcombine.low %v2811, %v2827
        %v2877 = vcombine.high %v2811, %v2827
        %v2879 = vunpack.c.l.s4 1934713408
        %v2880 = vunpack.c.0.s8 %v2879
        %v2881 = vlaneseq
        %v2882 = vshrl.u32 %v2881, 7
        %v2883 = vsub.s32 %v2880, %v2882
        %v2884 = vrot.slane %v2876, %v2883
        %v2886 = vunpack.c.l.s4 1934713408
        %v2887 = vunpack.c.0.s8 %v2886
        %v2888 = vlaneseq
        %v2889 = vshrl.u32 %v2888, 7
        %v2890 = vsub.s32 %v2887, %v2889
        %v2891 = vrot.slane %v2877, %v2890
        %v2892 = vcombine.low %v2836, %v2868
        %v2893 = vcombine.high %v2836, %v2868
        %v2894 = vcombine.low %v2843, %v2875
        %v2895 = vcombine.high %v2843, %v2875
        %v2896 = vcombine.low %v2852, %v2884
        %v2897 = vcombine.high %v2852, %v2884
        %v2898 = vcombine.low %v2859, %v2891
        %v2899 = vcombine.high %v2859, %v2891
        %2901 = vrot.lane.b32.xlu0 %v2757, 16
        %v2902 = vpop.permute.xlu0 %2901
        %2905 = vrot.lane.b32.xlu0 %v2758, 32
        %v2906 = vpop.permute.xlu0 %2905
        %2909 = vrot.lane.b32.xlu0 %v2759, 48
        %v2910 = vpop.permute.xlu0 %2909
        %2913 = vrot.lane.b32.xlu0 %v2760, 64
        %v2914 = vpop.permute.xlu0 %2913
        %2917 = vrot.lane.b32.xlu0 %v2761, 80
        %v2918 = vpop.permute.xlu0 %2917
        %2921 = vrot.lane.b32.xlu0 %v2762, 96
        %v2922 = vpop.permute.xlu0 %2921
        %2925 = vrot.lane.b32.xlu0 %v2763, 112
        %v2926 = vpop.permute.xlu0 %2925
        %2929 = vrot.lane.b32.xlu0 %v2893, 16
        %v2930 = vpop.permute.xlu0 %2929
        %2933 = vrot.lane.b32.xlu0 %v2894, 32
        %v2934 = vpop.permute.xlu0 %2933
        %2937 = vrot.lane.b32.xlu0 %v2895, 48
        %v2938 = vpop.permute.xlu0 %2937
        %2941 = vrot.lane.b32.xlu0 %v2896, 64
        %v2942 = vpop.permute.xlu0 %2941
        %2945 = vrot.lane.b32.xlu0 %v2897, 80
        %v2946 = vpop.permute.xlu0 %2945
        %2949 = vrot.lane.b32.xlu0 %v2898, 96
        %v2950 = vpop.permute.xlu0 %2949
        %2953 = vrot.lane.b32.xlu0 %v2899, 112
        %v2954 = vpop.permute.xlu0 %2953
        %v2956 = vsel %vm684, %v2756, %v2902
        %v2957 = vsel %vm686, %v2956, %v2906
        %v2958 = vsel %vm688, %v2957, %v2910
        %v2959 = vsel %vm690, %v2958, %v2914
        %v2960 = vsel %vm692, %v2959, %v2918
        %v2961 = vsel %vm694, %v2960, %v2922
        %v2962 = vsel %vm696, %v2961, %v2926
        %v2963 = vsel %vm684, %v2892, %v2930
        %v2964 = vsel %vm686, %v2963, %v2934
        %v2965 = vsel %vm688, %v2964, %v2938
        %v2966 = vsel %vm690, %v2965, %v2942
        %v2967 = vsel %vm692, %v2966, %v2946
        %v2968 = vsel %vm694, %v2967, %v2950
        %v2969 = vsel %vm696, %v2968, %v2954
        %s2970 = scalar_lea.vmem %s1, 20
        %v2971 = vld [vmem:[%s2970] sm:$0xf]
        %v2972 = vpack.c.bf16 %v2971, %v2971
        %v2973 = vpack.c.bf16 %v2962, %v2962
        %v2974 = vpack.c.bf16 %v2969, %v2969
        %v2976 = vsel %vm1120, %v2972, 0
        %v2979 = vsel %vm1124, %v2973, 0
        %v2982 = vsel %vm1124, %v2974, 0
        %2984 = vmatprep.subr.bf16.mxu0 0
        %2985 = vmatpush1.bf16.msra.mxu0 0
        %2986 = vmatprep.subr.bf16.mxu0 0
        %2987 = vmatpush1.bf16.msra.mxu0 0
        %2988 = vmatprep.subr.bf16.mxu0 0
        %2989 = vmatpush1.bf16.msra.mxu0 0
        %2990 = vmatprep.subr.bf16.mxu0 0
        %2991 = vmatpush1.bf16.msra.mxu0 0
        %2992 = vmatprep.subr.bf16.mxu0 0
        %2993 = vmatpush1.bf16.msra.mxu0 0
        %2994 = vmatprep.subr.bf16.mxu0 0
        %2995 = vmatpush1.bf16.msra.mxu0 0
        %2996 = vmatprep.subr.bf16.mxu0 0
        %2997 = vmatpush1.bf16.msra.mxu0 0
        %2998 = vmatprep.subr.bf16.mxu0 %v2982
        %2999 = vmatpush1.bf16.msra.mxu0 %v2979
        %3000 = vmatprep.subr.bf16.mxu0 0
        %3001 = vmatpush2.bf16.msra.mxu0 0
        %3002 = vmatprep.subr.bf16.mxu0 0
        %3003 = vmatpush2.bf16.msra.mxu0 0
        %3004 = vmatprep.subr.bf16.mxu0 0
        %3005 = vmatpush2.bf16.msra.mxu0 0
        %3006 = vmatprep.subr.bf16.mxu0 0
        %3007 = vmatpush2.bf16.msra.mxu0 0
        %3008 = vmatprep.subr.bf16.mxu0 0
        %3009 = vmatpush2.bf16.msra.mxu0 0
        %3010 = vmatprep.subr.bf16.mxu0 0
        %3011 = vmatpush2.bf16.msra.mxu0 0
        %3012 = vmatprep.subr.bf16.mxu0 0
        %3013 = vmatpush2.bf16.msra.mxu0 0
        %3014 = vmatprep.subr.bf16.mxu0 0
        %3015 = vmatpush2.bf16.msra.mxu0 0
        %3016 = vmatprep.mubr.bf16.mxu0 0
        %3017 = vmatmul.mubr.bf16.gmra.mxu0 %v2976
        %v3018 = vpop.f32.mrf.mxu0
        %v3019 = vadd.f32 0.0, %v3018
        %v3020 = vpop.f32.mrf.mxu0
        %v3021 = vadd.f32 0.0, %v3020
        %v3022 = vpop.f32.mrf.mxu0
        %v3023 = vpop.f32.mrf.mxu0
        %3024 = vdwg.mxu0
        %v3025 = vadd.f32 %v2578, %v3019
        %v3026 = vadd.f32 %v2579, %v3021
        %vm3027 = vcmask 1045504
        %v3028 = vrot.slane %v332, 2
        %v3029 = vrot.slane %v333, 2
        %v3030 = vsel %vm3027, %v3028, %v3029
        %v3031 = vrot.slane %v334, 2
        %v3032 = vsel %vm3027, %v3029, %v3031
        %v3033 = vrot.slane %v335, 2
        %v3034 = vrot.slane %v336, 2
        %v3035 = vsel %vm3027, %v3033, %v3034
        %v3036 = vrot.slane %v337, 2
        %v3037 = vsel %vm3027, %v3034, %v3036
        %v3038 = vrot.slane %v338, 2
        %v3039 = vrot.slane %v339, 2
        %v3040 = vsel %vm3027, %v3038, %v3039
        %v3041 = vrot.slane %v340, 2
        %v3042 = vsel %vm3027, %v3039, %v3041
        %v3043 = vrot.slane %v341, 2
        %v3044 = vrot.slane %v342, 2
        %v3045 = vsel %vm3027, %v3043, %v3044
        %v3046 = vrot.slane %v343, 2
        %v3047 = vsel %vm3027, %v3044, %v3046
        %v3048 = vrot.slane %v344, 2
        %v3049 = vrot.slane %v345, 2
        %v3050 = vsel %vm3027, %v3048, %v3049
        %v3051 = vrot.slane %v346, 2
        %v3052 = vsel %vm3027, %v3049, %v3051
        %v3053 = vrot.slane %v347, 2
        %v3054 = vrot.slane %v348, 2
        %v3055 = vsel %vm3027, %v3053, %v3054
        %v3056 = vrot.slane %v349, 2
        %v3057 = vsel %vm3027, %v3054, %v3056
        %v3058 = vrot.slane %v350, 2
        %v3059 = vrot.slane %v351, 2
        %v3060 = vsel %vm3027, %v3058, %v3059
        %v3061 = vrot.slane %v352, 2
        %v3062 = vsel %vm3027, %v3059, %v3061
        %v3063 = vrot.slane %v353, 2
        %v3064 = vrot.slane %v354, 2
        %v3065 = vsel %vm3027, %v3063, %v3064
        %v3066 = vrot.slane %v355, 2
        %v3067 = vsel %vm3027, %v3064, %v3066
        %v3084 = vcombine.low %v3030, %v3040
        %v3085 = vcombine.high %v3030, %v3040
        %v3087 = vunpack.c.l.s4 1983009808
        %v3088 = vunpack.c.0.s8 %v3087
        %v3089 = vlaneseq
        %v3090 = vshrl.u32 %v3089, 7
        %v3091 = vsub.s32 %v3088, %v3090
        %v3092 = vrot.slane %v3084, %v3091
        %v3094 = vunpack.c.l.s4 1983009808
        %v3095 = vunpack.c.0.s8 %v3094
        %v3096 = vlaneseq
        %v3097 = vshrl.u32 %v3096, 7
        %v3098 = vsub.s32 %v3095, %v3097
        %v3099 = vrot.slane %v3085, %v3098
        %v3100 = vcombine.low %v3035, %v3045
        %v3101 = vcombine.high %v3035, %v3045
        %v3103 = vunpack.c.l.s4 1983009808
        %v3104 = vunpack.c.0.s8 %v3103
        %v3105 = vlaneseq
        %v3106 = vshrl.u32 %v3105, 7
        %v3107 = vsub.s32 %v3104, %v3106
        %v3108 = vrot.slane %v3100, %v3107
        %v3110 = vunpack.c.l.s4 1983009808
        %v3111 = vunpack.c.0.s8 %v3110
        %v3112 = vlaneseq
        %v3113 = vshrl.u32 %v3112, 7
        %v3114 = vsub.s32 %v3111, %v3113
        %v3115 = vrot.slane %v3101, %v3114
        %v3116 = vcombine.low %v3050, %v3060
        %v3117 = vcombine.high %v3050, %v3060
        %v3119 = vunpack.c.l.s4 1983009808
        %v3120 = vunpack.c.0.s8 %v3119
        %v3121 = vlaneseq
        %v3122 = vshrl.u32 %v3121, 7
        %v3123 = vsub.s32 %v3120, %v3122
        %v3124 = vrot.slane %v3116, %v3123
        %v3126 = vunpack.c.l.s4 1983009808
        %v3127 = vunpack.c.0.s8 %v3126
        %v3128 = vlaneseq
        %v3129 = vshrl.u32 %v3128, 7
        %v3130 = vsub.s32 %v3127, %v3129
        %v3131 = vrot.slane %v3117, %v3130
        %v3132 = vcombine.low %v3055, %v3065
        %v3133 = vcombine.high %v3055, %v3065
        %v3135 = vunpack.c.l.s4 1983009808
        %v3136 = vunpack.c.0.s8 %v3135
        %v3137 = vlaneseq
        %v3138 = vshrl.u32 %v3137, 7
        %v3139 = vsub.s32 %v3136, %v3138
        %v3140 = vrot.slane %v3132, %v3139
        %v3142 = vunpack.c.l.s4 1983009808
        %v3143 = vunpack.c.0.s8 %v3142
        %v3144 = vlaneseq
        %v3145 = vshrl.u32 %v3144, 7
        %v3146 = vsub.s32 %v3143, %v3145
        %v3147 = vrot.slane %v3133, %v3146
        %v3148 = vcombine.low %v3092, %v3108
        %v3149 = vcombine.high %v3092, %v3108
        %v3151 = vunpack.c.l.s4 1934713408
        %v3152 = vunpack.c.0.s8 %v3151
        %v3153 = vlaneseq
        %v3154 = vshrl.u32 %v3153, 7
        %v3155 = vsub.s32 %v3152, %v3154
        %v3156 = vrot.slane %v3148, %v3155
        %v3158 = vunpack.c.l.s4 1934713408
        %v3159 = vunpack.c.0.s8 %v3158
        %v3160 = vlaneseq
        %v3161 = vshrl.u32 %v3160, 7
        %v3162 = vsub.s32 %v3159, %v3161
        %v3163 = vrot.slane %v3149, %v3162
        %v3164 = vcombine.low %v3099, %v3115
        %v3165 = vcombine.high %v3099, %v3115
        %v3167 = vunpack.c.l.s4 1934713408
        %v3168 = vunpack.c.0.s8 %v3167
        %v3169 = vlaneseq
        %v3170 = vshrl.u32 %v3169, 7
        %v3171 = vsub.s32 %v3168, %v3170
        %v3172 = vrot.slane %v3164, %v3171
        %v3174 = vunpack.c.l.s4 1934713408
        %v3175 = vunpack.c.0.s8 %v3174
        %v3176 = vlaneseq
        %v3177 = vshrl.u32 %v3176, 7
        %v3178 = vsub.s32 %v3175, %v3177
        %v3179 = vrot.slane %v3165, %v3178
        %v3180 = vcombine.low %v3124, %v3140
        %v3181 = vcombine.high %v3124, %v3140
        %v3183 = vunpack.c.l.s4 1934713408
        %v3184 = vunpack.c.0.s8 %v3183
        %v3185 = vlaneseq
        %v3186 = vshrl.u32 %v3185, 7
        %v3187 = vsub.s32 %v3184, %v3186
        %v3188 = vrot.slane %v3180, %v3187
        %v3190 = vunpack.c.l.s4 1934713408
        %v3191 = vunpack.c.0.s8 %v3190
        %v3192 = vlaneseq
        %v3193 = vshrl.u32 %v3192, 7
        %v3194 = vsub.s32 %v3191, %v3193
        %v3195 = vrot.slane %v3181, %v3194
        %v3196 = vcombine.low %v3131, %v3147
        %v3197 = vcombine.high %v3131, %v3147
        %v3199 = vunpack.c.l.s4 1934713408
        %v3200 = vunpack.c.0.s8 %v3199
        %v3201 = vlaneseq
        %v3202 = vshrl.u32 %v3201, 7
        %v3203 = vsub.s32 %v3200, %v3202
        %v3204 = vrot.slane %v3196, %v3203
        %v3206 = vunpack.c.l.s4 1934713408
        %v3207 = vunpack.c.0.s8 %v3206
        %v3208 = vlaneseq
        %v3209 = vshrl.u32 %v3208, 7
        %v3210 = vsub.s32 %v3207, %v3209
        %v3211 = vrot.slane %v3197, %v3210
        %v3212 = vcombine.low %v3156, %v3188
        %v3213 = vcombine.high %v3156, %v3188
        %v3214 = vcombine.low %v3163, %v3195
        %v3215 = vcombine.high %v3163, %v3195
        %v3216 = vcombine.low %v3172, %v3204
        %v3217 = vcombine.high %v3172, %v3204
        %v3218 = vcombine.low %v3179, %v3211
        %v3219 = vcombine.high %v3179, %v3211
        %v3220 = vcombine.low %v3032, %v3042
        %v3221 = vcombine.high %v3032, %v3042
        %v3223 = vunpack.c.l.s4 1983009808
        %v3224 = vunpack.c.0.s8 %v3223
        %v3225 = vlaneseq
        %v3226 = vshrl.u32 %v3225, 7
        %v3227 = vsub.s32 %v3224, %v3226
        %v3228 = vrot.slane %v3220, %v3227
        %v3230 = vunpack.c.l.s4 1983009808
        %v3231 = vunpack.c.0.s8 %v3230
        %v3232 = vlaneseq
        %v3233 = vshrl.u32 %v3232, 7
        %v3234 = vsub.s32 %v3231, %v3233
        %v3235 = vrot.slane %v3221, %v3234
        %v3236 = vcombine.low %v3037, %v3047
        %v3237 = vcombine.high %v3037, %v3047
        %v3239 = vunpack.c.l.s4 1983009808
        %v3240 = vunpack.c.0.s8 %v3239
        %v3241 = vlaneseq
        %v3242 = vshrl.u32 %v3241, 7
        %v3243 = vsub.s32 %v3240, %v3242
        %v3244 = vrot.slane %v3236, %v3243
        %v3246 = vunpack.c.l.s4 1983009808
        %v3247 = vunpack.c.0.s8 %v3246
        %v3248 = vlaneseq
        %v3249 = vshrl.u32 %v3248, 7
        %v3250 = vsub.s32 %v3247, %v3249
        %v3251 = vrot.slane %v3237, %v3250
        %v3252 = vcombine.low %v3052, %v3062
        %v3253 = vcombine.high %v3052, %v3062
        %v3255 = vunpack.c.l.s4 1983009808
        %v3256 = vunpack.c.0.s8 %v3255
        %v3257 = vlaneseq
        %v3258 = vshrl.u32 %v3257, 7
        %v3259 = vsub.s32 %v3256, %v3258
        %v3260 = vrot.slane %v3252, %v3259
        %v3262 = vunpack.c.l.s4 1983009808
        %v3263 = vunpack.c.0.s8 %v3262
        %v3264 = vlaneseq
        %v3265 = vshrl.u32 %v3264, 7
        %v3266 = vsub.s32 %v3263, %v3265
        %v3267 = vrot.slane %v3253, %v3266
        %v3268 = vcombine.low %v3057, %v3067
        %v3269 = vcombine.high %v3057, %v3067
        %v3271 = vunpack.c.l.s4 1983009808
        %v3272 = vunpack.c.0.s8 %v3271
        %v3273 = vlaneseq
        %v3274 = vshrl.u32 %v3273, 7
        %v3275 = vsub.s32 %v3272, %v3274
        %v3276 = vrot.slane %v3268, %v3275
        %v3278 = vunpack.c.l.s4 1983009808
        %v3279 = vunpack.c.0.s8 %v3278
        %v3280 = vlaneseq
        %v3281 = vshrl.u32 %v3280, 7
        %v3282 = vsub.s32 %v3279, %v3281
        %v3283 = vrot.slane %v3269, %v3282
        %v3284 = vcombine.low %v3228, %v3244
        %v3285 = vcombine.high %v3228, %v3244
        %v3287 = vunpack.c.l.s4 1934713408
        %v3288 = vunpack.c.0.s8 %v3287
        %v3289 = vlaneseq
        %v3290 = vshrl.u32 %v3289, 7
        %v3291 = vsub.s32 %v3288, %v3290
        %v3292 = vrot.slane %v3284, %v3291
        %v3294 = vunpack.c.l.s4 1934713408
        %v3295 = vunpack.c.0.s8 %v3294
        %v3296 = vlaneseq
        %v3297 = vshrl.u32 %v3296, 7
        %v3298 = vsub.s32 %v3295, %v3297
        %v3299 = vrot.slane %v3285, %v3298
        %v3300 = vcombine.low %v3235, %v3251
        %v3301 = vcombine.high %v3235, %v3251
        %v3303 = vunpack.c.l.s4 1934713408
        %v3304 = vunpack.c.0.s8 %v3303
        %v3305 = vlaneseq
        %v3306 = vshrl.u32 %v3305, 7
        %v3307 = vsub.s32 %v3304, %v3306
        %v3308 = vrot.slane %v3300, %v3307
        %v3310 = vunpack.c.l.s4 1934713408
        %v3311 = vunpack.c.0.s8 %v3310
        %v3312 = vlaneseq
        %v3313 = vshrl.u32 %v3312, 7
        %v3314 = vsub.s32 %v3311, %v3313
        %v3315 = vrot.slane %v3301, %v3314
        %v3316 = vcombine.low %v3260, %v3276
        %v3317 = vcombine.high %v3260, %v3276
        %v3319 = vunpack.c.l.s4 1934713408
        %v3320 = vunpack.c.0.s8 %v3319
        %v3321 = vlaneseq
        %v3322 = vshrl.u32 %v3321, 7
        %v3323 = vsub.s32 %v3320, %v3322
        %v3324 = vrot.slane %v3316, %v3323
        %v3326 = vunpack.c.l.s4 1934713408
        %v3327 = vunpack.c.0.s8 %v3326
        %v3328 = vlaneseq
        %v3329 = vshrl.u32 %v3328, 7
        %v3330 = vsub.s32 %v3327, %v3329
        %v3331 = vrot.slane %v3317, %v3330
        %v3332 = vcombine.low %v3267, %v3283
        %v3333 = vcombine.high %v3267, %v3283
        %v3335 = vunpack.c.l.s4 1934713408
        %v3336 = vunpack.c.0.s8 %v3335
        %v3337 = vlaneseq
        %v3338 = vshrl.u32 %v3337, 7
        %v3339 = vsub.s32 %v3336, %v3338
        %v3340 = vrot.slane %v3332, %v3339
        %v3342 = vunpack.c.l.s4 1934713408
        %v3343 = vunpack.c.0.s8 %v3342
        %v3344 = vlaneseq
        %v3345 = vshrl.u32 %v3344, 7
        %v3346 = vsub.s32 %v3343, %v3345
        %v3347 = vrot.slane %v3333, %v3346
        %v3348 = vcombine.low %v3292, %v3324
        %v3349 = vcombine.high %v3292, %v3324
        %v3350 = vcombine.low %v3299, %v3331
        %v3351 = vcombine.high %v3299, %v3331
        %v3352 = vcombine.low %v3308, %v3340
        %v3353 = vcombine.high %v3308, %v3340
        %v3354 = vcombine.low %v3315, %v3347
        %v3355 = vcombine.high %v3315, %v3347
        %3357 = vrot.lane.b32.xlu0 %v3213, 16
        %v3358 = vpop.permute.xlu0 %3357
        %3361 = vrot.lane.b32.xlu0 %v3214, 32
        %v3362 = vpop.permute.xlu0 %3361
        %3365 = vrot.lane.b32.xlu0 %v3215, 48
        %v3366 = vpop.permute.xlu0 %3365
        %3369 = vrot.lane.b32.xlu0 %v3216, 64
        %v3370 = vpop.permute.xlu0 %3369
        %3373 = vrot.lane.b32.xlu0 %v3217, 80
        %v3374 = vpop.permute.xlu0 %3373
        %3377 = vrot.lane.b32.xlu0 %v3218, 96
        %v3378 = vpop.permute.xlu0 %3377
        %3381 = vrot.lane.b32.xlu0 %v3219, 112
        %v3382 = vpop.permute.xlu0 %3381
        %3385 = vrot.lane.b32.xlu0 %v3349, 16
        %v3386 = vpop.permute.xlu0 %3385
        %3389 = vrot.lane.b32.xlu0 %v3350, 32
        %v3390 = vpop.permute.xlu0 %3389
        %3393 = vrot.lane.b32.xlu0 %v3351, 48
        %v3394 = vpop.permute.xlu0 %3393
        %3397 = vrot.lane.b32.xlu0 %v3352, 64
        %v3398 = vpop.permute.xlu0 %3397
        %3401 = vrot.lane.b32.xlu0 %v3353, 80
        %v3402 = vpop.permute.xlu0 %3401
        %3405 = vrot.lane.b32.xlu0 %v3354, 96
        %v3406 = vpop.permute.xlu0 %3405
        %3409 = vrot.lane.b32.xlu0 %v3355, 112
        %v3410 = vpop.permute.xlu0 %3409
        %v3412 = vsel %vm684, %v3212, %v3358
        %v3413 = vsel %vm686, %v3412, %v3362
        %v3414 = vsel %vm688, %v3413, %v3366
        %v3415 = vsel %vm690, %v3414, %v3370
        %v3416 = vsel %vm692, %v3415, %v3374
        %v3417 = vsel %vm694, %v3416, %v3378
        %v3418 = vsel %vm696, %v3417, %v3382
        %v3419 = vsel %vm684, %v3348, %v3386
        %v3420 = vsel %vm686, %v3419, %v3390
        %v3421 = vsel %vm688, %v3420, %v3394
        %v3422 = vsel %vm690, %v3421, %v3398
        %v3423 = vsel %vm692, %v3422, %v3402
        %v3424 = vsel %vm694, %v3423, %v3406
        %v3425 = vsel %vm696, %v3424, %v3410
        %s3426 = scalar_lea.vmem %s1, 24
        %v3427 = vld [vmem:[%s3426] sm:$0xf]
        %v3428 = vpack.c.bf16 %v3427, %v3427
        %v3429 = vpack.c.bf16 %v3418, %v3418
        %v3430 = vpack.c.bf16 %v3425, %v3425
        %v3432 = vsel %vm1120, %v3428, 0
        %v3435 = vsel %vm1124, %v3429, 0
        %v3438 = vsel %vm1124, %v3430, 0
        %3440 = vmatprep.subr.bf16.mxu0 0
        %3441 = vmatpush1.bf16.msra.mxu0 0
        %3442 = vmatprep.subr.bf16.mxu0 0
        %3443 = vmatpush1.bf16.msra.mxu0 0
        %3444 = vmatprep.subr.bf16.mxu0 0
        %3445 = vmatpush1.bf16.msra.mxu0 0
        %3446 = vmatprep.subr.bf16.mxu0 0
        %3447 = vmatpush1.bf16.msra.mxu0 0
        %3448 = vmatprep.subr.bf16.mxu0 0
        %3449 = vmatpush1.bf16.msra.mxu0 0
        %3450 = vmatprep.subr.bf16.mxu0 0
        %3451 = vmatpush1.bf16.msra.mxu0 0
        %3452 = vmatprep.subr.bf16.mxu0 0
        %3453 = vmatpush1.bf16.msra.mxu0 0
        %3454 = vmatprep.subr.bf16.mxu0 %v3438
        %3455 = vmatpush1.bf16.msra.mxu0 %v3435
        %3456 = vmatprep.subr.bf16.mxu0 0
        %3457 = vmatpush2.bf16.msra.mxu0 0
        %3458 = vmatprep.subr.bf16.mxu0 0
        %3459 = vmatpush2.bf16.msra.mxu0 0
        %3460 = vmatprep.subr.bf16.mxu0 0
        %3461 = vmatpush2.bf16.msra.mxu0 0
        %3462 = vmatprep.subr.bf16.mxu0 0
        %3463 = vmatpush2.bf16.msra.mxu0 0
        %3464 = vmatprep.subr.bf16.mxu0 0
        %3465 = vmatpush2.bf16.msra.mxu0 0
        %3466 = vmatprep.subr.bf16.mxu0 0
        %3467 = vmatpush2.bf16.msra.mxu0 0
        %3468 = vmatprep.subr.bf16.mxu0 0
        %3469 = vmatpush2.bf16.msra.mxu0 0
        %3470 = vmatprep.subr.bf16.mxu0 0
        %3471 = vmatpush2.bf16.msra.mxu0 0
        %3472 = vmatprep.mubr.bf16.mxu0 0
        %3473 = vmatmul.mubr.bf16.gmra.mxu0 %v3432
        %v3474 = vpop.f32.mrf.mxu0
        %v3475 = vadd.f32 0.0, %v3474
        %v3476 = vpop.f32.mrf.mxu0
        %v3477 = vadd.f32 0.0, %v3476
        %v3478 = vpop.f32.mrf.mxu0
        %v3479 = vpop.f32.mrf.mxu0
        %3480 = vdwg.mxu0
        %v3481 = vadd.f32 %v3025, %v3475
        %v3482 = vadd.f32 %v3026, %v3477
        %3483 = vrot.lane.b32.xlu0 %v3030, 127
        %v3484 = vpop.permute.xlu0 %3483
        %3485 = vrot.lane.b32.xlu0 %v3032, 127
        %v3486 = vpop.permute.xlu0 %3485
        %3487 = vrot.lane.b32.xlu0 %v3035, 127
        %v3488 = vpop.permute.xlu0 %3487
        %3489 = vrot.lane.b32.xlu0 %v3037, 127
        %v3490 = vpop.permute.xlu0 %3489
        %3491 = vrot.lane.b32.xlu0 %v3040, 127
        %v3492 = vpop.permute.xlu0 %3491
        %3493 = vrot.lane.b32.xlu0 %v3042, 127
        %v3494 = vpop.permute.xlu0 %3493
        %3495 = vrot.lane.b32.xlu0 %v3045, 127
        %v3496 = vpop.permute.xlu0 %3495
        %3497 = vrot.lane.b32.xlu0 %v3047, 127
        %v3498 = vpop.permute.xlu0 %3497
        %3499 = vrot.lane.b32.xlu0 %v3050, 127
        %v3500 = vpop.permute.xlu0 %3499
        %3501 = vrot.lane.b32.xlu0 %v3052, 127
        %v3502 = vpop.permute.xlu0 %3501
        %3503 = vrot.lane.b32.xlu0 %v3055, 127
        %v3504 = vpop.permute.xlu0 %3503
        %3505 = vrot.lane.b32.xlu0 %v3057, 127
        %v3506 = vpop.permute.xlu0 %3505
        %3507 = vrot.lane.b32.xlu0 %v3060, 127
        %v3508 = vpop.permute.xlu0 %3507
        %3509 = vrot.lane.b32.xlu0 %v3062, 127
        %v3510 = vpop.permute.xlu0 %3509
        %3511 = vrot.lane.b32.xlu0 %v3065, 127
        %v3512 = vpop.permute.xlu0 %3511
        %3513 = vrot.lane.b32.xlu0 %v3067, 127
        %v3514 = vpop.permute.xlu0 %3513
        %v3531 = vcombine.low %v3484, %v3492
        %v3532 = vcombine.high %v3484, %v3492
        %v3534 = vunpack.c.l.s4 1983009808
        %v3535 = vunpack.c.0.s8 %v3534
        %v3536 = vlaneseq
        %v3537 = vshrl.u32 %v3536, 7
        %v3538 = vsub.s32 %v3535, %v3537
        %v3539 = vrot.slane %v3531, %v3538
        %v3541 = vunpack.c.l.s4 1983009808
        %v3542 = vunpack.c.0.s8 %v3541
        %v3543 = vlaneseq
        %v3544 = vshrl.u32 %v3543, 7
        %v3545 = vsub.s32 %v3542, %v3544
        %v3546 = vrot.slane %v3532, %v3545
        %v3547 = vcombine.low %v3488, %v3496
        %v3548 = vcombine.high %v3488, %v3496
        %v3550 = vunpack.c.l.s4 1983009808
        %v3551 = vunpack.c.0.s8 %v3550
        %v3552 = vlaneseq
        %v3553 = vshrl.u32 %v3552, 7
        %v3554 = vsub.s32 %v3551, %v3553
        %v3555 = vrot.slane %v3547, %v3554
        %v3557 = vunpack.c.l.s4 1983009808
        %v3558 = vunpack.c.0.s8 %v3557
        %v3559 = vlaneseq
        %v3560 = vshrl.u32 %v3559, 7
        %v3561 = vsub.s32 %v3558, %v3560
        %v3562 = vrot.slane %v3548, %v3561
        %v3563 = vcombine.low %v3500, %v3508
        %v3564 = vcombine.high %v3500, %v3508
        %v3566 = vunpack.c.l.s4 1983009808
        %v3567 = vunpack.c.0.s8 %v3566
        %v3568 = vlaneseq
        %v3569 = vshrl.u32 %v3568, 7
        %v3570 = vsub.s32 %v3567, %v3569
        %v3571 = vrot.slane %v3563, %v3570
        %v3573 = vunpack.c.l.s4 1983009808
        %v3574 = vunpack.c.0.s8 %v3573
        %v3575 = vlaneseq
        %v3576 = vshrl.u32 %v3575, 7
        %v3577 = vsub.s32 %v3574, %v3576
        %v3578 = vrot.slane %v3564, %v3577
        %v3579 = vcombine.low %v3504, %v3512
        %v3580 = vcombine.high %v3504, %v3512
        %v3582 = vunpack.c.l.s4 1983009808
        %v3583 = vunpack.c.0.s8 %v3582
        %v3584 = vlaneseq
        %v3585 = vshrl.u32 %v3584, 7
        %v3586 = vsub.s32 %v3583, %v3585
        %v3587 = vrot.slane %v3579, %v3586
        %v3589 = vunpack.c.l.s4 1983009808
        %v3590 = vunpack.c.0.s8 %v3589
        %v3591 = vlaneseq
        %v3592 = vshrl.u32 %v3591, 7
        %v3593 = vsub.s32 %v3590, %v3592
        %v3594 = vrot.slane %v3580, %v3593
        %v3595 = vcombine.low %v3539, %v3555
        %v3596 = vcombine.high %v3539, %v3555
        %v3598 = vunpack.c.l.s4 1934713408
        %v3599 = vunpack.c.0.s8 %v3598
        %v3600 = vlaneseq
        %v3601 = vshrl.u32 %v3600, 7
        %v3602 = vsub.s32 %v3599, %v3601
        %v3603 = vrot.slane %v3595, %v3602
        %v3605 = vunpack.c.l.s4 1934713408
        %v3606 = vunpack.c.0.s8 %v3605
        %v3607 = vlaneseq
        %v3608 = vshrl.u32 %v3607, 7
        %v3609 = vsub.s32 %v3606, %v3608
        %v3610 = vrot.slane %v3596, %v3609
        %v3611 = vcombine.low %v3546, %v3562
        %v3612 = vcombine.high %v3546, %v3562
        %v3614 = vunpack.c.l.s4 1934713408
        %v3615 = vunpack.c.0.s8 %v3614
        %v3616 = vlaneseq
        %v3617 = vshrl.u32 %v3616, 7
        %v3618 = vsub.s32 %v3615, %v3617
        %v3619 = vrot.slane %v3611, %v3618
        %v3621 = vunpack.c.l.s4 1934713408
        %v3622 = vunpack.c.0.s8 %v3621
        %v3623 = vlaneseq
        %v3624 = vshrl.u32 %v3623, 7
        %v3625 = vsub.s32 %v3622, %v3624
        %v3626 = vrot.slane %v3612, %v3625
        %v3627 = vcombine.low %v3571, %v3587
        %v3628 = vcombine.high %v3571, %v3587
        %v3630 = vunpack.c.l.s4 1934713408
        %v3631 = vunpack.c.0.s8 %v3630
        %v3632 = vlaneseq
        %v3633 = vshrl.u32 %v3632, 7
        %v3634 = vsub.s32 %v3631, %v3633
        %v3635 = vrot.slane %v3627, %v3634
        %v3637 = vunpack.c.l.s4 1934713408
        %v3638 = vunpack.c.0.s8 %v3637
        %v3639 = vlaneseq
        %v3640 = vshrl.u32 %v3639, 7
        %v3641 = vsub.s32 %v3638, %v3640
        %v3642 = vrot.slane %v3628, %v3641
        %v3643 = vcombine.low %v3578, %v3594
        %v3644 = vcombine.high %v3578, %v3594
        %v3646 = vunpack.c.l.s4 1934713408
        %v3647 = vunpack.c.0.s8 %v3646
        %v3648 = vlaneseq
        %v3649 = vshrl.u32 %v3648, 7
        %v3650 = vsub.s32 %v3647, %v3649
        %v3651 = vrot.slane %v3643, %v3650
        %v3653 = vunpack.c.l.s4 1934713408
        %v3654 = vunpack.c.0.s8 %v3653
        %v3655 = vlaneseq
        %v3656 = vshrl.u32 %v3655, 7
        %v3657 = vsub.s32 %v3654, %v3656
        %v3658 = vrot.slane %v3644, %v3657
        %v3659 = vcombine.low %v3603, %v3635
        %v3660 = vcombine.high %v3603, %v3635
        %v3661 = vcombine.low %v3610, %v3642
        %v3662 = vcombine.high %v3610, %v3642
        %v3663 = vcombine.low %v3619, %v3651
        %v3664 = vcombine.high %v3619, %v3651
        %v3665 = vcombine.low %v3626, %v3658
        %v3666 = vcombine.high %v3626, %v3658
        %v3667 = vcombine.low %v3486, %v3494
        %v3668 = vcombine.high %v3486, %v3494
        %v3670 = vunpack.c.l.s4 1983009808
        %v3671 = vunpack.c.0.s8 %v3670
        %v3672 = vlaneseq
        %v3673 = vshrl.u32 %v3672, 7
        %v3674 = vsub.s32 %v3671, %v3673
        %v3675 = vrot.slane %v3667, %v3674
        %v3677 = vunpack.c.l.s4 1983009808
        %v3678 = vunpack.c.0.s8 %v3677
        %v3679 = vlaneseq
        %v3680 = vshrl.u32 %v3679, 7
        %v3681 = vsub.s32 %v3678, %v3680
        %v3682 = vrot.slane %v3668, %v3681
        %v3683 = vcombine.low %v3490, %v3498
        %v3684 = vcombine.high %v3490, %v3498
        %v3686 = vunpack.c.l.s4 1983009808
        %v3687 = vunpack.c.0.s8 %v3686
        %v3688 = vlaneseq
        %v3689 = vshrl.u32 %v3688, 7
        %v3690 = vsub.s32 %v3687, %v3689
        %v3691 = vrot.slane %v3683, %v3690
        %v3693 = vunpack.c.l.s4 1983009808
        %v3694 = vunpack.c.0.s8 %v3693
        %v3695 = vlaneseq
        %v3696 = vshrl.u32 %v3695, 7
        %v3697 = vsub.s32 %v3694, %v3696
        %v3698 = vrot.slane %v3684, %v3697
        %v3699 = vcombine.low %v3502, %v3510
        %v3700 = vcombine.high %v3502, %v3510
        %v3702 = vunpack.c.l.s4 1983009808
        %v3703 = vunpack.c.0.s8 %v3702
        %v3704 = vlaneseq
        %v3705 = vshrl.u32 %v3704, 7
        %v3706 = vsub.s32 %v3703, %v3705
        %v3707 = vrot.slane %v3699, %v3706
        %v3709 = vunpack.c.l.s4 1983009808
        %v3710 = vunpack.c.0.s8 %v3709
        %v3711 = vlaneseq
        %v3712 = vshrl.u32 %v3711, 7
        %v3713 = vsub.s32 %v3710, %v3712
        %v3714 = vrot.slane %v3700, %v3713
        %v3715 = vcombine.low %v3506, %v3514
        %v3716 = vcombine.high %v3506, %v3514
        %v3718 = vunpack.c.l.s4 1983009808
        %v3719 = vunpack.c.0.s8 %v3718
        %v3720 = vlaneseq
        %v3721 = vshrl.u32 %v3720, 7
        %v3722 = vsub.s32 %v3719, %v3721
        %v3723 = vrot.slane %v3715, %v3722
        %v3725 = vunpack.c.l.s4 1983009808
        %v3726 = vunpack.c.0.s8 %v3725
        %v3727 = vlaneseq
        %v3728 = vshrl.u32 %v3727, 7
        %v3729 = vsub.s32 %v3726, %v3728
        %v3730 = vrot.slane %v3716, %v3729
        %v3731 = vcombine.low %v3675, %v3691
        %v3732 = vcombine.high %v3675, %v3691
        %v3734 = vunpack.c.l.s4 1934713408
        %v3735 = vunpack.c.0.s8 %v3734
        %v3736 = vlaneseq
        %v3737 = vshrl.u32 %v3736, 7
        %v3738 = vsub.s32 %v3735, %v3737
        %v3739 = vrot.slane %v3731, %v3738
        %v3741 = vunpack.c.l.s4 1934713408
        %v3742 = vunpack.c.0.s8 %v3741
        %v3743 = vlaneseq
        %v3744 = vshrl.u32 %v3743, 7
        %v3745 = vsub.s32 %v3742, %v3744
        %v3746 = vrot.slane %v3732, %v3745
        %v3747 = vcombine.low %v3682, %v3698
        %v3748 = vcombine.high %v3682, %v3698
        %v3750 = vunpack.c.l.s4 1934713408
        %v3751 = vunpack.c.0.s8 %v3750
        %v3752 = vlaneseq
        %v3753 = vshrl.u32 %v3752, 7
        %v3754 = vsub.s32 %v3751, %v3753
        %v3755 = vrot.slane %v3747, %v3754
        %v3757 = vunpack.c.l.s4 1934713408
        %v3758 = vunpack.c.0.s8 %v3757
        %v3759 = vlaneseq
        %v3760 = vshrl.u32 %v3759, 7
        %v3761 = vsub.s32 %v3758, %v3760
        %v3762 = vrot.slane %v3748, %v3761
        %v3763 = vcombine.low %v3707, %v3723
        %v3764 = vcombine.high %v3707, %v3723
        %v3766 = vunpack.c.l.s4 1934713408
        %v3767 = vunpack.c.0.s8 %v3766
        %v3768 = vlaneseq
        %v3769 = vshrl.u32 %v3768, 7
        %v3770 = vsub.s32 %v3767, %v3769
        %v3771 = vrot.slane %v3763, %v3770
        %v3773 = vunpack.c.l.s4 1934713408
        %v3774 = vunpack.c.0.s8 %v3773
        %v3775 = vlaneseq
        %v3776 = vshrl.u32 %v3775, 7
        %v3777 = vsub.s32 %v3774, %v3776
        %v3778 = vrot.slane %v3764, %v3777
        %v3779 = vcombine.low %v3714, %v3730
        %v3780 = vcombine.high %v3714, %v3730
        %v3782 = vunpack.c.l.s4 1934713408
        %v3783 = vunpack.c.0.s8 %v3782
        %v3784 = vlaneseq
        %v3785 = vshrl.u32 %v3784, 7
        %v3786 = vsub.s32 %v3783, %v3785
        %v3787 = vrot.slane %v3779, %v3786
        %v3789 = vunpack.c.l.s4 1934713408
        %v3790 = vunpack.c.0.s8 %v3789
        %v3791 = vlaneseq
        %v3792 = vshrl.u32 %v3791, 7
        %v3793 = vsub.s32 %v3790, %v3792
        %v3794 = vrot.slane %v3780, %v3793
        %v3795 = vcombine.low %v3739, %v3771
        %v3796 = vcombine.high %v3739, %v3771
        %v3797 = vcombine.low %v3746, %v3778
        %v3798 = vcombine.high %v3746, %v3778
        %v3799 = vcombine.low %v3755, %v3787
        %v3800 = vcombine.high %v3755, %v3787
        %v3801 = vcombine.low %v3762, %v3794
        %v3802 = vcombine.high %v3762, %v3794
        %3804 = vrot.lane.b32.xlu0 %v3660, 16
        %v3805 = vpop.permute.xlu0 %3804
        %3808 = vrot.lane.b32.xlu0 %v3661, 32
        %v3809 = vpop.permute.xlu0 %3808
        %3812 = vrot.lane.b32.xlu0 %v3662, 48
        %v3813 = vpop.permute.xlu0 %3812
        %3816 = vrot.lane.b32.xlu0 %v3663, 64
        %v3817 = vpop.permute.xlu0 %3816
        %3820 = vrot.lane.b32.xlu0 %v3664, 80
        %v3821 = vpop.permute.xlu0 %3820
        %3824 = vrot.lane.b32.xlu0 %v3665, 96
        %v3825 = vpop.permute.xlu0 %3824
        %3828 = vrot.lane.b32.xlu0 %v3666, 112
        %v3829 = vpop.permute.xlu0 %3828
        %3832 = vrot.lane.b32.xlu0 %v3796, 16
        %v3833 = vpop.permute.xlu0 %3832
        %3836 = vrot.lane.b32.xlu0 %v3797, 32
        %v3837 = vpop.permute.xlu0 %3836
        %3840 = vrot.lane.b32.xlu0 %v3798, 48
        %v3841 = vpop.permute.xlu0 %3840
        %3844 = vrot.lane.b32.xlu0 %v3799, 64
        %v3845 = vpop.permute.xlu0 %3844
        %3848 = vrot.lane.b32.xlu0 %v3800, 80
        %v3849 = vpop.permute.xlu0 %3848
        %3852 = vrot.lane.b32.xlu0 %v3801, 96
        %v3853 = vpop.permute.xlu0 %3852
        %3856 = vrot.lane.b32.xlu0 %v3802, 112
        %v3857 = vpop.permute.xlu0 %3856
        %v3859 = vsel %vm684, %v3659, %v3805
        %v3860 = vsel %vm686, %v3859, %v3809
        %v3861 = vsel %vm688, %v3860, %v3813
        %v3862 = vsel %vm690, %v3861, %v3817
        %v3863 = vsel %vm692, %v3862, %v3821
        %v3864 = vsel %vm694, %v3863, %v3825
        %v3865 = vsel %vm696, %v3864, %v3829
        %v3866 = vsel %vm684, %v3795, %v3833
        %v3867 = vsel %vm686, %v3866, %v3837
        %v3868 = vsel %vm688, %v3867, %v3841
        %v3869 = vsel %vm690, %v3868, %v3845
        %v3870 = vsel %vm692, %v3869, %v3849
        %v3871 = vsel %vm694, %v3870, %v3853
        %v3872 = vsel %vm696, %v3871, %v3857
        %s3873 = scalar_lea.vmem %s1, 28
        %v3874 = vld [vmem:[%s3873] sm:$0xf]
        %v3875 = vpack.c.bf16 %v3874, %v3874
        %v3876 = vpack.c.bf16 %v3865, %v3865
        %v3877 = vpack.c.bf16 %v3872, %v3872
        %v3879 = vsel %vm1120, %v3875, 0
        %v3882 = vsel %vm1124, %v3876, 0
        %v3885 = vsel %vm1124, %v3877, 0
        %3887 = vmatprep.subr.bf16.mxu0 0
        %3888 = vmatpush1.bf16.msra.mxu0 0
        %3889 = vmatprep.subr.bf16.mxu0 0
        %3890 = vmatpush1.bf16.msra.mxu0 0
        %3891 = vmatprep.subr.bf16.mxu0 0
        %3892 = vmatpush1.bf16.msra.mxu0 0
        %3893 = vmatprep.subr.bf16.mxu0 0
        %3894 = vmatpush1.bf16.msra.mxu0 0
        %3895 = vmatprep.subr.bf16.mxu0 0
        %3896 = vmatpush1.bf16.msra.mxu0 0
        %3897 = vmatprep.subr.bf16.mxu0 0
        %3898 = vmatpush1.bf16.msra.mxu0 0
        %3899 = vmatprep.subr.bf16.mxu0 0
        %3900 = vmatpush1.bf16.msra.mxu0 0
        %3901 = vmatprep.subr.bf16.mxu0 %v3885
        %3902 = vmatpush1.bf16.msra.mxu0 %v3882
        %3903 = vmatprep.subr.bf16.mxu0 0
        %3904 = vmatpush2.bf16.msra.mxu0 0
        %3905 = vmatprep.subr.bf16.mxu0 0
        %3906 = vmatpush2.bf16.msra.mxu0 0
        %3907 = vmatprep.subr.bf16.mxu0 0
        %3908 = vmatpush2.bf16.msra.mxu0 0
        %3909 = vmatprep.subr.bf16.mxu0 0
        %3910 = vmatpush2.bf16.msra.mxu0 0
        %3911 = vmatprep.subr.bf16.mxu0 0
        %3912 = vmatpush2.bf16.msra.mxu0 0
        %3913 = vmatprep.subr.bf16.mxu0 0
        %3914 = vmatpush2.bf16.msra.mxu0 0
        %3915 = vmatprep.subr.bf16.mxu0 0
        %3916 = vmatpush2.bf16.msra.mxu0 0
        %3917 = vmatprep.subr.bf16.mxu0 0
        %3918 = vmatpush2.bf16.msra.mxu0 0
        %3919 = vmatprep.mubr.bf16.mxu0 0
        %3920 = vmatmul.mubr.bf16.gmra.mxu0 %v3879
        %v3921 = vpop.f32.mrf.mxu0
        %v3922 = vadd.f32 0.0, %v3921
        %v3923 = vpop.f32.mrf.mxu0
        %v3924 = vadd.f32 0.0, %v3923
        %v3925 = vpop.f32.mrf.mxu0
        %v3926 = vpop.f32.mrf.mxu0
        %3927 = vdwg.mxu0
        %v3928 = vadd.f32 %v3481, %v3922
        %v3929 = vadd.f32 %v3482, %v3924
        %3930 = vrot.lane.b32.xlu0 %v3030, 126
        %v3931 = vpop.permute.xlu0 %3930
        %3932 = vrot.lane.b32.xlu0 %v3032, 126
        %v3933 = vpop.permute.xlu0 %3932
        %3934 = vrot.lane.b32.xlu0 %v3035, 126
        %v3935 = vpop.permute.xlu0 %3934
        %3936 = vrot.lane.b32.xlu0 %v3037, 126
        %v3937 = vpop.permute.xlu0 %3936
        %3938 = vrot.lane.b32.xlu0 %v3040, 126
        %v3939 = vpop.permute.xlu0 %3938
        %3940 = vrot.lane.b32.xlu0 %v3042, 126
        %v3941 = vpop.permute.xlu0 %3940
        %3942 = vrot.lane.b32.xlu0 %v3045, 126
        %v3943 = vpop.permute.xlu0 %3942
        %3944 = vrot.lane.b32.xlu0 %v3047, 126
        %v3945 = vpop.permute.xlu0 %3944
        %3946 = vrot.lane.b32.xlu0 %v3050, 126
        %v3947 = vpop.permute.xlu0 %3946
        %3948 = vrot.lane.b32.xlu0 %v3052, 126
        %v3949 = vpop.permute.xlu0 %3948
        %3950 = vrot.lane.b32.xlu0 %v3055, 126
        %v3951 = vpop.permute.xlu0 %3950
        %3952 = vrot.lane.b32.xlu0 %v3057, 126
        %v3953 = vpop.permute.xlu0 %3952
        %3954 = vrot.lane.b32.xlu0 %v3060, 126
        %v3955 = vpop.permute.xlu0 %3954
        %3956 = vrot.lane.b32.xlu0 %v3062, 126
        %v3957 = vpop.permute.xlu0 %3956
        %3958 = vrot.lane.b32.xlu0 %v3065, 126
        %v3959 = vpop.permute.xlu0 %3958
        %3960 = vrot.lane.b32.xlu0 %v3067, 126
        %v3961 = vpop.permute.xlu0 %3960
        %v3978 = vcombine.low %v3931, %v3939
        %v3979 = vcombine.high %v3931, %v3939
        %v3981 = vunpack.c.l.s4 1983009808
        %v3982 = vunpack.c.0.s8 %v3981
        %v3983 = vlaneseq
        %v3984 = vshrl.u32 %v3983, 7
        %v3985 = vsub.s32 %v3982, %v3984
        %v3986 = vrot.slane %v3978, %v3985
        %v3988 = vunpack.c.l.s4 1983009808
        %v3989 = vunpack.c.0.s8 %v3988
        %v3990 = vlaneseq
        %v3991 = vshrl.u32 %v3990, 7
        %v3992 = vsub.s32 %v3989, %v3991
        %v3993 = vrot.slane %v3979, %v3992
        %v3994 = vcombine.low %v3935, %v3943
        %v3995 = vcombine.high %v3935, %v3943
        %v3997 = vunpack.c.l.s4 1983009808
        %v3998 = vunpack.c.0.s8 %v3997
        %v3999 = vlaneseq
        %v4000 = vshrl.u32 %v3999, 7
        %v4001 = vsub.s32 %v3998, %v4000
        %v4002 = vrot.slane %v3994, %v4001
        %v4004 = vunpack.c.l.s4 1983009808
        %v4005 = vunpack.c.0.s8 %v4004
        %v4006 = vlaneseq
        %v4007 = vshrl.u32 %v4006, 7
        %v4008 = vsub.s32 %v4005, %v4007
        %v4009 = vrot.slane %v3995, %v4008
        %v4010 = vcombine.low %v3947, %v3955
        %v4011 = vcombine.high %v3947, %v3955
        %v4013 = vunpack.c.l.s4 1983009808
        %v4014 = vunpack.c.0.s8 %v4013
        %v4015 = vlaneseq
        %v4016 = vshrl.u32 %v4015, 7
        %v4017 = vsub.s32 %v4014, %v4016
        %v4018 = vrot.slane %v4010, %v4017
        %v4020 = vunpack.c.l.s4 1983009808
        %v4021 = vunpack.c.0.s8 %v4020
        %v4022 = vlaneseq
        %v4023 = vshrl.u32 %v4022, 7
        %v4024 = vsub.s32 %v4021, %v4023
        %v4025 = vrot.slane %v4011, %v4024
        %v4026 = vcombine.low %v3951, %v3959
        %v4027 = vcombine.high %v3951, %v3959
        %v4029 = vunpack.c.l.s4 1983009808
        %v4030 = vunpack.c.0.s8 %v4029
        %v4031 = vlaneseq
        %v4032 = vshrl.u32 %v4031, 7
        %v4033 = vsub.s32 %v4030, %v4032
        %v4034 = vrot.slane %v4026, %v4033
        %v4036 = vunpack.c.l.s4 1983009808
        %v4037 = vunpack.c.0.s8 %v4036
        %v4038 = vlaneseq
        %v4039 = vshrl.u32 %v4038, 7
        %v4040 = vsub.s32 %v4037, %v4039
        %v4041 = vrot.slane %v4027, %v4040
        %v4042 = vcombine.low %v3986, %v4002
        %v4043 = vcombine.high %v3986, %v4002
        %v4045 = vunpack.c.l.s4 1934713408
        %v4046 = vunpack.c.0.s8 %v4045
        %v4047 = vlaneseq
        %v4048 = vshrl.u32 %v4047, 7
        %v4049 = vsub.s32 %v4046, %v4048
        %v4050 = vrot.slane %v4042, %v4049
        %v4052 = vunpack.c.l.s4 1934713408
        %v4053 = vunpack.c.0.s8 %v4052
        %v4054 = vlaneseq
        %v4055 = vshrl.u32 %v4054, 7
        %v4056 = vsub.s32 %v4053, %v4055
        %v4057 = vrot.slane %v4043, %v4056
        %v4058 = vcombine.low %v3993, %v4009
        %v4059 = vcombine.high %v3993, %v4009
        %v4061 = vunpack.c.l.s4 1934713408
        %v4062 = vunpack.c.0.s8 %v4061
        %v4063 = vlaneseq
        %v4064 = vshrl.u32 %v4063, 7
        %v4065 = vsub.s32 %v4062, %v4064
        %v4066 = vrot.slane %v4058, %v4065
        %v4068 = vunpack.c.l.s4 1934713408
        %v4069 = vunpack.c.0.s8 %v4068
        %v4070 = vlaneseq
        %v4071 = vshrl.u32 %v4070, 7
        %v4072 = vsub.s32 %v4069, %v4071
        %v4073 = vrot.slane %v4059, %v4072
        %v4074 = vcombine.low %v4018, %v4034
        %v4075 = vcombine.high %v4018, %v4034
        %v4077 = vunpack.c.l.s4 1934713408
        %v4078 = vunpack.c.0.s8 %v4077
        %v4079 = vlaneseq
        %v4080 = vshrl.u32 %v4079, 7
        %v4081 = vsub.s32 %v4078, %v4080
        %v4082 = vrot.slane %v4074, %v4081
        %v4084 = vunpack.c.l.s4 1934713408
        %v4085 = vunpack.c.0.s8 %v4084
        %v4086 = vlaneseq
        %v4087 = vshrl.u32 %v4086, 7
        %v4088 = vsub.s32 %v4085, %v4087
        %v4089 = vrot.slane %v4075, %v4088
        %v4090 = vcombine.low %v4025, %v4041
        %v4091 = vcombine.high %v4025, %v4041
        %v4093 = vunpack.c.l.s4 1934713408
        %v4094 = vunpack.c.0.s8 %v4093
        %v4095 = vlaneseq
        %v4096 = vshrl.u32 %v4095, 7
        %v4097 = vsub.s32 %v4094, %v4096
        %v4098 = vrot.slane %v4090, %v4097
        %v4100 = vunpack.c.l.s4 1934713408
        %v4101 = vunpack.c.0.s8 %v4100
        %v4102 = vlaneseq
        %v4103 = vshrl.u32 %v4102, 7
        %v4104 = vsub.s32 %v4101, %v4103
        %v4105 = vrot.slane %v4091, %v4104
        %v4106 = vcombine.low %v4050, %v4082
        %v4107 = vcombine.high %v4050, %v4082
        %v4108 = vcombine.low %v4057, %v4089
        %v4109 = vcombine.high %v4057, %v4089
        %v4110 = vcombine.low %v4066, %v4098
        %v4111 = vcombine.high %v4066, %v4098
        %v4112 = vcombine.low %v4073, %v4105
        %v4113 = vcombine.high %v4073, %v4105
        %v4114 = vcombine.low %v3933, %v3941
        %v4115 = vcombine.high %v3933, %v3941
        %v4117 = vunpack.c.l.s4 1983009808
        %v4118 = vunpack.c.0.s8 %v4117
        %v4119 = vlaneseq
        %v4120 = vshrl.u32 %v4119, 7
        %v4121 = vsub.s32 %v4118, %v4120
        %v4122 = vrot.slane %v4114, %v4121
        %v4124 = vunpack.c.l.s4 1983009808
        %v4125 = vunpack.c.0.s8 %v4124
        %v4126 = vlaneseq
        %v4127 = vshrl.u32 %v4126, 7
        %v4128 = vsub.s32 %v4125, %v4127
        %v4129 = vrot.slane %v4115, %v4128
        %v4130 = vcombine.low %v3937, %v3945
        %v4131 = vcombine.high %v3937, %v3945
        %v4133 = vunpack.c.l.s4 1983009808
        %v4134 = vunpack.c.0.s8 %v4133
        %v4135 = vlaneseq
        %v4136 = vshrl.u32 %v4135, 7
        %v4137 = vsub.s32 %v4134, %v4136
        %v4138 = vrot.slane %v4130, %v4137
        %v4140 = vunpack.c.l.s4 1983009808
        %v4141 = vunpack.c.0.s8 %v4140
        %v4142 = vlaneseq
        %v4143 = vshrl.u32 %v4142, 7
        %v4144 = vsub.s32 %v4141, %v4143
        %v4145 = vrot.slane %v4131, %v4144
        %v4146 = vcombine.low %v3949, %v3957
        %v4147 = vcombine.high %v3949, %v3957
        %v4149 = vunpack.c.l.s4 1983009808
        %v4150 = vunpack.c.0.s8 %v4149
        %v4151 = vlaneseq
        %v4152 = vshrl.u32 %v4151, 7
        %v4153 = vsub.s32 %v4150, %v4152
        %v4154 = vrot.slane %v4146, %v4153
        %v4156 = vunpack.c.l.s4 1983009808
        %v4157 = vunpack.c.0.s8 %v4156
        %v4158 = vlaneseq
        %v4159 = vshrl.u32 %v4158, 7
        %v4160 = vsub.s32 %v4157, %v4159
        %v4161 = vrot.slane %v4147, %v4160
        %v4162 = vcombine.low %v3953, %v3961
        %v4163 = vcombine.high %v3953, %v3961
        %v4165 = vunpack.c.l.s4 1983009808
        %v4166 = vunpack.c.0.s8 %v4165
        %v4167 = vlaneseq
        %v4168 = vshrl.u32 %v4167, 7
        %v4169 = vsub.s32 %v4166, %v4168
        %v4170 = vrot.slane %v4162, %v4169
        %v4172 = vunpack.c.l.s4 1983009808
        %v4173 = vunpack.c.0.s8 %v4172
        %v4174 = vlaneseq
        %v4175 = vshrl.u32 %v4174, 7
        %v4176 = vsub.s32 %v4173, %v4175
        %v4177 = vrot.slane %v4163, %v4176
        %v4178 = vcombine.low %v4122, %v4138
        %v4179 = vcombine.high %v4122, %v4138
        %v4181 = vunpack.c.l.s4 1934713408
        %v4182 = vunpack.c.0.s8 %v4181
        %v4183 = vlaneseq
        %v4184 = vshrl.u32 %v4183, 7
        %v4185 = vsub.s32 %v4182, %v4184
        %v4186 = vrot.slane %v4178, %v4185
        %v4188 = vunpack.c.l.s4 1934713408
        %v4189 = vunpack.c.0.s8 %v4188
        %v4190 = vlaneseq
        %v4191 = vshrl.u32 %v4190, 7
        %v4192 = vsub.s32 %v4189, %v4191
        %v4193 = vrot.slane %v4179, %v4192
        %v4194 = vcombine.low %v4129, %v4145
        %v4195 = vcombine.high %v4129, %v4145
        %v4197 = vunpack.c.l.s4 1934713408
        %v4198 = vunpack.c.0.s8 %v4197
        %v4199 = vlaneseq
        %v4200 = vshrl.u32 %v4199, 7
        %v4201 = vsub.s32 %v4198, %v4200
        %v4202 = vrot.slane %v4194, %v4201
        %v4204 = vunpack.c.l.s4 1934713408
        %v4205 = vunpack.c.0.s8 %v4204
        %v4206 = vlaneseq
        %v4207 = vshrl.u32 %v4206, 7
        %v4208 = vsub.s32 %v4205, %v4207
        %v4209 = vrot.slane %v4195, %v4208
        %v4210 = vcombine.low %v4154, %v4170
        %v4211 = vcombine.high %v4154, %v4170
        %v4213 = vunpack.c.l.s4 1934713408
        %v4214 = vunpack.c.0.s8 %v4213
        %v4215 = vlaneseq
        %v4216 = vshrl.u32 %v4215, 7
        %v4217 = vsub.s32 %v4214, %v4216
        %v4218 = vrot.slane %v4210, %v4217
        %v4220 = vunpack.c.l.s4 1934713408
        %v4221 = vunpack.c.0.s8 %v4220
        %v4222 = vlaneseq
        %v4223 = vshrl.u32 %v4222, 7
        %v4224 = vsub.s32 %v4221, %v4223
        %v4225 = vrot.slane %v4211, %v4224
        %v4226 = vcombine.low %v4161, %v4177
        %v4227 = vcombine.high %v4161, %v4177
        %v4229 = vunpack.c.l.s4 1934713408
        %v4230 = vunpack.c.0.s8 %v4229
        %v4231 = vlaneseq
        %v4232 = vshrl.u32 %v4231, 7
        %v4233 = vsub.s32 %v4230, %v4232
        %v4234 = vrot.slane %v4226, %v4233
        %v4236 = vunpack.c.l.s4 1934713408
        %v4237 = vunpack.c.0.s8 %v4236
        %v4238 = vlaneseq
        %v4239 = vshrl.u32 %v4238, 7
        %v4240 = vsub.s32 %v4237, %v4239
        %v4241 = vrot.slane %v4227, %v4240
        %v4242 = vcombine.low %v4186, %v4218
        %v4243 = vcombine.high %v4186, %v4218
        %v4244 = vcombine.low %v4193, %v4225
        %v4245 = vcombine.high %v4193, %v4225
        %v4246 = vcombine.low %v4202, %v4234
        %v4247 = vcombine.high %v4202, %v4234
        %v4248 = vcombine.low %v4209, %v4241
        %v4249 = vcombine.high %v4209, %v4241
        %4251 = vrot.lane.b32.xlu0 %v4107, 16
        %v4252 = vpop.permute.xlu0 %4251
        %4255 = vrot.lane.b32.xlu0 %v4108, 32
        %v4256 = vpop.permute.xlu0 %4255
        %4259 = vrot.lane.b32.xlu0 %v4109, 48
        %v4260 = vpop.permute.xlu0 %4259
        %4263 = vrot.lane.b32.xlu0 %v4110, 64
        %v4264 = vpop.permute.xlu0 %4263
        %4267 = vrot.lane.b32.xlu0 %v4111, 80
        %v4268 = vpop.permute.xlu0 %4267
        %4271 = vrot.lane.b32.xlu0 %v4112, 96
        %v4272 = vpop.permute.xlu0 %4271
        %4275 = vrot.lane.b32.xlu0 %v4113, 112
        %v4276 = vpop.permute.xlu0 %4275
        %4279 = vrot.lane.b32.xlu0 %v4243, 16
        %v4280 = vpop.permute.xlu0 %4279
        %4283 = vrot.lane.b32.xlu0 %v4244, 32
        %v4284 = vpop.permute.xlu0 %4283
        %4287 = vrot.lane.b32.xlu0 %v4245, 48
        %v4288 = vpop.permute.xlu0 %4287
        %4291 = vrot.lane.b32.xlu0 %v4246, 64
        %v4292 = vpop.permute.xlu0 %4291
        %4295 = vrot.lane.b32.xlu0 %v4247, 80
        %v4296 = vpop.permute.xlu0 %4295
        %4299 = vrot.lane.b32.xlu0 %v4248, 96
        %v4300 = vpop.permute.xlu0 %4299
        %4303 = vrot.lane.b32.xlu0 %v4249, 112
        %v4304 = vpop.permute.xlu0 %4303
        %v4306 = vsel %vm684, %v4106, %v4252
        %v4307 = vsel %vm686, %v4306, %v4256
        %v4308 = vsel %vm688, %v4307, %v4260
        %v4309 = vsel %vm690, %v4308, %v4264
        %v4310 = vsel %vm692, %v4309, %v4268
        %v4311 = vsel %vm694, %v4310, %v4272
        %v4312 = vsel %vm696, %v4311, %v4276
        %v4313 = vsel %vm684, %v4242, %v4280
        %v4314 = vsel %vm686, %v4313, %v4284
        %v4315 = vsel %vm688, %v4314, %v4288
        %v4316 = vsel %vm690, %v4315, %v4292
        %v4317 = vsel %vm692, %v4316, %v4296
        %v4318 = vsel %vm694, %v4317, %v4300
        %v4319 = vsel %vm696, %v4318, %v4304
        %s4320 = scalar_lea.vmem %s1, 32
        %v4321 = vld [vmem:[%s4320] sm:$0xf]
        %v4322 = vpack.c.bf16 %v4321, %v4321
        %v4323 = vpack.c.bf16 %v4312, %v4312
        %v4324 = vpack.c.bf16 %v4319, %v4319
        %v4326 = vsel %vm1120, %v4322, 0
        %v4329 = vsel %vm1124, %v4323, 0
        %v4332 = vsel %vm1124, %v4324, 0
        %4334 = vmatprep.subr.bf16.mxu0 0
        %4335 = vmatpush1.bf16.msra.mxu0 0
        %4336 = vmatprep.subr.bf16.mxu0 0
        %4337 = vmatpush1.bf16.msra.mxu0 0
        %4338 = vmatprep.subr.bf16.mxu0 0
        %4339 = vmatpush1.bf16.msra.mxu0 0
        %4340 = vmatprep.subr.bf16.mxu0 0
        %4341 = vmatpush1.bf16.msra.mxu0 0
        %4342 = vmatprep.subr.bf16.mxu0 0
        %4343 = vmatpush1.bf16.msra.mxu0 0
        %4344 = vmatprep.subr.bf16.mxu0 0
        %4345 = vmatpush1.bf16.msra.mxu0 0
        %4346 = vmatprep.subr.bf16.mxu0 0
        %4347 = vmatpush1.bf16.msra.mxu0 0
        %4348 = vmatprep.subr.bf16.mxu0 %v4332
        %4349 = vmatpush1.bf16.msra.mxu0 %v4329
        %4350 = vmatprep.subr.bf16.mxu0 0
        %4351 = vmatpush2.bf16.msra.mxu0 0
        %4352 = vmatprep.subr.bf16.mxu0 0
        %4353 = vmatpush2.bf16.msra.mxu0 0
        %4354 = vmatprep.subr.bf16.mxu0 0
        %4355 = vmatpush2.bf16.msra.mxu0 0
        %4356 = vmatprep.subr.bf16.mxu0 0
        %4357 = vmatpush2.bf16.msra.mxu0 0
        %4358 = vmatprep.subr.bf16.mxu0 0
        %4359 = vmatpush2.bf16.msra.mxu0 0
        %4360 = vmatprep.subr.bf16.mxu0 0
        %4361 = vmatpush2.bf16.msra.mxu0 0
        %4362 = vmatprep.subr.bf16.mxu0 0
        %4363 = vmatpush2.bf16.msra.mxu0 0
        %4364 = vmatprep.subr.bf16.mxu0 0
        %4365 = vmatpush2.bf16.msra.mxu0 0
        %4366 = vmatprep.mubr.bf16.mxu0 0
        %4367 = vmatmul.mubr.bf16.gmra.mxu0 %v4326
        %v4368 = vpop.f32.mrf.mxu0
        %v4369 = vadd.f32 0.0, %v4368
        %v4370 = vpop.f32.mrf.mxu0
        %v4371 = vadd.f32 0.0, %v4370
        %v4372 = vpop.f32.mrf.mxu0
        %v4373 = vpop.f32.mrf.mxu0
        %4374 = vdwg.mxu0
        %v4375 = vadd.f32 %v3928, %v4369
        %v4376 = vadd.f32 %v3929, %v4371
        %v4377 = vld [vmem:[%s2] sm:$0xf]
        %4379 = vset.pattern.permute.xlu0 0
        %4380 = vperm.xlu0 %4379, %v4377
        %v4381 = vpop.permute.xlu0 %4380
        %v4383 = vmul.f32 %v4375, %v4381
        %v4384 = vmul.f32 %v4376, %v4381
        %v4385 = vld [vmem:[%s3] sm:$0xf]
        %4387 = vset.pattern.permute.xlu0 0
        %4388 = vperm.xlu0 %4387, %v4385
        %v4389 = vpop.permute.xlu0 %4388
        %v4391 = vadd.f32 %v4383, %v4389
        %v4392 = vadd.f32 %v4384, %v4389
        %v4393 = vmax.f32 %v4391, 0.0
        %v4394 = vmax.f32 %v4392, 0.0
        %vm4395 = vcmask 146432
        %4396 = vst.msk [vmem:[#allocation2] sm:$0xff] %vm4395, 0.0
        %4397 = vst.msk [vmem:[#allocation2 + $0x8] sm:$0xff] %vm4395, 0.0
        %vm4398 = vcmask 140288
        %4399 = vst.msk [vmem:[#allocation2 + $0x10] sm:$0x3] %vm4398, 0.0
        %4400 = vst.msk [vmem:[#allocation2 + $0x18] sm:$0xff] %vm4395, 0.0
        %4401 = vst.msk [vmem:[#allocation2 + $0x20] sm:$0xff] %vm4395, 0.0
        %4402 = vst.msk [vmem:[#allocation2 + $0x28] sm:$0x3] %vm4398, 0.0
        %4403 = vst.msk [vmem:[#allocation2 + $0x30] sm:$0xff] %vm4395, 0.0
        %4404 = vst.msk [vmem:[#allocation2 + $0x38] sm:$0xff] %vm4395, 0.0
        %4405 = vst.msk [vmem:[#allocation2 + $0x40] sm:$0x3] %vm4398, 0.0
        %4406 = vst.msk [vmem:[#allocation2 + $0x48] sm:$0xff] %vm4395, 0.0
        %4407 = vst.msk [vmem:[#allocation2 + $0x50] sm:$0xff] %vm4395, 0.0
        %4408 = vst.msk [vmem:[#allocation2 + $0x58] sm:$0x3] %vm4398, 0.0
        %4410 = vrot.lane.b32.xlu0 %v4393, 112
        %v4411 = vpop.permute.xlu0 %4410
        %4413 = vrot.lane.b32.xlu0 %v4393, 96
        %v4414 = vpop.permute.xlu0 %4413
        %4416 = vrot.lane.b32.xlu0 %v4393, 80
        %v4417 = vpop.permute.xlu0 %4416
        %4419 = vrot.lane.b32.xlu0 %v4393, 64
        %v4420 = vpop.permute.xlu0 %4419
        %4422 = vrot.lane.b32.xlu0 %v4393, 48
        %v4423 = vpop.permute.xlu0 %4422
        %4425 = vrot.lane.b32.xlu0 %v4393, 32
        %v4426 = vpop.permute.xlu0 %4425
        %4428 = vrot.lane.b32.xlu0 %v4393, 16
        %v4429 = vpop.permute.xlu0 %4428
        %4432 = vrot.lane.b32.xlu0 %v4394, 112
        %v4433 = vpop.permute.xlu0 %4432
        %4435 = vrot.lane.b32.xlu0 %v4394, 96
        %v4436 = vpop.permute.xlu0 %4435
        %4438 = vrot.lane.b32.xlu0 %v4394, 80
        %v4439 = vpop.permute.xlu0 %4438
        %4441 = vrot.lane.b32.xlu0 %v4394, 64
        %v4442 = vpop.permute.xlu0 %4441
        %4444 = vrot.lane.b32.xlu0 %v4394, 48
        %v4445 = vpop.permute.xlu0 %4444
        %4447 = vrot.lane.b32.xlu0 %v4394, 32
        %v4448 = vpop.permute.xlu0 %4447
        %4450 = vrot.lane.b32.xlu0 %v4394, 16
        %v4451 = vpop.permute.xlu0 %4450
        %v4453 = vcombine.low %v4393, %v4414
        %v4455 = vunpack.c.l.s4 1983009808
        %v4456 = vunpack.c.0.s8 %v4455
        %v4457 = vlaneseq
        %v4458 = vshrl.u32 %v4457, 7
        %v4459 = vsub.s32 %v4456, %v4458
        %v4460 = vrot.slane %v4453, %v4459
        %v4461 = vcombine.low %v4411, %v4417
        %v4463 = vunpack.c.l.s4 1983009808
        %v4464 = vunpack.c.0.s8 %v4463
        %v4465 = vlaneseq
        %v4466 = vshrl.u32 %v4465, 7
        %v4467 = vsub.s32 %v4464, %v4466
        %v4468 = vrot.slane %v4461, %v4467
        %v4469 = vcombine.low %v4420, %v4426
        %v4471 = vunpack.c.l.s4 1983009808
        %v4472 = vunpack.c.0.s8 %v4471
        %v4473 = vlaneseq
        %v4474 = vshrl.u32 %v4473, 7
        %v4475 = vsub.s32 %v4472, %v4474
        %v4476 = vrot.slane %v4469, %v4475
        %v4477 = vcombine.low %v4423, %v4429
        %v4479 = vunpack.c.l.s4 1983009808
        %v4480 = vunpack.c.0.s8 %v4479
        %v4481 = vlaneseq
        %v4482 = vshrl.u32 %v4481, 7
        %v4483 = vsub.s32 %v4480, %v4482
        %v4484 = vrot.slane %v4477, %v4483
        %v4485 = vcombine.low %v4460, %v4468
        %v4486 = vcombine.high %v4460, %v4468
        %v4488 = vunpack.c.l.s4 1934713408
        %v4489 = vunpack.c.0.s8 %v4488
        %v4490 = vlaneseq
        %v4491 = vshrl.u32 %v4490, 7
        %v4492 = vsub.s32 %v4489, %v4491
        %v4493 = vrot.slane %v4485, %v4492
        %v4495 = vunpack.c.l.s4 1934713408
        %v4496 = vunpack.c.0.s8 %v4495
        %v4497 = vlaneseq
        %v4498 = vshrl.u32 %v4497, 7
        %v4499 = vsub.s32 %v4496, %v4498
        %v4500 = vrot.slane %v4486, %v4499
        %v4501 = vcombine.low %v4476, %v4484
        %v4502 = vcombine.high %v4476, %v4484
        %v4504 = vunpack.c.l.s4 1934713408
        %v4505 = vunpack.c.0.s8 %v4504
        %v4506 = vlaneseq
        %v4507 = vshrl.u32 %v4506, 7
        %v4508 = vsub.s32 %v4505, %v4507
        %v4509 = vrot.slane %v4501, %v4508
        %v4511 = vunpack.c.l.s4 1934713408
        %v4512 = vunpack.c.0.s8 %v4511
        %v4513 = vlaneseq
        %v4514 = vshrl.u32 %v4513, 7
        %v4515 = vsub.s32 %v4512, %v4514
        %v4516 = vrot.slane %v4502, %v4515
        %v4517 = vcombine.low %v4493, %v4509
        %v4518 = vcombine.high %v4493, %v4509
        %v4519 = vcombine.low %v4500, %v4516
        %v4520 = vcombine.high %v4500, %v4516
        %v4521 = vcombine.low %v4394, %v4436
        %v4523 = vunpack.c.l.s4 1983009808
        %v4524 = vunpack.c.0.s8 %v4523
        %v4525 = vlaneseq
        %v4526 = vshrl.u32 %v4525, 7
        %v4527 = vsub.s32 %v4524, %v4526
        %v4528 = vrot.slane %v4521, %v4527
        %v4529 = vcombine.low %v4433, %v4439
        %v4531 = vunpack.c.l.s4 1983009808
        %v4532 = vunpack.c.0.s8 %v4531
        %v4533 = vlaneseq
        %v4534 = vshrl.u32 %v4533, 7
        %v4535 = vsub.s32 %v4532, %v4534
        %v4536 = vrot.slane %v4529, %v4535
        %v4537 = vcombine.low %v4442, %v4448
        %v4539 = vunpack.c.l.s4 1983009808
        %v4540 = vunpack.c.0.s8 %v4539
        %v4541 = vlaneseq
        %v4542 = vshrl.u32 %v4541, 7
        %v4543 = vsub.s32 %v4540, %v4542
        %v4544 = vrot.slane %v4537, %v4543
        %v4545 = vcombine.low %v4445, %v4451
        %v4547 = vunpack.c.l.s4 1983009808
        %v4548 = vunpack.c.0.s8 %v4547
        %v4549 = vlaneseq
        %v4550 = vshrl.u32 %v4549, 7
        %v4551 = vsub.s32 %v4548, %v4550
        %v4552 = vrot.slane %v4545, %v4551
        %v4553 = vcombine.low %v4528, %v4536
        %v4554 = vcombine.high %v4528, %v4536
        %v4556 = vunpack.c.l.s4 1934713408
        %v4557 = vunpack.c.0.s8 %v4556
        %v4558 = vlaneseq
        %v4559 = vshrl.u32 %v4558, 7
        %v4560 = vsub.s32 %v4557, %v4559
        %v4561 = vrot.slane %v4553, %v4560
        %v4563 = vunpack.c.l.s4 1934713408
        %v4564 = vunpack.c.0.s8 %v4563
        %v4565 = vlaneseq
        %v4566 = vshrl.u32 %v4565, 7
        %v4567 = vsub.s32 %v4564, %v4566
        %v4568 = vrot.slane %v4554, %v4567
        %v4569 = vcombine.low %v4544, %v4552
        %v4570 = vcombine.high %v4544, %v4552
        %v4572 = vunpack.c.l.s4 1934713408
        %v4573 = vunpack.c.0.s8 %v4572
        %v4574 = vlaneseq
        %v4575 = vshrl.u32 %v4574, 7
        %v4576 = vsub.s32 %v4573, %v4575
        %v4577 = vrot.slane %v4569, %v4576
        %v4579 = vunpack.c.l.s4 1934713408
        %v4580 = vunpack.c.0.s8 %v4579
        %v4581 = vlaneseq
        %v4582 = vshrl.u32 %v4581, 7
        %v4583 = vsub.s32 %v4580, %v4582
        %v4584 = vrot.slane %v4570, %v4583
        %v4585 = vcombine.low %v4561, %v4577
        %v4586 = vcombine.high %v4561, %v4577
        %v4587 = vcombine.low %v4568, %v4584
        %v4588 = vcombine.high %v4568, %v4584
        %4597 = vrot.lane.b32.xlu0 %v4517, 1
        %v4598 = vpop.permute.xlu0 %4597
        %4599 = vrot.lane.b32.xlu0 %v4585, 1
        %v4600 = vpop.permute.xlu0 %4599
        %4601 = vrot.lane.b32.xlu0 %v4518, 1
        %v4602 = vpop.permute.xlu0 %4601
        %4603 = vrot.lane.b32.xlu0 %v4586, 1
        %v4604 = vpop.permute.xlu0 %4603
        %4605 = vrot.lane.b32.xlu0 %v4519, 1
        %v4606 = vpop.permute.xlu0 %4605
        %4607 = vrot.lane.b32.xlu0 %v4587, 1
        %v4608 = vpop.permute.xlu0 %4607
        %4609 = vrot.lane.b32.xlu0 %v4520, 1
        %v4610 = vpop.permute.xlu0 %4609
        %4611 = vrot.lane.b32.xlu0 %v4588, 1
        %v4612 = vpop.permute.xlu0 %4611
        %vm4621 = vcmask 138248
        %4622 = vst.msk [vmem:[#allocation2 + $0x1] sm:$0xff] %vm4621, %v4598
        %4623 = vst.msk [vmem:[#allocation2 + $0x9] sm:$0xff] %vm4621, %v4600
        %4624 = vst.msk [vmem:[#allocation2 + $0x19] sm:$0xff] %vm4621, %v4602
        %4625 = vst.msk [vmem:[#allocation2 + $0x21] sm:$0xff] %vm4621, %v4604
        %4626 = vst.msk [vmem:[#allocation2 + $0x31] sm:$0xff] %vm4621, %v4606
        %4627 = vst.msk [vmem:[#allocation2 + $0x39] sm:$0xff] %vm4621, %v4608
        %4628 = vst.msk [vmem:[#allocation2 + $0x49] sm:$0xff] %vm4621, %v4610
        %4629 = vst.msk [vmem:[#allocation2 + $0x51] sm:$0xff] %vm4621, %v4612
        %v4630 = vld [vmem:[#allocation2] sm:$0xff]
        %v4631 = vld [vmem:[#allocation2 + $0x8] sm:$0xff]
        %v4632 = vld [vmem:[#allocation2 + $0x10] sm:$0x3]
        %v4633 = vld [vmem:[#allocation2 + $0x18] sm:$0xff]
        %v4634 = vld [vmem:[#allocation2 + $0x20] sm:$0xff]
        %v4635 = vld [vmem:[#allocation2 + $0x28] sm:$0x3]
        %v4636 = vld [vmem:[#allocation2 + $0x30] sm:$0xff]
        %v4637 = vld [vmem:[#allocation2 + $0x38] sm:$0xff]
        %v4638 = vld [vmem:[#allocation2 + $0x40] sm:$0x3]
        %v4639 = vld [vmem:[#allocation2 + $0x48] sm:$0xff]
        %v4640 = vld [vmem:[#allocation2 + $0x50] sm:$0xff]
        %v4641 = vld [vmem:[#allocation2 + $0x58] sm:$0x3]
        %v4642 = vcombine.low %v4630, %v4636
        %v4643 = vcombine.high %v4630, %v4636
        %v4645 = vunpack.c.l.s4 1983009808
        %v4646 = vunpack.c.0.s8 %v4645
        %v4647 = vlaneseq
        %v4648 = vshrl.u32 %v4647, 7
        %v4649 = vsub.s32 %v4646, %v4648
        %v4650 = vrot.slane %v4642, %v4649
        %v4652 = vunpack.c.l.s4 1983009808
        %v4653 = vunpack.c.0.s8 %v4652
        %v4654 = vlaneseq
        %v4655 = vshrl.u32 %v4654, 7
        %v4656 = vsub.s32 %v4653, %v4655
        %v4657 = vrot.slane %v4643, %v4656
        %v4658 = vcombine.low %v4633, %v4639
        %v4659 = vcombine.high %v4633, %v4639
        %v4661 = vunpack.c.l.s4 1983009808
        %v4662 = vunpack.c.0.s8 %v4661
        %v4663 = vlaneseq
        %v4664 = vshrl.u32 %v4663, 7
        %v4665 = vsub.s32 %v4662, %v4664
        %v4666 = vrot.slane %v4658, %v4665
        %v4668 = vunpack.c.l.s4 1983009808
        %v4669 = vunpack.c.0.s8 %v4668
        %v4670 = vlaneseq
        %v4671 = vshrl.u32 %v4670, 7
        %v4672 = vsub.s32 %v4669, %v4671
        %v4673 = vrot.slane %v4659, %v4672
        %v4674 = vcombine.low %v4650, %v4666
        %v4675 = vcombine.high %v4650, %v4666
        %v4677 = vunpack.c.l.s4 1934713408
        %v4678 = vunpack.c.0.s8 %v4677
        %v4679 = vlaneseq
        %v4680 = vshrl.u32 %v4679, 7
        %v4681 = vsub.s32 %v4678, %v4680
        %v4682 = vrot.slane %v4674, %v4681
        %v4684 = vunpack.c.l.s4 1934713408
        %v4685 = vunpack.c.0.s8 %v4684
        %v4686 = vlaneseq
        %v4687 = vshrl.u32 %v4686, 7
        %v4688 = vsub.s32 %v4685, %v4687
        %v4689 = vrot.slane %v4675, %v4688
        %v4690 = vcombine.low %v4657, %v4673
        %v4691 = vcombine.high %v4657, %v4673
        %v4693 = vunpack.c.l.s4 1934713408
        %v4694 = vunpack.c.0.s8 %v4693
        %v4695 = vlaneseq
        %v4696 = vshrl.u32 %v4695, 7
        %v4697 = vsub.s32 %v4694, %v4696
        %v4698 = vrot.slane %v4690, %v4697
        %v4700 = vunpack.c.l.s4 1934713408
        %v4701 = vunpack.c.0.s8 %v4700
        %v4702 = vlaneseq
        %v4703 = vshrl.u32 %v4702, 7
        %v4704 = vsub.s32 %v4701, %v4703
        %v4705 = vrot.slane %v4691, %v4704
        %v4706 = vcombine.high %v4682, 0.0
        %v4707 = vcombine.high %v4689, 0.0
        %v4708 = vcombine.high %v4698, 0.0
        %v4709 = vcombine.high %v4705, 0.0
        %v4710 = vcombine.low %v4631, %v4637
        %v4711 = vcombine.high %v4631, %v4637
        %v4713 = vunpack.c.l.s4 1983009808
        %v4714 = vunpack.c.0.s8 %v4713
        %v4715 = vlaneseq
        %v4716 = vshrl.u32 %v4715, 7
        %v4717 = vsub.s32 %v4714, %v4716
        %v4718 = vrot.slane %v4710, %v4717
        %v4720 = vunpack.c.l.s4 1983009808
        %v4721 = vunpack.c.0.s8 %v4720
        %v4722 = vlaneseq
        %v4723 = vshrl.u32 %v4722, 7
        %v4724 = vsub.s32 %v4721, %v4723
        %v4725 = vrot.slane %v4711, %v4724
        %v4726 = vcombine.low %v4634, %v4640
        %v4727 = vcombine.high %v4634, %v4640
        %v4729 = vunpack.c.l.s4 1983009808
        %v4730 = vunpack.c.0.s8 %v4729
        %v4731 = vlaneseq
        %v4732 = vshrl.u32 %v4731, 7
        %v4733 = vsub.s32 %v4730, %v4732
        %v4734 = vrot.slane %v4726, %v4733
        %v4736 = vunpack.c.l.s4 1983009808
        %v4737 = vunpack.c.0.s8 %v4736
        %v4738 = vlaneseq
        %v4739 = vshrl.u32 %v4738, 7
        %v4740 = vsub.s32 %v4737, %v4739
        %v4741 = vrot.slane %v4727, %v4740
        %v4742 = vcombine.low %v4718, %v4734
        %v4743 = vcombine.high %v4718, %v4734
        %v4745 = vunpack.c.l.s4 1934713408
        %v4746 = vunpack.c.0.s8 %v4745
        %v4747 = vlaneseq
        %v4748 = vshrl.u32 %v4747, 7
        %v4749 = vsub.s32 %v4746, %v4748
        %v4750 = vrot.slane %v4742, %v4749
        %v4752 = vunpack.c.l.s4 1934713408
        %v4753 = vunpack.c.0.s8 %v4752
        %v4754 = vlaneseq
        %v4755 = vshrl.u32 %v4754, 7
        %v4756 = vsub.s32 %v4753, %v4755
        %v4757 = vrot.slane %v4743, %v4756
        %v4758 = vcombine.low %v4725, %v4741
        %v4759 = vcombine.high %v4725, %v4741
        %v4761 = vunpack.c.l.s4 1934713408
        %v4762 = vunpack.c.0.s8 %v4761
        %v4763 = vlaneseq
        %v4764 = vshrl.u32 %v4763, 7
        %v4765 = vsub.s32 %v4762, %v4764
        %v4766 = vrot.slane %v4758, %v4765
        %v4768 = vunpack.c.l.s4 1934713408
        %v4769 = vunpack.c.0.s8 %v4768
        %v4770 = vlaneseq
        %v4771 = vshrl.u32 %v4770, 7
        %v4772 = vsub.s32 %v4769, %v4771
        %v4773 = vrot.slane %v4759, %v4772
        %v4774 = vcombine.high %v4750, 0.0
        %v4775 = vcombine.high %v4757, 0.0
        %v4776 = vcombine.high %v4766, 0.0
        %v4777 = vcombine.high %v4773, 0.0
        %4779 = vrot.lane.b32.xlu0 %v4706, 16
        %v4780 = vpop.permute.xlu0 %4779
        %4783 = vrot.lane.b32.xlu0 %v4689, 32
        %v4784 = vpop.permute.xlu0 %4783
        %4787 = vrot.lane.b32.xlu0 %v4707, 48
        %v4788 = vpop.permute.xlu0 %4787
        %4791 = vrot.lane.b32.xlu0 %v4698, 64
        %v4792 = vpop.permute.xlu0 %4791
        %4795 = vrot.lane.b32.xlu0 %v4708, 80
        %v4796 = vpop.permute.xlu0 %4795
        %4799 = vrot.lane.b32.xlu0 %v4705, 96
        %v4800 = vpop.permute.xlu0 %4799
        %4803 = vrot.lane.b32.xlu0 %v4709, 112
        %v4804 = vpop.permute.xlu0 %4803
        %4807 = vrot.lane.b32.xlu0 %v4774, 16
        %v4808 = vpop.permute.xlu0 %4807
        %4811 = vrot.lane.b32.xlu0 %v4757, 32
        %v4812 = vpop.permute.xlu0 %4811
        %4815 = vrot.lane.b32.xlu0 %v4775, 48
        %v4816 = vpop.permute.xlu0 %4815
        %4819 = vrot.lane.b32.xlu0 %v4766, 64
        %v4820 = vpop.permute.xlu0 %4819
        %4823 = vrot.lane.b32.xlu0 %v4776, 80
        %v4824 = vpop.permute.xlu0 %4823
        %4827 = vrot.lane.b32.xlu0 %v4773, 96
        %v4828 = vpop.permute.xlu0 %4827
        %4831 = vrot.lane.b32.xlu0 %v4777, 112
        %v4832 = vpop.permute.xlu0 %4831
        %v4834 = vsel %vm684, %v4682, %v4780
        %v4835 = vsel %vm686, %v4834, %v4784
        %v4836 = vsel %vm688, %v4835, %v4788
        %v4837 = vsel %vm690, %v4836, %v4792
        %v4838 = vsel %vm692, %v4837, %v4796
        %v4839 = vsel %vm694, %v4838, %v4800
        %v4840 = vsel %vm696, %v4839, %v4804
        %v4841 = vsel %vm684, %v4750, %v4808
        %v4842 = vsel %vm686, %v4841, %v4812
        %v4843 = vsel %vm688, %v4842, %v4816
        %v4844 = vsel %vm690, %v4843, %v4820
        %v4845 = vsel %vm692, %v4844, %v4824
        %v4846 = vsel %vm694, %v4845, %v4828
        %v4847 = vsel %vm696, %v4846, %v4832
        %v4848 = vld [vmem:[%s4] sm:$0xf]
        %v4849 = vpack.c.bf16 %v4848, %v4848
        %v4850 = vpack.c.bf16 %v4840, %v4840
        %v4851 = vpack.c.bf16 %v4847, %v4847
        %4860 = vrot.lane.b32.xlu0 %v4630, 127
        %v4861 = vpop.permute.xlu0 %4860
        %4862 = vrot.lane.b32.xlu0 %v4631, 127
        %v4863 = vpop.permute.xlu0 %4862
        %4864 = vrot.lane.b32.xlu0 %v4633, 127
        %v4865 = vpop.permute.xlu0 %4864
        %4866 = vrot.lane.b32.xlu0 %v4634, 127
        %v4867 = vpop.permute.xlu0 %4866
        %4868 = vrot.lane.b32.xlu0 %v4636, 127
        %v4869 = vpop.permute.xlu0 %4868
        %4870 = vrot.lane.b32.xlu0 %v4637, 127
        %v4871 = vpop.permute.xlu0 %4870
        %4872 = vrot.lane.b32.xlu0 %v4639, 127
        %v4873 = vpop.permute.xlu0 %4872
        %4874 = vrot.lane.b32.xlu0 %v4640, 127
        %v4875 = vpop.permute.xlu0 %4874
        %v4884 = vcombine.low %v4861, %v4869
        %v4885 = vcombine.high %v4861, %v4869
        %v4887 = vunpack.c.l.s4 1983009808
        %v4888 = vunpack.c.0.s8 %v4887
        %v4889 = vlaneseq
        %v4890 = vshrl.u32 %v4889, 7
        %v4891 = vsub.s32 %v4888, %v4890
        %v4892 = vrot.slane %v4884, %v4891
        %v4894 = vunpack.c.l.s4 1983009808
        %v4895 = vunpack.c.0.s8 %v4894
        %v4896 = vlaneseq
        %v4897 = vshrl.u32 %v4896, 7
        %v4898 = vsub.s32 %v4895, %v4897
        %v4899 = vrot.slane %v4885, %v4898
        %v4900 = vcombine.low %v4865, %v4873
        %v4901 = vcombine.high %v4865, %v4873
        %v4903 = vunpack.c.l.s4 1983009808
        %v4904 = vunpack.c.0.s8 %v4903
        %v4905 = vlaneseq
        %v4906 = vshrl.u32 %v4905, 7
        %v4907 = vsub.s32 %v4904, %v4906
        %v4908 = vrot.slane %v4900, %v4907
        %v4910 = vunpack.c.l.s4 1983009808
        %v4911 = vunpack.c.0.s8 %v4910
        %v4912 = vlaneseq
        %v4913 = vshrl.u32 %v4912, 7
        %v4914 = vsub.s32 %v4911, %v4913
        %v4915 = vrot.slane %v4901, %v4914
        %v4916 = vcombine.low %v4892, %v4908
        %v4917 = vcombine.high %v4892, %v4908
        %v4919 = vunpack.c.l.s4 1934713408
        %v4920 = vunpack.c.0.s8 %v4919
        %v4921 = vlaneseq
        %v4922 = vshrl.u32 %v4921, 7
        %v4923 = vsub.s32 %v4920, %v4922
        %v4924 = vrot.slane %v4916, %v4923
        %v4926 = vunpack.c.l.s4 1934713408
        %v4927 = vunpack.c.0.s8 %v4926
        %v4928 = vlaneseq
        %v4929 = vshrl.u32 %v4928, 7
        %v4930 = vsub.s32 %v4927, %v4929
        %v4931 = vrot.slane %v4917, %v4930
        %v4932 = vcombine.low %v4899, %v4915
        %v4933 = vcombine.high %v4899, %v4915
        %v4935 = vunpack.c.l.s4 1934713408
        %v4936 = vunpack.c.0.s8 %v4935
        %v4937 = vlaneseq
        %v4938 = vshrl.u32 %v4937, 7
        %v4939 = vsub.s32 %v4936, %v4938
        %v4940 = vrot.slane %v4932, %v4939
        %v4942 = vunpack.c.l.s4 1934713408
        %v4943 = vunpack.c.0.s8 %v4942
        %v4944 = vlaneseq
        %v4945 = vshrl.u32 %v4944, 7
        %v4946 = vsub.s32 %v4943, %v4945
        %v4947 = vrot.slane %v4933, %v4946
        %v4948 = vcombine.high %v4924, 0.0
        %v4949 = vcombine.high %v4931, 0.0
        %v4950 = vcombine.high %v4940, 0.0
        %v4951 = vcombine.high %v4947, 0.0
        %v4952 = vcombine.low %v4863, %v4871
        %v4953 = vcombine.high %v4863, %v4871
        %v4955 = vunpack.c.l.s4 1983009808
        %v4956 = vunpack.c.0.s8 %v4955
        %v4957 = vlaneseq
        %v4958 = vshrl.u32 %v4957, 7
        %v4959 = vsub.s32 %v4956, %v4958
        %v4960 = vrot.slane %v4952, %v4959
        %v4962 = vunpack.c.l.s4 1983009808
        %v4963 = vunpack.c.0.s8 %v4962
        %v4964 = vlaneseq
        %v4965 = vshrl.u32 %v4964, 7
        %v4966 = vsub.s32 %v4963, %v4965
        %v4967 = vrot.slane %v4953, %v4966
        %v4968 = vcombine.low %v4867, %v4875
        %v4969 = vcombine.high %v4867, %v4875
        %v4971 = vunpack.c.l.s4 1983009808
        %v4972 = vunpack.c.0.s8 %v4971
        %v4973 = vlaneseq
        %v4974 = vshrl.u32 %v4973, 7
        %v4975 = vsub.s32 %v4972, %v4974
        %v4976 = vrot.slane %v4968, %v4975
        %v4978 = vunpack.c.l.s4 1983009808
        %v4979 = vunpack.c.0.s8 %v4978
        %v4980 = vlaneseq
        %v4981 = vshrl.u32 %v4980, 7
        %v4982 = vsub.s32 %v4979, %v4981
        %v4983 = vrot.slane %v4969, %v4982
        %v4984 = vcombine.low %v4960, %v4976
        %v4985 = vcombine.high %v4960, %v4976
        %v4987 = vunpack.c.l.s4 1934713408
        %v4988 = vunpack.c.0.s8 %v4987
        %v4989 = vlaneseq
        %v4990 = vshrl.u32 %v4989, 7
        %v4991 = vsub.s32 %v4988, %v4990
        %v4992 = vrot.slane %v4984, %v4991
        %v4994 = vunpack.c.l.s4 1934713408
        %v4995 = vunpack.c.0.s8 %v4994
        %v4996 = vlaneseq
        %v4997 = vshrl.u32 %v4996, 7
        %v4998 = vsub.s32 %v4995, %v4997
        %v4999 = vrot.slane %v4985, %v4998
        %v5000 = vcombine.low %v4967, %v4983
        %v5001 = vcombine.high %v4967, %v4983
        %v5003 = vunpack.c.l.s4 1934713408
        %v5004 = vunpack.c.0.s8 %v5003
        %v5005 = vlaneseq
        %v5006 = vshrl.u32 %v5005, 7
        %v5007 = vsub.s32 %v5004, %v5006
        %v5008 = vrot.slane %v5000, %v5007
        %v5010 = vunpack.c.l.s4 1934713408
        %v5011 = vunpack.c.0.s8 %v5010
        %v5012 = vlaneseq
        %v5013 = vshrl.u32 %v5012, 7
        %v5014 = vsub.s32 %v5011, %v5013
        %v5015 = vrot.slane %v5001, %v5014
        %v5016 = vcombine.high %v4992, 0.0
        %v5017 = vcombine.high %v4999, 0.0
        %v5018 = vcombine.high %v5008, 0.0
        %v5019 = vcombine.high %v5015, 0.0
        %5021 = vrot.lane.b32.xlu0 %v4948, 16
        %v5022 = vpop.permute.xlu0 %5021
        %5025 = vrot.lane.b32.xlu0 %v4931, 32
        %v5026 = vpop.permute.xlu0 %5025
        %5029 = vrot.lane.b32.xlu0 %v4949, 48
        %v5030 = vpop.permute.xlu0 %5029
        %5033 = vrot.lane.b32.xlu0 %v4940, 64
        %v5034 = vpop.permute.xlu0 %5033
        %5037 = vrot.lane.b32.xlu0 %v4950, 80
        %v5038 = vpop.permute.xlu0 %5037
        %5041 = vrot.lane.b32.xlu0 %v4947, 96
        %v5042 = vpop.permute.xlu0 %5041
        %5045 = vrot.lane.b32.xlu0 %v4951, 112
        %v5046 = vpop.permute.xlu0 %5045
        %5049 = vrot.lane.b32.xlu0 %v5016, 16
        %v5050 = vpop.permute.xlu0 %5049
        %5053 = vrot.lane.b32.xlu0 %v4999, 32
        %v5054 = vpop.permute.xlu0 %5053
        %5057 = vrot.lane.b32.xlu0 %v5017, 48
        %v5058 = vpop.permute.xlu0 %5057
        %5061 = vrot.lane.b32.xlu0 %v5008, 64
        %v5062 = vpop.permute.xlu0 %5061
        %5065 = vrot.lane.b32.xlu0 %v5018, 80
        %v5066 = vpop.permute.xlu0 %5065
        %5069 = vrot.lane.b32.xlu0 %v5015, 96
        %v5070 = vpop.permute.xlu0 %5069
        %5073 = vrot.lane.b32.xlu0 %v5019, 112
        %v5074 = vpop.permute.xlu0 %5073
        %v5076 = vsel %vm684, %v4924, %v5022
        %v5077 = vsel %vm686, %v5076, %v5026
        %v5078 = vsel %vm688, %v5077, %v5030
        %v5079 = vsel %vm690, %v5078, %v5034
        %v5080 = vsel %vm692, %v5079, %v5038
        %v5081 = vsel %vm694, %v5080, %v5042
        %v5082 = vsel %vm696, %v5081, %v5046
        %v5083 = vsel %vm684, %v4992, %v5050
        %v5084 = vsel %vm686, %v5083, %v5054
        %v5085 = vsel %vm688, %v5084, %v5058
        %v5086 = vsel %vm690, %v5085, %v5062
        %v5087 = vsel %vm692, %v5086, %v5066
        %v5088 = vsel %vm694, %v5087, %v5070
        %v5089 = vsel %vm696, %v5088, %v5074
        %s5090 = scalar_lea.vmem %s4, 4
        %v5091 = vld [vmem:[%s5090] sm:$0xf]
        %v5092 = vpack.c.bf16 %v5091, %v5091
        %v5093 = vpack.c.bf16 %v5082, %v5082
        %v5094 = vpack.c.bf16 %v5089, %v5089
        %vm5095 = vcmask 31744
        %v5097 = vsel %vm5095, %v5092, 0
        %vm5099 = vcmask 1041408
        %v5101 = vsel %vm5099, %v5093, 0
        %v5104 = vsel %vm5099, %v5094, 0
        %5106 = vmatprep.subr.bf16.mxu0 0
        %5107 = vmatpush1.bf16.msra.mxu0 0
        %5108 = vmatprep.subr.bf16.mxu0 0
        %5109 = vmatpush1.bf16.msra.mxu0 0
        %5110 = vmatprep.subr.bf16.mxu0 0
        %5111 = vmatpush1.bf16.msra.mxu0 0
        %5112 = vmatprep.subr.bf16.mxu0 0
        %5113 = vmatpush1.bf16.msra.mxu0 0
        %5114 = vmatprep.subr.bf16.mxu0 0
        %5115 = vmatpush1.bf16.msra.mxu0 0
        %5116 = vmatprep.subr.bf16.mxu0 0
        %5117 = vmatpush1.bf16.msra.mxu0 0
        %5118 = vmatprep.subr.bf16.mxu0 0
        %5119 = vmatpush1.bf16.msra.mxu0 0
        %5120 = vmatprep.subr.bf16.mxu0 %v5104
        %5121 = vmatpush1.bf16.msra.mxu0 %v5101
        %5122 = vmatprep.subr.bf16.mxu0 0
        %5123 = vmatpush2.bf16.msra.mxu0 0
        %5124 = vmatprep.subr.bf16.mxu0 0
        %5125 = vmatpush2.bf16.msra.mxu0 0
        %5126 = vmatprep.subr.bf16.mxu0 0
        %5127 = vmatpush2.bf16.msra.mxu0 0
        %5128 = vmatprep.subr.bf16.mxu0 0
        %5129 = vmatpush2.bf16.msra.mxu0 0
        %5130 = vmatprep.subr.bf16.mxu0 0
        %5131 = vmatpush2.bf16.msra.mxu0 0
        %5132 = vmatprep.subr.bf16.mxu0 0
        %5133 = vmatpush2.bf16.msra.mxu0 0
        %5134 = vmatprep.subr.bf16.mxu0 0
        %5135 = vmatpush2.bf16.msra.mxu0 0
        %5136 = vmatprep.subr.bf16.mxu0 0
        %5137 = vmatpush2.bf16.msra.mxu0 0
        %5138 = vmatprep.mubr.bf16.mxu0 0
        %5139 = vmatmul.mubr.bf16.gmra.mxu0 %v5097
        %v5140 = vpop.f32.mrf.mxu0
        %v5141 = vadd.f32 0.0, %v5140
        %v5142 = vpop.f32.mrf.mxu0
        %v5143 = vadd.f32 0.0, %v5142
        %v5144 = vpop.f32.mrf.mxu0
        %v5145 = vpop.f32.mrf.mxu0
        %5146 = vdwg.mxu0
        %v5148 = vsel %vm5095, %v4849, 0
        %v5151 = vsel %vm5099, %v4850, 0
        %v5154 = vsel %vm5099, %v4851, 0
        %5156 = vmatprep.subr.bf16.mxu0 0
        %5157 = vmatpush1.bf16.msra.mxu0 0
        %5158 = vmatprep.subr.bf16.mxu0 0
        %5159 = vmatpush1.bf16.msra.mxu0 0
        %5160 = vmatprep.subr.bf16.mxu0 0
        %5161 = vmatpush1.bf16.msra.mxu0 0
        %5162 = vmatprep.subr.bf16.mxu0 0
        %5163 = vmatpush1.bf16.msra.mxu0 0
        %5164 = vmatprep.subr.bf16.mxu0 0
        %5165 = vmatpush1.bf16.msra.mxu0 0
        %5166 = vmatprep.subr.bf16.mxu0 0
        %5167 = vmatpush1.bf16.msra.mxu0 0
        %5168 = vmatprep.subr.bf16.mxu0 0
        %5169 = vmatpush1.bf16.msra.mxu0 0
        %5170 = vmatprep.subr.bf16.mxu0 %v5154
        %5171 = vmatpush1.bf16.msra.mxu0 %v5151
        %5172 = vmatprep.subr.bf16.mxu0 0
        %5173 = vmatpush2.bf16.msra.mxu0 0
        %5174 = vmatprep.subr.bf16.mxu0 0
        %5175 = vmatpush2.bf16.msra.mxu0 0
        %5176 = vmatprep.subr.bf16.mxu0 0
        %5177 = vmatpush2.bf16.msra.mxu0 0
        %5178 = vmatprep.subr.bf16.mxu0 0
        %5179 = vmatpush2.bf16.msra.mxu0 0
        %5180 = vmatprep.subr.bf16.mxu0 0
        %5181 = vmatpush2.bf16.msra.mxu0 0
        %5182 = vmatprep.subr.bf16.mxu0 0
        %5183 = vmatpush2.bf16.msra.mxu0 0
        %5184 = vmatprep.subr.bf16.mxu0 0
        %5185 = vmatpush2.bf16.msra.mxu0 0
        %5186 = vmatprep.subr.bf16.mxu0 0
        %5187 = vmatpush2.bf16.msra.mxu0 0
        %5188 = vmatprep.mubr.bf16.mxu0 0
        %5189 = vmatmul.mubr.bf16.gmra.mxu0 %v5148
        %v5190 = vpop.f32.mrf.mxu0
        %v5191 = vadd.f32 %v5141, %v5190
        %v5192 = vpop.f32.mrf.mxu0
        %v5193 = vadd.f32 %v5143, %v5192
        %v5194 = vpop.f32.mrf.mxu0
        %v5195 = vpop.f32.mrf.mxu0
        %5196 = vdwg.mxu0
        %5197 = vrot.lane.b32.xlu0 %v4630, 126
        %v5198 = vpop.permute.xlu0 %5197
        %5199 = vrot.lane.b32.xlu0 %v4631, 126
        %v5200 = vpop.permute.xlu0 %5199
        %5201 = vrot.lane.b32.xlu0 %v4633, 126
        %v5202 = vpop.permute.xlu0 %5201
        %5203 = vrot.lane.b32.xlu0 %v4634, 126
        %v5204 = vpop.permute.xlu0 %5203
        %5205 = vrot.lane.b32.xlu0 %v4636, 126
        %v5206 = vpop.permute.xlu0 %5205
        %5207 = vrot.lane.b32.xlu0 %v4637, 126
        %v5208 = vpop.permute.xlu0 %5207
        %5209 = vrot.lane.b32.xlu0 %v4639, 126
        %v5210 = vpop.permute.xlu0 %5209
        %5211 = vrot.lane.b32.xlu0 %v4640, 126
        %v5212 = vpop.permute.xlu0 %5211
        %v5221 = vcombine.low %v5198, %v5206
        %v5222 = vcombine.high %v5198, %v5206
        %v5224 = vunpack.c.l.s4 1983009808
        %v5225 = vunpack.c.0.s8 %v5224
        %v5226 = vlaneseq
        %v5227 = vshrl.u32 %v5226, 7
        %v5228 = vsub.s32 %v5225, %v5227
        %v5229 = vrot.slane %v5221, %v5228
        %v5231 = vunpack.c.l.s4 1983009808
        %v5232 = vunpack.c.0.s8 %v5231
        %v5233 = vlaneseq
        %v5234 = vshrl.u32 %v5233, 7
        %v5235 = vsub.s32 %v5232, %v5234
        %v5236 = vrot.slane %v5222, %v5235
        %v5237 = vcombine.low %v5202, %v5210
        %v5238 = vcombine.high %v5202, %v5210
        %v5240 = vunpack.c.l.s4 1983009808
        %v5241 = vunpack.c.0.s8 %v5240
        %v5242 = vlaneseq
        %v5243 = vshrl.u32 %v5242, 7
        %v5244 = vsub.s32 %v5241, %v5243
        %v5245 = vrot.slane %v5237, %v5244
        %v5247 = vunpack.c.l.s4 1983009808
        %v5248 = vunpack.c.0.s8 %v5247
        %v5249 = vlaneseq
        %v5250 = vshrl.u32 %v5249, 7
        %v5251 = vsub.s32 %v5248, %v5250
        %v5252 = vrot.slane %v5238, %v5251
        %v5253 = vcombine.low %v5229, %v5245
        %v5254 = vcombine.high %v5229, %v5245
        %v5256 = vunpack.c.l.s4 1934713408
        %v5257 = vunpack.c.0.s8 %v5256
        %v5258 = vlaneseq
        %v5259 = vshrl.u32 %v5258, 7
        %v5260 = vsub.s32 %v5257, %v5259
        %v5261 = vrot.slane %v5253, %v5260
        %v5263 = vunpack.c.l.s4 1934713408
        %v5264 = vunpack.c.0.s8 %v5263
        %v5265 = vlaneseq
        %v5266 = vshrl.u32 %v5265, 7
        %v5267 = vsub.s32 %v5264, %v5266
        %v5268 = vrot.slane %v5254, %v5267
        %v5269 = vcombine.low %v5236, %v5252
        %v5270 = vcombine.high %v5236, %v5252
        %v5272 = vunpack.c.l.s4 1934713408
        %v5273 = vunpack.c.0.s8 %v5272
        %v5274 = vlaneseq
        %v5275 = vshrl.u32 %v5274, 7
        %v5276 = vsub.s32 %v5273, %v5275
        %v5277 = vrot.slane %v5269, %v5276
        %v5279 = vunpack.c.l.s4 1934713408
        %v5280 = vunpack.c.0.s8 %v5279
        %v5281 = vlaneseq
        %v5282 = vshrl.u32 %v5281, 7
        %v5283 = vsub.s32 %v5280, %v5282
        %v5284 = vrot.slane %v5270, %v5283
        %v5285 = vcombine.high %v5261, 0.0
        %v5286 = vcombine.high %v5268, 0.0
        %v5287 = vcombine.high %v5277, 0.0
        %v5288 = vcombine.high %v5284, 0.0
        %v5289 = vcombine.low %v5200, %v5208
        %v5290 = vcombine.high %v5200, %v5208
        %v5292 = vunpack.c.l.s4 1983009808
        %v5293 = vunpack.c.0.s8 %v5292
        %v5294 = vlaneseq
        %v5295 = vshrl.u32 %v5294, 7
        %v5296 = vsub.s32 %v5293, %v5295
        %v5297 = vrot.slane %v5289, %v5296
        %v5299 = vunpack.c.l.s4 1983009808
        %v5300 = vunpack.c.0.s8 %v5299
        %v5301 = vlaneseq
        %v5302 = vshrl.u32 %v5301, 7
        %v5303 = vsub.s32 %v5300, %v5302
        %v5304 = vrot.slane %v5290, %v5303
        %v5305 = vcombine.low %v5204, %v5212
        %v5306 = vcombine.high %v5204, %v5212
        %v5308 = vunpack.c.l.s4 1983009808
        %v5309 = vunpack.c.0.s8 %v5308
        %v5310 = vlaneseq
        %v5311 = vshrl.u32 %v5310, 7
        %v5312 = vsub.s32 %v5309, %v5311
        %v5313 = vrot.slane %v5305, %v5312
        %v5315 = vunpack.c.l.s4 1983009808
        %v5316 = vunpack.c.0.s8 %v5315
        %v5317 = vlaneseq
        %v5318 = vshrl.u32 %v5317, 7
        %v5319 = vsub.s32 %v5316, %v5318
        %v5320 = vrot.slane %v5306, %v5319
        %v5321 = vcombine.low %v5297, %v5313
        %v5322 = vcombine.high %v5297, %v5313
        %v5324 = vunpack.c.l.s4 1934713408
        %v5325 = vunpack.c.0.s8 %v5324
        %v5326 = vlaneseq
        %v5327 = vshrl.u32 %v5326, 7
        %v5328 = vsub.s32 %v5325, %v5327
        %v5329 = vrot.slane %v5321, %v5328
        %v5331 = vunpack.c.l.s4 1934713408
        %v5332 = vunpack.c.0.s8 %v5331
        %v5333 = vlaneseq
        %v5334 = vshrl.u32 %v5333, 7
        %v5335 = vsub.s32 %v5332, %v5334
        %v5336 = vrot.slane %v5322, %v5335
        %v5337 = vcombine.low %v5304, %v5320
        %v5338 = vcombine.high %v5304, %v5320
        %v5340 = vunpack.c.l.s4 1934713408
        %v5341 = vunpack.c.0.s8 %v5340
        %v5342 = vlaneseq
        %v5343 = vshrl.u32 %v5342, 7
        %v5344 = vsub.s32 %v5341, %v5343
        %v5345 = vrot.slane %v5337, %v5344
        %v5347 = vunpack.c.l.s4 1934713408
        %v5348 = vunpack.c.0.s8 %v5347
        %v5349 = vlaneseq
        %v5350 = vshrl.u32 %v5349, 7
        %v5351 = vsub.s32 %v5348, %v5350
        %v5352 = vrot.slane %v5338, %v5351
        %v5353 = vcombine.high %v5329, 0.0
        %v5354 = vcombine.high %v5336, 0.0
        %v5355 = vcombine.high %v5345, 0.0
        %v5356 = vcombine.high %v5352, 0.0
        %5358 = vrot.lane.b32.xlu0 %v5285, 16
        %v5359 = vpop.permute.xlu0 %5358
        %5362 = vrot.lane.b32.xlu0 %v5268, 32
        %v5363 = vpop.permute.xlu0 %5362
        %5366 = vrot.lane.b32.xlu0 %v5286, 48
        %v5367 = vpop.permute.xlu0 %5366
        %5370 = vrot.lane.b32.xlu0 %v5277, 64
        %v5371 = vpop.permute.xlu0 %5370
        %5374 = vrot.lane.b32.xlu0 %v5287, 80
        %v5375 = vpop.permute.xlu0 %5374
        %5378 = vrot.lane.b32.xlu0 %v5284, 96
        %v5379 = vpop.permute.xlu0 %5378
        %5382 = vrot.lane.b32.xlu0 %v5288, 112
        %v5383 = vpop.permute.xlu0 %5382
        %5386 = vrot.lane.b32.xlu0 %v5353, 16
        %v5387 = vpop.permute.xlu0 %5386
        %5390 = vrot.lane.b32.xlu0 %v5336, 32
        %v5391 = vpop.permute.xlu0 %5390
        %5394 = vrot.lane.b32.xlu0 %v5354, 48
        %v5395 = vpop.permute.xlu0 %5394
        %5398 = vrot.lane.b32.xlu0 %v5345, 64
        %v5399 = vpop.permute.xlu0 %5398
        %5402 = vrot.lane.b32.xlu0 %v5355, 80
        %v5403 = vpop.permute.xlu0 %5402
        %5406 = vrot.lane.b32.xlu0 %v5352, 96
        %v5407 = vpop.permute.xlu0 %5406
        %5410 = vrot.lane.b32.xlu0 %v5356, 112
        %v5411 = vpop.permute.xlu0 %5410
        %v5413 = vsel %vm684, %v5261, %v5359
        %v5414 = vsel %vm686, %v5413, %v5363
        %v5415 = vsel %vm688, %v5414, %v5367
        %v5416 = vsel %vm690, %v5415, %v5371
        %v5417 = vsel %vm692, %v5416, %v5375
        %v5418 = vsel %vm694, %v5417, %v5379
        %v5419 = vsel %vm696, %v5418, %v5383
        %v5420 = vsel %vm684, %v5329, %v5387
        %v5421 = vsel %vm686, %v5420, %v5391
        %v5422 = vsel %vm688, %v5421, %v5395
        %v5423 = vsel %vm690, %v5422, %v5399
        %v5424 = vsel %vm692, %v5423, %v5403
        %v5425 = vsel %vm694, %v5424, %v5407
        %v5426 = vsel %vm696, %v5425, %v5411
        %s5427 = scalar_lea.vmem %s4, 8
        %v5428 = vld [vmem:[%s5427] sm:$0xf]
        %v5429 = vpack.c.bf16 %v5428, %v5428
        %v5430 = vpack.c.bf16 %v5419, %v5419
        %v5431 = vpack.c.bf16 %v5426, %v5426
        %v5433 = vsel %vm5095, %v5429, 0
        %v5436 = vsel %vm5099, %v5430, 0
        %v5439 = vsel %vm5099, %v5431, 0
        %5441 = vmatprep.subr.bf16.mxu0 0
        %5442 = vmatpush1.bf16.msra.mxu0 0
        %5443 = vmatprep.subr.bf16.mxu0 0
        %5444 = vmatpush1.bf16.msra.mxu0 0
        %5445 = vmatprep.subr.bf16.mxu0 0
        %5446 = vmatpush1.bf16.msra.mxu0 0
        %5447 = vmatprep.subr.bf16.mxu0 0
        %5448 = vmatpush1.bf16.msra.mxu0 0
        %5449 = vmatprep.subr.bf16.mxu0 0
        %5450 = vmatpush1.bf16.msra.mxu0 0
        %5451 = vmatprep.subr.bf16.mxu0 0
        %5452 = vmatpush1.bf16.msra.mxu0 0
        %5453 = vmatprep.subr.bf16.mxu0 0
        %5454 = vmatpush1.bf16.msra.mxu0 0
        %5455 = vmatprep.subr.bf16.mxu0 %v5439
        %5456 = vmatpush1.bf16.msra.mxu0 %v5436
        %5457 = vmatprep.subr.bf16.mxu0 0
        %5458 = vmatpush2.bf16.msra.mxu0 0
        %5459 = vmatprep.subr.bf16.mxu0 0
        %5460 = vmatpush2.bf16.msra.mxu0 0
        %5461 = vmatprep.subr.bf16.mxu0 0
        %5462 = vmatpush2.bf16.msra.mxu0 0
        %5463 = vmatprep.subr.bf16.mxu0 0
        %5464 = vmatpush2.bf16.msra.mxu0 0
        %5465 = vmatprep.subr.bf16.mxu0 0
        %5466 = vmatpush2.bf16.msra.mxu0 0
        %5467 = vmatprep.subr.bf16.mxu0 0
        %5468 = vmatpush2.bf16.msra.mxu0 0
        %5469 = vmatprep.subr.bf16.mxu0 0
        %5470 = vmatpush2.bf16.msra.mxu0 0
        %5471 = vmatprep.subr.bf16.mxu0 0
        %5472 = vmatpush2.bf16.msra.mxu0 0
        %5473 = vmatprep.mubr.bf16.mxu0 0
        %5474 = vmatmul.mubr.bf16.gmra.mxu0 %v5433
        %v5475 = vpop.f32.mrf.mxu0
        %v5476 = vadd.f32 0.0, %v5475
        %v5477 = vpop.f32.mrf.mxu0
        %v5478 = vadd.f32 0.0, %v5477
        %v5479 = vpop.f32.mrf.mxu0
        %v5480 = vpop.f32.mrf.mxu0
        %5481 = vdwg.mxu0
        %v5482 = vadd.f32 %v5191, %v5476
        %v5483 = vadd.f32 %v5193, %v5478
        %v5488 = vrot.slane %v4630, 1
        %v5489 = vrot.slane %v4631, 1
        %v5490 = vsel %vm1677, %v5488, %v5489
        %v5491 = vrot.slane %v4632, 1
        %v5492 = vsel %vm1677, %v5489, %v5491
        %v5493 = vrot.slane %v4633, 1
        %v5494 = vrot.slane %v4634, 1
        %v5495 = vsel %vm1677, %v5493, %v5494
        %v5496 = vrot.slane %v4635, 1
        %v5497 = vsel %vm1677, %v5494, %v5496
        %v5498 = vrot.slane %v4636, 1
        %v5499 = vrot.slane %v4637, 1
        %v5500 = vsel %vm1677, %v5498, %v5499
        %v5501 = vrot.slane %v4638, 1
        %v5502 = vsel %vm1677, %v5499, %v5501
        %v5503 = vrot.slane %v4639, 1
        %v5504 = vrot.slane %v4640, 1
        %v5505 = vsel %vm1677, %v5503, %v5504
        %v5506 = vrot.slane %v4641, 1
        %v5507 = vsel %vm1677, %v5504, %v5506
        %v5516 = vcombine.low %v5490, %v5500
        %v5517 = vcombine.high %v5490, %v5500
        %v5519 = vunpack.c.l.s4 1983009808
        %v5520 = vunpack.c.0.s8 %v5519
        %v5521 = vlaneseq
        %v5522 = vshrl.u32 %v5521, 7
        %v5523 = vsub.s32 %v5520, %v5522
        %v5524 = vrot.slane %v5516, %v5523
        %v5526 = vunpack.c.l.s4 1983009808
        %v5527 = vunpack.c.0.s8 %v5526
        %v5528 = vlaneseq
        %v5529 = vshrl.u32 %v5528, 7
        %v5530 = vsub.s32 %v5527, %v5529
        %v5531 = vrot.slane %v5517, %v5530
        %v5532 = vcombine.low %v5495, %v5505
        %v5533 = vcombine.high %v5495, %v5505
        %v5535 = vunpack.c.l.s4 1983009808
        %v5536 = vunpack.c.0.s8 %v5535
        %v5537 = vlaneseq
        %v5538 = vshrl.u32 %v5537, 7
        %v5539 = vsub.s32 %v5536, %v5538
        %v5540 = vrot.slane %v5532, %v5539
        %v5542 = vunpack.c.l.s4 1983009808
        %v5543 = vunpack.c.0.s8 %v5542
        %v5544 = vlaneseq
        %v5545 = vshrl.u32 %v5544, 7
        %v5546 = vsub.s32 %v5543, %v5545
        %v5547 = vrot.slane %v5533, %v5546
        %v5548 = vcombine.low %v5524, %v5540
        %v5549 = vcombine.high %v5524, %v5540
        %v5551 = vunpack.c.l.s4 1934713408
        %v5552 = vunpack.c.0.s8 %v5551
        %v5553 = vlaneseq
        %v5554 = vshrl.u32 %v5553, 7
        %v5555 = vsub.s32 %v5552, %v5554
        %v5556 = vrot.slane %v5548, %v5555
        %v5558 = vunpack.c.l.s4 1934713408
        %v5559 = vunpack.c.0.s8 %v5558
        %v5560 = vlaneseq
        %v5561 = vshrl.u32 %v5560, 7
        %v5562 = vsub.s32 %v5559, %v5561
        %v5563 = vrot.slane %v5549, %v5562
        %v5564 = vcombine.low %v5531, %v5547
        %v5565 = vcombine.high %v5531, %v5547
        %v5567 = vunpack.c.l.s4 1934713408
        %v5568 = vunpack.c.0.s8 %v5567
        %v5569 = vlaneseq
        %v5570 = vshrl.u32 %v5569, 7
        %v5571 = vsub.s32 %v5568, %v5570
        %v5572 = vrot.slane %v5564, %v5571
        %v5574 = vunpack.c.l.s4 1934713408
        %v5575 = vunpack.c.0.s8 %v5574
        %v5576 = vlaneseq
        %v5577 = vshrl.u32 %v5576, 7
        %v5578 = vsub.s32 %v5575, %v5577
        %v5579 = vrot.slane %v5565, %v5578
        %v5580 = vcombine.high %v5556, 0.0
        %v5581 = vcombine.high %v5563, 0.0
        %v5582 = vcombine.high %v5572, 0.0
        %v5583 = vcombine.high %v5579, 0.0
        %v5584 = vcombine.low %v5492, %v5502
        %v5585 = vcombine.high %v5492, %v5502
        %v5587 = vunpack.c.l.s4 1983009808
        %v5588 = vunpack.c.0.s8 %v5587
        %v5589 = vlaneseq
        %v5590 = vshrl.u32 %v5589, 7
        %v5591 = vsub.s32 %v5588, %v5590
        %v5592 = vrot.slane %v5584, %v5591
        %v5594 = vunpack.c.l.s4 1983009808
        %v5595 = vunpack.c.0.s8 %v5594
        %v5596 = vlaneseq
        %v5597 = vshrl.u32 %v5596, 7
        %v5598 = vsub.s32 %v5595, %v5597
        %v5599 = vrot.slane %v5585, %v5598
        %v5600 = vcombine.low %v5497, %v5507
        %v5601 = vcombine.high %v5497, %v5507
        %v5603 = vunpack.c.l.s4 1983009808
        %v5604 = vunpack.c.0.s8 %v5603
        %v5605 = vlaneseq
        %v5606 = vshrl.u32 %v5605, 7
        %v5607 = vsub.s32 %v5604, %v5606
        %v5608 = vrot.slane %v5600, %v5607
        %v5610 = vunpack.c.l.s4 1983009808
        %v5611 = vunpack.c.0.s8 %v5610
        %v5612 = vlaneseq
        %v5613 = vshrl.u32 %v5612, 7
        %v5614 = vsub.s32 %v5611, %v5613
        %v5615 = vrot.slane %v5601, %v5614
        %v5616 = vcombine.low %v5592, %v5608
        %v5617 = vcombine.high %v5592, %v5608
        %v5619 = vunpack.c.l.s4 1934713408
        %v5620 = vunpack.c.0.s8 %v5619
        %v5621 = vlaneseq
        %v5622 = vshrl.u32 %v5621, 7
        %v5623 = vsub.s32 %v5620, %v5622
        %v5624 = vrot.slane %v5616, %v5623
        %v5626 = vunpack.c.l.s4 1934713408
        %v5627 = vunpack.c.0.s8 %v5626
        %v5628 = vlaneseq
        %v5629 = vshrl.u32 %v5628, 7
        %v5630 = vsub.s32 %v5627, %v5629
        %v5631 = vrot.slane %v5617, %v5630
        %v5632 = vcombine.low %v5599, %v5615
        %v5633 = vcombine.high %v5599, %v5615
        %v5635 = vunpack.c.l.s4 1934713408
        %v5636 = vunpack.c.0.s8 %v5635
        %v5637 = vlaneseq
        %v5638 = vshrl.u32 %v5637, 7
        %v5639 = vsub.s32 %v5636, %v5638
        %v5640 = vrot.slane %v5632, %v5639
        %v5642 = vunpack.c.l.s4 1934713408
        %v5643 = vunpack.c.0.s8 %v5642
        %v5644 = vlaneseq
        %v5645 = vshrl.u32 %v5644, 7
        %v5646 = vsub.s32 %v5643, %v5645
        %v5647 = vrot.slane %v5633, %v5646
        %v5648 = vcombine.high %v5624, 0.0
        %v5649 = vcombine.high %v5631, 0.0
        %v5650 = vcombine.high %v5640, 0.0
        %v5651 = vcombine.high %v5647, 0.0
        %5653 = vrot.lane.b32.xlu0 %v5580, 16
        %v5654 = vpop.permute.xlu0 %5653
        %5657 = vrot.lane.b32.xlu0 %v5563, 32
        %v5658 = vpop.permute.xlu0 %5657
        %5661 = vrot.lane.b32.xlu0 %v5581, 48
        %v5662 = vpop.permute.xlu0 %5661
        %5665 = vrot.lane.b32.xlu0 %v5572, 64
        %v5666 = vpop.permute.xlu0 %5665
        %5669 = vrot.lane.b32.xlu0 %v5582, 80
        %v5670 = vpop.permute.xlu0 %5669
        %5673 = vrot.lane.b32.xlu0 %v5579, 96
        %v5674 = vpop.permute.xlu0 %5673
        %5677 = vrot.lane.b32.xlu0 %v5583, 112
        %v5678 = vpop.permute.xlu0 %5677
        %5681 = vrot.lane.b32.xlu0 %v5648, 16
        %v5682 = vpop.permute.xlu0 %5681
        %5685 = vrot.lane.b32.xlu0 %v5631, 32
        %v5686 = vpop.permute.xlu0 %5685
        %5689 = vrot.lane.b32.xlu0 %v5649, 48
        %v5690 = vpop.permute.xlu0 %5689
        %5693 = vrot.lane.b32.xlu0 %v5640, 64
        %v5694 = vpop.permute.xlu0 %5693
        %5697 = vrot.lane.b32.xlu0 %v5650, 80
        %v5698 = vpop.permute.xlu0 %5697
        %5701 = vrot.lane.b32.xlu0 %v5647, 96
        %v5702 = vpop.permute.xlu0 %5701
        %5705 = vrot.lane.b32.xlu0 %v5651, 112
        %v5706 = vpop.permute.xlu0 %5705
        %v5708 = vsel %vm684, %v5556, %v5654
        %v5709 = vsel %vm686, %v5708, %v5658
        %v5710 = vsel %vm688, %v5709, %v5662
        %v5711 = vsel %vm690, %v5710, %v5666
        %v5712 = vsel %vm692, %v5711, %v5670
        %v5713 = vsel %vm694, %v5712, %v5674
        %v5714 = vsel %vm696, %v5713, %v5678
        %v5715 = vsel %vm684, %v5624, %v5682
        %v5716 = vsel %vm686, %v5715, %v5686
        %v5717 = vsel %vm688, %v5716, %v5690
        %v5718 = vsel %vm690, %v5717, %v5694
        %v5719 = vsel %vm692, %v5718, %v5698
        %v5720 = vsel %vm694, %v5719, %v5702
        %v5721 = vsel %vm696, %v5720, %v5706
        %s5722 = scalar_lea.vmem %s4, 12
        %v5723 = vld [vmem:[%s5722] sm:$0xf]
        %v5724 = vpack.c.bf16 %v5723, %v5723
        %v5725 = vpack.c.bf16 %v5714, %v5714
        %v5726 = vpack.c.bf16 %v5721, %v5721
        %v5728 = vsel %vm5095, %v5724, 0
        %v5731 = vsel %vm5099, %v5725, 0
        %v5734 = vsel %vm5099, %v5726, 0
        %5736 = vmatprep.subr.bf16.mxu0 0
        %5737 = vmatpush1.bf16.msra.mxu0 0
        %5738 = vmatprep.subr.bf16.mxu0 0
        %5739 = vmatpush1.bf16.msra.mxu0 0
        %5740 = vmatprep.subr.bf16.mxu0 0
        %5741 = vmatpush1.bf16.msra.mxu0 0
        %5742 = vmatprep.subr.bf16.mxu0 0
        %5743 = vmatpush1.bf16.msra.mxu0 0
        %5744 = vmatprep.subr.bf16.mxu0 0
        %5745 = vmatpush1.bf16.msra.mxu0 0
        %5746 = vmatprep.subr.bf16.mxu0 0
        %5747 = vmatpush1.bf16.msra.mxu0 0
        %5748 = vmatprep.subr.bf16.mxu0 0
        %5749 = vmatpush1.bf16.msra.mxu0 0
        %5750 = vmatprep.subr.bf16.mxu0 %v5734
        %5751 = vmatpush1.bf16.msra.mxu0 %v5731
        %5752 = vmatprep.subr.bf16.mxu0 0
        %5753 = vmatpush2.bf16.msra.mxu0 0
        %5754 = vmatprep.subr.bf16.mxu0 0
        %5755 = vmatpush2.bf16.msra.mxu0 0
        %5756 = vmatprep.subr.bf16.mxu0 0
        %5757 = vmatpush2.bf16.msra.mxu0 0
        %5758 = vmatprep.subr.bf16.mxu0 0
        %5759 = vmatpush2.bf16.msra.mxu0 0
        %5760 = vmatprep.subr.bf16.mxu0 0
        %5761 = vmatpush2.bf16.msra.mxu0 0
        %5762 = vmatprep.subr.bf16.mxu0 0
        %5763 = vmatpush2.bf16.msra.mxu0 0
        %5764 = vmatprep.subr.bf16.mxu0 0
        %5765 = vmatpush2.bf16.msra.mxu0 0
        %5766 = vmatprep.subr.bf16.mxu0 0
        %5767 = vmatpush2.bf16.msra.mxu0 0
        %5768 = vmatprep.mubr.bf16.mxu0 0
        %5769 = vmatmul.mubr.bf16.gmra.mxu0 %v5728
        %v5770 = vpop.f32.mrf.mxu0
        %v5771 = vadd.f32 0.0, %v5770
        %v5772 = vpop.f32.mrf.mxu0
        %v5773 = vadd.f32 0.0, %v5772
        %v5774 = vpop.f32.mrf.mxu0
        %v5775 = vpop.f32.mrf.mxu0
        %5776 = vdwg.mxu0
        %v5777 = vadd.f32 %v5482, %v5771
        %v5778 = vadd.f32 %v5483, %v5773
        %5779 = vrot.lane.b32.xlu0 %v5490, 127
        %v5780 = vpop.permute.xlu0 %5779
        %5781 = vrot.lane.b32.xlu0 %v5492, 127
        %v5782 = vpop.permute.xlu0 %5781
        %5783 = vrot.lane.b32.xlu0 %v5495, 127
        %v5784 = vpop.permute.xlu0 %5783
        %5785 = vrot.lane.b32.xlu0 %v5497, 127
        %v5786 = vpop.permute.xlu0 %5785
        %5787 = vrot.lane.b32.xlu0 %v5500, 127
        %v5788 = vpop.permute.xlu0 %5787
        %5789 = vrot.lane.b32.xlu0 %v5502, 127
        %v5790 = vpop.permute.xlu0 %5789
        %5791 = vrot.lane.b32.xlu0 %v5505, 127
        %v5792 = vpop.permute.xlu0 %5791
        %5793 = vrot.lane.b32.xlu0 %v5507, 127
        %v5794 = vpop.permute.xlu0 %5793
        %v5803 = vcombine.low %v5780, %v5788
        %v5804 = vcombine.high %v5780, %v5788
        %v5806 = vunpack.c.l.s4 1983009808
        %v5807 = vunpack.c.0.s8 %v5806
        %v5808 = vlaneseq
        %v5809 = vshrl.u32 %v5808, 7
        %v5810 = vsub.s32 %v5807, %v5809
        %v5811 = vrot.slane %v5803, %v5810
        %v5813 = vunpack.c.l.s4 1983009808
        %v5814 = vunpack.c.0.s8 %v5813
        %v5815 = vlaneseq
        %v5816 = vshrl.u32 %v5815, 7
        %v5817 = vsub.s32 %v5814, %v5816
        %v5818 = vrot.slane %v5804, %v5817
        %v5819 = vcombine.low %v5784, %v5792
        %v5820 = vcombine.high %v5784, %v5792
        %v5822 = vunpack.c.l.s4 1983009808
        %v5823 = vunpack.c.0.s8 %v5822
        %v5824 = vlaneseq
        %v5825 = vshrl.u32 %v5824, 7
        %v5826 = vsub.s32 %v5823, %v5825
        %v5827 = vrot.slane %v5819, %v5826
        %v5829 = vunpack.c.l.s4 1983009808
        %v5830 = vunpack.c.0.s8 %v5829
        %v5831 = vlaneseq
        %v5832 = vshrl.u32 %v5831, 7
        %v5833 = vsub.s32 %v5830, %v5832
        %v5834 = vrot.slane %v5820, %v5833
        %v5835 = vcombine.low %v5811, %v5827
        %v5836 = vcombine.high %v5811, %v5827
        %v5838 = vunpack.c.l.s4 1934713408
        %v5839 = vunpack.c.0.s8 %v5838
        %v5840 = vlaneseq
        %v5841 = vshrl.u32 %v5840, 7
        %v5842 = vsub.s32 %v5839, %v5841
        %v5843 = vrot.slane %v5835, %v5842
        %v5845 = vunpack.c.l.s4 1934713408
        %v5846 = vunpack.c.0.s8 %v5845
        %v5847 = vlaneseq
        %v5848 = vshrl.u32 %v5847, 7
        %v5849 = vsub.s32 %v5846, %v5848
        %v5850 = vrot.slane %v5836, %v5849
        %v5851 = vcombine.low %v5818, %v5834
        %v5852 = vcombine.high %v5818, %v5834
        %v5854 = vunpack.c.l.s4 1934713408
        %v5855 = vunpack.c.0.s8 %v5854
        %v5856 = vlaneseq
        %v5857 = vshrl.u32 %v5856, 7
        %v5858 = vsub.s32 %v5855, %v5857
        %v5859 = vrot.slane %v5851, %v5858
        %v5861 = vunpack.c.l.s4 1934713408
        %v5862 = vunpack.c.0.s8 %v5861
        %v5863 = vlaneseq
        %v5864 = vshrl.u32 %v5863, 7
        %v5865 = vsub.s32 %v5862, %v5864
        %v5866 = vrot.slane %v5852, %v5865
        %v5867 = vcombine.high %v5843, 0.0
        %v5868 = vcombine.high %v5850, 0.0
        %v5869 = vcombine.high %v5859, 0.0
        %v5870 = vcombine.high %v5866, 0.0
        %v5871 = vcombine.low %v5782, %v5790
        %v5872 = vcombine.high %v5782, %v5790
        %v5874 = vunpack.c.l.s4 1983009808
        %v5875 = vunpack.c.0.s8 %v5874
        %v5876 = vlaneseq
        %v5877 = vshrl.u32 %v5876, 7
        %v5878 = vsub.s32 %v5875, %v5877
        %v5879 = vrot.slane %v5871, %v5878
        %v5881 = vunpack.c.l.s4 1983009808
        %v5882 = vunpack.c.0.s8 %v5881
        %v5883 = vlaneseq
        %v5884 = vshrl.u32 %v5883, 7
        %v5885 = vsub.s32 %v5882, %v5884
        %v5886 = vrot.slane %v5872, %v5885
        %v5887 = vcombine.low %v5786, %v5794
        %v5888 = vcombine.high %v5786, %v5794
        %v5890 = vunpack.c.l.s4 1983009808
        %v5891 = vunpack.c.0.s8 %v5890
        %v5892 = vlaneseq
        %v5893 = vshrl.u32 %v5892, 7
        %v5894 = vsub.s32 %v5891, %v5893
        %v5895 = vrot.slane %v5887, %v5894
        %v5897 = vunpack.c.l.s4 1983009808
        %v5898 = vunpack.c.0.s8 %v5897
        %v5899 = vlaneseq
        %v5900 = vshrl.u32 %v5899, 7
        %v5901 = vsub.s32 %v5898, %v5900
        %v5902 = vrot.slane %v5888, %v5901
        %v5903 = vcombine.low %v5879, %v5895
        %v5904 = vcombine.high %v5879, %v5895
        %v5906 = vunpack.c.l.s4 1934713408
        %v5907 = vunpack.c.0.s8 %v5906
        %v5908 = vlaneseq
        %v5909 = vshrl.u32 %v5908, 7
        %v5910 = vsub.s32 %v5907, %v5909
        %v5911 = vrot.slane %v5903, %v5910
        %v5913 = vunpack.c.l.s4 1934713408
        %v5914 = vunpack.c.0.s8 %v5913
        %v5915 = vlaneseq
        %v5916 = vshrl.u32 %v5915, 7
        %v5917 = vsub.s32 %v5914, %v5916
        %v5918 = vrot.slane %v5904, %v5917
        %v5919 = vcombine.low %v5886, %v5902
        %v5920 = vcombine.high %v5886, %v5902
        %v5922 = vunpack.c.l.s4 1934713408
        %v5923 = vunpack.c.0.s8 %v5922
        %v5924 = vlaneseq
        %v5925 = vshrl.u32 %v5924, 7
        %v5926 = vsub.s32 %v5923, %v5925
        %v5927 = vrot.slane %v5919, %v5926
        %v5929 = vunpack.c.l.s4 1934713408
        %v5930 = vunpack.c.0.s8 %v5929
        %v5931 = vlaneseq
        %v5932 = vshrl.u32 %v5931, 7
        %v5933 = vsub.s32 %v5930, %v5932
        %v5934 = vrot.slane %v5920, %v5933
        %v5935 = vcombine.high %v5911, 0.0
        %v5936 = vcombine.high %v5918, 0.0
        %v5937 = vcombine.high %v5927, 0.0
        %v5938 = vcombine.high %v5934, 0.0
        %5940 = vrot.lane.b32.xlu0 %v5867, 16
        %v5941 = vpop.permute.xlu0 %5940
        %5944 = vrot.lane.b32.xlu0 %v5850, 32
        %v5945 = vpop.permute.xlu0 %5944
        %5948 = vrot.lane.b32.xlu0 %v5868, 48
        %v5949 = vpop.permute.xlu0 %5948
        %5952 = vrot.lane.b32.xlu0 %v5859, 64
        %v5953 = vpop.permute.xlu0 %5952
        %5956 = vrot.lane.b32.xlu0 %v5869, 80
        %v5957 = vpop.permute.xlu0 %5956
        %5960 = vrot.lane.b32.xlu0 %v5866, 96
        %v5961 = vpop.permute.xlu0 %5960
        %5964 = vrot.lane.b32.xlu0 %v5870, 112
        %v5965 = vpop.permute.xlu0 %5964
        %5968 = vrot.lane.b32.xlu0 %v5935, 16
        %v5969 = vpop.permute.xlu0 %5968
        %5972 = vrot.lane.b32.xlu0 %v5918, 32
        %v5973 = vpop.permute.xlu0 %5972
        %5976 = vrot.lane.b32.xlu0 %v5936, 48
        %v5977 = vpop.permute.xlu0 %5976
        %5980 = vrot.lane.b32.xlu0 %v5927, 64
        %v5981 = vpop.permute.xlu0 %5980
        %5984 = vrot.lane.b32.xlu0 %v5937, 80
        %v5985 = vpop.permute.xlu0 %5984
        %5988 = vrot.lane.b32.xlu0 %v5934, 96
        %v5989 = vpop.permute.xlu0 %5988
        %5992 = vrot.lane.b32.xlu0 %v5938, 112
        %v5993 = vpop.permute.xlu0 %5992
        %v5995 = vsel %vm684, %v5843, %v5941
        %v5996 = vsel %vm686, %v5995, %v5945
        %v5997 = vsel %vm688, %v5996, %v5949
        %v5998 = vsel %vm690, %v5997, %v5953
        %v5999 = vsel %vm692, %v5998, %v5957
        %v6000 = vsel %vm694, %v5999, %v5961
        %v6001 = vsel %vm696, %v6000, %v5965
        %v6002 = vsel %vm684, %v5911, %v5969
        %v6003 = vsel %vm686, %v6002, %v5973
        %v6004 = vsel %vm688, %v6003, %v5977
        %v6005 = vsel %vm690, %v6004, %v5981
        %v6006 = vsel %vm692, %v6005, %v5985
        %v6007 = vsel %vm694, %v6006, %v5989
        %v6008 = vsel %vm696, %v6007, %v5993
        %s6009 = scalar_lea.vmem %s4, 16
        %v6010 = vld [vmem:[%s6009] sm:$0xf]
        %v6011 = vpack.c.bf16 %v6010, %v6010
        %v6012 = vpack.c.bf16 %v6001, %v6001
        %v6013 = vpack.c.bf16 %v6008, %v6008
        %v6015 = vsel %vm5095, %v6011, 0
        %v6018 = vsel %vm5099, %v6012, 0
        %v6021 = vsel %vm5099, %v6013, 0
        %6023 = vmatprep.subr.bf16.mxu0 0
        %6024 = vmatpush1.bf16.msra.mxu0 0
        %6025 = vmatprep.subr.bf16.mxu0 0
        %6026 = vmatpush1.bf16.msra.mxu0 0
        %6027 = vmatprep.subr.bf16.mxu0 0
        %6028 = vmatpush1.bf16.msra.mxu0 0
        %6029 = vmatprep.subr.bf16.mxu0 0
        %6030 = vmatpush1.bf16.msra.mxu0 0
        %6031 = vmatprep.subr.bf16.mxu0 0
        %6032 = vmatpush1.bf16.msra.mxu0 0
        %6033 = vmatprep.subr.bf16.mxu0 0
        %6034 = vmatpush1.bf16.msra.mxu0 0
        %6035 = vmatprep.subr.bf16.mxu0 0
        %6036 = vmatpush1.bf16.msra.mxu0 0
        %6037 = vmatprep.subr.bf16.mxu0 %v6021
        %6038 = vmatpush1.bf16.msra.mxu0 %v6018
        %6039 = vmatprep.subr.bf16.mxu0 0
        %6040 = vmatpush2.bf16.msra.mxu0 0
        %6041 = vmatprep.subr.bf16.mxu0 0
        %6042 = vmatpush2.bf16.msra.mxu0 0
        %6043 = vmatprep.subr.bf16.mxu0 0
        %6044 = vmatpush2.bf16.msra.mxu0 0
        %6045 = vmatprep.subr.bf16.mxu0 0
        %6046 = vmatpush2.bf16.msra.mxu0 0
        %6047 = vmatprep.subr.bf16.mxu0 0
        %6048 = vmatpush2.bf16.msra.mxu0 0
        %6049 = vmatprep.subr.bf16.mxu0 0
        %6050 = vmatpush2.bf16.msra.mxu0 0
        %6051 = vmatprep.subr.bf16.mxu0 0
        %6052 = vmatpush2.bf16.msra.mxu0 0
        %6053 = vmatprep.subr.bf16.mxu0 0
        %6054 = vmatpush2.bf16.msra.mxu0 0
        %6055 = vmatprep.mubr.bf16.mxu0 0
        %6056 = vmatmul.mubr.bf16.gmra.mxu0 %v6015
        %v6057 = vpop.f32.mrf.mxu0
        %v6058 = vadd.f32 0.0, %v6057
        %v6059 = vpop.f32.mrf.mxu0
        %v6060 = vadd.f32 0.0, %v6059
        %v6061 = vpop.f32.mrf.mxu0
        %v6062 = vpop.f32.mrf.mxu0
        %6063 = vdwg.mxu0
        %v6064 = vadd.f32 %v5777, %v6058
        %v6065 = vadd.f32 %v5778, %v6060
        %6066 = vrot.lane.b32.xlu0 %v5490, 126
        %v6067 = vpop.permute.xlu0 %6066
        %6068 = vrot.lane.b32.xlu0 %v5492, 126
        %v6069 = vpop.permute.xlu0 %6068
        %6070 = vrot.lane.b32.xlu0 %v5495, 126
        %v6071 = vpop.permute.xlu0 %6070
        %6072 = vrot.lane.b32.xlu0 %v5497, 126
        %v6073 = vpop.permute.xlu0 %6072
        %6074 = vrot.lane.b32.xlu0 %v5500, 126
        %v6075 = vpop.permute.xlu0 %6074
        %6076 = vrot.lane.b32.xlu0 %v5502, 126
        %v6077 = vpop.permute.xlu0 %6076
        %6078 = vrot.lane.b32.xlu0 %v5505, 126
        %v6079 = vpop.permute.xlu0 %6078
        %6080 = vrot.lane.b32.xlu0 %v5507, 126
        %v6081 = vpop.permute.xlu0 %6080
        %v6090 = vcombine.low %v6067, %v6075
        %v6091 = vcombine.high %v6067, %v6075
        %v6093 = vunpack.c.l.s4 1983009808
        %v6094 = vunpack.c.0.s8 %v6093
        %v6095 = vlaneseq
        %v6096 = vshrl.u32 %v6095, 7
        %v6097 = vsub.s32 %v6094, %v6096
        %v6098 = vrot.slane %v6090, %v6097
        %v6100 = vunpack.c.l.s4 1983009808
        %v6101 = vunpack.c.0.s8 %v6100
        %v6102 = vlaneseq
        %v6103 = vshrl.u32 %v6102, 7
        %v6104 = vsub.s32 %v6101, %v6103
        %v6105 = vrot.slane %v6091, %v6104
        %v6106 = vcombine.low %v6071, %v6079
        %v6107 = vcombine.high %v6071, %v6079
        %v6109 = vunpack.c.l.s4 1983009808
        %v6110 = vunpack.c.0.s8 %v6109
        %v6111 = vlaneseq
        %v6112 = vshrl.u32 %v6111, 7
        %v6113 = vsub.s32 %v6110, %v6112
        %v6114 = vrot.slane %v6106, %v6113
        %v6116 = vunpack.c.l.s4 1983009808
        %v6117 = vunpack.c.0.s8 %v6116
        %v6118 = vlaneseq
        %v6119 = vshrl.u32 %v6118, 7
        %v6120 = vsub.s32 %v6117, %v6119
        %v6121 = vrot.slane %v6107, %v6120
        %v6122 = vcombine.low %v6098, %v6114
        %v6123 = vcombine.high %v6098, %v6114
        %v6125 = vunpack.c.l.s4 1934713408
        %v6126 = vunpack.c.0.s8 %v6125
        %v6127 = vlaneseq
        %v6128 = vshrl.u32 %v6127, 7
        %v6129 = vsub.s32 %v6126, %v6128
        %v6130 = vrot.slane %v6122, %v6129
        %v6132 = vunpack.c.l.s4 1934713408
        %v6133 = vunpack.c.0.s8 %v6132
        %v6134 = vlaneseq
        %v6135 = vshrl.u32 %v6134, 7
        %v6136 = vsub.s32 %v6133, %v6135
        %v6137 = vrot.slane %v6123, %v6136
        %v6138 = vcombine.low %v6105, %v6121
        %v6139 = vcombine.high %v6105, %v6121
        %v6141 = vunpack.c.l.s4 1934713408
        %v6142 = vunpack.c.0.s8 %v6141
        %v6143 = vlaneseq
        %v6144 = vshrl.u32 %v6143, 7
        %v6145 = vsub.s32 %v6142, %v6144
        %v6146 = vrot.slane %v6138, %v6145
        %v6148 = vunpack.c.l.s4 1934713408
        %v6149 = vunpack.c.0.s8 %v6148
        %v6150 = vlaneseq
        %v6151 = vshrl.u32 %v6150, 7
        %v6152 = vsub.s32 %v6149, %v6151
        %v6153 = vrot.slane %v6139, %v6152
        %v6154 = vcombine.high %v6130, 0.0
        %v6155 = vcombine.high %v6137, 0.0
        %v6156 = vcombine.high %v6146, 0.0
        %v6157 = vcombine.high %v6153, 0.0
        %v6158 = vcombine.low %v6069, %v6077
        %v6159 = vcombine.high %v6069, %v6077
        %v6161 = vunpack.c.l.s4 1983009808
        %v6162 = vunpack.c.0.s8 %v6161
        %v6163 = vlaneseq
        %v6164 = vshrl.u32 %v6163, 7
        %v6165 = vsub.s32 %v6162, %v6164
        %v6166 = vrot.slane %v6158, %v6165
        %v6168 = vunpack.c.l.s4 1983009808
        %v6169 = vunpack.c.0.s8 %v6168
        %v6170 = vlaneseq
        %v6171 = vshrl.u32 %v6170, 7
        %v6172 = vsub.s32 %v6169, %v6171
        %v6173 = vrot.slane %v6159, %v6172
        %v6174 = vcombine.low %v6073, %v6081
        %v6175 = vcombine.high %v6073, %v6081
        %v6177 = vunpack.c.l.s4 1983009808
        %v6178 = vunpack.c.0.s8 %v6177
        %v6179 = vlaneseq
        %v6180 = vshrl.u32 %v6179, 7
        %v6181 = vsub.s32 %v6178, %v6180
        %v6182 = vrot.slane %v6174, %v6181
        %v6184 = vunpack.c.l.s4 1983009808
        %v6185 = vunpack.c.0.s8 %v6184
        %v6186 = vlaneseq
        %v6187 = vshrl.u32 %v6186, 7
        %v6188 = vsub.s32 %v6185, %v6187
        %v6189 = vrot.slane %v6175, %v6188
        %v6190 = vcombine.low %v6166, %v6182
        %v6191 = vcombine.high %v6166, %v6182
        %v6193 = vunpack.c.l.s4 1934713408
        %v6194 = vunpack.c.0.s8 %v6193
        %v6195 = vlaneseq
        %v6196 = vshrl.u32 %v6195, 7
        %v6197 = vsub.s32 %v6194, %v6196
        %v6198 = vrot.slane %v6190, %v6197
        %v6200 = vunpack.c.l.s4 1934713408
        %v6201 = vunpack.c.0.s8 %v6200
        %v6202 = vlaneseq
        %v6203 = vshrl.u32 %v6202, 7
        %v6204 = vsub.s32 %v6201, %v6203
        %v6205 = vrot.slane %v6191, %v6204
        %v6206 = vcombine.low %v6173, %v6189
        %v6207 = vcombine.high %v6173, %v6189
        %v6209 = vunpack.c.l.s4 1934713408
        %v6210 = vunpack.c.0.s8 %v6209
        %v6211 = vlaneseq
        %v6212 = vshrl.u32 %v6211, 7
        %v6213 = vsub.s32 %v6210, %v6212
        %v6214 = vrot.slane %v6206, %v6213
        %v6216 = vunpack.c.l.s4 1934713408
        %v6217 = vunpack.c.0.s8 %v6216
        %v6218 = vlaneseq
        %v6219 = vshrl.u32 %v6218, 7
        %v6220 = vsub.s32 %v6217, %v6219
        %v6221 = vrot.slane %v6207, %v6220
        %v6222 = vcombine.high %v6198, 0.0
        %v6223 = vcombine.high %v6205, 0.0
        %v6224 = vcombine.high %v6214, 0.0
        %v6225 = vcombine.high %v6221, 0.0
        %6227 = vrot.lane.b32.xlu0 %v6154, 16
        %v6228 = vpop.permute.xlu0 %6227
        %6231 = vrot.lane.b32.xlu0 %v6137, 32
        %v6232 = vpop.permute.xlu0 %6231
        %6235 = vrot.lane.b32.xlu0 %v6155, 48
        %v6236 = vpop.permute.xlu0 %6235
        %6239 = vrot.lane.b32.xlu0 %v6146, 64
        %v6240 = vpop.permute.xlu0 %6239
        %6243 = vrot.lane.b32.xlu0 %v6156, 80
        %v6244 = vpop.permute.xlu0 %6243
        %6247 = vrot.lane.b32.xlu0 %v6153, 96
        %v6248 = vpop.permute.xlu0 %6247
        %6251 = vrot.lane.b32.xlu0 %v6157, 112
        %v6252 = vpop.permute.xlu0 %6251
        %6255 = vrot.lane.b32.xlu0 %v6222, 16
        %v6256 = vpop.permute.xlu0 %6255
        %6259 = vrot.lane.b32.xlu0 %v6205, 32
        %v6260 = vpop.permute.xlu0 %6259
        %6263 = vrot.lane.b32.xlu0 %v6223, 48
        %v6264 = vpop.permute.xlu0 %6263
        %6267 = vrot.lane.b32.xlu0 %v6214, 64
        %v6268 = vpop.permute.xlu0 %6267
        %6271 = vrot.lane.b32.xlu0 %v6224, 80
        %v6272 = vpop.permute.xlu0 %6271
        %6275 = vrot.lane.b32.xlu0 %v6221, 96
        %v6276 = vpop.permute.xlu0 %6275
        %6279 = vrot.lane.b32.xlu0 %v6225, 112
        %v6280 = vpop.permute.xlu0 %6279
        %v6282 = vsel %vm684, %v6130, %v6228
        %v6283 = vsel %vm686, %v6282, %v6232
        %v6284 = vsel %vm688, %v6283, %v6236
        %v6285 = vsel %vm690, %v6284, %v6240
        %v6286 = vsel %vm692, %v6285, %v6244
        %v6287 = vsel %vm694, %v6286, %v6248
        %v6288 = vsel %vm696, %v6287, %v6252
        %v6289 = vsel %vm684, %v6198, %v6256
        %v6290 = vsel %vm686, %v6289, %v6260
        %v6291 = vsel %vm688, %v6290, %v6264
        %v6292 = vsel %vm690, %v6291, %v6268
        %v6293 = vsel %vm692, %v6292, %v6272
        %v6294 = vsel %vm694, %v6293, %v6276
        %v6295 = vsel %vm696, %v6294, %v6280
        %s6296 = scalar_lea.vmem %s4, 20
        %v6297 = vld [vmem:[%s6296] sm:$0xf]
        %v6298 = vpack.c.bf16 %v6297, %v6297
        %v6299 = vpack.c.bf16 %v6288, %v6288
        %v6300 = vpack.c.bf16 %v6295, %v6295
        %v6302 = vsel %vm5095, %v6298, 0
        %v6305 = vsel %vm5099, %v6299, 0
        %v6308 = vsel %vm5099, %v6300, 0
        %6310 = vmatprep.subr.bf16.mxu0 0
        %6311 = vmatpush1.bf16.msra.mxu0 0
        %6312 = vmatprep.subr.bf16.mxu0 0
        %6313 = vmatpush1.bf16.msra.mxu0 0
        %6314 = vmatprep.subr.bf16.mxu0 0
        %6315 = vmatpush1.bf16.msra.mxu0 0
        %6316 = vmatprep.subr.bf16.mxu0 0
        %6317 = vmatpush1.bf16.msra.mxu0 0
        %6318 = vmatprep.subr.bf16.mxu0 0
        %6319 = vmatpush1.bf16.msra.mxu0 0
        %6320 = vmatprep.subr.bf16.mxu0 0
        %6321 = vmatpush1.bf16.msra.mxu0 0
        %6322 = vmatprep.subr.bf16.mxu0 0
        %6323 = vmatpush1.bf16.msra.mxu0 0
        %6324 = vmatprep.subr.bf16.mxu0 %v6308
        %6325 = vmatpush1.bf16.msra.mxu0 %v6305
        %6326 = vmatprep.subr.bf16.mxu0 0
        %6327 = vmatpush2.bf16.msra.mxu0 0
        %6328 = vmatprep.subr.bf16.mxu0 0
        %6329 = vmatpush2.bf16.msra.mxu0 0
        %6330 = vmatprep.subr.bf16.mxu0 0
        %6331 = vmatpush2.bf16.msra.mxu0 0
        %6332 = vmatprep.subr.bf16.mxu0 0
        %6333 = vmatpush2.bf16.msra.mxu0 0
        %6334 = vmatprep.subr.bf16.mxu0 0
        %6335 = vmatpush2.bf16.msra.mxu0 0
        %6336 = vmatprep.subr.bf16.mxu0 0
        %6337 = vmatpush2.bf16.msra.mxu0 0
        %6338 = vmatprep.subr.bf16.mxu0 0
        %6339 = vmatpush2.bf16.msra.mxu0 0
        %6340 = vmatprep.subr.bf16.mxu0 0
        %6341 = vmatpush2.bf16.msra.mxu0 0
        %6342 = vmatprep.mubr.bf16.mxu0 0
        %6343 = vmatmul.mubr.bf16.gmra.mxu0 %v6302
        %v6344 = vpop.f32.mrf.mxu0
        %v6345 = vadd.f32 0.0, %v6344
        %v6346 = vpop.f32.mrf.mxu0
        %v6347 = vadd.f32 0.0, %v6346
        %v6348 = vpop.f32.mrf.mxu0
        %v6349 = vpop.f32.mrf.mxu0
        %6350 = vdwg.mxu0
        %v6351 = vadd.f32 %v6064, %v6345
        %v6352 = vadd.f32 %v6065, %v6347
        %v6353 = vrot.slane %v4630, 2
        %v6354 = vrot.slane %v4631, 2
        %v6355 = vsel %vm3027, %v6353, %v6354
        %v6356 = vrot.slane %v4632, 2
        %v6357 = vsel %vm3027, %v6354, %v6356
        %v6358 = vrot.slane %v4633, 2
        %v6359 = vrot.slane %v4634, 2
        %v6360 = vsel %vm3027, %v6358, %v6359
        %v6361 = vrot.slane %v4635, 2
        %v6362 = vsel %vm3027, %v6359, %v6361
        %v6363 = vrot.slane %v4636, 2
        %v6364 = vrot.slane %v4637, 2
        %v6365 = vsel %vm3027, %v6363, %v6364
        %v6366 = vrot.slane %v4638, 2
        %v6367 = vsel %vm3027, %v6364, %v6366
        %v6368 = vrot.slane %v4639, 2
        %v6369 = vrot.slane %v4640, 2
        %v6370 = vsel %vm3027, %v6368, %v6369
        %v6371 = vrot.slane %v4641, 2
        %v6372 = vsel %vm3027, %v6369, %v6371
        %v6381 = vcombine.low %v6355, %v6365
        %v6382 = vcombine.high %v6355, %v6365
        %v6384 = vunpack.c.l.s4 1983009808
        %v6385 = vunpack.c.0.s8 %v6384
        %v6386 = vlaneseq
        %v6387 = vshrl.u32 %v6386, 7
        %v6388 = vsub.s32 %v6385, %v6387
        %v6389 = vrot.slane %v6381, %v6388
        %v6391 = vunpack.c.l.s4 1983009808
        %v6392 = vunpack.c.0.s8 %v6391
        %v6393 = vlaneseq
        %v6394 = vshrl.u32 %v6393, 7
        %v6395 = vsub.s32 %v6392, %v6394
        %v6396 = vrot.slane %v6382, %v6395
        %v6397 = vcombine.low %v6360, %v6370
        %v6398 = vcombine.high %v6360, %v6370
        %v6400 = vunpack.c.l.s4 1983009808
        %v6401 = vunpack.c.0.s8 %v6400
        %v6402 = vlaneseq
        %v6403 = vshrl.u32 %v6402, 7
        %v6404 = vsub.s32 %v6401, %v6403
        %v6405 = vrot.slane %v6397, %v6404
        %v6407 = vunpack.c.l.s4 1983009808
        %v6408 = vunpack.c.0.s8 %v6407
        %v6409 = vlaneseq
        %v6410 = vshrl.u32 %v6409, 7
        %v6411 = vsub.s32 %v6408, %v6410
        %v6412 = vrot.slane %v6398, %v6411
        %v6413 = vcombine.low %v6389, %v6405
        %v6414 = vcombine.high %v6389, %v6405
        %v6416 = vunpack.c.l.s4 1934713408
        %v6417 = vunpack.c.0.s8 %v6416
        %v6418 = vlaneseq
        %v6419 = vshrl.u32 %v6418, 7
        %v6420 = vsub.s32 %v6417, %v6419
        %v6421 = vrot.slane %v6413, %v6420
        %v6423 = vunpack.c.l.s4 1934713408
        %v6424 = vunpack.c.0.s8 %v6423
        %v6425 = vlaneseq
        %v6426 = vshrl.u32 %v6425, 7
        %v6427 = vsub.s32 %v6424, %v6426
        %v6428 = vrot.slane %v6414, %v6427
        %v6429 = vcombine.low %v6396, %v6412
        %v6430 = vcombine.high %v6396, %v6412
        %v6432 = vunpack.c.l.s4 1934713408
        %v6433 = vunpack.c.0.s8 %v6432
        %v6434 = vlaneseq
        %v6435 = vshrl.u32 %v6434, 7
        %v6436 = vsub.s32 %v6433, %v6435
        %v6437 = vrot.slane %v6429, %v6436
        %v6439 = vunpack.c.l.s4 1934713408
        %v6440 = vunpack.c.0.s8 %v6439
        %v6441 = vlaneseq
        %v6442 = vshrl.u32 %v6441, 7
        %v6443 = vsub.s32 %v6440, %v6442
        %v6444 = vrot.slane %v6430, %v6443
        %v6445 = vcombine.high %v6421, 0.0
        %v6446 = vcombine.high %v6428, 0.0
        %v6447 = vcombine.high %v6437, 0.0
        %v6448 = vcombine.high %v6444, 0.0
        %v6449 = vcombine.low %v6357, %v6367
        %v6450 = vcombine.high %v6357, %v6367
        %v6452 = vunpack.c.l.s4 1983009808
        %v6453 = vunpack.c.0.s8 %v6452
        %v6454 = vlaneseq
        %v6455 = vshrl.u32 %v6454, 7
        %v6456 = vsub.s32 %v6453, %v6455
        %v6457 = vrot.slane %v6449, %v6456
        %v6459 = vunpack.c.l.s4 1983009808
        %v6460 = vunpack.c.0.s8 %v6459
        %v6461 = vlaneseq
        %v6462 = vshrl.u32 %v6461, 7
        %v6463 = vsub.s32 %v6460, %v6462
        %v6464 = vrot.slane %v6450, %v6463
        %v6465 = vcombine.low %v6362, %v6372
        %v6466 = vcombine.high %v6362, %v6372
        %v6468 = vunpack.c.l.s4 1983009808
        %v6469 = vunpack.c.0.s8 %v6468
        %v6470 = vlaneseq
        %v6471 = vshrl.u32 %v6470, 7
        %v6472 = vsub.s32 %v6469, %v6471
        %v6473 = vrot.slane %v6465, %v6472
        %v6475 = vunpack.c.l.s4 1983009808
        %v6476 = vunpack.c.0.s8 %v6475
        %v6477 = vlaneseq
        %v6478 = vshrl.u32 %v6477, 7
        %v6479 = vsub.s32 %v6476, %v6478
        %v6480 = vrot.slane %v6466, %v6479
        %v6481 = vcombine.low %v6457, %v6473
        %v6482 = vcombine.high %v6457, %v6473
        %v6484 = vunpack.c.l.s4 1934713408
        %v6485 = vunpack.c.0.s8 %v6484
        %v6486 = vlaneseq
        %v6487 = vshrl.u32 %v6486, 7
        %v6488 = vsub.s32 %v6485, %v6487
        %v6489 = vrot.slane %v6481, %v6488
        %v6491 = vunpack.c.l.s4 1934713408
        %v6492 = vunpack.c.0.s8 %v6491
        %v6493 = vlaneseq
        %v6494 = vshrl.u32 %v6493, 7
        %v6495 = vsub.s32 %v6492, %v6494
        %v6496 = vrot.slane %v6482, %v6495
        %v6497 = vcombine.low %v6464, %v6480
        %v6498 = vcombine.high %v6464, %v6480
        %v6500 = vunpack.c.l.s4 1934713408
        %v6501 = vunpack.c.0.s8 %v6500
        %v6502 = vlaneseq
        %v6503 = vshrl.u32 %v6502, 7
        %v6504 = vsub.s32 %v6501, %v6503
        %v6505 = vrot.slane %v6497, %v6504
        %v6507 = vunpack.c.l.s4 1934713408
        %v6508 = vunpack.c.0.s8 %v6507
        %v6509 = vlaneseq
        %v6510 = vshrl.u32 %v6509, 7
        %v6511 = vsub.s32 %v6508, %v6510
        %v6512 = vrot.slane %v6498, %v6511
        %v6513 = vcombine.high %v6489, 0.0
        %v6514 = vcombine.high %v6496, 0.0
        %v6515 = vcombine.high %v6505, 0.0
        %v6516 = vcombine.high %v6512, 0.0
        %6518 = vrot.lane.b32.xlu0 %v6445, 16
        %v6519 = vpop.permute.xlu0 %6518
        %6522 = vrot.lane.b32.xlu0 %v6428, 32
        %v6523 = vpop.permute.xlu0 %6522
        %6526 = vrot.lane.b32.xlu0 %v6446, 48
        %v6527 = vpop.permute.xlu0 %6526
        %6530 = vrot.lane.b32.xlu0 %v6437, 64
        %v6531 = vpop.permute.xlu0 %6530
        %6534 = vrot.lane.b32.xlu0 %v6447, 80
        %v6535 = vpop.permute.xlu0 %6534
        %6538 = vrot.lane.b32.xlu0 %v6444, 96
        %v6539 = vpop.permute.xlu0 %6538
        %6542 = vrot.lane.b32.xlu0 %v6448, 112
        %v6543 = vpop.permute.xlu0 %6542
        %6546 = vrot.lane.b32.xlu0 %v6513, 16
        %v6547 = vpop.permute.xlu0 %6546
        %6550 = vrot.lane.b32.xlu0 %v6496, 32
        %v6551 = vpop.permute.xlu0 %6550
        %6554 = vrot.lane.b32.xlu0 %v6514, 48
        %v6555 = vpop.permute.xlu0 %6554
        %6558 = vrot.lane.b32.xlu0 %v6505, 64
        %v6559 = vpop.permute.xlu0 %6558
        %6562 = vrot.lane.b32.xlu0 %v6515, 80
        %v6563 = vpop.permute.xlu0 %6562
        %6566 = vrot.lane.b32.xlu0 %v6512, 96
        %v6567 = vpop.permute.xlu0 %6566
        %6570 = vrot.lane.b32.xlu0 %v6516, 112
        %v6571 = vpop.permute.xlu0 %6570
        %v6573 = vsel %vm684, %v6421, %v6519
        %v6574 = vsel %vm686, %v6573, %v6523
        %v6575 = vsel %vm688, %v6574, %v6527
        %v6576 = vsel %vm690, %v6575, %v6531
        %v6577 = vsel %vm692, %v6576, %v6535
        %v6578 = vsel %vm694, %v6577, %v6539
        %v6579 = vsel %vm696, %v6578, %v6543
        %v6580 = vsel %vm684, %v6489, %v6547
        %v6581 = vsel %vm686, %v6580, %v6551
        %v6582 = vsel %vm688, %v6581, %v6555
        %v6583 = vsel %vm690, %v6582, %v6559
        %v6584 = vsel %vm692, %v6583, %v6563
        %v6585 = vsel %vm694, %v6584, %v6567
        %v6586 = vsel %vm696, %v6585, %v6571
        %s6587 = scalar_lea.vmem %s4, 24
        %v6588 = vld [vmem:[%s6587] sm:$0xf]
        %v6589 = vpack.c.bf16 %v6588, %v6588
        %v6590 = vpack.c.bf16 %v6579, %v6579
        %v6591 = vpack.c.bf16 %v6586, %v6586
        %v6593 = vsel %vm5095, %v6589, 0
        %v6596 = vsel %vm5099, %v6590, 0
        %v6599 = vsel %vm5099, %v6591, 0
        %6601 = vmatprep.subr.bf16.mxu0 0
        %6602 = vmatpush1.bf16.msra.mxu0 0
        %6603 = vmatprep.subr.bf16.mxu0 0
        %6604 = vmatpush1.bf16.msra.mxu0 0
        %6605 = vmatprep.subr.bf16.mxu0 0
        %6606 = vmatpush1.bf16.msra.mxu0 0
        %6607 = vmatprep.subr.bf16.mxu0 0
        %6608 = vmatpush1.bf16.msra.mxu0 0
        %6609 = vmatprep.subr.bf16.mxu0 0
        %6610 = vmatpush1.bf16.msra.mxu0 0
        %6611 = vmatprep.subr.bf16.mxu0 0
        %6612 = vmatpush1.bf16.msra.mxu0 0
        %6613 = vmatprep.subr.bf16.mxu0 0
        %6614 = vmatpush1.bf16.msra.mxu0 0
        %6615 = vmatprep.subr.bf16.mxu0 %v6599
        %6616 = vmatpush1.bf16.msra.mxu0 %v6596
        %6617 = vmatprep.subr.bf16.mxu0 0
        %6618 = vmatpush2.bf16.msra.mxu0 0
        %6619 = vmatprep.subr.bf16.mxu0 0
        %6620 = vmatpush2.bf16.msra.mxu0 0
        %6621 = vmatprep.subr.bf16.mxu0 0
        %6622 = vmatpush2.bf16.msra.mxu0 0
        %6623 = vmatprep.subr.bf16.mxu0 0
        %6624 = vmatpush2.bf16.msra.mxu0 0
        %6625 = vmatprep.subr.bf16.mxu0 0
        %6626 = vmatpush2.bf16.msra.mxu0 0
        %6627 = vmatprep.subr.bf16.mxu0 0
        %6628 = vmatpush2.bf16.msra.mxu0 0
        %6629 = vmatprep.subr.bf16.mxu0 0
        %6630 = vmatpush2.bf16.msra.mxu0 0
        %6631 = vmatprep.subr.bf16.mxu0 0
        %6632 = vmatpush2.bf16.msra.mxu0 0
        %6633 = vmatprep.mubr.bf16.mxu0 0
        %6634 = vmatmul.mubr.bf16.gmra.mxu0 %v6593
        %v6635 = vpop.f32.mrf.mxu0
        %v6636 = vadd.f32 0.0, %v6635
        %v6637 = vpop.f32.mrf.mxu0
        %v6638 = vadd.f32 0.0, %v6637
        %v6639 = vpop.f32.mrf.mxu0
        %v6640 = vpop.f32.mrf.mxu0
        %6641 = vdwg.mxu0
        %v6642 = vadd.f32 %v6351, %v6636
        %v6643 = vadd.f32 %v6352, %v6638
        %6644 = vrot.lane.b32.xlu0 %v6355, 127
        %v6645 = vpop.permute.xlu0 %6644
        %6646 = vrot.lane.b32.xlu0 %v6357, 127
        %v6647 = vpop.permute.xlu0 %6646
        %6648 = vrot.lane.b32.xlu0 %v6360, 127
        %v6649 = vpop.permute.xlu0 %6648
        %6650 = vrot.lane.b32.xlu0 %v6362, 127
        %v6651 = vpop.permute.xlu0 %6650
        %6652 = vrot.lane.b32.xlu0 %v6365, 127
        %v6653 = vpop.permute.xlu0 %6652
        %6654 = vrot.lane.b32.xlu0 %v6367, 127
        %v6655 = vpop.permute.xlu0 %6654
        %6656 = vrot.lane.b32.xlu0 %v6370, 127
        %v6657 = vpop.permute.xlu0 %6656
        %6658 = vrot.lane.b32.xlu0 %v6372, 127
        %v6659 = vpop.permute.xlu0 %6658
        %v6668 = vcombine.low %v6645, %v6653
        %v6669 = vcombine.high %v6645, %v6653
        %v6671 = vunpack.c.l.s4 1983009808
        %v6672 = vunpack.c.0.s8 %v6671
        %v6673 = vlaneseq
        %v6674 = vshrl.u32 %v6673, 7
        %v6675 = vsub.s32 %v6672, %v6674
        %v6676 = vrot.slane %v6668, %v6675
        %v6678 = vunpack.c.l.s4 1983009808
        %v6679 = vunpack.c.0.s8 %v6678
        %v6680 = vlaneseq
        %v6681 = vshrl.u32 %v6680, 7
        %v6682 = vsub.s32 %v6679, %v6681
        %v6683 = vrot.slane %v6669, %v6682
        %v6684 = vcombine.low %v6649, %v6657
        %v6685 = vcombine.high %v6649, %v6657
        %v6687 = vunpack.c.l.s4 1983009808
        %v6688 = vunpack.c.0.s8 %v6687
        %v6689 = vlaneseq
        %v6690 = vshrl.u32 %v6689, 7
        %v6691 = vsub.s32 %v6688, %v6690
        %v6692 = vrot.slane %v6684, %v6691
        %v6694 = vunpack.c.l.s4 1983009808
        %v6695 = vunpack.c.0.s8 %v6694
        %v6696 = vlaneseq
        %v6697 = vshrl.u32 %v6696, 7
        %v6698 = vsub.s32 %v6695, %v6697
        %v6699 = vrot.slane %v6685, %v6698
        %v6700 = vcombine.low %v6676, %v6692
        %v6701 = vcombine.high %v6676, %v6692
        %v6703 = vunpack.c.l.s4 1934713408
        %v6704 = vunpack.c.0.s8 %v6703
        %v6705 = vlaneseq
        %v6706 = vshrl.u32 %v6705, 7
        %v6707 = vsub.s32 %v6704, %v6706
        %v6708 = vrot.slane %v6700, %v6707
        %v6710 = vunpack.c.l.s4 1934713408
        %v6711 = vunpack.c.0.s8 %v6710
        %v6712 = vlaneseq
        %v6713 = vshrl.u32 %v6712, 7
        %v6714 = vsub.s32 %v6711, %v6713
        %v6715 = vrot.slane %v6701, %v6714
        %v6716 = vcombine.low %v6683, %v6699
        %v6717 = vcombine.high %v6683, %v6699
        %v6719 = vunpack.c.l.s4 1934713408
        %v6720 = vunpack.c.0.s8 %v6719
        %v6721 = vlaneseq
        %v6722 = vshrl.u32 %v6721, 7
        %v6723 = vsub.s32 %v6720, %v6722
        %v6724 = vrot.slane %v6716, %v6723
        %v6726 = vunpack.c.l.s4 1934713408
        %v6727 = vunpack.c.0.s8 %v6726
        %v6728 = vlaneseq
        %v6729 = vshrl.u32 %v6728, 7
        %v6730 = vsub.s32 %v6727, %v6729
        %v6731 = vrot.slane %v6717, %v6730
        %v6732 = vcombine.high %v6708, 0.0
        %v6733 = vcombine.high %v6715, 0.0
        %v6734 = vcombine.high %v6724, 0.0
        %v6735 = vcombine.high %v6731, 0.0
        %v6736 = vcombine.low %v6647, %v6655
        %v6737 = vcombine.high %v6647, %v6655
        %v6739 = vunpack.c.l.s4 1983009808
        %v6740 = vunpack.c.0.s8 %v6739
        %v6741 = vlaneseq
        %v6742 = vshrl.u32 %v6741, 7
        %v6743 = vsub.s32 %v6740, %v6742
        %v6744 = vrot.slane %v6736, %v6743
        %v6746 = vunpack.c.l.s4 1983009808
        %v6747 = vunpack.c.0.s8 %v6746
        %v6748 = vlaneseq
        %v6749 = vshrl.u32 %v6748, 7
        %v6750 = vsub.s32 %v6747, %v6749
        %v6751 = vrot.slane %v6737, %v6750
        %v6752 = vcombine.low %v6651, %v6659
        %v6753 = vcombine.high %v6651, %v6659
        %v6755 = vunpack.c.l.s4 1983009808
        %v6756 = vunpack.c.0.s8 %v6755
        %v6757 = vlaneseq
        %v6758 = vshrl.u32 %v6757, 7
        %v6759 = vsub.s32 %v6756, %v6758
        %v6760 = vrot.slane %v6752, %v6759
        %v6762 = vunpack.c.l.s4 1983009808
        %v6763 = vunpack.c.0.s8 %v6762
        %v6764 = vlaneseq
        %v6765 = vshrl.u32 %v6764, 7
        %v6766 = vsub.s32 %v6763, %v6765
        %v6767 = vrot.slane %v6753, %v6766
        %v6768 = vcombine.low %v6744, %v6760
        %v6769 = vcombine.high %v6744, %v6760
        %v6771 = vunpack.c.l.s4 1934713408
        %v6772 = vunpack.c.0.s8 %v6771
        %v6773 = vlaneseq
        %v6774 = vshrl.u32 %v6773, 7
        %v6775 = vsub.s32 %v6772, %v6774
        %v6776 = vrot.slane %v6768, %v6775
        %v6778 = vunpack.c.l.s4 1934713408
        %v6779 = vunpack.c.0.s8 %v6778
        %v6780 = vlaneseq
        %v6781 = vshrl.u32 %v6780, 7
        %v6782 = vsub.s32 %v6779, %v6781
        %v6783 = vrot.slane %v6769, %v6782
        %v6784 = vcombine.low %v6751, %v6767
        %v6785 = vcombine.high %v6751, %v6767
        %v6787 = vunpack.c.l.s4 1934713408
        %v6788 = vunpack.c.0.s8 %v6787
        %v6789 = vlaneseq
        %v6790 = vshrl.u32 %v6789, 7
        %v6791 = vsub.s32 %v6788, %v6790
        %v6792 = vrot.slane %v6784, %v6791
        %v6794 = vunpack.c.l.s4 1934713408
        %v6795 = vunpack.c.0.s8 %v6794
        %v6796 = vlaneseq
        %v6797 = vshrl.u32 %v6796, 7
        %v6798 = vsub.s32 %v6795, %v6797
        %v6799 = vrot.slane %v6785, %v6798
        %v6800 = vcombine.high %v6776, 0.0
        %v6801 = vcombine.high %v6783, 0.0
        %v6802 = vcombine.high %v6792, 0.0
        %v6803 = vcombine.high %v6799, 0.0
        %6805 = vrot.lane.b32.xlu0 %v6732, 16
        %v6806 = vpop.permute.xlu0 %6805
        %6809 = vrot.lane.b32.xlu0 %v6715, 32
        %v6810 = vpop.permute.xlu0 %6809
        %6813 = vrot.lane.b32.xlu0 %v6733, 48
        %v6814 = vpop.permute.xlu0 %6813
        %6817 = vrot.lane.b32.xlu0 %v6724, 64
        %v6818 = vpop.permute.xlu0 %6817
        %6821 = vrot.lane.b32.xlu0 %v6734, 80
        %v6822 = vpop.permute.xlu0 %6821
        %6825 = vrot.lane.b32.xlu0 %v6731, 96
        %v6826 = vpop.permute.xlu0 %6825
        %6829 = vrot.lane.b32.xlu0 %v6735, 112
        %v6830 = vpop.permute.xlu0 %6829
        %6833 = vrot.lane.b32.xlu0 %v6800, 16
        %v6834 = vpop.permute.xlu0 %6833
        %6837 = vrot.lane.b32.xlu0 %v6783, 32
        %v6838 = vpop.permute.xlu0 %6837
        %6841 = vrot.lane.b32.xlu0 %v6801, 48
        %v6842 = vpop.permute.xlu0 %6841
        %6845 = vrot.lane.b32.xlu0 %v6792, 64
        %v6846 = vpop.permute.xlu0 %6845
        %6849 = vrot.lane.b32.xlu0 %v6802, 80
        %v6850 = vpop.permute.xlu0 %6849
        %6853 = vrot.lane.b32.xlu0 %v6799, 96
        %v6854 = vpop.permute.xlu0 %6853
        %6857 = vrot.lane.b32.xlu0 %v6803, 112
        %v6858 = vpop.permute.xlu0 %6857
        %v6860 = vsel %vm684, %v6708, %v6806
        %v6861 = vsel %vm686, %v6860, %v6810
        %v6862 = vsel %vm688, %v6861, %v6814
        %v6863 = vsel %vm690, %v6862, %v6818
        %v6864 = vsel %vm692, %v6863, %v6822
        %v6865 = vsel %vm694, %v6864, %v6826
        %v6866 = vsel %vm696, %v6865, %v6830
        %v6867 = vsel %vm684, %v6776, %v6834
        %v6868 = vsel %vm686, %v6867, %v6838
        %v6869 = vsel %vm688, %v6868, %v6842
        %v6870 = vsel %vm690, %v6869, %v6846
        %v6871 = vsel %vm692, %v6870, %v6850
        %v6872 = vsel %vm694, %v6871, %v6854
        %v6873 = vsel %vm696, %v6872, %v6858
        %s6874 = scalar_lea.vmem %s4, 28
        %v6875 = vld [vmem:[%s6874] sm:$0xf]
        %v6876 = vpack.c.bf16 %v6875, %v6875
        %v6877 = vpack.c.bf16 %v6866, %v6866
        %v6878 = vpack.c.bf16 %v6873, %v6873
        %v6880 = vsel %vm5095, %v6876, 0
        %v6883 = vsel %vm5099, %v6877, 0
        %v6886 = vsel %vm5099, %v6878, 0
        %6888 = vmatprep.subr.bf16.mxu0 0
        %6889 = vmatpush1.bf16.msra.mxu0 0
        %6890 = vmatprep.subr.bf16.mxu0 0
        %6891 = vmatpush1.bf16.msra.mxu0 0
        %6892 = vmatprep.subr.bf16.mxu0 0
        %6893 = vmatpush1.bf16.msra.mxu0 0
        %6894 = vmatprep.subr.bf16.mxu0 0
        %6895 = vmatpush1.bf16.msra.mxu0 0
        %6896 = vmatprep.subr.bf16.mxu0 0
        %6897 = vmatpush1.bf16.msra.mxu0 0
        %6898 = vmatprep.subr.bf16.mxu0 0
        %6899 = vmatpush1.bf16.msra.mxu0 0
        %6900 = vmatprep.subr.bf16.mxu0 0
        %6901 = vmatpush1.bf16.msra.mxu0 0
        %6902 = vmatprep.subr.bf16.mxu0 %v6886
        %6903 = vmatpush1.bf16.msra.mxu0 %v6883
        %6904 = vmatprep.subr.bf16.mxu0 0
        %6905 = vmatpush2.bf16.msra.mxu0 0
        %6906 = vmatprep.subr.bf16.mxu0 0
        %6907 = vmatpush2.bf16.msra.mxu0 0
        %6908 = vmatprep.subr.bf16.mxu0 0
        %6909 = vmatpush2.bf16.msra.mxu0 0
        %6910 = vmatprep.subr.bf16.mxu0 0
        %6911 = vmatpush2.bf16.msra.mxu0 0
        %6912 = vmatprep.subr.bf16.mxu0 0
        %6913 = vmatpush2.bf16.msra.mxu0 0
        %6914 = vmatprep.subr.bf16.mxu0 0
        %6915 = vmatpush2.bf16.msra.mxu0 0
        %6916 = vmatprep.subr.bf16.mxu0 0
        %6917 = vmatpush2.bf16.msra.mxu0 0
        %6918 = vmatprep.subr.bf16.mxu0 0
        %6919 = vmatpush2.bf16.msra.mxu0 0
        %6920 = vmatprep.mubr.bf16.mxu0 0
        %6921 = vmatmul.mubr.bf16.gmra.mxu0 %v6880
        %v6922 = vpop.f32.mrf.mxu0
        %v6923 = vadd.f32 0.0, %v6922
        %v6924 = vpop.f32.mrf.mxu0
        %v6925 = vadd.f32 0.0, %v6924
        %v6926 = vpop.f32.mrf.mxu0
        %v6927 = vpop.f32.mrf.mxu0
        %6928 = vdwg.mxu0
        %v6929 = vadd.f32 %v6642, %v6923
        %v6930 = vadd.f32 %v6643, %v6925
        %6931 = vrot.lane.b32.xlu0 %v6355, 126
        %v6932 = vpop.permute.xlu0 %6931
        %6933 = vrot.lane.b32.xlu0 %v6357, 126
        %v6934 = vpop.permute.xlu0 %6933
        %6935 = vrot.lane.b32.xlu0 %v6360, 126
        %v6936 = vpop.permute.xlu0 %6935
        %6937 = vrot.lane.b32.xlu0 %v6362, 126
        %v6938 = vpop.permute.xlu0 %6937
        %6939 = vrot.lane.b32.xlu0 %v6365, 126
        %v6940 = vpop.permute.xlu0 %6939
        %6941 = vrot.lane.b32.xlu0 %v6367, 126
        %v6942 = vpop.permute.xlu0 %6941
        %6943 = vrot.lane.b32.xlu0 %v6370, 126
        %v6944 = vpop.permute.xlu0 %6943
        %6945 = vrot.lane.b32.xlu0 %v6372, 126
        %v6946 = vpop.permute.xlu0 %6945
        %v6955 = vcombine.low %v6932, %v6940
        %v6956 = vcombine.high %v6932, %v6940
        %v6958 = vunpack.c.l.s4 1983009808
        %v6959 = vunpack.c.0.s8 %v6958
        %v6960 = vlaneseq
        %v6961 = vshrl.u32 %v6960, 7
        %v6962 = vsub.s32 %v6959, %v6961
        %v6963 = vrot.slane %v6955, %v6962
        %v6965 = vunpack.c.l.s4 1983009808
        %v6966 = vunpack.c.0.s8 %v6965
        %v6967 = vlaneseq
        %v6968 = vshrl.u32 %v6967, 7
        %v6969 = vsub.s32 %v6966, %v6968
        %v6970 = vrot.slane %v6956, %v6969
        %v6971 = vcombine.low %v6936, %v6944
        %v6972 = vcombine.high %v6936, %v6944
        %v6974 = vunpack.c.l.s4 1983009808
        %v6975 = vunpack.c.0.s8 %v6974
        %v6976 = vlaneseq
        %v6977 = vshrl.u32 %v6976, 7
        %v6978 = vsub.s32 %v6975, %v6977
        %v6979 = vrot.slane %v6971, %v6978
        %v6981 = vunpack.c.l.s4 1983009808
        %v6982 = vunpack.c.0.s8 %v6981
        %v6983 = vlaneseq
        %v6984 = vshrl.u32 %v6983, 7
        %v6985 = vsub.s32 %v6982, %v6984
        %v6986 = vrot.slane %v6972, %v6985
        %v6987 = vcombine.low %v6963, %v6979
        %v6988 = vcombine.high %v6963, %v6979
        %v6990 = vunpack.c.l.s4 1934713408
        %v6991 = vunpack.c.0.s8 %v6990
        %v6992 = vlaneseq
        %v6993 = vshrl.u32 %v6992, 7
        %v6994 = vsub.s32 %v6991, %v6993
        %v6995 = vrot.slane %v6987, %v6994
        %v6997 = vunpack.c.l.s4 1934713408
        %v6998 = vunpack.c.0.s8 %v6997
        %v6999 = vlaneseq
        %v7000 = vshrl.u32 %v6999, 7
        %v7001 = vsub.s32 %v6998, %v7000
        %v7002 = vrot.slane %v6988, %v7001
        %v7003 = vcombine.low %v6970, %v6986
        %v7004 = vcombine.high %v6970, %v6986
        %v7006 = vunpack.c.l.s4 1934713408
        %v7007 = vunpack.c.0.s8 %v7006
        %v7008 = vlaneseq
        %v7009 = vshrl.u32 %v7008, 7
        %v7010 = vsub.s32 %v7007, %v7009
        %v7011 = vrot.slane %v7003, %v7010
        %v7013 = vunpack.c.l.s4 1934713408
        %v7014 = vunpack.c.0.s8 %v7013
        %v7015 = vlaneseq
        %v7016 = vshrl.u32 %v7015, 7
        %v7017 = vsub.s32 %v7014, %v7016
        %v7018 = vrot.slane %v7004, %v7017
        %v7019 = vcombine.high %v6995, 0.0
        %v7020 = vcombine.high %v7002, 0.0
        %v7021 = vcombine.high %v7011, 0.0
        %v7022 = vcombine.high %v7018, 0.0
        %v7023 = vcombine.low %v6934, %v6942
        %v7024 = vcombine.high %v6934, %v6942
        %v7026 = vunpack.c.l.s4 1983009808
        %v7027 = vunpack.c.0.s8 %v7026
        %v7028 = vlaneseq
        %v7029 = vshrl.u32 %v7028, 7
        %v7030 = vsub.s32 %v7027, %v7029
        %v7031 = vrot.slane %v7023, %v7030
        %v7033 = vunpack.c.l.s4 1983009808
        %v7034 = vunpack.c.0.s8 %v7033
        %v7035 = vlaneseq
        %v7036 = vshrl.u32 %v7035, 7
        %v7037 = vsub.s32 %v7034, %v7036
        %v7038 = vrot.slane %v7024, %v7037
        %v7039 = vcombine.low %v6938, %v6946
        %v7040 = vcombine.high %v6938, %v6946
        %v7042 = vunpack.c.l.s4 1983009808
        %v7043 = vunpack.c.0.s8 %v7042
        %v7044 = vlaneseq
        %v7045 = vshrl.u32 %v7044, 7
        %v7046 = vsub.s32 %v7043, %v7045
        %v7047 = vrot.slane %v7039, %v7046
        %v7049 = vunpack.c.l.s4 1983009808
        %v7050 = vunpack.c.0.s8 %v7049
        %v7051 = vlaneseq
        %v7052 = vshrl.u32 %v7051, 7
        %v7053 = vsub.s32 %v7050, %v7052
        %v7054 = vrot.slane %v7040, %v7053
        %v7055 = vcombine.low %v7031, %v7047
        %v7056 = vcombine.high %v7031, %v7047
        %v7058 = vunpack.c.l.s4 1934713408
        %v7059 = vunpack.c.0.s8 %v7058
        %v7060 = vlaneseq
        %v7061 = vshrl.u32 %v7060, 7
        %v7062 = vsub.s32 %v7059, %v7061
        %v7063 = vrot.slane %v7055, %v7062
        %v7065 = vunpack.c.l.s4 1934713408
        %v7066 = vunpack.c.0.s8 %v7065
        %v7067 = vlaneseq
        %v7068 = vshrl.u32 %v7067, 7
        %v7069 = vsub.s32 %v7066, %v7068
        %v7070 = vrot.slane %v7056, %v7069
        %v7071 = vcombine.low %v7038, %v7054
        %v7072 = vcombine.high %v7038, %v7054
        %v7074 = vunpack.c.l.s4 1934713408
        %v7075 = vunpack.c.0.s8 %v7074
        %v7076 = vlaneseq
        %v7077 = vshrl.u32 %v7076, 7
        %v7078 = vsub.s32 %v7075, %v7077
        %v7079 = vrot.slane %v7071, %v7078
        %v7081 = vunpack.c.l.s4 1934713408
        %v7082 = vunpack.c.0.s8 %v7081
        %v7083 = vlaneseq
        %v7084 = vshrl.u32 %v7083, 7
        %v7085 = vsub.s32 %v7082, %v7084
        %v7086 = vrot.slane %v7072, %v7085
        %v7087 = vcombine.high %v7063, 0.0
        %v7088 = vcombine.high %v7070, 0.0
        %v7089 = vcombine.high %v7079, 0.0
        %v7090 = vcombine.high %v7086, 0.0
        %7092 = vrot.lane.b32.xlu0 %v7019, 16
        %v7093 = vpop.permute.xlu0 %7092
        %7096 = vrot.lane.b32.xlu0 %v7002, 32
        %v7097 = vpop.permute.xlu0 %7096
        %7100 = vrot.lane.b32.xlu0 %v7020, 48
        %v7101 = vpop.permute.xlu0 %7100
        %7104 = vrot.lane.b32.xlu0 %v7011, 64
        %v7105 = vpop.permute.xlu0 %7104
        %7108 = vrot.lane.b32.xlu0 %v7021, 80
        %v7109 = vpop.permute.xlu0 %7108
        %7112 = vrot.lane.b32.xlu0 %v7018, 96
        %v7113 = vpop.permute.xlu0 %7112
        %7116 = vrot.lane.b32.xlu0 %v7022, 112
        %v7117 = vpop.permute.xlu0 %7116
        %7120 = vrot.lane.b32.xlu0 %v7087, 16
        %v7121 = vpop.permute.xlu0 %7120
        %7124 = vrot.lane.b32.xlu0 %v7070, 32
        %v7125 = vpop.permute.xlu0 %7124
        %7128 = vrot.lane.b32.xlu0 %v7088, 48
        %v7129 = vpop.permute.xlu0 %7128
        %7132 = vrot.lane.b32.xlu0 %v7079, 64
        %v7133 = vpop.permute.xlu0 %7132
        %7136 = vrot.lane.b32.xlu0 %v7089, 80
        %v7137 = vpop.permute.xlu0 %7136
        %7140 = vrot.lane.b32.xlu0 %v7086, 96
        %v7141 = vpop.permute.xlu0 %7140
        %7144 = vrot.lane.b32.xlu0 %v7090, 112
        %v7145 = vpop.permute.xlu0 %7144
        %v7147 = vsel %vm684, %v6995, %v7093
        %v7148 = vsel %vm686, %v7147, %v7097
        %v7149 = vsel %vm688, %v7148, %v7101
        %v7150 = vsel %vm690, %v7149, %v7105
        %v7151 = vsel %vm692, %v7150, %v7109
        %v7152 = vsel %vm694, %v7151, %v7113
        %v7153 = vsel %vm696, %v7152, %v7117
        %v7154 = vsel %vm684, %v7063, %v7121
        %v7155 = vsel %vm686, %v7154, %v7125
        %v7156 = vsel %vm688, %v7155, %v7129
        %v7157 = vsel %vm690, %v7156, %v7133
        %v7158 = vsel %vm692, %v7157, %v7137
        %v7159 = vsel %vm694, %v7158, %v7141
        %v7160 = vsel %vm696, %v7159, %v7145
        %s7161 = scalar_lea.vmem %s4, 32
        %v7162 = vld [vmem:[%s7161] sm:$0xf]
        %v7163 = vpack.c.bf16 %v7162, %v7162
        %v7164 = vpack.c.bf16 %v7153, %v7153
        %v7165 = vpack.c.bf16 %v7160, %v7160
        %v7167 = vsel %vm5095, %v7163, 0
        %v7170 = vsel %vm5099, %v7164, 0
        %v7173 = vsel %vm5099, %v7165, 0
        %7175 = vmatprep.subr.bf16.mxu0 0
        %7176 = vmatpush1.bf16.msra.mxu0 0
        %7177 = vmatprep.subr.bf16.mxu0 0
        %7178 = vmatpush1.bf16.msra.mxu0 0
        %7179 = vmatprep.subr.bf16.mxu0 0
        %7180 = vmatpush1.bf16.msra.mxu0 0
        %7181 = vmatprep.subr.bf16.mxu0 0
        %7182 = vmatpush1.bf16.msra.mxu0 0
        %7183 = vmatprep.subr.bf16.mxu0 0
        %7184 = vmatpush1.bf16.msra.mxu0 0
        %7185 = vmatprep.subr.bf16.mxu0 0
        %7186 = vmatpush1.bf16.msra.mxu0 0
        %7187 = vmatprep.subr.bf16.mxu0 0
        %7188 = vmatpush1.bf16.msra.mxu0 0
        %7189 = vmatprep.subr.bf16.mxu0 %v7173
        %7190 = vmatpush1.bf16.msra.mxu0 %v7170
        %7191 = vmatprep.subr.bf16.mxu0 0
        %7192 = vmatpush2.bf16.msra.mxu0 0
        %7193 = vmatprep.subr.bf16.mxu0 0
        %7194 = vmatpush2.bf16.msra.mxu0 0
        %7195 = vmatprep.subr.bf16.mxu0 0
        %7196 = vmatpush2.bf16.msra.mxu0 0
        %7197 = vmatprep.subr.bf16.mxu0 0
        %7198 = vmatpush2.bf16.msra.mxu0 0
        %7199 = vmatprep.subr.bf16.mxu0 0
        %7200 = vmatpush2.bf16.msra.mxu0 0
        %7201 = vmatprep.subr.bf16.mxu0 0
        %7202 = vmatpush2.bf16.msra.mxu0 0
        %7203 = vmatprep.subr.bf16.mxu0 0
        %7204 = vmatpush2.bf16.msra.mxu0 0
        %7205 = vmatprep.subr.bf16.mxu0 0
        %7206 = vmatpush2.bf16.msra.mxu0 0
        %7207 = vmatprep.mubr.bf16.mxu0 0
        %7208 = vmatmul.mubr.bf16.gmra.mxu0 %v7167
        %v7209 = vpop.f32.mrf.mxu0
        %v7210 = vadd.f32 0.0, %v7209
        %v7211 = vpop.f32.mrf.mxu0
        %v7212 = vadd.f32 0.0, %v7211
        %v7213 = vpop.f32.mrf.mxu0
        %v7214 = vpop.f32.mrf.mxu0
        %7215 = vdwg.mxu0
        %v7216 = vadd.f32 %v6929, %v7210
        %v7217 = vadd.f32 %v6930, %v7212
        %v7218 = vld [vmem:[%s5] sm:$0xf]
        %7220 = vset.pattern.permute.xlu0 0
        %7221 = vperm.xlu0 %7220, %v7218
        %v7222 = vpop.permute.xlu0 %7221
        %v7224 = vmul.f32 %v7216, %v7222
        %v7225 = vmul.f32 %v7217, %v7222
        %v7226 = vld [vmem:[%s6] sm:$0xf]
        %7228 = vset.pattern.permute.xlu0 0
        %7229 = vperm.xlu0 %7228, %v7226
        %v7230 = vpop.permute.xlu0 %7229
        %v7232 = vadd.f32 %v7224, %v7230
        %v7233 = vadd.f32 %v7225, %v7230
        %v7234 = vld [vmem:[%s7] sm:$0xf]
        %v7235 = vpack.c.bf16 %v7234, %v7234
        %v7237 = vsel %vm1120, %v7235, 0
        %7239 = vmatprep.subr.bf16.mxu0 0
        %7240 = vmatpush1.bf16.msra.mxu0 0
        %7241 = vmatprep.subr.bf16.mxu0 0
        %7242 = vmatpush1.bf16.msra.mxu0 0
        %7243 = vmatprep.subr.bf16.mxu0 0
        %7244 = vmatpush1.bf16.msra.mxu0 0
        %7245 = vmatprep.subr.bf16.mxu0 0
        %7246 = vmatpush1.bf16.msra.mxu0 0
        %7247 = vmatprep.subr.bf16.mxu0 0
        %7248 = vmatpush1.bf16.msra.mxu0 0
        %7249 = vmatprep.subr.bf16.mxu0 0
        %7250 = vmatpush1.bf16.msra.mxu0 0
        %7251 = vmatprep.subr.bf16.mxu0 0
        %7252 = vmatpush1.bf16.msra.mxu0 0
        %7253 = vmatprep.subr.bf16.mxu0 %v2535
        %7254 = vmatpush1.bf16.msra.mxu0 %v2532
        %7255 = vmatprep.subr.bf16.mxu0 0
        %7256 = vmatpush2.bf16.msra.mxu0 0
        %7257 = vmatprep.subr.bf16.mxu0 0
        %7258 = vmatpush2.bf16.msra.mxu0 0
        %7259 = vmatprep.subr.bf16.mxu0 0
        %7260 = vmatpush2.bf16.msra.mxu0 0
        %7261 = vmatprep.subr.bf16.mxu0 0
        %7262 = vmatpush2.bf16.msra.mxu0 0
        %7263 = vmatprep.subr.bf16.mxu0 0
        %7264 = vmatpush2.bf16.msra.mxu0 0
        %7265 = vmatprep.subr.bf16.mxu0 0
        %7266 = vmatpush2.bf16.msra.mxu0 0
        %7267 = vmatprep.subr.bf16.mxu0 0
        %7268 = vmatpush2.bf16.msra.mxu0 0
        %7269 = vmatprep.subr.bf16.mxu0 0
        %7270 = vmatpush2.bf16.msra.mxu0 0
        %7271 = vmatprep.mubr.bf16.mxu0 0
        %7272 = vmatmul.mubr.bf16.gmra.mxu0 %v7237
        %v7273 = vpop.f32.mrf.mxu0
        %v7274 = vadd.f32 0.0, %v7273
        %v7275 = vpop.f32.mrf.mxu0
        %v7276 = vadd.f32 0.0, %v7275
        %v7277 = vpop.f32.mrf.mxu0
        %v7278 = vpop.f32.mrf.mxu0
        %7279 = vdwg.mxu0
        %v7280 = vadd.f32 %v7232, %v7274
        %v7281 = vadd.f32 %v7233, %v7276
        %v7282 = vld [vmem:[%s8] sm:$0xf]
        %7284 = vset.pattern.permute.xlu0 0
        %7285 = vperm.xlu0 %7284, %v7282
        %v7286 = vpop.permute.xlu0 %7285
        %v7288 = vadd.f32 %v7280, %v7286
        %v7289 = vadd.f32 %v7281, %v7286
        %v7290 = vmax.f32 %v7288, 0.0
        %v7291 = vmax.f32 %v7289, 0.0
        %7293 = vrot.lane.b32.xlu0 %v7290, 112
        %v7294 = vpop.permute.xlu0 %7293
        %7296 = vrot.lane.b32.xlu0 %v7290, 96
        %v7297 = vpop.permute.xlu0 %7296
        %7299 = vrot.lane.b32.xlu0 %v7290, 80
        %v7300 = vpop.permute.xlu0 %7299
        %7302 = vrot.lane.b32.xlu0 %v7290, 64
        %v7303 = vpop.permute.xlu0 %7302
        %7305 = vrot.lane.b32.xlu0 %v7290, 48
        %v7306 = vpop.permute.xlu0 %7305
        %7308 = vrot.lane.b32.xlu0 %v7290, 32
        %v7309 = vpop.permute.xlu0 %7308
        %7311 = vrot.lane.b32.xlu0 %v7290, 16
        %v7312 = vpop.permute.xlu0 %7311
        %7315 = vrot.lane.b32.xlu0 %v7291, 112
        %v7316 = vpop.permute.xlu0 %7315
        %7318 = vrot.lane.b32.xlu0 %v7291, 96
        %v7319 = vpop.permute.xlu0 %7318
        %7321 = vrot.lane.b32.xlu0 %v7291, 80
        %v7322 = vpop.permute.xlu0 %7321
        %7324 = vrot.lane.b32.xlu0 %v7291, 64
        %v7325 = vpop.permute.xlu0 %7324
        %7327 = vrot.lane.b32.xlu0 %v7291, 48
        %v7328 = vpop.permute.xlu0 %7327
        %7330 = vrot.lane.b32.xlu0 %v7291, 32
        %v7331 = vpop.permute.xlu0 %7330
        %7333 = vrot.lane.b32.xlu0 %v7291, 16
        %v7334 = vpop.permute.xlu0 %7333
        %v7336 = vcombine.low %v7290, %v7297
        %v7338 = vunpack.c.l.s4 1983009808
        %v7339 = vunpack.c.0.s8 %v7338
        %v7340 = vlaneseq
        %v7341 = vshrl.u32 %v7340, 7
        %v7342 = vsub.s32 %v7339, %v7341
        %v7343 = vrot.slane %v7336, %v7342
        %v7344 = vcombine.low %v7294, %v7300
        %v7346 = vunpack.c.l.s4 1983009808
        %v7347 = vunpack.c.0.s8 %v7346
        %v7348 = vlaneseq
        %v7349 = vshrl.u32 %v7348, 7
        %v7350 = vsub.s32 %v7347, %v7349
        %v7351 = vrot.slane %v7344, %v7350
        %v7352 = vcombine.low %v7303, %v7309
        %v7354 = vunpack.c.l.s4 1983009808
        %v7355 = vunpack.c.0.s8 %v7354
        %v7356 = vlaneseq
        %v7357 = vshrl.u32 %v7356, 7
        %v7358 = vsub.s32 %v7355, %v7357
        %v7359 = vrot.slane %v7352, %v7358
        %v7360 = vcombine.low %v7306, %v7312
        %v7362 = vunpack.c.l.s4 1983009808
        %v7363 = vunpack.c.0.s8 %v7362
        %v7364 = vlaneseq
        %v7365 = vshrl.u32 %v7364, 7
        %v7366 = vsub.s32 %v7363, %v7365
        %v7367 = vrot.slane %v7360, %v7366
        %v7368 = vcombine.low %v7343, %v7351
        %v7369 = vcombine.high %v7343, %v7351
        %v7371 = vunpack.c.l.s4 1934713408
        %v7372 = vunpack.c.0.s8 %v7371
        %v7373 = vlaneseq
        %v7374 = vshrl.u32 %v7373, 7
        %v7375 = vsub.s32 %v7372, %v7374
        %v7376 = vrot.slane %v7368, %v7375
        %v7378 = vunpack.c.l.s4 1934713408
        %v7379 = vunpack.c.0.s8 %v7378
        %v7380 = vlaneseq
        %v7381 = vshrl.u32 %v7380, 7
        %v7382 = vsub.s32 %v7379, %v7381
        %v7383 = vrot.slane %v7369, %v7382
        %v7384 = vcombine.low %v7359, %v7367
        %v7385 = vcombine.high %v7359, %v7367
        %v7387 = vunpack.c.l.s4 1934713408
        %v7388 = vunpack.c.0.s8 %v7387
        %v7389 = vlaneseq
        %v7390 = vshrl.u32 %v7389, 7
        %v7391 = vsub.s32 %v7388, %v7390
        %v7392 = vrot.slane %v7384, %v7391
        %v7394 = vunpack.c.l.s4 1934713408
        %v7395 = vunpack.c.0.s8 %v7394
        %v7396 = vlaneseq
        %v7397 = vshrl.u32 %v7396, 7
        %v7398 = vsub.s32 %v7395, %v7397
        %v7399 = vrot.slane %v7385, %v7398
        %v7400 = vcombine.low %v7376, %v7392
        %v7401 = vcombine.high %v7376, %v7392
        %v7402 = vcombine.low %v7383, %v7399
        %v7403 = vcombine.high %v7383, %v7399
        %v7404 = vcombine.low %v7291, %v7319
        %v7406 = vunpack.c.l.s4 1983009808
        %v7407 = vunpack.c.0.s8 %v7406
        %v7408 = vlaneseq
        %v7409 = vshrl.u32 %v7408, 7
        %v7410 = vsub.s32 %v7407, %v7409
        %v7411 = vrot.slane %v7404, %v7410
        %v7412 = vcombine.low %v7316, %v7322
        %v7414 = vunpack.c.l.s4 1983009808
        %v7415 = vunpack.c.0.s8 %v7414
        %v7416 = vlaneseq
        %v7417 = vshrl.u32 %v7416, 7
        %v7418 = vsub.s32 %v7415, %v7417
        %v7419 = vrot.slane %v7412, %v7418
        %v7420 = vcombine.low %v7325, %v7331
        %v7422 = vunpack.c.l.s4 1983009808
        %v7423 = vunpack.c.0.s8 %v7422
        %v7424 = vlaneseq
        %v7425 = vshrl.u32 %v7424, 7
        %v7426 = vsub.s32 %v7423, %v7425
        %v7427 = vrot.slane %v7420, %v7426
        %v7428 = vcombine.low %v7328, %v7334
        %v7430 = vunpack.c.l.s4 1983009808
        %v7431 = vunpack.c.0.s8 %v7430
        %v7432 = vlaneseq
        %v7433 = vshrl.u32 %v7432, 7
        %v7434 = vsub.s32 %v7431, %v7433
        %v7435 = vrot.slane %v7428, %v7434
        %v7436 = vcombine.low %v7411, %v7419
        %v7437 = vcombine.high %v7411, %v7419
        %v7439 = vunpack.c.l.s4 1934713408
        %v7440 = vunpack.c.0.s8 %v7439
        %v7441 = vlaneseq
        %v7442 = vshrl.u32 %v7441, 7
        %v7443 = vsub.s32 %v7440, %v7442
        %v7444 = vrot.slane %v7436, %v7443
        %v7446 = vunpack.c.l.s4 1934713408
        %v7447 = vunpack.c.0.s8 %v7446
        %v7448 = vlaneseq
        %v7449 = vshrl.u32 %v7448, 7
        %v7450 = vsub.s32 %v7447, %v7449
        %v7451 = vrot.slane %v7437, %v7450
        %v7452 = vcombine.low %v7427, %v7435
        %v7453 = vcombine.high %v7427, %v7435
        %v7455 = vunpack.c.l.s4 1934713408
        %v7456 = vunpack.c.0.s8 %v7455
        %v7457 = vlaneseq
        %v7458 = vshrl.u32 %v7457, 7
        %v7459 = vsub.s32 %v7456, %v7458
        %v7460 = vrot.slane %v7452, %v7459
        %v7462 = vunpack.c.l.s4 1934713408
        %v7463 = vunpack.c.0.s8 %v7462
        %v7464 = vlaneseq
        %v7465 = vshrl.u32 %v7464, 7
        %v7466 = vsub.s32 %v7463, %v7465
        %v7467 = vrot.slane %v7453, %v7466
        %v7468 = vcombine.low %v7444, %v7460
        %v7469 = vcombine.high %v7444, %v7460
        %v7470 = vcombine.low %v7451, %v7467
        %v7471 = vcombine.high %v7451, %v7467
        %7472 = vst.msk [vmem:[%s325] sm:$0xff] %vm684, %v7400
        %7473 = vst.msk [vmem:[%s325 + $0x8] sm:$0xff] %vm684, %v7468
        %7474 = vst.msk [vmem:[%s325 + $0x10] sm:$0xff] %vm684, %v7401
        %7475 = vst.msk [vmem:[%s325 + $0x18] sm:$0xff] %vm684, %v7469
        %7476 = vst.msk [vmem:[%s325 + $0x20] sm:$0xff] %vm684, %v7402
        %7477 = vst.msk [vmem:[%s325 + $0x28] sm:$0xff] %vm684, %v7470
        %7478 = vst.msk [vmem:[%s325 + $0x30] sm:$0xff] %vm684, %v7403
        %7479 = vst.msk [vmem:[%s325 + $0x38] sm:$0xff] %vm684, %v7471
        %s7480 = sand.u32 %s225, 1
        %s7481 = scalar_lea.sflag [#allocation4], %s7480
        %s7482 = sand.u32 %s225, 1
        %s7483 = smul.addr %s7482, 64
        %s7484 = scalar_lea.vmem [#allocation3], %s7483
        // Predicated region
        $region57: #{_lambda_.5} parent=55 // pred_check
          %p7485 = pneg %p235
        $region58: #{_lambda_.5} parent=55 // pred_check_branch
          %7487 = sbr.rel (%p7485) target = $region60
        $region59: #{_lambda_.5} parent=55 // pred_region
          %s7489 = ssub.s32 1024, 1024
          %7490 = vsyncadd %s7481, %s7489
          %s7491 = smul.addr %s23, 8
          %s7492 = smul.addr %s7491, 128
          %s7493 = scalar_lea.hbm %s9, %s7492
          %s7494 = sshll.u32 %s7484, 4
          %s7495 = int_to_ptr.vmem [resolvable:$true] %s7494
          %7500 = dma.vmem_to_hbm [thread:$0]  %s7495, 1024, %s7493, %s7481, 128, 128, 8
        $region60: #{_lambda_.5} parent=55 // pred_fallthru
          _
      $region56: #{_lambda_.5} parent=5 // pred_fallthru
        _
      %p7501 = scmp.le.s32.totalorder 2, %s18
      // Predicated region
      $region61: #{_lambda_.5} parent=5 // pred_check
        %p7502 = pneg %p7501
      $region62: #{_lambda_.5} parent=5 // pred_check_branch
        %7504 = sbr.rel (%p7502) target = $region64
      $region63: #{_lambda_.5} parent=5 // pred_region
        %s7505 = ssub.s32 %s18, 2
        // Predicated region
        $region65: #{_lambda_.5} parent=63 // pred_check
          %p7506 = pneg %p241
        $region66: #{_lambda_.5} parent=63 // pred_check_branch
          %7508 = sbr.rel (%p7506) target = $region68
        $region67: #{_lambda_.5} parent=63 // pred_region
          %s7509 = sand.u32 %s226, 1
          %s7510 = scalar_lea.sflag [#allocation4], %s7509
          %s7511 = sand.u32 %s226, 1
          %s7512 = smul.addr %s7511, 64
          %s7513 = scalar_lea.vmem [#allocation3], %s7512
          %7514 = dma.done %s7510, 1024
        $region68: #{_lambda_.5} parent=63 // pred_fallthru
          _
      $region64: #{_lambda_.5} parent=5 // pred_fallthru
        _
    $region6: #{_lambda_.5} parent=1 // loop_footer
      %s22 = sadd.s32 1, %s18
    $region7: #{_lambda_.5} parent=1 // loop_footer_branch
      %17 = sbr.rel target = $region3
    $region8: #{_lambda_.5} parent=1 // loop_exit
      _
    %7515 = vsyncpa [#allocation4], 1
    %s7516 = scalar_lea.sflag [#allocation4], 1
    %7517 = vsyncpa %s7516, 1

</llo_original>
